<compile_context>
chip_gen: v7x
topology: tpu7x:2x2x1
jax: 0.10.0
libtpu: 0.0.40
codegen_flags: <defaults>
</compile_context>

<pallas_src>
import numpy as np
import jax
import jax.numpy as jnp
from jax.experimental import pallas as pl
from jax.experimental.pallas import tpu as pltpu


def _round_up(x, m):
    return (x + m - 1) // m * m


# ---------------- host-side weight folding / packing ----------------

def _conv_stage_gemm(w, b, hin, k_pad):
    """Fold Conv2d((3,1),(2,1),pad 0) + ReLU + MaxPool2d((2,1)) into one GEMM.

    Output columns hold BOTH pool branches side by side; each branch is padded
    to a multiple of 128 lanes so the in-kernel halves-max is tile aligned.
    Branch `half` / pool row `p` reads input rows 4p+{0,2}+kh."""
    w = np.asarray(w, np.float32)
    b = np.asarray(b, np.float32)
    cout, cin, k = w.shape
    assert hin * cin <= k_pad
    hconv = (hin - k) // 2 + 1
    hpool = (hconv - 2) // 2 + 1
    half_real = hpool * cout
    half_pad = _round_up(half_real, 128)
    big = np.zeros((k_pad, 2 * half_pad), np.float32)
    bias = np.zeros((1, 2 * half_pad), np.float32)
    for half, off in enumerate((0, 2)):
        c_base = half * half_pad
        for p in range(hpool):
            for kh in range(k):
                h = 4 * p + off + kh                       # input feature row
                r0 = h * cin
                c0 = c_base + p * cout
                big[r0:r0 + cin, c0:c0 + cout] = w[:, :, kh].T
            bias[0, c_base + p * cout:c_base + (p + 1) * cout] = b
    return big, bias, hpool, half_pad


def _small_layout(nh, no, T, d1_pad):
    """Row layout of the packed f32 LSTM/head slab: name -> (row_off, rows, cols)."""
    entries = [
        ("l1_wih", d1_pad, 4 * nh), ("l1_whh", nh, 4 * nh), ("l1_b", 1, 4 * nh),
        ("l1_we", nh, nh), ("l1_be", 1, nh),
        ("l2_wih", nh, 4 * nh), ("l2_whh", nh, 4 * nh), ("l2_b", 1, 4 * nh),
        ("l2_we", nh, no), ("l2_be", 1, no),
        ("soh_w", no, 1), ("soh_b", 1, 1),
        ("rul_w", T, 1), ("rul_b", 1, 1),
    ]
    lay, r = {}, 0
    for name, nr, ncl in entries:
        lay[name] = (r, nr, ncl)
        r += _round_up(nr, 8)
    width = max(ncl for _, _, ncl in entries)
    return lay, r, width


def prepare_params(tp, H, C, T, nh, no):
    """One-time host conversion: PyTorch-layout params -> 3 packed kernel slabs."""
    B_pad = 8
    # ---- conv stack folded into GEMMs ----
    k0_pad = _round_up(H * C, 128)
    k_pad, hin = k0_pad, H
    blocks, biases, conv_k, conv_half = [], [], [], []
    for i in range(3):
        big, bias, hin, half_pad = _conv_stage_gemm(
            tp[f"conv{i}_w"], tp[f"conv{i}_b"], hin, k_pad)
        blocks.append(big)
        biases.append(bias)
        conv_k.append(k_pad)
        conv_half.append(half_pad)
        k_pad = half_pad
    assert hin == 1, "conv/pool stack must reduce height to 1"

    slab_w = max(bk.shape[1] for bk in blocks)
    conv_row_off, r = [], 0
    for bk in blocks:
        conv_row_off.append(r)
        r += bk.shape[0]
    wconv = np.zeros((r, slab_w), np.float32)
    cbias = np.zeros((8, slab_w), np.float32)
    for i, bk in enumerate(blocks):
        wconv[conv_row_off[i]:conv_row_off[i] + bk.shape[0], :bk.shape[1]] = bk
        cbias[i, :biases[i].shape[1]] = biases[i][0]

    # ---- LSTM / Linear slab ----
    d1_pad = conv_half[-1]                    # padded LSTM-1 input width
    lay, rows, wsm = _small_layout(nh, no, T, d1_pad)
    wsmall = np.zeros((_round_up(rows, 8), wsm), np.float32)

    def put(name, arr):
        r0, nr, ncl = lay[name]
        arr = np.atleast_2d(np.asarray(arr, np.float32))
        assert arr.shape[0] <= nr and arr.shape[1] <= ncl, (name, arr.shape)
        wsmall[r0:r0 + arr.shape[0], :arr.shape[1]] = arr

    for i in (1, 2):
        put(f"l{i}_wih", np.asarray(tp[f"l{i}_wih"]).T)           # [nin, 4nh]
        put(f"l{i}_whh", np.asarray(tp[f"l{i}_whh"]).T)           # [nh, 4nh]
        put(f"l{i}_b",
            (np.asarray(tp[f"l{i}_bih"]) + np.asarray(tp[f"l{i}_bhh"]))[None, :])
        put(f"l{i}_we", np.asarray(tp[f"l{i}_ew"]).T)             # [nh, nout]
        put(f"l{i}_be", np.asarray(tp[f"l{i}_eb"])[None, :])
    put("soh_w", np.asarray(tp["soh_w"]).T)                       # [64, 1]
    put("soh_b", np.asarray(tp["soh_b"])[None, :])
    put("rul_w", np.asarray(tp["rul_w"]).T)                       # [T, 1]
    put("rul_b", np.asarray(tp["rul_b"])[None, :])

    params = {
        "wconv": jnp.asarray(wconv, jnp.bfloat16),   # bf16 halves weight DMA
        "cbias": jnp.asarray(cbias),
        "wsmall": jnp.asarray(wsmall),
    }
    cfg = dict(T=T, B_pad=B_pad, nh=nh, no=no, k0_pad=k0_pad,
               conv_row_off=tuple(conv_row_off), conv_k=tuple(conv_k),
               conv_half=tuple(conv_half), lay=lay, out_w=128)
    return params, cfg


# ---------------- fused forward kernel ----------------

def make_crnn_kernel(cfg):
    T, B_pad, nh = cfg["T"], cfg["B_pad"], cfg["nh"]
    conv_row_off, conv_k, conv_half = cfg["conv_row_off"], cfg["conv_k"], cfg["conv_half"]
    lay, out_w = cfg["lay"], cfg["out_w"]
    f32, bf16 = jnp.float32, jnp.bfloat16

    def sigmoid(z):          # exact: sigmoid(z) = 0.5*tanh(0.5z)+0.5 (EUP tanh)
        return 0.5 * jnp.tanh(0.5 * z) + 0.5

    def crnn_kernel(x_ref, wconv_ref, cbias_ref, wsmall_ref, out_ref):
        # --- read each packed weight once (loop-invariant static slab slices) ---
        def ws(name):
            r0, nr, ncl = lay[name]
            return wsmall_ref[r0:r0 + nr, :ncl]

        l1_wih, l1_whh, l1_b = ws("l1_wih"), ws("l1_whh"), ws("l1_b")
        l1_we, l1_be = ws("l1_we"), ws("l1_be")
        l2_wih, l2_whh, l2_b = ws("l2_wih"), ws("l2_whh"), ws("l2_b")
        l2_we, l2_be = ws("l2_we"), ws("l2_be")
        soh_w, soh_b = ws("soh_w"), ws("soh_b")
        rul_w, rul_b = ws("rul_w"), ws("rul_b")

        # --- CNN: each stage = one bf16 GEMM holding BOTH max-pool branches
        #     (each branch lane-padded to 128) + f32 bias + ReLU + halves max ---
        a = x_ref[...]                                     # [T*8, K0] time-major
        for i in range(3):
            r0, kp, hp = conv_row_off[i], conv_k[i], conv_half[i]
            w = wconv_ref[r0:r0 + kp, :2 * hp]
            y = jnp.dot(a.astype(bf16), w, preferred_element_type=f32)
            y = jnp.maximum(y + cbias_ref[i:i + 1, :2 * hp], 0.0)   # bias + ReLU
            a = jnp.maximum(y[:, :hp], y[:, hp:])                   # MaxPool(2,1)

        # --- LSTM-1 input projection hoisted over all T steps (one GEMM) ---
        xw1 = jnp.dot(a, l1_wih, preferred_element_type=f32) + l1_b  # [T*8, 4nh]

        def lstm_step(gates, c):
            i_g = sigmoid(gates[:, 0 * nh:1 * nh])
            f_g = sigmoid(gates[:, 1 * nh:2 * nh])
            g_g = jnp.tanh(gates[:, 2 * nh:3 * nh])
            o_g = sigmoid(gates[:, 3 * nh:4 * nh])
            c = f_g * c + i_g * g_g
            return o_g * jnp.tanh(c), c

        zeros = jnp.zeros((B_pad, nh), f32)
        h1, c1, h2, c2 = zeros, zeros, zeros, zeros
        lane = jax.lax.broadcasted_iota(jnp.int32, (B_pad, out_w), 1)
        acc = jnp.zeros((B_pad, out_w), f32)               # soh columns 0..T-1
        g2 = None
        # Software-pipelined LSTM stack: slot s runs layer-1 step s and layer-2
        # step s-1; the two chains are independent so their latency overlaps.
        for s in range(T + 1):
            g2_new = None
            if s < T:                                      # ---- layer-1 step s
                gates1 = xw1[s * B_pad:(s + 1) * B_pad, :] + jnp.dot(
                    h1, l1_whh, preferred_element_type=f32)
                h1, c1 = lstm_step(gates1, c1)
                o1 = jnp.dot(h1, l1_we, preferred_element_type=f32) + l1_be
                # layer-2 input projection for step s (off layer-2's recurrence)
                g2_new = jnp.dot(o1, l2_wih, preferred_element_type=f32) + l2_b
            if s >= 1:                                     # ---- layer-2 step s-1
                t = s - 1
                gates2 = g2 + jnp.dot(h2, l2_whh, preferred_element_type=f32)
                h2, c2 = lstm_step(gates2, c2)
                o2 = jnp.dot(h2, l2_we, preferred_element_type=f32) + l2_be
                soh_t = jnp.dot(o2, soh_w, preferred_element_type=f32) + soh_b
                acc = jnp.where(lane == t, soh_t, acc)     # place soh column t
            g2 = g2_new

        # rul = Linear(T, 1)(soh); pack rul into lane T of one lane-dense tile.
        rul = jnp.dot(acc[:, :T], rul_w, preferred_element_type=f32) + rul_b
        out_ref[...] = jnp.where(lane == T, rul, acc)
        # TODO(synk): nn.Dropout (dropout=False) and F.sigmoid (sigmoid=False)
        # are inactive in the reference config, so neither is applied here.

    return crnn_kernel


# ---------------- wrapper ----------------

def crnn_forward(x, params, cfg):
    """x: [b, c, h, w] NCHW like PyTorch.  Returns (rul [b,1], soh [b,w])."""
    b, c, H, W = x.shape
    T, B_pad, k0 = cfg["T"], cfg["B_pad"], cfg["k0_pad"]
    assert W == T and H * c <= k0 and b <= B_pad
    # NCHW -> [W, b, H*c]; pad batch->8 rows and features->k0 lanes; flatten to
    # time-major rows (row = t*8 + batch) so every LSTM step is 8-aligned.
    xt = jnp.transpose(x, (3, 0, 2, 1)).reshape(W, b, H * c)
    xt = jnp.pad(xt, ((0, 0), (0, B_pad - b), (0, k0 - H * c)))
    x2d = xt.reshape(W * B_pad, k0)

    vmem = pl.BlockSpec(memory_space=pltpu.MemorySpace.VMEM)
    out = pl.pallas_call(
        make_crnn_kernel(cfg),
        out_shape=jax.ShapeDtypeStruct((B_pad, cfg["out_w"]), jnp.float32),
        in_specs=[vmem] * 4,
        out_specs=vmem,
    )(x2d, params["wconv"], params["cbias"], params["wsmall"])
    soh = out[:b, :T]
    rul = out[:b, T:T + 1]
    return rul, soh


# ---------------- torch-layout parameter construction ----------------

def init_torch_like_params(key, nc, nh, no, T):
    """Random parameters in the PyTorch layouts used by CRNN."""
    ks = iter(jax.random.split(key, 32))

    def rnd(shape, fan_in):
        return (jax.random.normal(next(ks), shape, jnp.float32)
                / np.sqrt(fan_in)).astype(jnp.float32)

    p = {}
    cin = nc
    for i, cout in enumerate([8, 16, 64]):                 # conv0..conv2
        p[f"conv{i}_w"] = rnd((cout, cin, 3), 3 * cin)     # Conv2d weight[..., 0]
        p[f"conv{i}_b"] = rnd((cout,), 3 * cin)
        cin = cout

    def lstm(idx, nin, nhid, nout):
        p[f"l{idx}_wih"] = rnd((4 * nhid, nin), nin)       # weight_ih_l0
        p[f"l{idx}_whh"] = rnd((4 * nhid, nhid), nhid)     # weight_hh_l0
        p[f"l{idx}_bih"] = rnd((4 * nhid,), nhid)
        p[f"l{idx}_bhh"] = rnd((4 * nhid,), nhid)
        p[f"l{idx}_ew"] = rnd((nout, nhid), nhid)          # embedding Linear
        p[f"l{idx}_eb"] = rnd((nout,), nhid)

    lstm(1, 64, nh, nh)
    lstm(2, nh, nh, no)
    p["soh_w"] = rnd((1, 64), 64)
    p["soh_b"] = rnd((1,), 64)                             # Linear(64, 1)
    p["rul_w"] = rnd((1, T), T)
    p["rul_b"] = rnd((1,), T)                              # Linear(T, 1)
    return p


# ---------------- pure-JAX reference (for correctness check) ----------------

def crnn_reference(x, tp):
    """Matches the PyTorch forward; conv operands rounded to bf16 exactly like
    the kernel (which uses bf16 conv weights/activations on the MXU)."""
    f32, bf16 = jnp.float32, jnp.bfloat16
    hi = jax.lax.Precision.HIGHEST
    a = x.astype(f32)
    for i in range(3):
        w = jnp.asarray(tp[f"conv{i}_w"], f32)[:, :, :, None]      # OIHW
        b = jnp.asarray(tp[f"conv{i}_b"], f32)
        y = jax.lax.conv_general_dilated(
            a.astype(bf16).astype(f32), w.astype(bf16).astype(f32),
            window_strides=(2, 1), padding="VALID",
            dimension_numbers=("NCHW", "OIHW", "NCHW"), precision=hi)
        y = jnp.maximum(y + b[None, :, None, None], 0.0)
        a = jnp.maximum(y[:, :, 0::2, :], y[:, :, 1::2, :])         # MaxPool(2,1)
    seq = jnp.transpose(a[:, :, 0, :], (0, 2, 1))                   # [B, T, 64]

    def blstm(seq_in, i):
        wih = jnp.asarray(tp[f"l{i}_wih"], f32)
        whh = jnp.asarray(tp[f"l{i}_whh"], f32)
        bias = jnp.asarray(tp[f"l{i}_bih"], f32) + jnp.asarray(tp[f"l{i}_bhh"], f32)
        nh_ = whh.shape[1]
        Bb, Tt, _ = seq_in.shape
        h = jnp.zeros((Bb, nh_), f32)
        c = jnp.zeros((Bb, nh_), f32)
        hs = []
        for t in range(Tt):
            g = (jnp.dot(seq_in[:, t, :], wih.T, precision=hi)
                 + jnp.dot(h, whh.T, precision=hi) + bias)
            i_g = jax.nn.sigmoid(g[:, :nh_])
            f_g = jax.nn.sigmoid(g[:, nh_:2 * nh_])
            g_g = jnp.tanh(g[:, 2 * nh_:3 * nh_])
            o_g = jax.nn.sigmoid(g[:, 3 * nh_:])
            c = f_g * c + i_g * g_g
            h = o_g * jnp.tanh(c)
            hs.append(h)
        rec = jnp.stack(hs, axis=1)
        return (jnp.dot(rec, jnp.asarray(tp[f"l{i}_ew"], f32).T, precision=hi)
                + jnp.asarray(tp[f"l{i}_eb"], f32))

    o1 = blstm(seq, 1)
    o2 = blstm(o1, 2)
    soh = (jnp.dot(o2, jnp.asarray(tp["soh_w"], f32).T, precision=hi)
           + jnp.asarray(tp["soh_b"], f32))[..., 0]                 # [B, T]
    rul = (jnp.dot(soh, jnp.asarray(tp["rul_w"], f32).T, precision=hi)
           + jnp.asarray(tp["rul_b"], f32))                         # [B, 1]
    return rul, soh


if __name__ == "__main__":
    # H=85 is the smallest height the fixed conv/pool stack reduces to h=1;
    # W (sequence length T) must be 10 because rul = Linear(10, 1); no must be
    # 64 because soh = Linear(64, 1) is applied to the RNN output.
    B, NC, H, W = 2, 4, 85, 10
    NH, NO = 32, 64
    key = jax.random.PRNGKey(0)
    kx, kparam = jax.random.split(key)
    x = jax.random.normal(kx, (B, NC, H, W), jnp.float32)
    torch_params = init_torch_like_params(kparam, NC, NH, NO, W)
    params, cfg = prepare_params(torch_params, H, NC, W, NH, NO)

    fwd = jax.jit(lambda xx: crnn_forward(xx, params, cfg))
    rul, soh = fwd(x)
    jax.block_until_ready((rul, soh))
    assert rul.shape == (B, 1) and soh.shape == (B, W)
    assert bool(jnp.all(jnp.isfinite(rul))) and bool(jnp.all(jnp.isfinite(soh)))

    # correctness vs. pure-JAX reference (loose tol covers the bf16 conv path)
    rul_gold, soh_gold = crnn_reference(x, torch_params)
    np.testing.assert_allclose(np.asarray(soh), np.asarray(soh_gold),
                               rtol=2e-2, atol=2e-2)
    np.testing.assert_allclose(np.asarray(rul), np.asarray(rul_gold),
                               rtol=2e-2, atol=2e-2)
    print("KERNEL_OK")
</pallas_src>

<mosaic_0001>
module attributes {stable_mosaic.version = 11 : i64} {
  func.func @crnn_kernel(%arg0: memref<80x384xf32, #tpu.memory_space<vmem>>, %arg1: memref<768x512xbf16, #tpu.memory_space<vmem>>, %arg2: memref<8x512xf32, #tpu.memory_space<vmem>>, %arg3: memref<416x128xf32, #tpu.memory_space<vmem>>, %arg4: memref<8x128xf32, #tpu.memory_space<vmem>>) attributes {dimension_semantics = [], scalar_prefetch = 0 : i64, scratch_operands = 0 : i64, tpu.core_type = #tpu.core_type<tc>} {
    %c0 = arith.constant 0 : index
    %c0_0 = arith.constant 0 : index
    %0 = vector.load %arg3[%c0, %c0_0] : memref<416x128xf32, #tpu.memory_space<vmem>>, vector<128x128xf32>
    %c128 = arith.constant 128 : index
    %c0_1 = arith.constant 0 : index
    %1 = vector.load %arg3[%c128, %c0_1] : memref<416x128xf32, #tpu.memory_space<vmem>>, vector<32x128xf32>
    %c160 = arith.constant 160 : index
    %c0_2 = arith.constant 0 : index
    %2 = vector.load %arg3[%c160, %c0_2] : memref<416x128xf32, #tpu.memory_space<vmem>>, vector<1x128xf32>
    %c168 = arith.constant 168 : index
    %c0_3 = arith.constant 0 : index
    %3 = vector.load %arg3[%c168, %c0_3] : memref<416x128xf32, #tpu.memory_space<vmem>>, vector<32x32xf32>
    %c200 = arith.constant 200 : index
    %c0_4 = arith.constant 0 : index
    %4 = vector.load %arg3[%c200, %c0_4] : memref<416x128xf32, #tpu.memory_space<vmem>>, vector<1x32xf32>
    %c208 = arith.constant 208 : index
    %c0_5 = arith.constant 0 : index
    %5 = vector.load %arg3[%c208, %c0_5] : memref<416x128xf32, #tpu.memory_space<vmem>>, vector<32x128xf32>
    %c240 = arith.constant 240 : index
    %c0_6 = arith.constant 0 : index
    %6 = vector.load %arg3[%c240, %c0_6] : memref<416x128xf32, #tpu.memory_space<vmem>>, vector<32x128xf32>
    %c272 = arith.constant 272 : index
    %c0_7 = arith.constant 0 : index
    %7 = vector.load %arg3[%c272, %c0_7] : memref<416x128xf32, #tpu.memory_space<vmem>>, vector<1x128xf32>
    %c280 = arith.constant 280 : index
    %c0_8 = arith.constant 0 : index
    %8 = vector.load %arg3[%c280, %c0_8] : memref<416x128xf32, #tpu.memory_space<vmem>>, vector<32x64xf32>
    %c312 = arith.constant 312 : index
    %c0_9 = arith.constant 0 : index
    %9 = vector.load %arg3[%c312, %c0_9] : memref<416x128xf32, #tpu.memory_space<vmem>>, vector<1x64xf32>
    %c320 = arith.constant 320 : index
    %c0_10 = arith.constant 0 : index
    %10 = vector.load %arg3[%c320, %c0_10] : memref<416x128xf32, #tpu.memory_space<vmem>>, vector<64x1xf32>
    %c384 = arith.constant 384 : index
    %c0_11 = arith.constant 0 : index
    %11 = vector.load %arg3[%c384, %c0_11] : memref<416x128xf32, #tpu.memory_space<vmem>>, vector<1x1xf32>
    %c392 = arith.constant 392 : index
    %c0_12 = arith.constant 0 : index
    %12 = vector.load %arg3[%c392, %c0_12] : memref<416x128xf32, #tpu.memory_space<vmem>>, vector<10x1xf32>
    %c408 = arith.constant 408 : index
    %c0_13 = arith.constant 0 : index
    %13 = vector.load %arg3[%c408, %c0_13] : memref<416x128xf32, #tpu.memory_space<vmem>>, vector<1x1xf32>
    %c0_14 = arith.constant 0 : index
    %c0_15 = arith.constant 0 : index
    %14 = vector.load %arg0[%c0_14, %c0_15] : memref<80x384xf32, #tpu.memory_space<vmem>>, vector<80x384xf32>
    %c0_16 = arith.constant 0 : index
    %c0_17 = arith.constant 0 : index
    %15 = vector.load %arg1[%c0_16, %c0_17] : memref<768x512xbf16, #tpu.memory_space<vmem>>, vector<384x512xbf16>
    %16 = arith.truncf %14 : vector<80x384xf32> to vector<80x384xbf16>
    %cst = arith.constant dense<0.000000e+00> : vector<80x512xf32>
    %17 = tpu.matmul %16, %15, %cst {dimension_numbers = #tpu.dot_dimension_numbers<[1], [0], [0], [1], [0, 0, 1, 1], [], []>} : vector<80x384xbf16>, vector<384x512xbf16>, vector<80x512xf32> -> vector<80x512xf32>
    %c0_18 = arith.constant 0 : index
    %c0_19 = arith.constant 0 : index
    %18 = vector.load %arg2[%c0_18, %c0_19] : memref<8x512xf32, #tpu.memory_space<vmem>>, vector<1x512xf32>
    %19 = vector.broadcast %18 : vector<1x512xf32> to vector<80x512xf32>
    %20 = arith.addf %17, %19 : vector<80x512xf32>
    %cst_20 = arith.constant 0.000000e+00 : f32
    %21 = vector.broadcast %cst_20 : f32 to vector<80x512xf32>
    %22 = arith.maximumf %20, %21 : vector<80x512xf32>
    %23 = vector.extract_strided_slice %22 {offsets = [0, 0], sizes = [80, 256], strides = [1, 1]} : vector<80x512xf32> to vector<80x256xf32>
    %24 = vector.extract_strided_slice %22 {offsets = [0, 256], sizes = [80, 256], strides = [1, 1]} : vector<80x512xf32> to vector<80x256xf32>
    %25 = arith.maximumf %23, %24 : vector<80x256xf32>
    %c384_21 = arith.constant 384 : index
    %c0_22 = arith.constant 0 : index
    %26 = vector.load %arg1[%c384_21, %c0_22] : memref<768x512xbf16, #tpu.memory_space<vmem>>, vector<256x256xbf16>
    %27 = arith.truncf %25 : vector<80x256xf32> to vector<80x256xbf16>
    %cst_23 = arith.constant dense<0.000000e+00> : vector<80x256xf32>
    %28 = tpu.matmul %27, %26, %cst_23 {dimension_numbers = #tpu.dot_dimension_numbers<[1], [0], [0], [1], [0, 0, 1, 1], [], []>} : vector<80x256xbf16>, vector<256x256xbf16>, vector<80x256xf32> -> vector<80x256xf32>
    %c1 = arith.constant 1 : index
    %c0_24 = arith.constant 0 : index
    %29 = vector.load %arg2[%c1, %c0_24] : memref<8x512xf32, #tpu.memory_space<vmem>>, vector<1x256xf32>
    %30 = vector.broadcast %29 : vector<1x256xf32> to vector<80x256xf32>
    %31 = arith.addf %28, %30 : vector<80x256xf32>
    %cst_25 = arith.constant 0.000000e+00 : f32
    %32 = vector.broadcast %cst_25 : f32 to vector<80x256xf32>
    %33 = arith.maximumf %31, %32 : vector<80x256xf32>
    %34 = vector.extract_strided_slice %33 {offsets = [0, 0], sizes = [80, 128], strides = [1, 1]} : vector<80x256xf32> to vector<80x128xf32>
    %35 = vector.extract_strided_slice %33 {offsets = [0, 128], sizes = [80, 128], strides = [1, 1]} : vector<80x256xf32> to vector<80x128xf32>
    %36 = arith.maximumf %34, %35 : vector<80x128xf32>
    %c640 = arith.constant 640 : index
    %c0_26 = arith.constant 0 : index
    %37 = vector.load %arg1[%c640, %c0_26] : memref<768x512xbf16, #tpu.memory_space<vmem>>, vector<128x256xbf16>
    %38 = arith.truncf %36 : vector<80x128xf32> to vector<80x128xbf16>
    %cst_27 = arith.constant dense<0.000000e+00> : vector<80x256xf32>
    %39 = tpu.matmul %38, %37, %cst_27 {dimension_numbers = #tpu.dot_dimension_numbers<[1], [0], [0], [1], [0, 0, 1, 1], [], []>} : vector<80x128xbf16>, vector<128x256xbf16>, vector<80x256xf32> -> vector<80x256xf32>
    %c2 = arith.constant 2 : index
    %c0_28 = arith.constant 0 : index
    %40 = vector.load %arg2[%c2, %c0_28] : memref<8x512xf32, #tpu.memory_space<vmem>>, vector<1x256xf32>
    %41 = vector.broadcast %40 : vector<1x256xf32> to vector<80x256xf32>
    %42 = arith.addf %39, %41 : vector<80x256xf32>
    %cst_29 = arith.constant 0.000000e+00 : f32
    %43 = vector.broadcast %cst_29 : f32 to vector<80x256xf32>
    %44 = arith.maximumf %42, %43 : vector<80x256xf32>
    %45 = vector.extract_strided_slice %44 {offsets = [0, 0], sizes = [80, 128], strides = [1, 1]} : vector<80x256xf32> to vector<80x128xf32>
    %46 = vector.extract_strided_slice %44 {offsets = [0, 128], sizes = [80, 128], strides = [1, 1]} : vector<80x256xf32> to vector<80x128xf32>
    %47 = arith.maximumf %45, %46 : vector<80x128xf32>
    %cst_30 = arith.constant dense<0.000000e+00> : vector<80x128xf32>
    %48 = tpu.matmul %47, %0, %cst_30 {dimension_numbers = #tpu.dot_dimension_numbers<[1], [0], [0], [1], [0, 0, 1, 1], [], []>} : vector<80x128xf32>, vector<128x128xf32>, vector<80x128xf32> -> vector<80x128xf32>
    %49 = vector.broadcast %2 : vector<1x128xf32> to vector<80x128xf32>
    %50 = arith.addf %48, %49 : vector<80x128xf32>
    %cst_31 = arith.constant 0.000000e+00 : f32
    %51 = vector.broadcast %cst_31 : f32 to vector<8x32xf32>
    %52 = tpu.iota {dimensions = array<i32: 1>} : vector<8x128xi32>
    %cst_32 = arith.constant 0.000000e+00 : f32
    %53 = vector.broadcast %cst_32 : f32 to vector<8x128xf32>
    %54 = vector.extract_strided_slice %50 {offsets = [0, 0], sizes = [8, 128], strides = [1, 1]} : vector<80x128xf32> to vector<8x128xf32>
    %cst_33 = arith.constant dense<0.000000e+00> : vector<8x128xf32>
    %55 = tpu.matmul %51, %1, %cst_33 {dimension_numbers = #tpu.dot_dimension_numbers<[1], [0], [0], [1], [0, 0, 1, 1], [], []>} : vector<8x32xf32>, vector<32x128xf32>, vector<8x128xf32> -> vector<8x128xf32>
    %56 = arith.addf %54, %55 : vector<8x128xf32>
    %57 = vector.extract_strided_slice %56 {offsets = [0, 0], sizes = [8, 32], strides = [1, 1]} : vector<8x128xf32> to vector<8x32xf32>
    %cst_34 = arith.constant 5.000000e-01 : f32
    %58 = vector.broadcast %cst_34 : f32 to vector<8x32xf32>
    %59 = arith.mulf %58, %57 : vector<8x32xf32>
    %60 = math.tanh %59 : vector<8x32xf32>
    %cst_35 = arith.constant 5.000000e-01 : f32
    %61 = vector.broadcast %cst_35 : f32 to vector<8x32xf32>
    %62 = arith.mulf %61, %60 : vector<8x32xf32>
    %cst_36 = arith.constant 5.000000e-01 : f32
    %63 = vector.broadcast %cst_36 : f32 to vector<8x32xf32>
    %64 = arith.addf %62, %63 : vector<8x32xf32>
    %65 = vector.extract_strided_slice %56 {offsets = [0, 32], sizes = [8, 32], strides = [1, 1]} : vector<8x128xf32> to vector<8x32xf32>
    %cst_37 = arith.constant 5.000000e-01 : f32
    %66 = vector.broadcast %cst_37 : f32 to vector<8x32xf32>
    %67 = arith.mulf %66, %65 : vector<8x32xf32>
    %68 = math.tanh %67 : vector<8x32xf32>
    %cst_38 = arith.constant 5.000000e-01 : f32
    %69 = vector.broadcast %cst_38 : f32 to vector<8x32xf32>
    %70 = arith.mulf %69, %68 : vector<8x32xf32>
    %cst_39 = arith.constant 5.000000e-01 : f32
    %71 = vector.broadcast %cst_39 : f32 to vector<8x32xf32>
    %72 = arith.addf %70, %71 : vector<8x32xf32>
    %73 = vector.extract_strided_slice %56 {offsets = [0, 64], sizes = [8, 32], strides = [1, 1]} : vector<8x128xf32> to vector<8x32xf32>
    %74 = math.tanh %73 : vector<8x32xf32>
    %75 = vector.extract_strided_slice %56 {offsets = [0, 96], sizes = [8, 32], strides = [1, 1]} : vector<8x128xf32> to vector<8x32xf32>
    %cst_40 = arith.constant 5.000000e-01 : f32
    %76 = vector.broadcast %cst_40 : f32 to vector<8x32xf32>
    %77 = arith.mulf %76, %75 : vector<8x32xf32>
    %78 = math.tanh %77 : vector<8x32xf32>
    %cst_41 = arith.constant 5.000000e-01 : f32
    %79 = vector.broadcast %cst_41 : f32 to vector<8x32xf32>
    %80 = arith.mulf %79, %78 : vector<8x32xf32>
    %cst_42 = arith.constant 5.000000e-01 : f32
    %81 = vector.broadcast %cst_42 : f32 to vector<8x32xf32>
    %82 = arith.addf %80, %81 : vector<8x32xf32>
    %83 = arith.mulf %72, %51 : vector<8x32xf32>
    %84 = arith.mulf %64, %74 : vector<8x32xf32>
    %85 = arith.addf %83, %84 : vector<8x32xf32>
    %86 = math.tanh %85 : vector<8x32xf32>
    %87 = arith.mulf %82, %86 : vector<8x32xf32>
    %cst_43 = arith.constant dense<0.000000e+00> : vector<8x32xf32>
    %88 = tpu.matmul %87, %3, %cst_43 {dimension_numbers = #tpu.dot_dimension_numbers<[1], [0], [0], [1], [0, 0, 1, 1], [], []>} : vector<8x32xf32>, vector<32x32xf32>, vector<8x32xf32> -> vector<8x32xf32>
    %89 = vector.broadcast %4 : vector<1x32xf32> to vector<8x32xf32>
    %90 = arith.addf %88, %89 : vector<8x32xf32>
    %cst_44 = arith.constant dense<0.000000e+00> : vector<8x128xf32>
    %91 = tpu.matmul %90, %5, %cst_44 {dimension_numbers = #tpu.dot_dimension_numbers<[1], [0], [0], [1], [0, 0, 1, 1], [], []>} : vector<8x32xf32>, vector<32x128xf32>, vector<8x128xf32> -> vector<8x128xf32>
    %92 = vector.broadcast %7 : vector<1x128xf32> to vector<8x128xf32>
    %93 = arith.addf %91, %92 : vector<8x128xf32>
    %94 = vector.extract_strided_slice %50 {offsets = [8, 0], sizes = [8, 128], strides = [1, 1]} : vector<80x128xf32> to vector<8x128xf32>
    %cst_45 = arith.constant dense<0.000000e+00> : vector<8x128xf32>
    %95 = tpu.matmul %87, %1, %cst_45 {dimension_numbers = #tpu.dot_dimension_numbers<[1], [0], [0], [1], [0, 0, 1, 1], [], []>} : vector<8x32xf32>, vector<32x128xf32>, vector<8x128xf32> -> vector<8x128xf32>
    %96 = arith.addf %94, %95 : vector<8x128xf32>
    %97 = vector.extract_strided_slice %96 {offsets = [0, 0], sizes = [8, 32], strides = [1, 1]} : vector<8x128xf32> to vector<8x32xf32>
    %cst_46 = arith.constant 5.000000e-01 : f32
    %98 = vector.broadcast %cst_46 : f32 to vector<8x32xf32>
    %99 = arith.mulf %98, %97 : vector<8x32xf32>
    %100 = math.tanh %99 : vector<8x32xf32>
    %cst_47 = arith.constant 5.000000e-01 : f32
    %101 = vector.broadcast %cst_47 : f32 to vector<8x32xf32>
    %102 = arith.mulf %101, %100 : vector<8x32xf32>
    %cst_48 = arith.constant 5.000000e-01 : f32
    %103 = vector.broadcast %cst_48 : f32 to vector<8x32xf32>
    %104 = arith.addf %102, %103 : vector<8x32xf32>
    %105 = vector.extract_strided_slice %96 {offsets = [0, 32], sizes = [8, 32], strides = [1, 1]} : vector<8x128xf32> to vector<8x32xf32>
    %cst_49 = arith.constant 5.000000e-01 : f32
    %106 = vector.broadcast %cst_49 : f32 to vector<8x32xf32>
    %107 = arith.mulf %106, %105 : vector<8x32xf32>
    %108 = math.tanh %107 : vector<8x32xf32>
    %cst_50 = arith.constant 5.000000e-01 : f32
    %109 = vector.broadcast %cst_50 : f32 to vector<8x32xf32>
    %110 = arith.mulf %109, %108 : vector<8x32xf32>
    %cst_51 = arith.constant 5.000000e-01 : f32
    %111 = vector.broadcast %cst_51 : f32 to vector<8x32xf32>
    %112 = arith.addf %110, %111 : vector<8x32xf32>
    %113 = vector.extract_strided_slice %96 {offsets = [0, 64], sizes = [8, 32], strides = [1, 1]} : vector<8x128xf32> to vector<8x32xf32>
    %114 = math.tanh %113 : vector<8x32xf32>
    %115 = vector.extract_strided_slice %96 {offsets = [0, 96], sizes = [8, 32], strides = [1, 1]} : vector<8x128xf32> to vector<8x32xf32>
    %cst_52 = arith.constant 5.000000e-01 : f32
    %116 = vector.broadcast %cst_52 : f32 to vector<8x32xf32>
    %117 = arith.mulf %116, %115 : vector<8x32xf32>
    %118 = math.tanh %117 : vector<8x32xf32>
    %cst_53 = arith.constant 5.000000e-01 : f32
    %119 = vector.broadcast %cst_53 : f32 to vector<8x32xf32>
    %120 = arith.mulf %119, %118 : vector<8x32xf32>
    %cst_54 = arith.constant 5.000000e-01 : f32
    %121 = vector.broadcast %cst_54 : f32 to vector<8x32xf32>
    %122 = arith.addf %120, %121 : vector<8x32xf32>
    %123 = arith.mulf %112, %85 : vector<8x32xf32>
    %124 = arith.mulf %104, %114 : vector<8x32xf32>
    %125 = arith.addf %123, %124 : vector<8x32xf32>
    %126 = math.tanh %125 : vector<8x32xf32>
    %127 = arith.mulf %122, %126 : vector<8x32xf32>
    %cst_55 = arith.constant dense<0.000000e+00> : vector<8x32xf32>
    %128 = tpu.matmul %127, %3, %cst_55 {dimension_numbers = #tpu.dot_dimension_numbers<[1], [0], [0], [1], [0, 0, 1, 1], [], []>} : vector<8x32xf32>, vector<32x32xf32>, vector<8x32xf32> -> vector<8x32xf32>
    %129 = vector.broadcast %4 : vector<1x32xf32> to vector<8x32xf32>
    %130 = arith.addf %128, %129 : vector<8x32xf32>
    %cst_56 = arith.constant dense<0.000000e+00> : vector<8x128xf32>
    %131 = tpu.matmul %130, %5, %cst_56 {dimension_numbers = #tpu.dot_dimension_numbers<[1], [0], [0], [1], [0, 0, 1, 1], [], []>} : vector<8x32xf32>, vector<32x128xf32>, vector<8x128xf32> -> vector<8x128xf32>
    %132 = vector.broadcast %7 : vector<1x128xf32> to vector<8x128xf32>
    %133 = arith.addf %131, %132 : vector<8x128xf32>
    %cst_57 = arith.constant dense<0.000000e+00> : vector<8x128xf32>
    %134 = tpu.matmul %51, %6, %cst_57 {dimension_numbers = #tpu.dot_dimension_numbers<[1], [0], [0], [1], [0, 0, 1, 1], [], []>} : vector<8x32xf32>, vector<32x128xf32>, vector<8x128xf32> -> vector<8x128xf32>
    %135 = arith.addf %93, %134 : vector<8x128xf32>
    %136 = vector.extract_strided_slice %135 {offsets = [0, 0], sizes = [8, 32], strides = [1, 1]} : vector<8x128xf32> to vector<8x32xf32>
    %cst_58 = arith.constant 5.000000e-01 : f32
    %137 = vector.broadcast %cst_58 : f32 to vector<8x32xf32>
    %138 = arith.mulf %137, %136 : vector<8x32xf32>
    %139 = math.tanh %138 : vector<8x32xf32>
    %cst_59 = arith.constant 5.000000e-01 : f32
    %140 = vector.broadcast %cst_59 : f32 to vector<8x32xf32>
    %141 = arith.mulf %140, %139 : vector<8x32xf32>
    %cst_60 = arith.constant 5.000000e-01 : f32
    %142 = vector.broadcast %cst_60 : f32 to vector<8x32xf32>
    %143 = arith.addf %141, %142 : vector<8x32xf32>
    %144 = vector.extract_strided_slice %135 {offsets = [0, 32], sizes = [8, 32], strides = [1, 1]} : vector<8x128xf32> to vector<8x32xf32>
    %cst_61 = arith.constant 5.000000e-01 : f32
    %145 = vector.broadcast %cst_61 : f32 to vector<8x32xf32>
    %146 = arith.mulf %145, %144 : vector<8x32xf32>
    %147 = math.tanh %146 : vector<8x32xf32>
    %cst_62 = arith.constant 5.000000e-01 : f32
    %148 = vector.broadcast %cst_62 : f32 to vector<8x32xf32>
    %149 = arith.mulf %148, %147 : vector<8x32xf32>
    %cst_63 = arith.constant 5.000000e-01 : f32
    %150 = vector.broadcast %cst_63 : f32 to vector<8x32xf32>
    %151 = arith.addf %149, %150 : vector<8x32xf32>
    %152 = vector.extract_strided_slice %135 {offsets = [0, 64], sizes = [8, 32], strides = [1, 1]} : vector<8x128xf32> to vector<8x32xf32>
    %153 = math.tanh %152 : vector<8x32xf32>
    %154 = vector.extract_strided_slice %135 {offsets = [0, 96], sizes = [8, 32], strides = [1, 1]} : vector<8x128xf32> to vector<8x32xf32>
    %cst_64 = arith.constant 5.000000e-01 : f32
    %155 = vector.broadcast %cst_64 : f32 to vector<8x32xf32>
    %156 = arith.mulf %155, %154 : vector<8x32xf32>
    %157 = math.tanh %156 : vector<8x32xf32>
    %cst_65 = arith.constant 5.000000e-01 : f32
    %158 = vector.broadcast %cst_65 : f32 to vector<8x32xf32>
    %159 = arith.mulf %158, %157 : vector<8x32xf32>
    %cst_66 = arith.constant 5.000000e-01 : f32
    %160 = vector.broadcast %cst_66 : f32 to vector<8x32xf32>
    %161 = arith.addf %159, %160 : vector<8x32xf32>
    %162 = arith.mulf %151, %51 : vector<8x32xf32>
    %163 = arith.mulf %143, %153 : vector<8x32xf32>
    %164 = arith.addf %162, %163 : vector<8x32xf32>
    %165 = math.tanh %164 : vector<8x32xf32>
    %166 = arith.mulf %161, %165 : vector<8x32xf32>
    %cst_67 = arith.constant dense<0.000000e+00> : vector<8x64xf32>
    %167 = tpu.matmul %166, %8, %cst_67 {dimension_numbers = #tpu.dot_dimension_numbers<[1], [0], [0], [1], [0, 0, 1, 1], [], []>} : vector<8x32xf32>, vector<32x64xf32>, vector<8x64xf32> -> vector<8x64xf32>
    %168 = vector.broadcast %9 : vector<1x64xf32> to vector<8x64xf32>
    %169 = arith.addf %167, %168 : vector<8x64xf32>
    %cst_68 = arith.constant dense<0.000000e+00> : vector<8x1xf32>
    %170 = tpu.matmul %169, %10, %cst_68 {dimension_numbers = #tpu.dot_dimension_numbers<[1], [0], [0], [1], [0, 0, 1, 1], [], []>} : vector<8x64xf32>, vector<64x1xf32>, vector<8x1xf32> -> vector<8x1xf32>
    %171 = vector.broadcast %11 : vector<1x1xf32> to vector<8x1xf32>
    %172 = arith.addf %170, %171 : vector<8x1xf32>
    %c0_i32 = arith.constant 0 : i32
    %173 = vector.broadcast %c0_i32 : i32 to vector<8x128xi32>
    %174 = arith.cmpi eq, %52, %173 : vector<8x128xi32>
    %175 = vector.shape_cast %172 : vector<8x1xf32> to vector<8x1xf32>
    %176 = vector.broadcast %175 : vector<8x1xf32> to vector<8x128xf32>
    %177 = arith.select %174, %176, %53 : vector<8x128xi1>, vector<8x128xf32>
    %178 = vector.extract_strided_slice %50 {offsets = [16, 0], sizes = [8, 128], strides = [1, 1]} : vector<80x128xf32> to vector<8x128xf32>
    %cst_69 = arith.constant dense<0.000000e+00> : vector<8x128xf32>
    %179 = tpu.matmul %127, %1, %cst_69 {dimension_numbers = #tpu.dot_dimension_numbers<[1], [0], [0], [1], [0, 0, 1, 1], [], []>} : vector<8x32xf32>, vector<32x128xf32>, vector<8x128xf32> -> vector<8x128xf32>
    %180 = arith.addf %178, %179 : vector<8x128xf32>
    %181 = vector.extract_strided_slice %180 {offsets = [0, 0], sizes = [8, 32], strides = [1, 1]} : vector<8x128xf32> to vector<8x32xf32>
    %cst_70 = arith.constant 5.000000e-01 : f32
    %182 = vector.broadcast %cst_70 : f32 to vector<8x32xf32>
    %183 = arith.mulf %182, %181 : vector<8x32xf32>
    %184 = math.tanh %183 : vector<8x32xf32>
    %cst_71 = arith.constant 5.000000e-01 : f32
    %185 = vector.broadcast %cst_71 : f32 to vector<8x32xf32>
    %186 = arith.mulf %185, %184 : vector<8x32xf32>
    %cst_72 = arith.constant 5.000000e-01 : f32
    %187 = vector.broadcast %cst_72 : f32 to vector<8x32xf32>
    %188 = arith.addf %186, %187 : vector<8x32xf32>
    %189 = vector.extract_strided_slice %180 {offsets = [0, 32], sizes = [8, 32], strides = [1, 1]} : vector<8x128xf32> to vector<8x32xf32>
    %cst_73 = arith.constant 5.000000e-01 : f32
    %190 = vector.broadcast %cst_73 : f32 to vector<8x32xf32>
    %191 = arith.mulf %190, %189 : vector<8x32xf32>
    %192 = math.tanh %191 : vector<8x32xf32>
    %cst_74 = arith.constant 5.000000e-01 : f32
    %193 = vector.broadcast %cst_74 : f32 to vector<8x32xf32>
    %194 = arith.mulf %193, %192 : vector<8x32xf32>
    %cst_75 = arith.constant 5.000000e-01 : f32
    %195 = vector.broadcast %cst_75 : f32 to vector<8x32xf32>
    %196 = arith.addf %194, %195 : vector<8x32xf32>
    %197 = vector.extract_strided_slice %180 {offsets = [0, 64], sizes = [8, 32], strides = [1, 1]} : vector<8x128xf32> to vector<8x32xf32>
    %198 = math.tanh %197 : vector<8x32xf32>
    %199 = vector.extract_strided_slice %180 {offsets = [0, 96], sizes = [8, 32], strides = [1, 1]} : vector<8x128xf32> to vector<8x32xf32>
    %cst_76 = arith.constant 5.000000e-01 : f32
    %200 = vector.broadcast %cst_76 : f32 to vector<8x32xf32>
    %201 = arith.mulf %200, %199 : vector<8x32xf32>
    %202 = math.tanh %201 : vector<8x32xf32>
    %cst_77 = arith.constant 5.000000e-01 : f32
    %203 = vector.broadcast %cst_77 : f32 to vector<8x32xf32>
    %204 = arith.mulf %203, %202 : vector<8x32xf32>
    %cst_78 = arith.constant 5.000000e-01 : f32
    %205 = vector.broadcast %cst_78 : f32 to vector<8x32xf32>
    %206 = arith.addf %204, %205 : vector<8x32xf32>
    %207 = arith.mulf %196, %125 : vector<8x32xf32>
    %208 = arith.mulf %188, %198 : vector<8x32xf32>
    %209 = arith.addf %207, %208 : vector<8x32xf32>
    %210 = math.tanh %209 : vector<8x32xf32>
    %211 = arith.mulf %206, %210 : vector<8x32xf32>
    %cst_79 = arith.constant dense<0.000000e+00> : vector<8x32xf32>
    %212 = tpu.matmul %211, %3, %cst_79 {dimension_numbers = #tpu.dot_dimension_numbers<[1], [0], [0], [1], [0, 0, 1, 1], [], []>} : vector<8x32xf32>, vector<32x32xf32>, vector<8x32xf32> -> vector<8x32xf32>
    %213 = vector.broadcast %4 : vector<1x32xf32> to vector<8x32xf32>
    %214 = arith.addf %212, %213 : vector<8x32xf32>
    %cst_80 = arith.constant dense<0.000000e+00> : vector<8x128xf32>
    %215 = tpu.matmul %214, %5, %cst_80 {dimension_numbers = #tpu.dot_dimension_numbers<[1], [0], [0], [1], [0, 0, 1, 1], [], []>} : vector<8x32xf32>, vector<32x128xf32>, vector<8x128xf32> -> vector<8x128xf32>
    %216 = vector.broadcast %7 : vector<1x128xf32> to vector<8x128xf32>
    %217 = arith.addf %215, %216 : vector<8x128xf32>
    %cst_81 = arith.constant dense<0.000000e+00> : vector<8x128xf32>
    %218 = tpu.matmul %166, %6, %cst_81 {dimension_numbers = #tpu.dot_dimension_numbers<[1], [0], [0], [1], [0, 0, 1, 1], [], []>} : vector<8x32xf32>, vector<32x128xf32>, vector<8x128xf32> -> vector<8x128xf32>
    %219 = arith.addf %133, %218 : vector<8x128xf32>
    %220 = vector.extract_strided_slice %219 {offsets = [0, 0], sizes = [8, 32], strides = [1, 1]} : vector<8x128xf32> to vector<8x32xf32>
    %cst_82 = arith.constant 5.000000e-01 : f32
    %221 = vector.broadcast %cst_82 : f32 to vector<8x32xf32>
    %222 = arith.mulf %221, %220 : vector<8x32xf32>
    %223 = math.tanh %222 : vector<8x32xf32>
    %cst_83 = arith.constant 5.000000e-01 : f32
    %224 = vector.broadcast %cst_83 : f32 to vector<8x32xf32>
    %225 = arith.mulf %224, %223 : vector<8x32xf32>
    %cst_84 = arith.constant 5.000000e-01 : f32
    %226 = vector.broadcast %cst_84 : f32 to vector<8x32xf32>
    %227 = arith.addf %225, %226 : vector<8x32xf32>
    %228 = vector.extract_strided_slice %219 {offsets = [0, 32], sizes = [8, 32], strides = [1, 1]} : vector<8x128xf32> to vector<8x32xf32>
    %cst_85 = arith.constant 5.000000e-01 : f32
    %229 = vector.broadcast %cst_85 : f32 to vector<8x32xf32>
    %230 = arith.mulf %229, %228 : vector<8x32xf32>
    %231 = math.tanh %230 : vector<8x32xf32>
    %cst_86 = arith.constant 5.000000e-01 : f32
    %232 = vector.broadcast %cst_86 : f32 to vector<8x32xf32>
    %233 = arith.mulf %232, %231 : vector<8x32xf32>
    %cst_87 = arith.constant 5.000000e-01 : f32
    %234 = vector.broadcast %cst_87 : f32 to vector<8x32xf32>
    %235 = arith.addf %233, %234 : vector<8x32xf32>
    %236 = vector.extract_strided_slice %219 {offsets = [0, 64], sizes = [8, 32], strides = [1, 1]} : vector<8x128xf32> to vector<8x32xf32>
    %237 = math.tanh %236 : vector<8x32xf32>
    %238 = vector.extract_strided_slice %219 {offsets = [0, 96], sizes = [8, 32], strides = [1, 1]} : vector<8x128xf32> to vector<8x32xf32>
    %cst_88 = arith.constant 5.000000e-01 : f32
    %239 = vector.broadcast %cst_88 : f32 to vector<8x32xf32>
    %240 = arith.mulf %239, %238 : vector<8x32xf32>
    %241 = math.tanh %240 : vector<8x32xf32>
    %cst_89 = arith.constant 5.000000e-01 : f32
    %242 = vector.broadcast %cst_89 : f32 to vector<8x32xf32>
    %243 = arith.mulf %242, %241 : vector<8x32xf32>
    %cst_90 = arith.constant 5.000000e-01 : f32
    %244 = vector.broadcast %cst_90 : f32 to vector<8x32xf32>
    %245 = arith.addf %243, %244 : vector<8x32xf32>
    %246 = arith.mulf %235, %164 : vector<8x32xf32>
    %247 = arith.mulf %227, %237 : vector<8x32xf32>
    %248 = arith.addf %246, %247 : vector<8x32xf32>
    %249 = math.tanh %248 : vector<8x32xf32>
    %250 = arith.mulf %245, %249 : vector<8x32xf32>
    %cst_91 = arith.constant dense<0.000000e+00> : vector<8x64xf32>
    %251 = tpu.matmul %250, %8, %cst_91 {dimension_numbers = #tpu.dot_dimension_numbers<[1], [0], [0], [1], [0, 0, 1, 1], [], []>} : vector<8x32xf32>, vector<32x64xf32>, vector<8x64xf32> -> vector<8x64xf32>
    %252 = vector.broadcast %9 : vector<1x64xf32> to vector<8x64xf32>
    %253 = arith.addf %251, %252 : vector<8x64xf32>
    %cst_92 = arith.constant dense<0.000000e+00> : vector<8x1xf32>
    %254 = tpu.matmul %253, %10, %cst_92 {dimension_numbers = #tpu.dot_dimension_numbers<[1], [0], [0], [1], [0, 0, 1, 1], [], []>} : vector<8x64xf32>, vector<64x1xf32>, vector<8x1xf32> -> vector<8x1xf32>
    %255 = vector.broadcast %11 : vector<1x1xf32> to vector<8x1xf32>
    %256 = arith.addf %254, %255 : vector<8x1xf32>
    %c1_i32 = arith.constant 1 : i32
    %257 = vector.broadcast %c1_i32 : i32 to vector<8x128xi32>
    %258 = arith.cmpi eq, %52, %257 : vector<8x128xi32>
    %259 = vector.shape_cast %256 : vector<8x1xf32> to vector<8x1xf32>
    %260 = vector.broadcast %259 : vector<8x1xf32> to vector<8x128xf32>
    %261 = arith.select %258, %260, %177 : vector<8x128xi1>, vector<8x128xf32>
    %262 = vector.extract_strided_slice %50 {offsets = [24, 0], sizes = [8, 128], strides = [1, 1]} : vector<80x128xf32> to vector<8x128xf32>
    %cst_93 = arith.constant dense<0.000000e+00> : vector<8x128xf32>
    %263 = tpu.matmul %211, %1, %cst_93 {dimension_numbers = #tpu.dot_dimension_numbers<[1], [0], [0], [1], [0, 0, 1, 1], [], []>} : vector<8x32xf32>, vector<32x128xf32>, vector<8x128xf32> -> vector<8x128xf32>
    %264 = arith.addf %262, %263 : vector<8x128xf32>
    %265 = vector.extract_strided_slice %264 {offsets = [0, 0], sizes = [8, 32], strides = [1, 1]} : vector<8x128xf32> to vector<8x32xf32>
    %cst_94 = arith.constant 5.000000e-01 : f32
    %266 = vector.broadcast %cst_94 : f32 to vector<8x32xf32>
    %267 = arith.mulf %266, %265 : vector<8x32xf32>
    %268 = math.tanh %267 : vector<8x32xf32>
    %cst_95 = arith.constant 5.000000e-01 : f32
    %269 = vector.broadcast %cst_95 : f32 to vector<8x32xf32>
    %270 = arith.mulf %269, %268 : vector<8x32xf32>
    %cst_96 = arith.constant 5.000000e-01 : f32
    %271 = vector.broadcast %cst_96 : f32 to vector<8x32xf32>
    %272 = arith.addf %270, %271 : vector<8x32xf32>
    %273 = vector.extract_strided_slice %264 {offsets = [0, 32], sizes = [8, 32], strides = [1, 1]} : vector<8x128xf32> to vector<8x32xf32>
    %cst_97 = arith.constant 5.000000e-01 : f32
    %274 = vector.broadcast %cst_97 : f32 to vector<8x32xf32>
    %275 = arith.mulf %274, %273 : vector<8x32xf32>
    %276 = math.tanh %275 : vector<8x32xf32>
    %cst_98 = arith.constant 5.000000e-01 : f32
    %277 = vector.broadcast %cst_98 : f32 to vector<8x32xf32>
    %278 = arith.mulf %277, %276 : vector<8x32xf32>
    %cst_99 = arith.constant 5.000000e-01 : f32
    %279 = vector.broadcast %cst_99 : f32 to vector<8x32xf32>
    %280 = arith.addf %278, %279 : vector<8x32xf32>
    %281 = vector.extract_strided_slice %264 {offsets = [0, 64], sizes = [8, 32], strides = [1, 1]} : vector<8x128xf32> to vector<8x32xf32>
    %282 = math.tanh %281 : vector<8x32xf32>
    %283 = vector.extract_strided_slice %264 {offsets = [0, 96], sizes = [8, 32], strides = [1, 1]} : vector<8x128xf32> to vector<8x32xf32>
    %cst_100 = arith.constant 5.000000e-01 : f32
    %284 = vector.broadcast %cst_100 : f32 to vector<8x32xf32>
    %285 = arith.mulf %284, %283 : vector<8x32xf32>
    %286 = math.tanh %285 : vector<8x32xf32>
    %cst_101 = arith.constant 5.000000e-01 : f32
    %287 = vector.broadcast %cst_101 : f32 to vector<8x32xf32>
    %288 = arith.mulf %287, %286 : vector<8x32xf32>
    %cst_102 = arith.constant 5.000000e-01 : f32
    %289 = vector.broadcast %cst_102 : f32 to vector<8x32xf32>
    %290 = arith.addf %288, %289 : vector<8x32xf32>
    %291 = arith.mulf %280, %209 : vector<8x32xf32>
    %292 = arith.mulf %272, %282 : vector<8x32xf32>
    %293 = arith.addf %291, %292 : vector<8x32xf32>
    %294 = math.tanh %293 : vector<8x32xf32>
    %295 = arith.mulf %290, %294 : vector<8x32xf32>
    %cst_103 = arith.constant dense<0.000000e+00> : vector<8x32xf32>
    %296 = tpu.matmul %295, %3, %cst_103 {dimension_numbers = #tpu.dot_dimension_numbers<[1], [0], [0], [1], [0, 0, 1, 1], [], []>} : vector<8x32xf32>, vector<32x32xf32>, vector<8x32xf32> -> vector<8x32xf32>
    %297 = vector.broadcast %4 : vector<1x32xf32> to vector<8x32xf32>
    %298 = arith.addf %296, %297 : vector<8x32xf32>
    %cst_104 = arith.constant dense<0.000000e+00> : vector<8x128xf32>
    %299 = tpu.matmul %298, %5, %cst_104 {dimension_numbers = #tpu.dot_dimension_numbers<[1], [0], [0], [1], [0, 0, 1, 1], [], []>} : vector<8x32xf32>, vector<32x128xf32>, vector<8x128xf32> -> vector<8x128xf32>
    %300 = vector.broadcast %7 : vector<1x128xf32> to vector<8x128xf32>
    %301 = arith.addf %299, %300 : vector<8x128xf32>
    %cst_105 = arith.constant dense<0.000000e+00> : vector<8x128xf32>
    %302 = tpu.matmul %250, %6, %cst_105 {dimension_numbers = #tpu.dot_dimension_numbers<[1], [0], [0], [1], [0, 0, 1, 1], [], []>} : vector<8x32xf32>, vector<32x128xf32>, vector<8x128xf32> -> vector<8x128xf32>
    %303 = arith.addf %217, %302 : vector<8x128xf32>
    %304 = vector.extract_strided_slice %303 {offsets = [0, 0], sizes = [8, 32], strides = [1, 1]} : vector<8x128xf32> to vector<8x32xf32>
    %cst_106 = arith.constant 5.000000e-01 : f32
    %305 = vector.broadcast %cst_106 : f32 to vector<8x32xf32>
    %306 = arith.mulf %305, %304 : vector<8x32xf32>
    %307 = math.tanh %306 : vector<8x32xf32>
    %cst_107 = arith.constant 5.000000e-01 : f32
    %308 = vector.broadcast %cst_107 : f32 to vector<8x32xf32>
    %309 = arith.mulf %308, %307 : vector<8x32xf32>
    %cst_108 = arith.constant 5.000000e-01 : f32
    %310 = vector.broadcast %cst_108 : f32 to vector<8x32xf32>
    %311 = arith.addf %309, %310 : vector<8x32xf32>
    %312 = vector.extract_strided_slice %303 {offsets = [0, 32], sizes = [8, 32], strides = [1, 1]} : vector<8x128xf32> to vector<8x32xf32>
    %cst_109 = arith.constant 5.000000e-01 : f32
    %313 = vector.broadcast %cst_109 : f32 to vector<8x32xf32>
    %314 = arith.mulf %313, %312 : vector<8x32xf32>
    %315 = math.tanh %314 : vector<8x32xf32>
    %cst_110 = arith.constant 5.000000e-01 : f32
    %316 = vector.broadcast %cst_110 : f32 to vector<8x32xf32>
    %317 = arith.mulf %316, %315 : vector<8x32xf32>
    %cst_111 = arith.constant 5.000000e-01 : f32
    %318 = vector.broadcast %cst_111 : f32 to vector<8x32xf32>
    %319 = arith.addf %317, %318 : vector<8x32xf32>
    %320 = vector.extract_strided_slice %303 {offsets = [0, 64], sizes = [8, 32], strides = [1, 1]} : vector<8x128xf32> to vector<8x32xf32>
    %321 = math.tanh %320 : vector<8x32xf32>
    %322 = vector.extract_strided_slice %303 {offsets = [0, 96], sizes = [8, 32], strides = [1, 1]} : vector<8x128xf32> to vector<8x32xf32>
    %cst_112 = arith.constant 5.000000e-01 : f32
    %323 = vector.broadcast %cst_112 : f32 to vector<8x32xf32>
    %324 = arith.mulf %323, %322 : vector<8x32xf32>
    %325 = math.tanh %324 : vector<8x32xf32>
    %cst_113 = arith.constant 5.000000e-01 : f32
    %326 = vector.broadcast %cst_113 : f32 to vector<8x32xf32>
    %327 = arith.mulf %326, %325 : vector<8x32xf32>
    %cst_114 = arith.constant 5.000000e-01 : f32
    %328 = vector.broadcast %cst_114 : f32 to vector<8x32xf32>
    %329 = arith.addf %327, %328 : vector<8x32xf32>
    %330 = arith.mulf %319, %248 : vector<8x32xf32>
    %331 = arith.mulf %311, %321 : vector<8x32xf32>
    %332 = arith.addf %330, %331 : vector<8x32xf32>
    %333 = math.tanh %332 : vector<8x32xf32>
    %334 = arith.mulf %329, %333 : vector<8x32xf32>
    %cst_115 = arith.constant dense<0.000000e+00> : vector<8x64xf32>
    %335 = tpu.matmul %334, %8, %cst_115 {dimension_numbers = #tpu.dot_dimension_numbers<[1], [0], [0], [1], [0, 0, 1, 1], [], []>} : vector<8x32xf32>, vector<32x64xf32>, vector<8x64xf32> -> vector<8x64xf32>
    %336 = vector.broadcast %9 : vector<1x64xf32> to vector<8x64xf32>
    %337 = arith.addf %335, %336 : vector<8x64xf32>
    %cst_116 = arith.constant dense<0.000000e+00> : vector<8x1xf32>
    %338 = tpu.matmul %337, %10, %cst_116 {dimension_numbers = #tpu.dot_dimension_numbers<[1], [0], [0], [1], [0, 0, 1, 1], [], []>} : vector<8x64xf32>, vector<64x1xf32>, vector<8x1xf32> -> vector<8x1xf32>
    %339 = vector.broadcast %11 : vector<1x1xf32> to vector<8x1xf32>
    %340 = arith.addf %338, %339 : vector<8x1xf32>
    %c2_i32 = arith.constant 2 : i32
    %341 = vector.broadcast %c2_i32 : i32 to vector<8x128xi32>
    %342 = arith.cmpi eq, %52, %341 : vector<8x128xi32>
    %343 = vector.shape_cast %340 : vector<8x1xf32> to vector<8x1xf32>
    %344 = vector.broadcast %343 : vector<8x1xf32> to vector<8x128xf32>
    %345 = arith.select %342, %344, %261 : vector<8x128xi1>, vector<8x128xf32>
    %346 = vector.extract_strided_slice %50 {offsets = [32, 0], sizes = [8, 128], strides = [1, 1]} : vector<80x128xf32> to vector<8x128xf32>
    %cst_117 = arith.constant dense<0.000000e+00> : vector<8x128xf32>
    %347 = tpu.matmul %295, %1, %cst_117 {dimension_numbers = #tpu.dot_dimension_numbers<[1], [0], [0], [1], [0, 0, 1, 1], [], []>} : vector<8x32xf32>, vector<32x128xf32>, vector<8x128xf32> -> vector<8x128xf32>
    %348 = arith.addf %346, %347 : vector<8x128xf32>
    %349 = vector.extract_strided_slice %348 {offsets = [0, 0], sizes = [8, 32], strides = [1, 1]} : vector<8x128xf32> to vector<8x32xf32>
    %cst_118 = arith.constant 5.000000e-01 : f32
    %350 = vector.broadcast %cst_118 : f32 to vector<8x32xf32>
    %351 = arith.mulf %350, %349 : vector<8x32xf32>
    %352 = math.tanh %351 : vector<8x32xf32>
    %cst_119 = arith.constant 5.000000e-01 : f32
    %353 = vector.broadcast %cst_119 : f32 to vector<8x32xf32>
    %354 = arith.mulf %353, %352 : vector<8x32xf32>
    %cst_120 = arith.constant 5.000000e-01 : f32
    %355 = vector.broadcast %cst_120 : f32 to vector<8x32xf32>
    %356 = arith.addf %354, %355 : vector<8x32xf32>
    %357 = vector.extract_strided_slice %348 {offsets = [0, 32], sizes = [8, 32], strides = [1, 1]} : vector<8x128xf32> to vector<8x32xf32>
    %cst_121 = arith.constant 5.000000e-01 : f32
    %358 = vector.broadcast %cst_121 : f32 to vector<8x32xf32>
    %359 = arith.mulf %358, %357 : vector<8x32xf32>
    %360 = math.tanh %359 : vector<8x32xf32>
    %cst_122 = arith.constant 5.000000e-01 : f32
    %361 = vector.broadcast %cst_122 : f32 to vector<8x32xf32>
    %362 = arith.mulf %361, %360 : vector<8x32xf32>
    %cst_123 = arith.constant 5.000000e-01 : f32
    %363 = vector.broadcast %cst_123 : f32 to vector<8x32xf32>
    %364 = arith.addf %362, %363 : vector<8x32xf32>
    %365 = vector.extract_strided_slice %348 {offsets = [0, 64], sizes = [8, 32], strides = [1, 1]} : vector<8x128xf32> to vector<8x32xf32>
    %366 = math.tanh %365 : vector<8x32xf32>
    %367 = vector.extract_strided_slice %348 {offsets = [0, 96], sizes = [8, 32], strides = [1, 1]} : vector<8x128xf32> to vector<8x32xf32>
    %cst_124 = arith.constant 5.000000e-01 : f32
    %368 = vector.broadcast %cst_124 : f32 to vector<8x32xf32>
    %369 = arith.mulf %368, %367 : vector<8x32xf32>
    %370 = math.tanh %369 : vector<8x32xf32>
    %cst_125 = arith.constant 5.000000e-01 : f32
    %371 = vector.broadcast %cst_125 : f32 to vector<8x32xf32>
    %372 = arith.mulf %371, %370 : vector<8x32xf32>
    %cst_126 = arith.constant 5.000000e-01 : f32
    %373 = vector.broadcast %cst_126 : f32 to vector<8x32xf32>
    %374 = arith.addf %372, %373 : vector<8x32xf32>
    %375 = arith.mulf %364, %293 : vector<8x32xf32>
    %376 = arith.mulf %356, %366 : vector<8x32xf32>
    %377 = arith.addf %375, %376 : vector<8x32xf32>
    %378 = math.tanh %377 : vector<8x32xf32>
    %379 = arith.mulf %374, %378 : vector<8x32xf32>
    %cst_127 = arith.constant dense<0.000000e+00> : vector<8x32xf32>
    %380 = tpu.matmul %379, %3, %cst_127 {dimension_numbers = #tpu.dot_dimension_numbers<[1], [0], [0], [1], [0, 0, 1, 1], [], []>} : vector<8x32xf32>, vector<32x32xf32>, vector<8x32xf32> -> vector<8x32xf32>
    %381 = vector.broadcast %4 : vector<1x32xf32> to vector<8x32xf32>
    %382 = arith.addf %380, %381 : vector<8x32xf32>
    %cst_128 = arith.constant dense<0.000000e+00> : vector<8x128xf32>
    %383 = tpu.matmul %382, %5, %cst_128 {dimension_numbers = #tpu.dot_dimension_numbers<[1], [0], [0], [1], [0, 0, 1, 1], [], []>} : vector<8x32xf32>, vector<32x128xf32>, vector<8x128xf32> -> vector<8x128xf32>
    %384 = vector.broadcast %7 : vector<1x128xf32> to vector<8x128xf32>
    %385 = arith.addf %383, %384 : vector<8x128xf32>
    %cst_129 = arith.constant dense<0.000000e+00> : vector<8x128xf32>
    %386 = tpu.matmul %334, %6, %cst_129 {dimension_numbers = #tpu.dot_dimension_numbers<[1], [0], [0], [1], [0, 0, 1, 1], [], []>} : vector<8x32xf32>, vector<32x128xf32>, vector<8x128xf32> -> vector<8x128xf32>
    %387 = arith.addf %301, %386 : vector<8x128xf32>
    %388 = vector.extract_strided_slice %387 {offsets = [0, 0], sizes = [8, 32], strides = [1, 1]} : vector<8x128xf32> to vector<8x32xf32>
    %cst_130 = arith.constant 5.000000e-01 : f32
    %389 = vector.broadcast %cst_130 : f32 to vector<8x32xf32>
    %390 = arith.mulf %389, %388 : vector<8x32xf32>
    %391 = math.tanh %390 : vector<8x32xf32>
    %cst_131 = arith.constant 5.000000e-01 : f32
    %392 = vector.broadcast %cst_131 : f32 to vector<8x32xf32>
    %393 = arith.mulf %392, %391 : vector<8x32xf32>
    %cst_132 = arith.constant 5.000000e-01 : f32
    %394 = vector.broadcast %cst_132 : f32 to vector<8x32xf32>
    %395 = arith.addf %393, %394 : vector<8x32xf32>
    %396 = vector.extract_strided_slice %387 {offsets = [0, 32], sizes = [8, 32], strides = [1, 1]} : vector<8x128xf32> to vector<8x32xf32>
    %cst_133 = arith.constant 5.000000e-01 : f32
    %397 = vector.broadcast %cst_133 : f32 to vector<8x32xf32>
    %398 = arith.mulf %397, %396 : vector<8x32xf32>
    %399 = math.tanh %398 : vector<8x32xf32>
    %cst_134 = arith.constant 5.000000e-01 : f32
    %400 = vector.broadcast %cst_134 : f32 to vector<8x32xf32>
    %401 = arith.mulf %400, %399 : vector<8x32xf32>
    %cst_135 = arith.constant 5.000000e-01 : f32
    %402 = vector.broadcast %cst_135 : f32 to vector<8x32xf32>
    %403 = arith.addf %401, %402 : vector<8x32xf32>
    %404 = vector.extract_strided_slice %387 {offsets = [0, 64], sizes = [8, 32], strides = [1, 1]} : vector<8x128xf32> to vector<8x32xf32>
    %405 = math.tanh %404 : vector<8x32xf32>
    %406 = vector.extract_strided_slice %387 {offsets = [0, 96], sizes = [8, 32], strides = [1, 1]} : vector<8x128xf32> to vector<8x32xf32>
    %cst_136 = arith.constant 5.000000e-01 : f32
    %407 = vector.broadcast %cst_136 : f32 to vector<8x32xf32>
    %408 = arith.mulf %407, %406 : vector<8x32xf32>
    %409 = math.tanh %408 : vector<8x32xf32>
    %cst_137 = arith.constant 5.000000e-01 : f32
    %410 = vector.broadcast %cst_137 : f32 to vector<8x32xf32>
    %411 = arith.mulf %410, %409 : vector<8x32xf32>
    %cst_138 = arith.constant 5.000000e-01 : f32
    %412 = vector.broadcast %cst_138 : f32 to vector<8x32xf32>
    %413 = arith.addf %411, %412 : vector<8x32xf32>
    %414 = arith.mulf %403, %332 : vector<8x32xf32>
    %415 = arith.mulf %395, %405 : vector<8x32xf32>
    %416 = arith.addf %414, %415 : vector<8x32xf32>
    %417 = math.tanh %416 : vector<8x32xf32>
    %418 = arith.mulf %413, %417 : vector<8x32xf32>
    %cst_139 = arith.constant dense<0.000000e+00> : vector<8x64xf32>
    %419 = tpu.matmul %418, %8, %cst_139 {dimension_numbers = #tpu.dot_dimension_numbers<[1], [0], [0], [1], [0, 0, 1, 1], [], []>} : vector<8x32xf32>, vector<32x64xf32>, vector<8x64xf32> -> vector<8x64xf32>
    %420 = vector.broadcast %9 : vector<1x64xf32> to vector<8x64xf32>
    %421 = arith.addf %419, %420 : vector<8x64xf32>
    %cst_140 = arith.constant dense<0.000000e+00> : vector<8x1xf32>
    %422 = tpu.matmul %421, %10, %cst_140 {dimension_numbers = #tpu.dot_dimension_numbers<[1], [0], [0], [1], [0, 0, 1, 1], [], []>} : vector<8x64xf32>, vector<64x1xf32>, vector<8x1xf32> -> vector<8x1xf32>
    %423 = vector.broadcast %11 : vector<1x1xf32> to vector<8x1xf32>
    %424 = arith.addf %422, %423 : vector<8x1xf32>
    %c3_i32 = arith.constant 3 : i32
    %425 = vector.broadcast %c3_i32 : i32 to vector<8x128xi32>
    %426 = arith.cmpi eq, %52, %425 : vector<8x128xi32>
    %427 = vector.shape_cast %424 : vector<8x1xf32> to vector<8x1xf32>
    %428 = vector.broadcast %427 : vector<8x1xf32> to vector<8x128xf32>
    %429 = arith.select %426, %428, %345 : vector<8x128xi1>, vector<8x128xf32>
    %430 = vector.extract_strided_slice %50 {offsets = [40, 0], sizes = [8, 128], strides = [1, 1]} : vector<80x128xf32> to vector<8x128xf32>
    %cst_141 = arith.constant dense<0.000000e+00> : vector<8x128xf32>
    %431 = tpu.matmul %379, %1, %cst_141 {dimension_numbers = #tpu.dot_dimension_numbers<[1], [0], [0], [1], [0, 0, 1, 1], [], []>} : vector<8x32xf32>, vector<32x128xf32>, vector<8x128xf32> -> vector<8x128xf32>
    %432 = arith.addf %430, %431 : vector<8x128xf32>
    %433 = vector.extract_strided_slice %432 {offsets = [0, 0], sizes = [8, 32], strides = [1, 1]} : vector<8x128xf32> to vector<8x32xf32>
    %cst_142 = arith.constant 5.000000e-01 : f32
    %434 = vector.broadcast %cst_142 : f32 to vector<8x32xf32>
    %435 = arith.mulf %434, %433 : vector<8x32xf32>
    %436 = math.tanh %435 : vector<8x32xf32>
    %cst_143 = arith.constant 5.000000e-01 : f32
    %437 = vector.broadcast %cst_143 : f32 to vector<8x32xf32>
    %438 = arith.mulf %437, %436 : vector<8x32xf32>
    %cst_144 = arith.constant 5.000000e-01 : f32
    %439 = vector.broadcast %cst_144 : f32 to vector<8x32xf32>
    %440 = arith.addf %438, %439 : vector<8x32xf32>
    %441 = vector.extract_strided_slice %432 {offsets = [0, 32], sizes = [8, 32], strides = [1, 1]} : vector<8x128xf32> to vector<8x32xf32>
    %cst_145 = arith.constant 5.000000e-01 : f32
    %442 = vector.broadcast %cst_145 : f32 to vector<8x32xf32>
    %443 = arith.mulf %442, %441 : vector<8x32xf32>
    %444 = math.tanh %443 : vector<8x32xf32>
    %cst_146 = arith.constant 5.000000e-01 : f32
    %445 = vector.broadcast %cst_146 : f32 to vector<8x32xf32>
    %446 = arith.mulf %445, %444 : vector<8x32xf32>
    %cst_147 = arith.constant 5.000000e-01 : f32
    %447 = vector.broadcast %cst_147 : f32 to vector<8x32xf32>
    %448 = arith.addf %446, %447 : vector<8x32xf32>
    %449 = vector.extract_strided_slice %432 {offsets = [0, 64], sizes = [8, 32], strides = [1, 1]} : vector<8x128xf32> to vector<8x32xf32>
    %450 = math.tanh %449 : vector<8x32xf32>
    %451 = vector.extract_strided_slice %432 {offsets = [0, 96], sizes = [8, 32], strides = [1, 1]} : vector<8x128xf32> to vector<8x32xf32>
    %cst_148 = arith.constant 5.000000e-01 : f32
    %452 = vector.broadcast %cst_148 : f32 to vector<8x32xf32>
    %453 = arith.mulf %452, %451 : vector<8x32xf32>
    %454 = math.tanh %453 : vector<8x32xf32>
    %cst_149 = arith.constant 5.000000e-01 : f32
    %455 = vector.broadcast %cst_149 : f32 to vector<8x32xf32>
    %456 = arith.mulf %455, %454 : vector<8x32xf32>
    %cst_150 = arith.constant 5.000000e-01 : f32
    %457 = vector.broadcast %cst_150 : f32 to vector<8x32xf32>
    %458 = arith.addf %456, %457 : vector<8x32xf32>
    %459 = arith.mulf %448, %377 : vector<8x32xf32>
    %460 = arith.mulf %440, %450 : vector<8x32xf32>
    %461 = arith.addf %459, %460 : vector<8x32xf32>
    %462 = math.tanh %461 : vector<8x32xf32>
    %463 = arith.mulf %458, %462 : vector<8x32xf32>
    %cst_151 = arith.constant dense<0.000000e+00> : vector<8x32xf32>
    %464 = tpu.matmul %463, %3, %cst_151 {dimension_numbers = #tpu.dot_dimension_numbers<[1], [0], [0], [1], [0, 0, 1, 1], [], []>} : vector<8x32xf32>, vector<32x32xf32>, vector<8x32xf32> -> vector<8x32xf32>
    %465 = vector.broadcast %4 : vector<1x32xf32> to vector<8x32xf32>
    %466 = arith.addf %464, %465 : vector<8x32xf32>
    %cst_152 = arith.constant dense<0.000000e+00> : vector<8x128xf32>
    %467 = tpu.matmul %466, %5, %cst_152 {dimension_numbers = #tpu.dot_dimension_numbers<[1], [0], [0], [1], [0, 0, 1, 1], [], []>} : vector<8x32xf32>, vector<32x128xf32>, vector<8x128xf32> -> vector<8x128xf32>
    %468 = vector.broadcast %7 : vector<1x128xf32> to vector<8x128xf32>
    %469 = arith.addf %467, %468 : vector<8x128xf32>
    %cst_153 = arith.constant dense<0.000000e+00> : vector<8x128xf32>
    %470 = tpu.matmul %418, %6, %cst_153 {dimension_numbers = #tpu.dot_dimension_numbers<[1], [0], [0], [1], [0, 0, 1, 1], [], []>} : vector<8x32xf32>, vector<32x128xf32>, vector<8x128xf32> -> vector<8x128xf32>
    %471 = arith.addf %385, %470 : vector<8x128xf32>
    %472 = vector.extract_strided_slice %471 {offsets = [0, 0], sizes = [8, 32], strides = [1, 1]} : vector<8x128xf32> to vector<8x32xf32>
    %cst_154 = arith.constant 5.000000e-01 : f32
    %473 = vector.broadcast %cst_154 : f32 to vector<8x32xf32>
    %474 = arith.mulf %473, %472 : vector<8x32xf32>
    %475 = math.tanh %474 : vector<8x32xf32>
    %cst_155 = arith.constant 5.000000e-01 : f32
    %476 = vector.broadcast %cst_155 : f32 to vector<8x32xf32>
    %477 = arith.mulf %476, %475 : vector<8x32xf32>
    %cst_156 = arith.constant 5.000000e-01 : f32
    %478 = vector.broadcast %cst_156 : f32 to vector<8x32xf32>
    %479 = arith.addf %477, %478 : vector<8x32xf32>
    %480 = vector.extract_strided_slice %471 {offsets = [0, 32], sizes = [8, 32], strides = [1, 1]} : vector<8x128xf32> to vector<8x32xf32>
    %cst_157 = arith.constant 5.000000e-01 : f32
    %481 = vector.broadcast %cst_157 : f32 to vector<8x32xf32>
    %482 = arith.mulf %481, %480 : vector<8x32xf32>
    %483 = math.tanh %482 : vector<8x32xf32>
    %cst_158 = arith.constant 5.000000e-01 : f32
    %484 = vector.broadcast %cst_158 : f32 to vector<8x32xf32>
    %485 = arith.mulf %484, %483 : vector<8x32xf32>
    %cst_159 = arith.constant 5.000000e-01 : f32
    %486 = vector.broadcast %cst_159 : f32 to vector<8x32xf32>
    %487 = arith.addf %485, %486 : vector<8x32xf32>
    %488 = vector.extract_strided_slice %471 {offsets = [0, 64], sizes = [8, 32], strides = [1, 1]} : vector<8x128xf32> to vector<8x32xf32>
    %489 = math.tanh %488 : vector<8x32xf32>
    %490 = vector.extract_strided_slice %471 {offsets = [0, 96], sizes = [8, 32], strides = [1, 1]} : vector<8x128xf32> to vector<8x32xf32>
    %cst_160 = arith.constant 5.000000e-01 : f32
    %491 = vector.broadcast %cst_160 : f32 to vector<8x32xf32>
    %492 = arith.mulf %491, %490 : vector<8x32xf32>
    %493 = math.tanh %492 : vector<8x32xf32>
    %cst_161 = arith.constant 5.000000e-01 : f32
    %494 = vector.broadcast %cst_161 : f32 to vector<8x32xf32>
    %495 = arith.mulf %494, %493 : vector<8x32xf32>
    %cst_162 = arith.constant 5.000000e-01 : f32
    %496 = vector.broadcast %cst_162 : f32 to vector<8x32xf32>
    %497 = arith.addf %495, %496 : vector<8x32xf32>
    %498 = arith.mulf %487, %416 : vector<8x32xf32>
    %499 = arith.mulf %479, %489 : vector<8x32xf32>
    %500 = arith.addf %498, %499 : vector<8x32xf32>
    %501 = math.tanh %500 : vector<8x32xf32>
    %502 = arith.mulf %497, %501 : vector<8x32xf32>
    %cst_163 = arith.constant dense<0.000000e+00> : vector<8x64xf32>
    %503 = tpu.matmul %502, %8, %cst_163 {dimension_numbers = #tpu.dot_dimension_numbers<[1], [0], [0], [1], [0, 0, 1, 1], [], []>} : vector<8x32xf32>, vector<32x64xf32>, vector<8x64xf32> -> vector<8x64xf32>
    %504 = vector.broadcast %9 : vector<1x64xf32> to vector<8x64xf32>
    %505 = arith.addf %503, %504 : vector<8x64xf32>
    %cst_164 = arith.constant dense<0.000000e+00> : vector<8x1xf32>
    %506 = tpu.matmul %505, %10, %cst_164 {dimension_numbers = #tpu.dot_dimension_numbers<[1], [0], [0], [1], [0, 0, 1, 1], [], []>} : vector<8x64xf32>, vector<64x1xf32>, vector<8x1xf32> -> vector<8x1xf32>
    %507 = vector.broadcast %11 : vector<1x1xf32> to vector<8x1xf32>
    %508 = arith.addf %506, %507 : vector<8x1xf32>
    %c4_i32 = arith.constant 4 : i32
    %509 = vector.broadcast %c4_i32 : i32 to vector<8x128xi32>
    %510 = arith.cmpi eq, %52, %509 : vector<8x128xi32>
    %511 = vector.shape_cast %508 : vector<8x1xf32> to vector<8x1xf32>
    %512 = vector.broadcast %511 : vector<8x1xf32> to vector<8x128xf32>
    %513 = arith.select %510, %512, %429 : vector<8x128xi1>, vector<8x128xf32>
    %514 = vector.extract_strided_slice %50 {offsets = [48, 0], sizes = [8, 128], strides = [1, 1]} : vector<80x128xf32> to vector<8x128xf32>
    %cst_165 = arith.constant dense<0.000000e+00> : vector<8x128xf32>
    %515 = tpu.matmul %463, %1, %cst_165 {dimension_numbers = #tpu.dot_dimension_numbers<[1], [0], [0], [1], [0, 0, 1, 1], [], []>} : vector<8x32xf32>, vector<32x128xf32>, vector<8x128xf32> -> vector<8x128xf32>
    %516 = arith.addf %514, %515 : vector<8x128xf32>
    %517 = vector.extract_strided_slice %516 {offsets = [0, 0], sizes = [8, 32], strides = [1, 1]} : vector<8x128xf32> to vector<8x32xf32>
    %cst_166 = arith.constant 5.000000e-01 : f32
    %518 = vector.broadcast %cst_166 : f32 to vector<8x32xf32>
    %519 = arith.mulf %518, %517 : vector<8x32xf32>
    %520 = math.tanh %519 : vector<8x32xf32>
    %cst_167 = arith.constant 5.000000e-01 : f32
    %521 = vector.broadcast %cst_167 : f32 to vector<8x32xf32>
    %522 = arith.mulf %521, %520 : vector<8x32xf32>
    %cst_168 = arith.constant 5.000000e-01 : f32
    %523 = vector.broadcast %cst_168 : f32 to vector<8x32xf32>
    %524 = arith.addf %522, %523 : vector<8x32xf32>
    %525 = vector.extract_strided_slice %516 {offsets = [0, 32], sizes = [8, 32], strides = [1, 1]} : vector<8x128xf32> to vector<8x32xf32>
    %cst_169 = arith.constant 5.000000e-01 : f32
    %526 = vector.broadcast %cst_169 : f32 to vector<8x32xf32>
    %527 = arith.mulf %526, %525 : vector<8x32xf32>
    %528 = math.tanh %527 : vector<8x32xf32>
    %cst_170 = arith.constant 5.000000e-01 : f32
    %529 = vector.broadcast %cst_170 : f32 to vector<8x32xf32>
    %530 = arith.mulf %529, %528 : vector<8x32xf32>
    %cst_171 = arith.constant 5.000000e-01 : f32
    %531 = vector.broadcast %cst_171 : f32 to vector<8x32xf32>
    %532 = arith.addf %530, %531 : vector<8x32xf32>
    %533 = vector.extract_strided_slice %516 {offsets = [0, 64], sizes = [8, 32], strides = [1, 1]} : vector<8x128xf32> to vector<8x32xf32>
    %534 = math.tanh %533 : vector<8x32xf32>
    %535 = vector.extract_strided_slice %516 {offsets = [0, 96], sizes = [8, 32], strides = [1, 1]} : vector<8x128xf32> to vector<8x32xf32>
    %cst_172 = arith.constant 5.000000e-01 : f32
    %536 = vector.broadcast %cst_172 : f32 to vector<8x32xf32>
    %537 = arith.mulf %536, %535 : vector<8x32xf32>
    %538 = math.tanh %537 : vector<8x32xf32>
    %cst_173 = arith.constant 5.000000e-01 : f32
    %539 = vector.broadcast %cst_173 : f32 to vector<8x32xf32>
    %540 = arith.mulf %539, %538 : vector<8x32xf32>
    %cst_174 = arith.constant 5.000000e-01 : f32
    %541 = vector.broadcast %cst_174 : f32 to vector<8x32xf32>
    %542 = arith.addf %540, %541 : vector<8x32xf32>
    %543 = arith.mulf %532, %461 : vector<8x32xf32>
    %544 = arith.mulf %524, %534 : vector<8x32xf32>
    %545 = arith.addf %543, %544 : vector<8x32xf32>
    %546 = math.tanh %545 : vector<8x32xf32>
    %547 = arith.mulf %542, %546 : vector<8x32xf32>
    %cst_175 = arith.constant dense<0.000000e+00> : vector<8x32xf32>
    %548 = tpu.matmul %547, %3, %cst_175 {dimension_numbers = #tpu.dot_dimension_numbers<[1], [0], [0], [1], [0, 0, 1, 1], [], []>} : vector<8x32xf32>, vector<32x32xf32>, vector<8x32xf32> -> vector<8x32xf32>
    %549 = vector.broadcast %4 : vector<1x32xf32> to vector<8x32xf32>
    %550 = arith.addf %548, %549 : vector<8x32xf32>
    %cst_176 = arith.constant dense<0.000000e+00> : vector<8x128xf32>
    %551 = tpu.matmul %550, %5, %cst_176 {dimension_numbers = #tpu.dot_dimension_numbers<[1], [0], [0], [1], [0, 0, 1, 1], [], []>} : vector<8x32xf32>, vector<32x128xf32>, vector<8x128xf32> -> vector<8x128xf32>
    %552 = vector.broadcast %7 : vector<1x128xf32> to vector<8x128xf32>
    %553 = arith.addf %551, %552 : vector<8x128xf32>
    %cst_177 = arith.constant dense<0.000000e+00> : vector<8x128xf32>
    %554 = tpu.matmul %502, %6, %cst_177 {dimension_numbers = #tpu.dot_dimension_numbers<[1], [0], [0], [1], [0, 0, 1, 1], [], []>} : vector<8x32xf32>, vector<32x128xf32>, vector<8x128xf32> -> vector<8x128xf32>
    %555 = arith.addf %469, %554 : vector<8x128xf32>
    %556 = vector.extract_strided_slice %555 {offsets = [0, 0], sizes = [8, 32], strides = [1, 1]} : vector<8x128xf32> to vector<8x32xf32>
    %cst_178 = arith.constant 5.000000e-01 : f32
    %557 = vector.broadcast %cst_178 : f32 to vector<8x32xf32>
    %558 = arith.mulf %557, %556 : vector<8x32xf32>
    %559 = math.tanh %558 : vector<8x32xf32>
    %cst_179 = arith.constant 5.000000e-01 : f32
    %560 = vector.broadcast %cst_179 : f32 to vector<8x32xf32>
    %561 = arith.mulf %560, %559 : vector<8x32xf32>
    %cst_180 = arith.constant 5.000000e-01 : f32
    %562 = vector.broadcast %cst_180 : f32 to vector<8x32xf32>
    %563 = arith.addf %561, %562 : vector<8x32xf32>
    %564 = vector.extract_strided_slice %555 {offsets = [0, 32], sizes = [8, 32], strides = [1, 1]} : vector<8x128xf32> to vector<8x32xf32>
    %cst_181 = arith.constant 5.000000e-01 : f32
    %565 = vector.broadcast %cst_181 : f32 to vector<8x32xf32>
    %566 = arith.mulf %565, %564 : vector<8x32xf32>
    %567 = math.tanh %566 : vector<8x32xf32>
    %cst_182 = arith.constant 5.000000e-01 : f32
    %568 = vector.broadcast %cst_182 : f32 to vector<8x32xf32>
    %569 = arith.mulf %568, %567 : vector<8x32xf32>
    %cst_183 = arith.constant 5.000000e-01 : f32
    %570 = vector.broadcast %cst_183 : f32 to vector<8x32xf32>
    %571 = arith.addf %569, %570 : vector<8x32xf32>
    %572 = vector.extract_strided_slice %555 {offsets = [0, 64], sizes = [8, 32], strides = [1, 1]} : vector<8x128xf32> to vector<8x32xf32>
    %573 = math.tanh %572 : vector<8x32xf32>
    %574 = vector.extract_strided_slice %555 {offsets = [0, 96], sizes = [8, 32], strides = [1, 1]} : vector<8x128xf32> to vector<8x32xf32>
    %cst_184 = arith.constant 5.000000e-01 : f32
    %575 = vector.broadcast %cst_184 : f32 to vector<8x32xf32>
    %576 = arith.mulf %575, %574 : vector<8x32xf32>
    %577 = math.tanh %576 : vector<8x32xf32>
    %cst_185 = arith.constant 5.000000e-01 : f32
    %578 = vector.broadcast %cst_185 : f32 to vector<8x32xf32>
    %579 = arith.mulf %578, %577 : vector<8x32xf32>
    %cst_186 = arith.constant 5.000000e-01 : f32
    %580 = vector.broadcast %cst_186 : f32 to vector<8x32xf32>
    %581 = arith.addf %579, %580 : vector<8x32xf32>
    %582 = arith.mulf %571, %500 : vector<8x32xf32>
    %583 = arith.mulf %563, %573 : vector<8x32xf32>
    %584 = arith.addf %582, %583 : vector<8x32xf32>
    %585 = math.tanh %584 : vector<8x32xf32>
    %586 = arith.mulf %581, %585 : vector<8x32xf32>
    %cst_187 = arith.constant dense<0.000000e+00> : vector<8x64xf32>
    %587 = tpu.matmul %586, %8, %cst_187 {dimension_numbers = #tpu.dot_dimension_numbers<[1], [0], [0], [1], [0, 0, 1, 1], [], []>} : vector<8x32xf32>, vector<32x64xf32>, vector<8x64xf32> -> vector<8x64xf32>
    %588 = vector.broadcast %9 : vector<1x64xf32> to vector<8x64xf32>
    %589 = arith.addf %587, %588 : vector<8x64xf32>
    %cst_188 = arith.constant dense<0.000000e+00> : vector<8x1xf32>
    %590 = tpu.matmul %589, %10, %cst_188 {dimension_numbers = #tpu.dot_dimension_numbers<[1], [0], [0], [1], [0, 0, 1, 1], [], []>} : vector<8x64xf32>, vector<64x1xf32>, vector<8x1xf32> -> vector<8x1xf32>
    %591 = vector.broadcast %11 : vector<1x1xf32> to vector<8x1xf32>
    %592 = arith.addf %590, %591 : vector<8x1xf32>
    %c5_i32 = arith.constant 5 : i32
    %593 = vector.broadcast %c5_i32 : i32 to vector<8x128xi32>
    %594 = arith.cmpi eq, %52, %593 : vector<8x128xi32>
    %595 = vector.shape_cast %592 : vector<8x1xf32> to vector<8x1xf32>
    %596 = vector.broadcast %595 : vector<8x1xf32> to vector<8x128xf32>
    %597 = arith.select %594, %596, %513 : vector<8x128xi1>, vector<8x128xf32>
    %598 = vector.extract_strided_slice %50 {offsets = [56, 0], sizes = [8, 128], strides = [1, 1]} : vector<80x128xf32> to vector<8x128xf32>
    %cst_189 = arith.constant dense<0.000000e+00> : vector<8x128xf32>
    %599 = tpu.matmul %547, %1, %cst_189 {dimension_numbers = #tpu.dot_dimension_numbers<[1], [0], [0], [1], [0, 0, 1, 1], [], []>} : vector<8x32xf32>, vector<32x128xf32>, vector<8x128xf32> -> vector<8x128xf32>
    %600 = arith.addf %598, %599 : vector<8x128xf32>
    %601 = vector.extract_strided_slice %600 {offsets = [0, 0], sizes = [8, 32], strides = [1, 1]} : vector<8x128xf32> to vector<8x32xf32>
    %cst_190 = arith.constant 5.000000e-01 : f32
    %602 = vector.broadcast %cst_190 : f32 to vector<8x32xf32>
    %603 = arith.mulf %602, %601 : vector<8x32xf32>
    %604 = math.tanh %603 : vector<8x32xf32>
    %cst_191 = arith.constant 5.000000e-01 : f32
    %605 = vector.broadcast %cst_191 : f32 to vector<8x32xf32>
    %606 = arith.mulf %605, %604 : vector<8x32xf32>
    %cst_192 = arith.constant 5.000000e-01 : f32
    %607 = vector.broadcast %cst_192 : f32 to vector<8x32xf32>
    %608 = arith.addf %606, %607 : vector<8x32xf32>
    %609 = vector.extract_strided_slice %600 {offsets = [0, 32], sizes = [8, 32], strides = [1, 1]} : vector<8x128xf32> to vector<8x32xf32>
    %cst_193 = arith.constant 5.000000e-01 : f32
    %610 = vector.broadcast %cst_193 : f32 to vector<8x32xf32>
    %611 = arith.mulf %610, %609 : vector<8x32xf32>
    %612 = math.tanh %611 : vector<8x32xf32>
    %cst_194 = arith.constant 5.000000e-01 : f32
    %613 = vector.broadcast %cst_194 : f32 to vector<8x32xf32>
    %614 = arith.mulf %613, %612 : vector<8x32xf32>
    %cst_195 = arith.constant 5.000000e-01 : f32
    %615 = vector.broadcast %cst_195 : f32 to vector<8x32xf32>
    %616 = arith.addf %614, %615 : vector<8x32xf32>
    %617 = vector.extract_strided_slice %600 {offsets = [0, 64], sizes = [8, 32], strides = [1, 1]} : vector<8x128xf32> to vector<8x32xf32>
    %618 = math.tanh %617 : vector<8x32xf32>
    %619 = vector.extract_strided_slice %600 {offsets = [0, 96], sizes = [8, 32], strides = [1, 1]} : vector<8x128xf32> to vector<8x32xf32>
    %cst_196 = arith.constant 5.000000e-01 : f32
    %620 = vector.broadcast %cst_196 : f32 to vector<8x32xf32>
    %621 = arith.mulf %620, %619 : vector<8x32xf32>
    %622 = math.tanh %621 : vector<8x32xf32>
    %cst_197 = arith.constant 5.000000e-01 : f32
    %623 = vector.broadcast %cst_197 : f32 to vector<8x32xf32>
    %624 = arith.mulf %623, %622 : vector<8x32xf32>
    %cst_198 = arith.constant 5.000000e-01 : f32
    %625 = vector.broadcast %cst_198 : f32 to vector<8x32xf32>
    %626 = arith.addf %624, %625 : vector<8x32xf32>
    %627 = arith.mulf %616, %545 : vector<8x32xf32>
    %628 = arith.mulf %608, %618 : vector<8x32xf32>
    %629 = arith.addf %627, %628 : vector<8x32xf32>
    %630 = math.tanh %629 : vector<8x32xf32>
    %631 = arith.mulf %626, %630 : vector<8x32xf32>
    %cst_199 = arith.constant dense<0.000000e+00> : vector<8x32xf32>
    %632 = tpu.matmul %631, %3, %cst_199 {dimension_numbers = #tpu.dot_dimension_numbers<[1], [0], [0], [1], [0, 0, 1, 1], [], []>} : vector<8x32xf32>, vector<32x32xf32>, vector<8x32xf32> -> vector<8x32xf32>
    %633 = vector.broadcast %4 : vector<1x32xf32> to vector<8x32xf32>
    %634 = arith.addf %632, %633 : vector<8x32xf32>
    %cst_200 = arith.constant dense<0.000000e+00> : vector<8x128xf32>
    %635 = tpu.matmul %634, %5, %cst_200 {dimension_numbers = #tpu.dot_dimension_numbers<[1], [0], [0], [1], [0, 0, 1, 1], [], []>} : vector<8x32xf32>, vector<32x128xf32>, vector<8x128xf32> -> vector<8x128xf32>
    %636 = vector.broadcast %7 : vector<1x128xf32> to vector<8x128xf32>
    %637 = arith.addf %635, %636 : vector<8x128xf32>
    %cst_201 = arith.constant dense<0.000000e+00> : vector<8x128xf32>
    %638 = tpu.matmul %586, %6, %cst_201 {dimension_numbers = #tpu.dot_dimension_numbers<[1], [0], [0], [1], [0, 0, 1, 1], [], []>} : vector<8x32xf32>, vector<32x128xf32>, vector<8x128xf32> -> vector<8x128xf32>
    %639 = arith.addf %553, %638 : vector<8x128xf32>
    %640 = vector.extract_strided_slice %639 {offsets = [0, 0], sizes = [8, 32], strides = [1, 1]} : vector<8x128xf32> to vector<8x32xf32>
    %cst_202 = arith.constant 5.000000e-01 : f32
    %641 = vector.broadcast %cst_202 : f32 to vector<8x32xf32>
    %642 = arith.mulf %641, %640 : vector<8x32xf32>
    %643 = math.tanh %642 : vector<8x32xf32>
    %cst_203 = arith.constant 5.000000e-01 : f32
    %644 = vector.broadcast %cst_203 : f32 to vector<8x32xf32>
    %645 = arith.mulf %644, %643 : vector<8x32xf32>
    %cst_204 = arith.constant 5.000000e-01 : f32
    %646 = vector.broadcast %cst_204 : f32 to vector<8x32xf32>
    %647 = arith.addf %645, %646 : vector<8x32xf32>
    %648 = vector.extract_strided_slice %639 {offsets = [0, 32], sizes = [8, 32], strides = [1, 1]} : vector<8x128xf32> to vector<8x32xf32>
    %cst_205 = arith.constant 5.000000e-01 : f32
    %649 = vector.broadcast %cst_205 : f32 to vector<8x32xf32>
    %650 = arith.mulf %649, %648 : vector<8x32xf32>
    %651 = math.tanh %650 : vector<8x32xf32>
    %cst_206 = arith.constant 5.000000e-01 : f32
    %652 = vector.broadcast %cst_206 : f32 to vector<8x32xf32>
    %653 = arith.mulf %652, %651 : vector<8x32xf32>
    %cst_207 = arith.constant 5.000000e-01 : f32
    %654 = vector.broadcast %cst_207 : f32 to vector<8x32xf32>
    %655 = arith.addf %653, %654 : vector<8x32xf32>
    %656 = vector.extract_strided_slice %639 {offsets = [0, 64], sizes = [8, 32], strides = [1, 1]} : vector<8x128xf32> to vector<8x32xf32>
    %657 = math.tanh %656 : vector<8x32xf32>
    %658 = vector.extract_strided_slice %639 {offsets = [0, 96], sizes = [8, 32], strides = [1, 1]} : vector<8x128xf32> to vector<8x32xf32>
    %cst_208 = arith.constant 5.000000e-01 : f32
    %659 = vector.broadcast %cst_208 : f32 to vector<8x32xf32>
    %660 = arith.mulf %659, %658 : vector<8x32xf32>
    %661 = math.tanh %660 : vector<8x32xf32>
    %cst_209 = arith.constant 5.000000e-01 : f32
    %662 = vector.broadcast %cst_209 : f32 to vector<8x32xf32>
    %663 = arith.mulf %662, %661 : vector<8x32xf32>
    %cst_210 = arith.constant 5.000000e-01 : f32
    %664 = vector.broadcast %cst_210 : f32 to vector<8x32xf32>
    %665 = arith.addf %663, %664 : vector<8x32xf32>
    %666 = arith.mulf %655, %584 : vector<8x32xf32>
    %667 = arith.mulf %647, %657 : vector<8x32xf32>
    %668 = arith.addf %666, %667 : vector<8x32xf32>
    %669 = math.tanh %668 : vector<8x32xf32>
    %670 = arith.mulf %665, %669 : vector<8x32xf32>
    %cst_211 = arith.constant dense<0.000000e+00> : vector<8x64xf32>
    %671 = tpu.matmul %670, %8, %cst_211 {dimension_numbers = #tpu.dot_dimension_numbers<[1], [0], [0], [1], [0, 0, 1, 1], [], []>} : vector<8x32xf32>, vector<32x64xf32>, vector<8x64xf32> -> vector<8x64xf32>
    %672 = vector.broadcast %9 : vector<1x64xf32> to vector<8x64xf32>
    %673 = arith.addf %671, %672 : vector<8x64xf32>
    %cst_212 = arith.constant dense<0.000000e+00> : vector<8x1xf32>
    %674 = tpu.matmul %673, %10, %cst_212 {dimension_numbers = #tpu.dot_dimension_numbers<[1], [0], [0], [1], [0, 0, 1, 1], [], []>} : vector<8x64xf32>, vector<64x1xf32>, vector<8x1xf32> -> vector<8x1xf32>
    %675 = vector.broadcast %11 : vector<1x1xf32> to vector<8x1xf32>
    %676 = arith.addf %674, %675 : vector<8x1xf32>
    %c6_i32 = arith.constant 6 : i32
    %677 = vector.broadcast %c6_i32 : i32 to vector<8x128xi32>
    %678 = arith.cmpi eq, %52, %677 : vector<8x128xi32>
    %679 = vector.shape_cast %676 : vector<8x1xf32> to vector<8x1xf32>
    %680 = vector.broadcast %679 : vector<8x1xf32> to vector<8x128xf32>
    %681 = arith.select %678, %680, %597 : vector<8x128xi1>, vector<8x128xf32>
    %682 = vector.extract_strided_slice %50 {offsets = [64, 0], sizes = [8, 128], strides = [1, 1]} : vector<80x128xf32> to vector<8x128xf32>
    %cst_213 = arith.constant dense<0.000000e+00> : vector<8x128xf32>
    %683 = tpu.matmul %631, %1, %cst_213 {dimension_numbers = #tpu.dot_dimension_numbers<[1], [0], [0], [1], [0, 0, 1, 1], [], []>} : vector<8x32xf32>, vector<32x128xf32>, vector<8x128xf32> -> vector<8x128xf32>
    %684 = arith.addf %682, %683 : vector<8x128xf32>
    %685 = vector.extract_strided_slice %684 {offsets = [0, 0], sizes = [8, 32], strides = [1, 1]} : vector<8x128xf32> to vector<8x32xf32>
    %cst_214 = arith.constant 5.000000e-01 : f32
    %686 = vector.broadcast %cst_214 : f32 to vector<8x32xf32>
    %687 = arith.mulf %686, %685 : vector<8x32xf32>
    %688 = math.tanh %687 : vector<8x32xf32>
    %cst_215 = arith.constant 5.000000e-01 : f32
    %689 = vector.broadcast %cst_215 : f32 to vector<8x32xf32>
    %690 = arith.mulf %689, %688 : vector<8x32xf32>
    %cst_216 = arith.constant 5.000000e-01 : f32
    %691 = vector.broadcast %cst_216 : f32 to vector<8x32xf32>
    %692 = arith.addf %690, %691 : vector<8x32xf32>
    %693 = vector.extract_strided_slice %684 {offsets = [0, 32], sizes = [8, 32], strides = [1, 1]} : vector<8x128xf32> to vector<8x32xf32>
    %cst_217 = arith.constant 5.000000e-01 : f32
    %694 = vector.broadcast %cst_217 : f32 to vector<8x32xf32>
    %695 = arith.mulf %694, %693 : vector<8x32xf32>
    %696 = math.tanh %695 : vector<8x32xf32>
    %cst_218 = arith.constant 5.000000e-01 : f32
    %697 = vector.broadcast %cst_218 : f32 to vector<8x32xf32>
    %698 = arith.mulf %697, %696 : vector<8x32xf32>
    %cst_219 = arith.constant 5.000000e-01 : f32
    %699 = vector.broadcast %cst_219 : f32 to vector<8x32xf32>
    %700 = arith.addf %698, %699 : vector<8x32xf32>
    %701 = vector.extract_strided_slice %684 {offsets = [0, 64], sizes = [8, 32], strides = [1, 1]} : vector<8x128xf32> to vector<8x32xf32>
    %702 = math.tanh %701 : vector<8x32xf32>
    %703 = vector.extract_strided_slice %684 {offsets = [0, 96], sizes = [8, 32], strides = [1, 1]} : vector<8x128xf32> to vector<8x32xf32>
    %cst_220 = arith.constant 5.000000e-01 : f32
    %704 = vector.broadcast %cst_220 : f32 to vector<8x32xf32>
    %705 = arith.mulf %704, %703 : vector<8x32xf32>
    %706 = math.tanh %705 : vector<8x32xf32>
    %cst_221 = arith.constant 5.000000e-01 : f32
    %707 = vector.broadcast %cst_221 : f32 to vector<8x32xf32>
    %708 = arith.mulf %707, %706 : vector<8x32xf32>
    %cst_222 = arith.constant 5.000000e-01 : f32
    %709 = vector.broadcast %cst_222 : f32 to vector<8x32xf32>
    %710 = arith.addf %708, %709 : vector<8x32xf32>
    %711 = arith.mulf %700, %629 : vector<8x32xf32>
    %712 = arith.mulf %692, %702 : vector<8x32xf32>
    %713 = arith.addf %711, %712 : vector<8x32xf32>
    %714 = math.tanh %713 : vector<8x32xf32>
    %715 = arith.mulf %710, %714 : vector<8x32xf32>
    %cst_223 = arith.constant dense<0.000000e+00> : vector<8x32xf32>
    %716 = tpu.matmul %715, %3, %cst_223 {dimension_numbers = #tpu.dot_dimension_numbers<[1], [0], [0], [1], [0, 0, 1, 1], [], []>} : vector<8x32xf32>, vector<32x32xf32>, vector<8x32xf32> -> vector<8x32xf32>
    %717 = vector.broadcast %4 : vector<1x32xf32> to vector<8x32xf32>
    %718 = arith.addf %716, %717 : vector<8x32xf32>
    %cst_224 = arith.constant dense<0.000000e+00> : vector<8x128xf32>
    %719 = tpu.matmul %718, %5, %cst_224 {dimension_numbers = #tpu.dot_dimension_numbers<[1], [0], [0], [1], [0, 0, 1, 1], [], []>} : vector<8x32xf32>, vector<32x128xf32>, vector<8x128xf32> -> vector<8x128xf32>
    %720 = vector.broadcast %7 : vector<1x128xf32> to vector<8x128xf32>
    %721 = arith.addf %719, %720 : vector<8x128xf32>
    %cst_225 = arith.constant dense<0.000000e+00> : vector<8x128xf32>
    %722 = tpu.matmul %670, %6, %cst_225 {dimension_numbers = #tpu.dot_dimension_numbers<[1], [0], [0], [1], [0, 0, 1, 1], [], []>} : vector<8x32xf32>, vector<32x128xf32>, vector<8x128xf32> -> vector<8x128xf32>
    %723 = arith.addf %637, %722 : vector<8x128xf32>
    %724 = vector.extract_strided_slice %723 {offsets = [0, 0], sizes = [8, 32], strides = [1, 1]} : vector<8x128xf32> to vector<8x32xf32>
    %cst_226 = arith.constant 5.000000e-01 : f32
    %725 = vector.broadcast %cst_226 : f32 to vector<8x32xf32>
    %726 = arith.mulf %725, %724 : vector<8x32xf32>
    %727 = math.tanh %726 : vector<8x32xf32>
    %cst_227 = arith.constant 5.000000e-01 : f32
    %728 = vector.broadcast %cst_227 : f32 to vector<8x32xf32>
    %729 = arith.mulf %728, %727 : vector<8x32xf32>
    %cst_228 = arith.constant 5.000000e-01 : f32
    %730 = vector.broadcast %cst_228 : f32 to vector<8x32xf32>
    %731 = arith.addf %729, %730 : vector<8x32xf32>
    %732 = vector.extract_strided_slice %723 {offsets = [0, 32], sizes = [8, 32], strides = [1, 1]} : vector<8x128xf32> to vector<8x32xf32>
    %cst_229 = arith.constant 5.000000e-01 : f32
    %733 = vector.broadcast %cst_229 : f32 to vector<8x32xf32>
    %734 = arith.mulf %733, %732 : vector<8x32xf32>
    %735 = math.tanh %734 : vector<8x32xf32>
    %cst_230 = arith.constant 5.000000e-01 : f32
    %736 = vector.broadcast %cst_230 : f32 to vector<8x32xf32>
    %737 = arith.mulf %736, %735 : vector<8x32xf32>
    %cst_231 = arith.constant 5.000000e-01 : f32
    %738 = vector.broadcast %cst_231 : f32 to vector<8x32xf32>
    %739 = arith.addf %737, %738 : vector<8x32xf32>
    %740 = vector.extract_strided_slice %723 {offsets = [0, 64], sizes = [8, 32], strides = [1, 1]} : vector<8x128xf32> to vector<8x32xf32>
    %741 = math.tanh %740 : vector<8x32xf32>
    %742 = vector.extract_strided_slice %723 {offsets = [0, 96], sizes = [8, 32], strides = [1, 1]} : vector<8x128xf32> to vector<8x32xf32>
    %cst_232 = arith.constant 5.000000e-01 : f32
    %743 = vector.broadcast %cst_232 : f32 to vector<8x32xf32>
    %744 = arith.mulf %743, %742 : vector<8x32xf32>
    %745 = math.tanh %744 : vector<8x32xf32>
    %cst_233 = arith.constant 5.000000e-01 : f32
    %746 = vector.broadcast %cst_233 : f32 to vector<8x32xf32>
    %747 = arith.mulf %746, %745 : vector<8x32xf32>
    %cst_234 = arith.constant 5.000000e-01 : f32
    %748 = vector.broadcast %cst_234 : f32 to vector<8x32xf32>
    %749 = arith.addf %747, %748 : vector<8x32xf32>
    %750 = arith.mulf %739, %668 : vector<8x32xf32>
    %751 = arith.mulf %731, %741 : vector<8x32xf32>
    %752 = arith.addf %750, %751 : vector<8x32xf32>
    %753 = math.tanh %752 : vector<8x32xf32>
    %754 = arith.mulf %749, %753 : vector<8x32xf32>
    %cst_235 = arith.constant dense<0.000000e+00> : vector<8x64xf32>
    %755 = tpu.matmul %754, %8, %cst_235 {dimension_numbers = #tpu.dot_dimension_numbers<[1], [0], [0], [1], [0, 0, 1, 1], [], []>} : vector<8x32xf32>, vector<32x64xf32>, vector<8x64xf32> -> vector<8x64xf32>
    %756 = vector.broadcast %9 : vector<1x64xf32> to vector<8x64xf32>
    %757 = arith.addf %755, %756 : vector<8x64xf32>
    %cst_236 = arith.constant dense<0.000000e+00> : vector<8x1xf32>
    %758 = tpu.matmul %757, %10, %cst_236 {dimension_numbers = #tpu.dot_dimension_numbers<[1], [0], [0], [1], [0, 0, 1, 1], [], []>} : vector<8x64xf32>, vector<64x1xf32>, vector<8x1xf32> -> vector<8x1xf32>
    %759 = vector.broadcast %11 : vector<1x1xf32> to vector<8x1xf32>
    %760 = arith.addf %758, %759 : vector<8x1xf32>
    %c7_i32 = arith.constant 7 : i32
    %761 = vector.broadcast %c7_i32 : i32 to vector<8x128xi32>
    %762 = arith.cmpi eq, %52, %761 : vector<8x128xi32>
    %763 = vector.shape_cast %760 : vector<8x1xf32> to vector<8x1xf32>
    %764 = vector.broadcast %763 : vector<8x1xf32> to vector<8x128xf32>
    %765 = arith.select %762, %764, %681 : vector<8x128xi1>, vector<8x128xf32>
    %766 = vector.extract_strided_slice %50 {offsets = [72, 0], sizes = [8, 128], strides = [1, 1]} : vector<80x128xf32> to vector<8x128xf32>
    %cst_237 = arith.constant dense<0.000000e+00> : vector<8x128xf32>
    %767 = tpu.matmul %715, %1, %cst_237 {dimension_numbers = #tpu.dot_dimension_numbers<[1], [0], [0], [1], [0, 0, 1, 1], [], []>} : vector<8x32xf32>, vector<32x128xf32>, vector<8x128xf32> -> vector<8x128xf32>
    %768 = arith.addf %766, %767 : vector<8x128xf32>
    %769 = vector.extract_strided_slice %768 {offsets = [0, 0], sizes = [8, 32], strides = [1, 1]} : vector<8x128xf32> to vector<8x32xf32>
    %cst_238 = arith.constant 5.000000e-01 : f32
    %770 = vector.broadcast %cst_238 : f32 to vector<8x32xf32>
    %771 = arith.mulf %770, %769 : vector<8x32xf32>
    %772 = math.tanh %771 : vector<8x32xf32>
    %cst_239 = arith.constant 5.000000e-01 : f32
    %773 = vector.broadcast %cst_239 : f32 to vector<8x32xf32>
    %774 = arith.mulf %773, %772 : vector<8x32xf32>
    %cst_240 = arith.constant 5.000000e-01 : f32
    %775 = vector.broadcast %cst_240 : f32 to vector<8x32xf32>
    %776 = arith.addf %774, %775 : vector<8x32xf32>
    %777 = vector.extract_strided_slice %768 {offsets = [0, 32], sizes = [8, 32], strides = [1, 1]} : vector<8x128xf32> to vector<8x32xf32>
    %cst_241 = arith.constant 5.000000e-01 : f32
    %778 = vector.broadcast %cst_241 : f32 to vector<8x32xf32>
    %779 = arith.mulf %778, %777 : vector<8x32xf32>
    %780 = math.tanh %779 : vector<8x32xf32>
    %cst_242 = arith.constant 5.000000e-01 : f32
    %781 = vector.broadcast %cst_242 : f32 to vector<8x32xf32>
    %782 = arith.mulf %781, %780 : vector<8x32xf32>
    %cst_243 = arith.constant 5.000000e-01 : f32
    %783 = vector.broadcast %cst_243 : f32 to vector<8x32xf32>
    %784 = arith.addf %782, %783 : vector<8x32xf32>
    %785 = vector.extract_strided_slice %768 {offsets = [0, 64], sizes = [8, 32], strides = [1, 1]} : vector<8x128xf32> to vector<8x32xf32>
    %786 = math.tanh %785 : vector<8x32xf32>
    %787 = vector.extract_strided_slice %768 {offsets = [0, 96], sizes = [8, 32], strides = [1, 1]} : vector<8x128xf32> to vector<8x32xf32>
    %cst_244 = arith.constant 5.000000e-01 : f32
    %788 = vector.broadcast %cst_244 : f32 to vector<8x32xf32>
    %789 = arith.mulf %788, %787 : vector<8x32xf32>
    %790 = math.tanh %789 : vector<8x32xf32>
    %cst_245 = arith.constant 5.000000e-01 : f32
    %791 = vector.broadcast %cst_245 : f32 to vector<8x32xf32>
    %792 = arith.mulf %791, %790 : vector<8x32xf32>
    %cst_246 = arith.constant 5.000000e-01 : f32
    %793 = vector.broadcast %cst_246 : f32 to vector<8x32xf32>
    %794 = arith.addf %792, %793 : vector<8x32xf32>
    %795 = arith.mulf %784, %713 : vector<8x32xf32>
    %796 = arith.mulf %776, %786 : vector<8x32xf32>
    %797 = arith.addf %795, %796 : vector<8x32xf32>
    %798 = math.tanh %797 : vector<8x32xf32>
    %799 = arith.mulf %794, %798 : vector<8x32xf32>
    %cst_247 = arith.constant dense<0.000000e+00> : vector<8x32xf32>
    %800 = tpu.matmul %799, %3, %cst_247 {dimension_numbers = #tpu.dot_dimension_numbers<[1], [0], [0], [1], [0, 0, 1, 1], [], []>} : vector<8x32xf32>, vector<32x32xf32>, vector<8x32xf32> -> vector<8x32xf32>
    %801 = vector.broadcast %4 : vector<1x32xf32> to vector<8x32xf32>
    %802 = arith.addf %800, %801 : vector<8x32xf32>
    %cst_248 = arith.constant dense<0.000000e+00> : vector<8x128xf32>
    %803 = tpu.matmul %802, %5, %cst_248 {dimension_numbers = #tpu.dot_dimension_numbers<[1], [0], [0], [1], [0, 0, 1, 1], [], []>} : vector<8x32xf32>, vector<32x128xf32>, vector<8x128xf32> -> vector<8x128xf32>
    %804 = vector.broadcast %7 : vector<1x128xf32> to vector<8x128xf32>
    %805 = arith.addf %803, %804 : vector<8x128xf32>
    %cst_249 = arith.constant dense<0.000000e+00> : vector<8x128xf32>
    %806 = tpu.matmul %754, %6, %cst_249 {dimension_numbers = #tpu.dot_dimension_numbers<[1], [0], [0], [1], [0, 0, 1, 1], [], []>} : vector<8x32xf32>, vector<32x128xf32>, vector<8x128xf32> -> vector<8x128xf32>
    %807 = arith.addf %721, %806 : vector<8x128xf32>
    %808 = vector.extract_strided_slice %807 {offsets = [0, 0], sizes = [8, 32], strides = [1, 1]} : vector<8x128xf32> to vector<8x32xf32>
    %cst_250 = arith.constant 5.000000e-01 : f32
    %809 = vector.broadcast %cst_250 : f32 to vector<8x32xf32>
    %810 = arith.mulf %809, %808 : vector<8x32xf32>
    %811 = math.tanh %810 : vector<8x32xf32>
    %cst_251 = arith.constant 5.000000e-01 : f32
    %812 = vector.broadcast %cst_251 : f32 to vector<8x32xf32>
    %813 = arith.mulf %812, %811 : vector<8x32xf32>
    %cst_252 = arith.constant 5.000000e-01 : f32
    %814 = vector.broadcast %cst_252 : f32 to vector<8x32xf32>
    %815 = arith.addf %813, %814 : vector<8x32xf32>
    %816 = vector.extract_strided_slice %807 {offsets = [0, 32], sizes = [8, 32], strides = [1, 1]} : vector<8x128xf32> to vector<8x32xf32>
    %cst_253 = arith.constant 5.000000e-01 : f32
    %817 = vector.broadcast %cst_253 : f32 to vector<8x32xf32>
    %818 = arith.mulf %817, %816 : vector<8x32xf32>
    %819 = math.tanh %818 : vector<8x32xf32>
    %cst_254 = arith.constant 5.000000e-01 : f32
    %820 = vector.broadcast %cst_254 : f32 to vector<8x32xf32>
    %821 = arith.mulf %820, %819 : vector<8x32xf32>
    %cst_255 = arith.constant 5.000000e-01 : f32
    %822 = vector.broadcast %cst_255 : f32 to vector<8x32xf32>
    %823 = arith.addf %821, %822 : vector<8x32xf32>
    %824 = vector.extract_strided_slice %807 {offsets = [0, 64], sizes = [8, 32], strides = [1, 1]} : vector<8x128xf32> to vector<8x32xf32>
    %825 = math.tanh %824 : vector<8x32xf32>
    %826 = vector.extract_strided_slice %807 {offsets = [0, 96], sizes = [8, 32], strides = [1, 1]} : vector<8x128xf32> to vector<8x32xf32>
    %cst_256 = arith.constant 5.000000e-01 : f32
    %827 = vector.broadcast %cst_256 : f32 to vector<8x32xf32>
    %828 = arith.mulf %827, %826 : vector<8x32xf32>
    %829 = math.tanh %828 : vector<8x32xf32>
    %cst_257 = arith.constant 5.000000e-01 : f32
    %830 = vector.broadcast %cst_257 : f32 to vector<8x32xf32>
    %831 = arith.mulf %830, %829 : vector<8x32xf32>
    %cst_258 = arith.constant 5.000000e-01 : f32
    %832 = vector.broadcast %cst_258 : f32 to vector<8x32xf32>
    %833 = arith.addf %831, %832 : vector<8x32xf32>
    %834 = arith.mulf %823, %752 : vector<8x32xf32>
    %835 = arith.mulf %815, %825 : vector<8x32xf32>
    %836 = arith.addf %834, %835 : vector<8x32xf32>
    %837 = math.tanh %836 : vector<8x32xf32>
    %838 = arith.mulf %833, %837 : vector<8x32xf32>
    %cst_259 = arith.constant dense<0.000000e+00> : vector<8x64xf32>
    %839 = tpu.matmul %838, %8, %cst_259 {dimension_numbers = #tpu.dot_dimension_numbers<[1], [0], [0], [1], [0, 0, 1, 1], [], []>} : vector<8x32xf32>, vector<32x64xf32>, vector<8x64xf32> -> vector<8x64xf32>
    %840 = vector.broadcast %9 : vector<1x64xf32> to vector<8x64xf32>
    %841 = arith.addf %839, %840 : vector<8x64xf32>
    %cst_260 = arith.constant dense<0.000000e+00> : vector<8x1xf32>
    %842 = tpu.matmul %841, %10, %cst_260 {dimension_numbers = #tpu.dot_dimension_numbers<[1], [0], [0], [1], [0, 0, 1, 1], [], []>} : vector<8x64xf32>, vector<64x1xf32>, vector<8x1xf32> -> vector<8x1xf32>
    %843 = vector.broadcast %11 : vector<1x1xf32> to vector<8x1xf32>
    %844 = arith.addf %842, %843 : vector<8x1xf32>
    %c8_i32 = arith.constant 8 : i32
    %845 = vector.broadcast %c8_i32 : i32 to vector<8x128xi32>
    %846 = arith.cmpi eq, %52, %845 : vector<8x128xi32>
    %847 = vector.shape_cast %844 : vector<8x1xf32> to vector<8x1xf32>
    %848 = vector.broadcast %847 : vector<8x1xf32> to vector<8x128xf32>
    %849 = arith.select %846, %848, %765 : vector<8x128xi1>, vector<8x128xf32>
    %cst_261 = arith.constant dense<0.000000e+00> : vector<8x128xf32>
    %850 = tpu.matmul %838, %6, %cst_261 {dimension_numbers = #tpu.dot_dimension_numbers<[1], [0], [0], [1], [0, 0, 1, 1], [], []>} : vector<8x32xf32>, vector<32x128xf32>, vector<8x128xf32> -> vector<8x128xf32>
    %851 = arith.addf %805, %850 : vector<8x128xf32>
    %852 = vector.extract_strided_slice %851 {offsets = [0, 0], sizes = [8, 32], strides = [1, 1]} : vector<8x128xf32> to vector<8x32xf32>
    %cst_262 = arith.constant 5.000000e-01 : f32
    %853 = vector.broadcast %cst_262 : f32 to vector<8x32xf32>
    %854 = arith.mulf %853, %852 : vector<8x32xf32>
    %855 = math.tanh %854 : vector<8x32xf32>
    %cst_263 = arith.constant 5.000000e-01 : f32
    %856 = vector.broadcast %cst_263 : f32 to vector<8x32xf32>
    %857 = arith.mulf %856, %855 : vector<8x32xf32>
    %cst_264 = arith.constant 5.000000e-01 : f32
    %858 = vector.broadcast %cst_264 : f32 to vector<8x32xf32>
    %859 = arith.addf %857, %858 : vector<8x32xf32>
    %860 = vector.extract_strided_slice %851 {offsets = [0, 32], sizes = [8, 32], strides = [1, 1]} : vector<8x128xf32> to vector<8x32xf32>
    %cst_265 = arith.constant 5.000000e-01 : f32
    %861 = vector.broadcast %cst_265 : f32 to vector<8x32xf32>
    %862 = arith.mulf %861, %860 : vector<8x32xf32>
    %863 = math.tanh %862 : vector<8x32xf32>
    %cst_266 = arith.constant 5.000000e-01 : f32
    %864 = vector.broadcast %cst_266 : f32 to vector<8x32xf32>
    %865 = arith.mulf %864, %863 : vector<8x32xf32>
    %cst_267 = arith.constant 5.000000e-01 : f32
    %866 = vector.broadcast %cst_267 : f32 to vector<8x32xf32>
    %867 = arith.addf %865, %866 : vector<8x32xf32>
    %868 = vector.extract_strided_slice %851 {offsets = [0, 64], sizes = [8, 32], strides = [1, 1]} : vector<8x128xf32> to vector<8x32xf32>
    %869 = math.tanh %868 : vector<8x32xf32>
    %870 = vector.extract_strided_slice %851 {offsets = [0, 96], sizes = [8, 32], strides = [1, 1]} : vector<8x128xf32> to vector<8x32xf32>
    %cst_268 = arith.constant 5.000000e-01 : f32
    %871 = vector.broadcast %cst_268 : f32 to vector<8x32xf32>
    %872 = arith.mulf %871, %870 : vector<8x32xf32>
    %873 = math.tanh %872 : vector<8x32xf32>
    %cst_269 = arith.constant 5.000000e-01 : f32
    %874 = vector.broadcast %cst_269 : f32 to vector<8x32xf32>
    %875 = arith.mulf %874, %873 : vector<8x32xf32>
    %cst_270 = arith.constant 5.000000e-01 : f32
    %876 = vector.broadcast %cst_270 : f32 to vector<8x32xf32>
    %877 = arith.addf %875, %876 : vector<8x32xf32>
    %878 = arith.mulf %867, %836 : vector<8x32xf32>
    %879 = arith.mulf %859, %869 : vector<8x32xf32>
    %880 = arith.addf %878, %879 : vector<8x32xf32>
    %881 = math.tanh %880 : vector<8x32xf32>
    %882 = arith.mulf %877, %881 : vector<8x32xf32>
    %cst_271 = arith.constant dense<0.000000e+00> : vector<8x64xf32>
    %883 = tpu.matmul %882, %8, %cst_271 {dimension_numbers = #tpu.dot_dimension_numbers<[1], [0], [0], [1], [0, 0, 1, 1], [], []>} : vector<8x32xf32>, vector<32x64xf32>, vector<8x64xf32> -> vector<8x64xf32>
    %884 = vector.broadcast %9 : vector<1x64xf32> to vector<8x64xf32>
    %885 = arith.addf %883, %884 : vector<8x64xf32>
    %cst_272 = arith.constant dense<0.000000e+00> : vector<8x1xf32>
    %886 = tpu.matmul %885, %10, %cst_272 {dimension_numbers = #tpu.dot_dimension_numbers<[1], [0], [0], [1], [0, 0, 1, 1], [], []>} : vector<8x64xf32>, vector<64x1xf32>, vector<8x1xf32> -> vector<8x1xf32>
    %887 = vector.broadcast %11 : vector<1x1xf32> to vector<8x1xf32>
    %888 = arith.addf %886, %887 : vector<8x1xf32>
    %c9_i32 = arith.constant 9 : i32
    %889 = vector.broadcast %c9_i32 : i32 to vector<8x128xi32>
    %890 = arith.cmpi eq, %52, %889 : vector<8x128xi32>
    %891 = vector.shape_cast %888 : vector<8x1xf32> to vector<8x1xf32>
    %892 = vector.broadcast %891 : vector<8x1xf32> to vector<8x128xf32>
    %893 = arith.select %890, %892, %849 : vector<8x128xi1>, vector<8x128xf32>
    %894 = vector.extract_strided_slice %893 {offsets = [0, 0], sizes = [8, 10], strides = [1, 1]} : vector<8x128xf32> to vector<8x10xf32>
    %cst_273 = arith.constant dense<0.000000e+00> : vector<8x1xf32>
    %895 = tpu.matmul %894, %12, %cst_273 {dimension_numbers = #tpu.dot_dimension_numbers<[1], [0], [0], [1], [0, 0, 1, 1], [], []>} : vector<8x10xf32>, vector<10x1xf32>, vector<8x1xf32> -> vector<8x1xf32>
    %896 = vector.broadcast %13 : vector<1x1xf32> to vector<8x1xf32>
    %897 = arith.addf %895, %896 : vector<8x1xf32>
    %c10_i32 = arith.constant 10 : i32
    %898 = vector.broadcast %c10_i32 : i32 to vector<8x128xi32>
    %899 = arith.cmpi eq, %52, %898 : vector<8x128xi32>
    %900 = vector.shape_cast %897 : vector<8x1xf32> to vector<8x1xf32>
    %901 = vector.broadcast %900 : vector<8x1xf32> to vector<8x128xf32>
    %902 = arith.select %899, %901, %893 : vector<8x128xi1>, vector<8x128xf32>
    %c0_274 = arith.constant 0 : index
    %c0_275 = arith.constant 0 : index
    %903 = vector.load %arg4[%c0_274, %c0_275] : memref<8x128xf32, #tpu.memory_space<vmem>>, vector<8x128xf32>
    tpu.vector_store %arg4[%c0_274, %c0_275], %902 {strides = array<i32>} : memref<8x128xf32, #tpu.memory_space<vmem>>, vector<8x128xf32>,
    return
  }
}

</mosaic_0001>

<llo_original>
// kernel: _lambda_.1
$region0: #{_lambda_.1}
  #allocation0 [shape = 'u32[]', space=smem, size = 0x4, offset = 0x4, fixed_abs, tag = 'smem constant byte address 0x4 - core index']
  #allocation1 [shape = 'u32[144,128]{1,0:T(1,128)}', space=vmem, size = 0x12000, scoped, tag = 'internal scratch']
  %s0 = inlined_call_operand.vmem [shape: f32[80,384], index: 0, kind: input, shape index: {}]
  %s1 = inlined_call_operand.vmem [shape: bf16[768,512], index: 1, kind: input, shape index: {}]
  %s2 = inlined_call_operand.vmem [shape: f32[8,512], index: 2, kind: input, shape index: {}]
  %s3 = inlined_call_operand.vmem [shape: f32[416,128], index: 3, kind: input, shape index: {}]
  %s4 = inlined_call_operand.vmem [shape: f32[8,128], index: 4, kind: output, shape index: {}]
  %s5 = sld [smem:[#allocation0]]
  $region26: #{_lambda_.1} parent=0
    _
  %s7 = ssub.s32 1, %s5
  %s8 = scalar_select 0, %s7, %s5
  // Predicated region
  $region2: #{_lambda_.1} parent=0 // pred_check
    _
  $region3: #{_lambda_.1} parent=0 // pred_check_branch
    %10 = sbr.rel (0) target = $region5
  $region4: #{_lambda_.1} parent=0 // pred_region
    _
  $region5: #{_lambda_.1} parent=0 // pred_fallthru
    _
  // Predicated region
  $region6: #{_lambda_.1} parent=0 // pred_check
    _
  $region7: #{_lambda_.1} parent=0 // pred_check_branch
    %12 = sbr.rel (0) target = $region9
  $region8: #{_lambda_.1} parent=0 // pred_region
    _
  $region9: #{_lambda_.1} parent=0 // pred_fallthru
    _
  // Predicated region
  $region10: #{_lambda_.1} parent=0 // pred_check
    _
  $region11: #{_lambda_.1} parent=0 // pred_check_branch
    %14 = sbr.rel (0) target = $region13
  $region12: #{_lambda_.1} parent=0 // pred_region
    _
  $region13: #{_lambda_.1} parent=0 // pred_fallthru
    _
  // Predicated region
  $region14: #{_lambda_.1} parent=0 // pred_check
    _
  $region15: #{_lambda_.1} parent=0 // pred_check_branch
    %16 = sbr.rel (0) target = $region17
  $region16: #{_lambda_.1} parent=0 // pred_region
    _
  $region17: #{_lambda_.1} parent=0 // pred_fallthru
    _
  %v18 = vld [vmem:[%s3] sm:$0xff]
  %v19 = vld [vmem:[%s3 + $0x8] sm:$0xff]
  %v20 = vld [vmem:[%s3 + $0x10] sm:$0xff]
  %v21 = vld [vmem:[%s3 + $0x18] sm:$0xff]
  %v22 = vld [vmem:[%s3 + $0x20] sm:$0xff]
  %v23 = vld [vmem:[%s3 + $0x28] sm:$0xff]
  %v24 = vld [vmem:[%s3 + $0x30] sm:$0xff]
  %v25 = vld [vmem:[%s3 + $0x38] sm:$0xff]
  %v26 = vld [vmem:[%s3 + $0x40] sm:$0xff]
  %v27 = vld [vmem:[%s3 + $0x48] sm:$0xff]
  %v28 = vld [vmem:[%s3 + $0x50] sm:$0xff]
  %v29 = vld [vmem:[%s3 + $0x58] sm:$0xff]
  %v30 = vld [vmem:[%s3 + $0x60] sm:$0xff]
  %v31 = vld [vmem:[%s3 + $0x68] sm:$0xff]
  %v32 = vld [vmem:[%s3 + $0x70] sm:$0xff]
  %v33 = vld [vmem:[%s3 + $0x78] sm:$0xff]
  %v34 = vld [vmem:[%s3 + $0x80] sm:$0xff]
  %v35 = vld [vmem:[%s3 + $0x88] sm:$0xff]
  %v36 = vld [vmem:[%s3 + $0x90] sm:$0xff]
  %v37 = vld [vmem:[%s3 + $0x98] sm:$0xff]
  %v38 = vld [vmem:[%s3 + $0xa0] sm:$0x1]
  %v39 = vld [vmem:[%s3 + $0xa8] sm:$0xff]
  %v40 = vld [vmem:[%s3 + $0xb0] sm:$0xff]
  %v41 = vld [vmem:[%s3 + $0xb8] sm:$0xff]
  %v42 = vld [vmem:[%s3 + $0xc0] sm:$0xff]
  %v43 = vld [vmem:[%s3 + $0xc8] sm:$0x1]
  %v44 = vld [vmem:[%s3 + $0xd0] sm:$0xff]
  %v45 = vld [vmem:[%s3 + $0xd8] sm:$0xff]
  %v46 = vld [vmem:[%s3 + $0xe0] sm:$0xff]
  %v47 = vld [vmem:[%s3 + $0xe8] sm:$0xff]
  %v48 = vld [vmem:[%s3 + $0xf0] sm:$0xff]
  %v49 = vld [vmem:[%s3 + $0xf8] sm:$0xff]
  %v50 = vld [vmem:[%s3 + $0x100] sm:$0xff]
  %v51 = vld [vmem:[%s3 + $0x108] sm:$0xff]
  %v52 = vld [vmem:[%s3 + $0x110] sm:$0x1]
  %v53 = vld [vmem:[%s3 + $0x118] sm:$0xff]
  %v54 = vld [vmem:[%s3 + $0x120] sm:$0xff]
  %v55 = vld [vmem:[%s3 + $0x128] sm:$0xff]
  %v56 = vld [vmem:[%s3 + $0x130] sm:$0xff]
  %v57 = vld [vmem:[%s3 + $0x138] sm:$0x1]
  %v58 = vld [vmem:[%s3 + $0x140] sm:$0xff]
  %v59 = vld [vmem:[%s3 + $0x148] sm:$0xff]
  %v60 = vld [vmem:[%s3 + $0x150] sm:$0xff]
  %v61 = vld [vmem:[%s3 + $0x158] sm:$0xff]
  %v62 = vld [vmem:[%s3 + $0x160] sm:$0xff]
  %v63 = vld [vmem:[%s3 + $0x168] sm:$0xff]
  %v64 = vld [vmem:[%s3 + $0x170] sm:$0xff]
  %v65 = vld [vmem:[%s3 + $0x178] sm:$0xff]
  %v66 = vld [vmem:[%s3 + $0x180] sm:$0x1]
  %v67 = vld [vmem:[%s3 + $0x188] sm:$0xff]
  %v68 = vld [vmem:[%s3 + $0x190] sm:$0x3]
  %v69 = vld [vmem:[%s3 + $0x198] sm:$0x1]
  %v70 = vld [vmem:[%s0] sm:$0xff]
  %v71 = vld [vmem:[%s0 + $0x8] sm:$0xff]
  %v72 = vld [vmem:[%s0 + $0x10] sm:$0xff]
  %v73 = vld [vmem:[%s0 + $0x18] sm:$0xff]
  %v74 = vld [vmem:[%s0 + $0x20] sm:$0xff]
  %v75 = vld [vmem:[%s0 + $0x28] sm:$0xff]
  %v76 = vld [vmem:[%s0 + $0x30] sm:$0xff]
  %v77 = vld [vmem:[%s0 + $0x38] sm:$0xff]
  %v78 = vld [vmem:[%s0 + $0x40] sm:$0xff]
  %v79 = vld [vmem:[%s0 + $0x48] sm:$0xff]
  %v80 = vld [vmem:[%s0 + $0x50] sm:$0xff]
  %v81 = vld [vmem:[%s0 + $0x58] sm:$0xff]
  %v82 = vld [vmem:[%s0 + $0x60] sm:$0xff]
  %v83 = vld [vmem:[%s0 + $0x68] sm:$0xff]
  %v84 = vld [vmem:[%s0 + $0x70] sm:$0xff]
  %v85 = vld [vmem:[%s0 + $0x78] sm:$0xff]
  %v86 = vld [vmem:[%s0 + $0x80] sm:$0xff]
  %v87 = vld [vmem:[%s0 + $0x88] sm:$0xff]
  %v88 = vld [vmem:[%s0 + $0x90] sm:$0xff]
  %v89 = vld [vmem:[%s0 + $0x98] sm:$0xff]
  %v90 = vld [vmem:[%s0 + $0xa0] sm:$0xff]
  %v91 = vld [vmem:[%s0 + $0xa8] sm:$0xff]
  %v92 = vld [vmem:[%s0 + $0xb0] sm:$0xff]
  %v93 = vld [vmem:[%s0 + $0xb8] sm:$0xff]
  %v94 = vld [vmem:[%s0 + $0xc0] sm:$0xff]
  %v95 = vld [vmem:[%s0 + $0xc8] sm:$0xff]
  %v96 = vld [vmem:[%s0 + $0xd0] sm:$0xff]
  %v97 = vld [vmem:[%s0 + $0xd8] sm:$0xff]
  %v98 = vld [vmem:[%s0 + $0xe0] sm:$0xff]
  %v99 = vld [vmem:[%s0 + $0xe8] sm:$0xff]
  %v100 = vld [vmem:[%s1] sm:$0xff]
  %v101 = vld [vmem:[%s1 + $0x8] sm:$0xff]
  %v102 = vld [vmem:[%s1 + $0x10] sm:$0xff]
  %v103 = vld [vmem:[%s1 + $0x18] sm:$0xff]
  %v104 = vld [vmem:[%s1 + $0x20] sm:$0xff]
  %v105 = vld [vmem:[%s1 + $0x28] sm:$0xff]
  %v106 = vld [vmem:[%s1 + $0x30] sm:$0xff]
  %v107 = vld [vmem:[%s1 + $0x38] sm:$0xff]
  %v108 = vld [vmem:[%s1 + $0x40] sm:$0xff]
  %v109 = vld [vmem:[%s1 + $0x48] sm:$0xff]
  %v110 = vld [vmem:[%s1 + $0x50] sm:$0xff]
  %v111 = vld [vmem:[%s1 + $0x58] sm:$0xff]
  %v112 = vld [vmem:[%s1 + $0x60] sm:$0xff]
  %v113 = vld [vmem:[%s1 + $0x68] sm:$0xff]
  %v114 = vld [vmem:[%s1 + $0x70] sm:$0xff]
  %v115 = vld [vmem:[%s1 + $0x78] sm:$0xff]
  %v116 = vld [vmem:[%s1 + $0x80] sm:$0xff]
  %v117 = vld [vmem:[%s1 + $0x88] sm:$0xff]
  %v118 = vld [vmem:[%s1 + $0x90] sm:$0xff]
  %v119 = vld [vmem:[%s1 + $0x98] sm:$0xff]
  %v120 = vld [vmem:[%s1 + $0xa0] sm:$0xff]
  %v121 = vld [vmem:[%s1 + $0xa8] sm:$0xff]
  %v122 = vld [vmem:[%s1 + $0xb0] sm:$0xff]
  %v123 = vld [vmem:[%s1 + $0xb8] sm:$0xff]
  %v124 = vld [vmem:[%s1 + $0xc0] sm:$0xff]
  %v125 = vld [vmem:[%s1 + $0xc8] sm:$0xff]
  %v126 = vld [vmem:[%s1 + $0xd0] sm:$0xff]
  %v127 = vld [vmem:[%s1 + $0xd8] sm:$0xff]
  %v128 = vld [vmem:[%s1 + $0xe0] sm:$0xff]
  %v129 = vld [vmem:[%s1 + $0xe8] sm:$0xff]
  %v130 = vld [vmem:[%s1 + $0xf0] sm:$0xff]
  %v131 = vld [vmem:[%s1 + $0xf8] sm:$0xff]
  %v132 = vld [vmem:[%s1 + $0x100] sm:$0xff]
  %v133 = vld [vmem:[%s1 + $0x108] sm:$0xff]
  %v134 = vld [vmem:[%s1 + $0x110] sm:$0xff]
  %v135 = vld [vmem:[%s1 + $0x118] sm:$0xff]
  %v136 = vld [vmem:[%s1 + $0x120] sm:$0xff]
  %v137 = vld [vmem:[%s1 + $0x128] sm:$0xff]
  %v138 = vld [vmem:[%s1 + $0x130] sm:$0xff]
  %v139 = vld [vmem:[%s1 + $0x138] sm:$0xff]
  %v140 = vld [vmem:[%s1 + $0x140] sm:$0xff]
  %v141 = vld [vmem:[%s1 + $0x148] sm:$0xff]
  %v142 = vld [vmem:[%s1 + $0x150] sm:$0xff]
  %v143 = vld [vmem:[%s1 + $0x158] sm:$0xff]
  %v144 = vld [vmem:[%s1 + $0x160] sm:$0xff]
  %v145 = vld [vmem:[%s1 + $0x168] sm:$0xff]
  %v146 = vld [vmem:[%s1 + $0x170] sm:$0xff]
  %v147 = vld [vmem:[%s1 + $0x178] sm:$0xff]
  %v148 = vld [vmem:[%s1 + $0x180] sm:$0xff]
  %v149 = vld [vmem:[%s1 + $0x188] sm:$0xff]
  %v150 = vld [vmem:[%s1 + $0x190] sm:$0xff]
  %v151 = vld [vmem:[%s1 + $0x198] sm:$0xff]
  %v152 = vld [vmem:[%s1 + $0x1a0] sm:$0xff]
  %v153 = vld [vmem:[%s1 + $0x1a8] sm:$0xff]
  %v154 = vld [vmem:[%s1 + $0x1b0] sm:$0xff]
  %v155 = vld [vmem:[%s1 + $0x1b8] sm:$0xff]
  %v156 = vld [vmem:[%s1 + $0x1c0] sm:$0xff]
  %v157 = vld [vmem:[%s1 + $0x1c8] sm:$0xff]
  %v158 = vld [vmem:[%s1 + $0x1d0] sm:$0xff]
  %v159 = vld [vmem:[%s1 + $0x1d8] sm:$0xff]
  %v160 = vld [vmem:[%s1 + $0x1e0] sm:$0xff]
  %v161 = vld [vmem:[%s1 + $0x1e8] sm:$0xff]
  %v162 = vld [vmem:[%s1 + $0x1f0] sm:$0xff]
  %v163 = vld [vmem:[%s1 + $0x1f8] sm:$0xff]
  %v164 = vld [vmem:[%s1 + $0x200] sm:$0xff]
  %v165 = vld [vmem:[%s1 + $0x208] sm:$0xff]
  %v166 = vld [vmem:[%s1 + $0x210] sm:$0xff]
  %v167 = vld [vmem:[%s1 + $0x218] sm:$0xff]
  %v168 = vld [vmem:[%s1 + $0x220] sm:$0xff]
  %v169 = vld [vmem:[%s1 + $0x228] sm:$0xff]
  %v170 = vld [vmem:[%s1 + $0x230] sm:$0xff]
  %v171 = vld [vmem:[%s1 + $0x238] sm:$0xff]
  %v172 = vld [vmem:[%s1 + $0x240] sm:$0xff]
  %v173 = vld [vmem:[%s1 + $0x248] sm:$0xff]
  %v174 = vld [vmem:[%s1 + $0x250] sm:$0xff]
  %v175 = vld [vmem:[%s1 + $0x258] sm:$0xff]
  %v176 = vld [vmem:[%s1 + $0x260] sm:$0xff]
  %v177 = vld [vmem:[%s1 + $0x268] sm:$0xff]
  %v178 = vld [vmem:[%s1 + $0x270] sm:$0xff]
  %v179 = vld [vmem:[%s1 + $0x278] sm:$0xff]
  %v180 = vld [vmem:[%s1 + $0x280] sm:$0xff]
  %v181 = vld [vmem:[%s1 + $0x288] sm:$0xff]
  %v182 = vld [vmem:[%s1 + $0x290] sm:$0xff]
  %v183 = vld [vmem:[%s1 + $0x298] sm:$0xff]
  %v184 = vld [vmem:[%s1 + $0x2a0] sm:$0xff]
  %v185 = vld [vmem:[%s1 + $0x2a8] sm:$0xff]
  %v186 = vld [vmem:[%s1 + $0x2b0] sm:$0xff]
  %v187 = vld [vmem:[%s1 + $0x2b8] sm:$0xff]
  %v188 = vld [vmem:[%s1 + $0x2c0] sm:$0xff]
  %v189 = vld [vmem:[%s1 + $0x2c8] sm:$0xff]
  %v190 = vld [vmem:[%s1 + $0x2d0] sm:$0xff]
  %v191 = vld [vmem:[%s1 + $0x2d8] sm:$0xff]
  %v192 = vld [vmem:[%s1 + $0x2e0] sm:$0xff]
  %v193 = vld [vmem:[%s1 + $0x2e8] sm:$0xff]
  %v194 = vld [vmem:[%s1 + $0x2f0] sm:$0xff]
  %v195 = vld [vmem:[%s1 + $0x2f8] sm:$0xff]
  %v196 = vpack.c.bf16 %v73, %v70
  %v197 = vpack.c.bf16 %v74, %v71
  %v198 = vpack.c.bf16 %v75, %v72
  %v199 = vpack.c.bf16 %v79, %v76
  %v200 = vpack.c.bf16 %v80, %v77
  %v201 = vpack.c.bf16 %v81, %v78
  %v202 = vpack.c.bf16 %v85, %v82
  %v203 = vpack.c.bf16 %v86, %v83
  %v204 = vpack.c.bf16 %v87, %v84
  %v205 = vpack.c.bf16 %v91, %v88
  %v206 = vpack.c.bf16 %v92, %v89
  %v207 = vpack.c.bf16 %v93, %v90
  %v208 = vpack.c.bf16 %v97, %v94
  %v209 = vpack.c.bf16 %v98, %v95
  %v210 = vpack.c.bf16 %v99, %v96
  %v211 = vld [vmem:[%s2] ss:$8 sm:$0xf]
  %v213 = vlaneseq
  %v214 = vshrl.u32 %v213, 7
  %v215 = vsub.s32 0, %v214
  %v216 = vrot.slane %v211, %v215
  %v217 = vlaneseq
  %v218 = vshrl.u32 %v217, 7
  %v219 = vsub.s32 1, %v218
  %v220 = vrot.slane %v211, %v219
  %v221 = vlaneseq
  %v222 = vshrl.u32 %v221, 7
  %v223 = vsub.s32 2, %v222
  %v224 = vrot.slane %v211, %v223
  %v225 = vlaneseq
  %v226 = vshrl.u32 %v225, 7
  %v227 = vsub.s32 3, %v226
  %v228 = vrot.slane %v211, %v227
  %v329 = vunpack.c.l.b16 %v100
  %v330 = vunpack.c.h.b16 %v100
  %v331 = vunpack.c.l.b16 %v101
  %v332 = vunpack.c.h.b16 %v101
  %v333 = vunpack.c.l.b16 %v102
  %v334 = vunpack.c.h.b16 %v102
  %v335 = vunpack.c.l.b16 %v103
  %v336 = vunpack.c.h.b16 %v103
  %v337 = vunpack.c.l.b16 %v104
  %v338 = vunpack.c.h.b16 %v104
  %v339 = vunpack.c.l.b16 %v105
  %v340 = vunpack.c.h.b16 %v105
  %v341 = vunpack.c.l.b16 %v106
  %v342 = vunpack.c.h.b16 %v106
  %v343 = vunpack.c.l.b16 %v107
  %v344 = vunpack.c.h.b16 %v107
  %v345 = vunpack.c.l.b16 %v108
  %v346 = vunpack.c.h.b16 %v108
  %v347 = vunpack.c.l.b16 %v109
  %v348 = vunpack.c.h.b16 %v109
  %v349 = vunpack.c.l.b16 %v110
  %v350 = vunpack.c.h.b16 %v110
  %v351 = vunpack.c.l.b16 %v111
  %v352 = vunpack.c.h.b16 %v111
  %v353 = vunpack.c.l.b16 %v112
  %v354 = vunpack.c.h.b16 %v112
  %v355 = vunpack.c.l.b16 %v113
  %v356 = vunpack.c.h.b16 %v113
  %v357 = vunpack.c.l.b16 %v114
  %v358 = vunpack.c.h.b16 %v114
  %v359 = vunpack.c.l.b16 %v115
  %v360 = vunpack.c.h.b16 %v115
  %v361 = vunpack.c.l.b16 %v116
  %v362 = vunpack.c.h.b16 %v116
  %v363 = vunpack.c.l.b16 %v117
  %v364 = vunpack.c.h.b16 %v117
  %v365 = vunpack.c.l.b16 %v118
  %v366 = vunpack.c.h.b16 %v118
  %v367 = vunpack.c.l.b16 %v119
  %v368 = vunpack.c.h.b16 %v119
  %v369 = vunpack.c.l.b16 %v120
  %v370 = vunpack.c.h.b16 %v120
  %v371 = vunpack.c.l.b16 %v121
  %v372 = vunpack.c.h.b16 %v121
  %v373 = vunpack.c.l.b16 %v122
  %v374 = vunpack.c.h.b16 %v122
  %v375 = vunpack.c.l.b16 %v123
  %v376 = vunpack.c.h.b16 %v123
  %v377 = vunpack.c.l.b16 %v124
  %v378 = vunpack.c.h.b16 %v124
  %v379 = vunpack.c.l.b16 %v125
  %v380 = vunpack.c.h.b16 %v125
  %v381 = vunpack.c.l.b16 %v126
  %v382 = vunpack.c.h.b16 %v126
  %v383 = vunpack.c.l.b16 %v127
  %v384 = vunpack.c.h.b16 %v127
  %v385 = vunpack.c.l.b16 %v128
  %v386 = vunpack.c.h.b16 %v128
  %v387 = vunpack.c.l.b16 %v129
  %v388 = vunpack.c.h.b16 %v129
  %v389 = vunpack.c.l.b16 %v130
  %v390 = vunpack.c.h.b16 %v130
  %v391 = vunpack.c.l.b16 %v131
  %v392 = vunpack.c.h.b16 %v131
  %v393 = vunpack.c.l.b16 %v132
  %v394 = vunpack.c.h.b16 %v132
  %v395 = vunpack.c.l.b16 %v133
  %v396 = vunpack.c.h.b16 %v133
  %v397 = vunpack.c.l.b16 %v134
  %v398 = vunpack.c.h.b16 %v134
  %v399 = vunpack.c.l.b16 %v135
  %v400 = vunpack.c.h.b16 %v135
  %v401 = vunpack.c.l.b16 %v136
  %v402 = vunpack.c.h.b16 %v136
  %v403 = vunpack.c.l.b16 %v137
  %v404 = vunpack.c.h.b16 %v137
  %v405 = vunpack.c.l.b16 %v138
  %v406 = vunpack.c.h.b16 %v138
  %v407 = vunpack.c.l.b16 %v139
  %v408 = vunpack.c.h.b16 %v139
  %v409 = vunpack.c.l.b16 %v140
  %v410 = vunpack.c.h.b16 %v140
  %v411 = vunpack.c.l.b16 %v141
  %v412 = vunpack.c.h.b16 %v141
  %v413 = vunpack.c.l.b16 %v142
  %v414 = vunpack.c.h.b16 %v142
  %v415 = vunpack.c.l.b16 %v143
  %v416 = vunpack.c.h.b16 %v143
  %v417 = vunpack.c.l.b16 %v144
  %v418 = vunpack.c.h.b16 %v144
  %v419 = vunpack.c.l.b16 %v145
  %v420 = vunpack.c.h.b16 %v145
  %v421 = vunpack.c.l.b16 %v146
  %v422 = vunpack.c.h.b16 %v146
  %v423 = vunpack.c.l.b16 %v147
  %v424 = vunpack.c.h.b16 %v147
  %v425 = vunpack.c.l.b16 %v148
  %v426 = vunpack.c.h.b16 %v148
  %v427 = vunpack.c.l.b16 %v149
  %v428 = vunpack.c.h.b16 %v149
  %v429 = vunpack.c.l.b16 %v150
  %v430 = vunpack.c.h.b16 %v150
  %v431 = vunpack.c.l.b16 %v151
  %v432 = vunpack.c.h.b16 %v151
  %v433 = vunpack.c.l.b16 %v152
  %v434 = vunpack.c.h.b16 %v152
  %v435 = vunpack.c.l.b16 %v153
  %v436 = vunpack.c.h.b16 %v153
  %v437 = vunpack.c.l.b16 %v154
  %v438 = vunpack.c.h.b16 %v154
  %v439 = vunpack.c.l.b16 %v155
  %v440 = vunpack.c.h.b16 %v155
  %v441 = vunpack.c.l.b16 %v156
  %v442 = vunpack.c.h.b16 %v156
  %v443 = vunpack.c.l.b16 %v157
  %v444 = vunpack.c.h.b16 %v157
  %v445 = vunpack.c.l.b16 %v158
  %v446 = vunpack.c.h.b16 %v158
  %v447 = vunpack.c.l.b16 %v159
  %v448 = vunpack.c.h.b16 %v159
  %v449 = vunpack.c.l.b16 %v160
  %v450 = vunpack.c.h.b16 %v160
  %v451 = vunpack.c.l.b16 %v161
  %v452 = vunpack.c.h.b16 %v161
  %v453 = vunpack.c.l.b16 %v162
  %v454 = vunpack.c.h.b16 %v162
  %v455 = vunpack.c.l.b16 %v163
  %v456 = vunpack.c.h.b16 %v163
  %v457 = vunpack.c.l.b16 %v164
  %v458 = vunpack.c.h.b16 %v164
  %v459 = vunpack.c.l.b16 %v165
  %v460 = vunpack.c.h.b16 %v165
  %v461 = vunpack.c.l.b16 %v166
  %v462 = vunpack.c.h.b16 %v166
  %v463 = vunpack.c.l.b16 %v167
  %v464 = vunpack.c.h.b16 %v167
  %v465 = vunpack.c.l.b16 %v168
  %v466 = vunpack.c.h.b16 %v168
  %v467 = vunpack.c.l.b16 %v169
  %v468 = vunpack.c.h.b16 %v169
  %v469 = vunpack.c.l.b16 %v170
  %v470 = vunpack.c.h.b16 %v170
  %v471 = vunpack.c.l.b16 %v171
  %v472 = vunpack.c.h.b16 %v171
  %v473 = vunpack.c.l.b16 %v172
  %v474 = vunpack.c.h.b16 %v172
  %v475 = vunpack.c.l.b16 %v173
  %v476 = vunpack.c.h.b16 %v173
  %v477 = vunpack.c.l.b16 %v174
  %v478 = vunpack.c.h.b16 %v174
  %v479 = vunpack.c.l.b16 %v175
  %v480 = vunpack.c.h.b16 %v175
  %v481 = vunpack.c.l.b16 %v176
  %v482 = vunpack.c.h.b16 %v176
  %v483 = vunpack.c.l.b16 %v177
  %v484 = vunpack.c.h.b16 %v177
  %v485 = vunpack.c.l.b16 %v178
  %v486 = vunpack.c.h.b16 %v178
  %v487 = vunpack.c.l.b16 %v179
  %v488 = vunpack.c.h.b16 %v179
  %v489 = vunpack.c.l.b16 %v180
  %v490 = vunpack.c.h.b16 %v180
  %v491 = vunpack.c.l.b16 %v181
  %v492 = vunpack.c.h.b16 %v181
  %v493 = vunpack.c.l.b16 %v182
  %v494 = vunpack.c.h.b16 %v182
  %v495 = vunpack.c.l.b16 %v183
  %v496 = vunpack.c.h.b16 %v183
  %v497 = vunpack.c.l.b16 %v184
  %v498 = vunpack.c.h.b16 %v184
  %v499 = vunpack.c.l.b16 %v185
  %v500 = vunpack.c.h.b16 %v185
  %v501 = vunpack.c.l.b16 %v186
  %v502 = vunpack.c.h.b16 %v186
  %v503 = vunpack.c.l.b16 %v187
  %v504 = vunpack.c.h.b16 %v187
  %v505 = vunpack.c.l.b16 %v188
  %v506 = vunpack.c.h.b16 %v188
  %v507 = vunpack.c.l.b16 %v189
  %v508 = vunpack.c.h.b16 %v189
  %v509 = vunpack.c.l.b16 %v190
  %v510 = vunpack.c.h.b16 %v190
  %v511 = vunpack.c.l.b16 %v191
  %v512 = vunpack.c.h.b16 %v191
  %v513 = vunpack.c.l.b16 %v192
  %v514 = vunpack.c.h.b16 %v192
  %v515 = vunpack.c.l.b16 %v193
  %v516 = vunpack.c.h.b16 %v193
  %v517 = vunpack.c.l.b16 %v194
  %v518 = vunpack.c.h.b16 %v194
  %v519 = vunpack.c.l.b16 %v195
  %v520 = vunpack.c.h.b16 %v195
  %v521 = vpack.c.b16 %v333, %v329
  %v522 = vpack.c.b16 %v334, %v330
  %v523 = vpack.c.b16 %v335, %v331
  %v524 = vpack.c.b16 %v336, %v332
  %v525 = vpack.c.b16 %v341, %v337
  %v526 = vpack.c.b16 %v342, %v338
  %v527 = vpack.c.b16 %v343, %v339
  %v528 = vpack.c.b16 %v344, %v340
  %v529 = vpack.c.b16 %v349, %v345
  %v530 = vpack.c.b16 %v350, %v346
  %v531 = vpack.c.b16 %v351, %v347
  %v532 = vpack.c.b16 %v352, %v348
  %v533 = vpack.c.b16 %v357, %v353
  %v534 = vpack.c.b16 %v358, %v354
  %v535 = vpack.c.b16 %v359, %v355
  %v536 = vpack.c.b16 %v360, %v356
  %v537 = vpack.c.b16 %v365, %v361
  %v538 = vpack.c.b16 %v366, %v362
  %v539 = vpack.c.b16 %v367, %v363
  %v540 = vpack.c.b16 %v368, %v364
  %v541 = vpack.c.b16 %v373, %v369
  %v542 = vpack.c.b16 %v374, %v370
  %v543 = vpack.c.b16 %v375, %v371
  %v544 = vpack.c.b16 %v376, %v372
  %v545 = vpack.c.b16 %v381, %v377
  %v546 = vpack.c.b16 %v382, %v378
  %v547 = vpack.c.b16 %v383, %v379
  %v548 = vpack.c.b16 %v384, %v380
  %v549 = vpack.c.b16 %v389, %v385
  %v550 = vpack.c.b16 %v390, %v386
  %v551 = vpack.c.b16 %v391, %v387
  %v552 = vpack.c.b16 %v392, %v388
  %v553 = vpack.c.b16 %v397, %v393
  %v554 = vpack.c.b16 %v398, %v394
  %v555 = vpack.c.b16 %v399, %v395
  %v556 = vpack.c.b16 %v400, %v396
  %v557 = vpack.c.b16 %v405, %v401
  %v558 = vpack.c.b16 %v406, %v402
  %v559 = vpack.c.b16 %v407, %v403
  %v560 = vpack.c.b16 %v408, %v404
  %v561 = vpack.c.b16 %v413, %v409
  %v562 = vpack.c.b16 %v414, %v410
  %v563 = vpack.c.b16 %v415, %v411
  %v564 = vpack.c.b16 %v416, %v412
  %v565 = vpack.c.b16 %v421, %v417
  %v566 = vpack.c.b16 %v422, %v418
  %v567 = vpack.c.b16 %v423, %v419
  %v568 = vpack.c.b16 %v424, %v420
  %v569 = vpack.c.b16 %v429, %v425
  %v570 = vpack.c.b16 %v430, %v426
  %v571 = vpack.c.b16 %v431, %v427
  %v572 = vpack.c.b16 %v432, %v428
  %v573 = vpack.c.b16 %v437, %v433
  %v574 = vpack.c.b16 %v438, %v434
  %v575 = vpack.c.b16 %v439, %v435
  %v576 = vpack.c.b16 %v440, %v436
  %v577 = vpack.c.b16 %v445, %v441
  %v578 = vpack.c.b16 %v446, %v442
  %v579 = vpack.c.b16 %v447, %v443
  %v580 = vpack.c.b16 %v448, %v444
  %v581 = vpack.c.b16 %v453, %v449
  %v582 = vpack.c.b16 %v454, %v450
  %v583 = vpack.c.b16 %v455, %v451
  %v584 = vpack.c.b16 %v456, %v452
  %v585 = vpack.c.b16 %v461, %v457
  %v586 = vpack.c.b16 %v462, %v458
  %v587 = vpack.c.b16 %v463, %v459
  %v588 = vpack.c.b16 %v464, %v460
  %v589 = vpack.c.b16 %v469, %v465
  %v590 = vpack.c.b16 %v470, %v466
  %v591 = vpack.c.b16 %v471, %v467
  %v592 = vpack.c.b16 %v472, %v468
  %v593 = vpack.c.b16 %v477, %v473
  %v594 = vpack.c.b16 %v478, %v474
  %v595 = vpack.c.b16 %v479, %v475
  %v596 = vpack.c.b16 %v480, %v476
  %v597 = vpack.c.b16 %v485, %v481
  %v598 = vpack.c.b16 %v486, %v482
  %v599 = vpack.c.b16 %v487, %v483
  %v600 = vpack.c.b16 %v488, %v484
  %v601 = vpack.c.b16 %v493, %v489
  %v602 = vpack.c.b16 %v494, %v490
  %v603 = vpack.c.b16 %v495, %v491
  %v604 = vpack.c.b16 %v496, %v492
  %v605 = vpack.c.b16 %v501, %v497
  %v606 = vpack.c.b16 %v502, %v498
  %v607 = vpack.c.b16 %v503, %v499
  %v608 = vpack.c.b16 %v504, %v500
  %v609 = vpack.c.b16 %v509, %v505
  %v610 = vpack.c.b16 %v510, %v506
  %v611 = vpack.c.b16 %v511, %v507
  %v612 = vpack.c.b16 %v512, %v508
  %v613 = vpack.c.b16 %v517, %v513
  %v614 = vpack.c.b16 %v518, %v514
  %v615 = vpack.c.b16 %v519, %v515
  %v616 = vpack.c.b16 %v520, %v516
  %713 = vmatprep.subr.bf16.mxu0 %v522
  %714 = vmatpush1.bf16.msra.mxu0 %v521
  %715 = vmatprep.subr.bf16.mxu0 %v526
  %716 = vmatpush1.bf16.msra.mxu0 %v525
  %717 = vmatprep.subr.bf16.mxu0 %v530
  %718 = vmatpush1.bf16.msra.mxu0 %v529
  %719 = vmatprep.subr.bf16.mxu0 %v534
  %720 = vmatpush1.bf16.msra.mxu0 %v533
  %721 = vmatprep.subr.bf16.mxu0 %v538
  %722 = vmatpush1.bf16.msra.mxu0 %v537
  %723 = vmatprep.subr.bf16.mxu0 %v542
  %724 = vmatpush1.bf16.msra.mxu0 %v541
  %725 = vmatprep.subr.bf16.mxu0 %v546
  %726 = vmatpush1.bf16.msra.mxu0 %v545
  %727 = vmatprep.subr.bf16.mxu0 %v550
  %728 = vmatpush1.bf16.msra.mxu0 %v549
  %729 = vmatprep.subr.bf16.mxu0 %v554
  %730 = vmatpush1.bf16.msra.mxu0 %v553
  %731 = vmatprep.subr.bf16.mxu0 %v558
  %732 = vmatpush1.bf16.msra.mxu0 %v557
  %733 = vmatprep.subr.bf16.mxu0 %v562
  %734 = vmatpush1.bf16.msra.mxu0 %v561
  %735 = vmatprep.subr.bf16.mxu0 %v566
  %736 = vmatpush1.bf16.msra.mxu0 %v565
  %737 = vmatprep.subr.bf16.mxu0 %v570
  %738 = vmatpush1.bf16.msra.mxu0 %v569
  %739 = vmatprep.subr.bf16.mxu0 %v574
  %740 = vmatpush1.bf16.msra.mxu0 %v573
  %741 = vmatprep.subr.bf16.mxu0 %v578
  %742 = vmatpush1.bf16.msra.mxu0 %v577
  %743 = vmatprep.subr.bf16.mxu0 %v582
  %744 = vmatpush1.bf16.msra.mxu0 %v581
  %745 = vmatprep.mubr.bf16.mxu0 %v197
  %746 = vmatmul.mubr.bf16.gmra.mrb[0].mxu0 %v196
  %v747 = vpop.f32.mrb[0].mxu0
  %v748 = vadd.f32 %v216, %v747
  %v749 = vpop.f32.mrb[0].mxu0
  %v750 = vadd.f32 %v220, %v749
  %v751 = vpop.f32.mrb[0].mxu0
  %v752 = vadd.f32 %v216, %v751
  %v753 = vpop.f32.mrb[0].mxu0
  %v754 = vadd.f32 %v220, %v753
  %755 = vmatprep.mubr.bf16.mxu0 %v200
  %756 = vmatmul.mubr.bf16.gmra.mrb[0].mxu0 %v199
  %v757 = vpop.f32.mrb[0].mxu0
  %v758 = vadd.f32 %v216, %v757
  %v759 = vpop.f32.mrb[0].mxu0
  %v760 = vadd.f32 %v220, %v759
  %v761 = vpop.f32.mrb[0].mxu0
  %v762 = vadd.f32 %v216, %v761
  %v763 = vpop.f32.mrb[0].mxu0
  %v764 = vadd.f32 %v220, %v763
  %765 = vmatprep.mubr.bf16.mxu0 %v203
  %766 = vmatmul.mubr.bf16.gmra.mrb[0].mxu0 %v202
  %v767 = vpop.f32.mrb[0].mxu0
  %v768 = vadd.f32 %v216, %v767
  %v769 = vpop.f32.mrb[0].mxu0
  %v770 = vadd.f32 %v220, %v769
  %v771 = vpop.f32.mrb[0].mxu0
  %v772 = vadd.f32 %v216, %v771
  %v773 = vpop.f32.mrb[0].mxu0
  %v774 = vadd.f32 %v220, %v773
  %775 = vmatprep.mubr.bf16.mxu0 %v206
  %776 = vmatmul.mubr.bf16.gmra.mrb[0].mxu0 %v205
  %v777 = vpop.f32.mrb[0].mxu0
  %v778 = vadd.f32 %v216, %v777
  %v779 = vpop.f32.mrb[0].mxu0
  %v780 = vadd.f32 %v220, %v779
  %v781 = vpop.f32.mrb[0].mxu0
  %v782 = vadd.f32 %v216, %v781
  %v783 = vpop.f32.mrb[0].mxu0
  %v784 = vadd.f32 %v220, %v783
  %785 = vmatprep.mubr.bf16.mxu0 %v209
  %786 = vmatmul.mubr.bf16.gmra.mrb[0].mxu0 %v208
  %v787 = vpop.f32.mrb[0].mxu0
  %v788 = vadd.f32 %v216, %v787
  %v789 = vpop.f32.mrb[0].mxu0
  %v790 = vadd.f32 %v220, %v789
  %v791 = vpop.f32.mrb[0].mxu0
  %v792 = vadd.f32 %v216, %v791
  %v793 = vpop.f32.mrb[0].mxu0
  %v794 = vadd.f32 %v220, %v793
  %795 = vdwg.mxu0
  %796 = vmatprep.subr.bf16.mxu0 %v586
  %797 = vmatpush1.bf16.msra.mxu0 %v585
  %798 = vmatprep.subr.bf16.mxu0 %v590
  %799 = vmatpush1.bf16.msra.mxu0 %v589
  %800 = vmatprep.subr.bf16.mxu0 %v594
  %801 = vmatpush1.bf16.msra.mxu0 %v593
  %802 = vmatprep.subr.bf16.mxu0 %v598
  %803 = vmatpush1.bf16.msra.mxu0 %v597
  %804 = vmatprep.subr.bf16.mxu0 %v602
  %805 = vmatpush1.bf16.msra.mxu0 %v601
  %806 = vmatprep.subr.bf16.mxu0 %v606
  %807 = vmatpush1.bf16.msra.mxu0 %v605
  %808 = vmatprep.subr.bf16.mxu0 %v610
  %809 = vmatpush1.bf16.msra.mxu0 %v609
  %810 = vmatprep.subr.bf16.mxu0 %v614
  %811 = vmatpush1.bf16.msra.mxu0 %v613
  %812 = vmatprep.subr.bf16.mxu0 0
  %813 = vmatpush1.bf16.msra.mxu0 0
  %814 = vmatprep.subr.bf16.mxu0 0
  %815 = vmatpush1.bf16.msra.mxu0 0
  %816 = vmatprep.subr.bf16.mxu0 0
  %817 = vmatpush1.bf16.msra.mxu0 0
  %818 = vmatprep.subr.bf16.mxu0 0
  %819 = vmatpush1.bf16.msra.mxu0 0
  %820 = vmatprep.subr.bf16.mxu0 0
  %821 = vmatpush1.bf16.msra.mxu0 0
  %822 = vmatprep.subr.bf16.mxu0 0
  %823 = vmatpush1.bf16.msra.mxu0 0
  %824 = vmatprep.subr.bf16.mxu0 0
  %825 = vmatpush1.bf16.msra.mxu0 0
  %826 = vmatprep.subr.bf16.mxu0 0
  %827 = vmatpush1.bf16.msra.mxu0 0
  %828 = vmatprep.mubr.bf16.mxu0 0
  %829 = vmatmul.mubr.bf16.gmra.mrb[0].mxu0 %v198
  %v830 = vpop.f32.mrb[0].mxu0
  %v831 = vadd.f32 %v748, %v830
  %v832 = vpop.f32.mrb[0].mxu0
  %v833 = vadd.f32 %v750, %v832
  %v834 = vpop.f32.mrb[0].mxu0
  %v835 = vadd.f32 %v752, %v834
  %v836 = vpop.f32.mrb[0].mxu0
  %v837 = vadd.f32 %v754, %v836
  %838 = vmatprep.mubr.bf16.mxu0 0
  %839 = vmatmul.mubr.bf16.gmra.mrb[0].mxu0 %v201
  %v840 = vpop.f32.mrb[0].mxu0
  %v841 = vadd.f32 %v758, %v840
  %v842 = vpop.f32.mrb[0].mxu0
  %v843 = vadd.f32 %v760, %v842
  %v844 = vpop.f32.mrb[0].mxu0
  %v845 = vadd.f32 %v762, %v844
  %v846 = vpop.f32.mrb[0].mxu0
  %v847 = vadd.f32 %v764, %v846
  %848 = vmatprep.mubr.bf16.mxu0 0
  %849 = vmatmul.mubr.bf16.gmra.mrb[0].mxu0 %v204
  %v850 = vpop.f32.mrb[0].mxu0
  %v851 = vadd.f32 %v768, %v850
  %v852 = vpop.f32.mrb[0].mxu0
  %v853 = vadd.f32 %v770, %v852
  %v854 = vpop.f32.mrb[0].mxu0
  %v855 = vadd.f32 %v772, %v854
  %v856 = vpop.f32.mrb[0].mxu0
  %v857 = vadd.f32 %v774, %v856
  %858 = vmatprep.mubr.bf16.mxu0 0
  %859 = vmatmul.mubr.bf16.gmra.mrb[0].mxu0 %v207
  %v860 = vpop.f32.mrb[0].mxu0
  %v861 = vadd.f32 %v778, %v860
  %v862 = vpop.f32.mrb[0].mxu0
  %v863 = vadd.f32 %v780, %v862
  %v864 = vpop.f32.mrb[0].mxu0
  %v865 = vadd.f32 %v782, %v864
  %v866 = vpop.f32.mrb[0].mxu0
  %v867 = vadd.f32 %v784, %v866
  %868 = vmatprep.mubr.bf16.mxu0 0
  %869 = vmatmul.mubr.bf16.gmra.mrb[0].mxu0 %v210
  %v870 = vpop.f32.mrb[0].mxu0
  %v871 = vadd.f32 %v788, %v870
  %v872 = vpop.f32.mrb[0].mxu0
  %v873 = vadd.f32 %v790, %v872
  %v874 = vpop.f32.mrb[0].mxu0
  %v875 = vadd.f32 %v792, %v874
  %v876 = vpop.f32.mrb[0].mxu0
  %v877 = vadd.f32 %v794, %v876
  %878 = vdwg.mxu0
  %879 = vmatprep.subr.bf16.mxu0 %v524
  %880 = vmatpush1.bf16.msra.mxu0 %v523
  %881 = vmatprep.subr.bf16.mxu0 %v528
  %882 = vmatpush1.bf16.msra.mxu0 %v527
  %883 = vmatprep.subr.bf16.mxu0 %v532
  %884 = vmatpush1.bf16.msra.mxu0 %v531
  %885 = vmatprep.subr.bf16.mxu0 %v536
  %886 = vmatpush1.bf16.msra.mxu0 %v535
  %887 = vmatprep.subr.bf16.mxu0 %v540
  %888 = vmatpush1.bf16.msra.mxu0 %v539
  %889 = vmatprep.subr.bf16.mxu0 %v544
  %890 = vmatpush1.bf16.msra.mxu0 %v543
  %891 = vmatprep.subr.bf16.mxu0 %v548
  %892 = vmatpush1.bf16.msra.mxu0 %v547
  %893 = vmatprep.subr.bf16.mxu0 %v552
  %894 = vmatpush1.bf16.msra.mxu0 %v551
  %895 = vmatprep.subr.bf16.mxu0 %v556
  %896 = vmatpush1.bf16.msra.mxu0 %v555
  %897 = vmatprep.subr.bf16.mxu0 %v560
  %898 = vmatpush1.bf16.msra.mxu0 %v559
  %899 = vmatprep.subr.bf16.mxu0 %v564
  %900 = vmatpush1.bf16.msra.mxu0 %v563
  %901 = vmatprep.subr.bf16.mxu0 %v568
  %902 = vmatpush1.bf16.msra.mxu0 %v567
  %903 = vmatprep.subr.bf16.mxu0 %v572
  %904 = vmatpush1.bf16.msra.mxu0 %v571
  %905 = vmatprep.subr.bf16.mxu0 %v576
  %906 = vmatpush1.bf16.msra.mxu0 %v575
  %907 = vmatprep.subr.bf16.mxu0 %v580
  %908 = vmatpush1.bf16.msra.mxu0 %v579
  %909 = vmatprep.subr.bf16.mxu0 %v584
  %910 = vmatpush1.bf16.msra.mxu0 %v583
  %911 = vmatprep.mubr.bf16.mxu0 %v197
  %912 = vmatmul.mubr.bf16.gmra.mrb[0].mxu0 %v196
  %v913 = vpop.f32.mrb[0].mxu0
  %v914 = vadd.f32 %v224, %v913
  %v915 = vpop.f32.mrb[0].mxu0
  %v916 = vadd.f32 %v228, %v915
  %v917 = vpop.f32.mrb[0].mxu0
  %v918 = vadd.f32 %v224, %v917
  %v919 = vpop.f32.mrb[0].mxu0
  %v920 = vadd.f32 %v228, %v919
  %921 = vmatprep.mubr.bf16.mxu0 %v200
  %922 = vmatmul.mubr.bf16.gmra.mrb[0].mxu0 %v199
  %v923 = vpop.f32.mrb[0].mxu0
  %v924 = vadd.f32 %v224, %v923
  %v925 = vpop.f32.mrb[0].mxu0
  %v926 = vadd.f32 %v228, %v925
  %v927 = vpop.f32.mrb[0].mxu0
  %v928 = vadd.f32 %v224, %v927
  %v929 = vpop.f32.mrb[0].mxu0
  %v930 = vadd.f32 %v228, %v929
  %931 = vmatprep.mubr.bf16.mxu0 %v203
  %932 = vmatmul.mubr.bf16.gmra.mrb[0].mxu0 %v202
  %v933 = vpop.f32.mrb[0].mxu0
  %v934 = vadd.f32 %v224, %v933
  %v935 = vpop.f32.mrb[0].mxu0
  %v936 = vadd.f32 %v228, %v935
  %v937 = vpop.f32.mrb[0].mxu0
  %v938 = vadd.f32 %v224, %v937
  %v939 = vpop.f32.mrb[0].mxu0
  %v940 = vadd.f32 %v228, %v939
  %941 = vmatprep.mubr.bf16.mxu0 %v206
  %942 = vmatmul.mubr.bf16.gmra.mrb[0].mxu0 %v205
  %v943 = vpop.f32.mrb[0].mxu0
  %v944 = vadd.f32 %v224, %v943
  %v945 = vpop.f32.mrb[0].mxu0
  %v946 = vadd.f32 %v228, %v945
  %v947 = vpop.f32.mrb[0].mxu0
  %v948 = vadd.f32 %v224, %v947
  %v949 = vpop.f32.mrb[0].mxu0
  %v950 = vadd.f32 %v228, %v949
  %951 = vmatprep.mubr.bf16.mxu0 %v209
  %952 = vmatmul.mubr.bf16.gmra.mrb[0].mxu0 %v208
  %v953 = vpop.f32.mrb[0].mxu0
  %v954 = vadd.f32 %v224, %v953
  %v955 = vpop.f32.mrb[0].mxu0
  %v956 = vadd.f32 %v228, %v955
  %v957 = vpop.f32.mrb[0].mxu0
  %v958 = vadd.f32 %v224, %v957
  %v959 = vpop.f32.mrb[0].mxu0
  %v960 = vadd.f32 %v228, %v959
  %961 = vdwg.mxu0
  %962 = vmatprep.subr.bf16.mxu0 %v588
  %963 = vmatpush1.bf16.msra.mxu0 %v587
  %964 = vmatprep.subr.bf16.mxu0 %v592
  %965 = vmatpush1.bf16.msra.mxu0 %v591
  %966 = vmatprep.subr.bf16.mxu0 %v596
  %967 = vmatpush1.bf16.msra.mxu0 %v595
  %968 = vmatprep.subr.bf16.mxu0 %v600
  %969 = vmatpush1.bf16.msra.mxu0 %v599
  %970 = vmatprep.subr.bf16.mxu0 %v604
  %971 = vmatpush1.bf16.msra.mxu0 %v603
  %972 = vmatprep.subr.bf16.mxu0 %v608
  %973 = vmatpush1.bf16.msra.mxu0 %v607
  %974 = vmatprep.subr.bf16.mxu0 %v612
  %975 = vmatpush1.bf16.msra.mxu0 %v611
  %976 = vmatprep.subr.bf16.mxu0 %v616
  %977 = vmatpush1.bf16.msra.mxu0 %v615
  %978 = vmatprep.subr.bf16.mxu0 0
  %979 = vmatpush1.bf16.msra.mxu0 0
  %980 = vmatprep.subr.bf16.mxu0 0
  %981 = vmatpush1.bf16.msra.mxu0 0
  %982 = vmatprep.subr.bf16.mxu0 0
  %983 = vmatpush1.bf16.msra.mxu0 0
  %984 = vmatprep.subr.bf16.mxu0 0
  %985 = vmatpush1.bf16.msra.mxu0 0
  %986 = vmatprep.subr.bf16.mxu0 0
  %987 = vmatpush1.bf16.msra.mxu0 0
  %988 = vmatprep.subr.bf16.mxu0 0
  %989 = vmatpush1.bf16.msra.mxu0 0
  %990 = vmatprep.subr.bf16.mxu0 0
  %991 = vmatpush1.bf16.msra.mxu0 0
  %992 = vmatprep.subr.bf16.mxu0 0
  %993 = vmatpush1.bf16.msra.mxu0 0
  %994 = vmatprep.mubr.bf16.mxu0 0
  %995 = vmatmul.mubr.bf16.gmra.mrb[0].mxu0 %v198
  %v996 = vpop.f32.mrb[0].mxu0
  %v997 = vadd.f32 %v914, %v996
  %v998 = vpop.f32.mrb[0].mxu0
  %v999 = vadd.f32 %v916, %v998
  %v1000 = vpop.f32.mrb[0].mxu0
  %v1001 = vadd.f32 %v918, %v1000
  %v1002 = vpop.f32.mrb[0].mxu0
  %v1003 = vadd.f32 %v920, %v1002
  %1004 = vmatprep.mubr.bf16.mxu0 0
  %1005 = vmatmul.mubr.bf16.gmra.mrb[0].mxu0 %v201
  %v1006 = vpop.f32.mrb[0].mxu0
  %v1007 = vadd.f32 %v924, %v1006
  %v1008 = vpop.f32.mrb[0].mxu0
  %v1009 = vadd.f32 %v926, %v1008
  %v1010 = vpop.f32.mrb[0].mxu0
  %v1011 = vadd.f32 %v928, %v1010
  %v1012 = vpop.f32.mrb[0].mxu0
  %v1013 = vadd.f32 %v930, %v1012
  %1014 = vmatprep.mubr.bf16.mxu0 0
  %1015 = vmatmul.mubr.bf16.gmra.mrb[0].mxu0 %v204
  %v1016 = vpop.f32.mrb[0].mxu0
  %v1017 = vadd.f32 %v934, %v1016
  %v1018 = vpop.f32.mrb[0].mxu0
  %v1019 = vadd.f32 %v936, %v1018
  %v1020 = vpop.f32.mrb[0].mxu0
  %v1021 = vadd.f32 %v938, %v1020
  %v1022 = vpop.f32.mrb[0].mxu0
  %v1023 = vadd.f32 %v940, %v1022
  %1024 = vmatprep.mubr.bf16.mxu0 0
  %1025 = vmatmul.mubr.bf16.gmra.mrb[0].mxu0 %v207
  %v1026 = vpop.f32.mrb[0].mxu0
  %v1027 = vadd.f32 %v944, %v1026
  %v1028 = vpop.f32.mrb[0].mxu0
  %v1029 = vadd.f32 %v946, %v1028
  %v1030 = vpop.f32.mrb[0].mxu0
  %v1031 = vadd.f32 %v948, %v1030
  %v1032 = vpop.f32.mrb[0].mxu0
  %v1033 = vadd.f32 %v950, %v1032
  %1034 = vmatprep.mubr.bf16.mxu0 0
  %1035 = vmatmul.mubr.bf16.gmra.mrb[0].mxu0 %v210
  %v1036 = vpop.f32.mrb[0].mxu0
  %v1037 = vadd.f32 %v954, %v1036
  %v1038 = vpop.f32.mrb[0].mxu0
  %v1039 = vadd.f32 %v956, %v1038
  %v1040 = vpop.f32.mrb[0].mxu0
  %v1041 = vadd.f32 %v958, %v1040
  %v1042 = vpop.f32.mrb[0].mxu0
  %v1043 = vadd.f32 %v960, %v1042
  %1044 = vdwg.mxu0
  %v1045 = vmax.f32 %v831, 0.0
  %v1046 = vmax.f32 %v833, 0.0
  %v1047 = vmax.f32 %v997, 0.0
  %v1048 = vmax.f32 %v999, 0.0
  %v1049 = vmax.f32 %v835, 0.0
  %v1050 = vmax.f32 %v837, 0.0
  %v1051 = vmax.f32 %v1001, 0.0
  %v1052 = vmax.f32 %v1003, 0.0
  %v1053 = vmax.f32 %v841, 0.0
  %v1054 = vmax.f32 %v843, 0.0
  %v1055 = vmax.f32 %v1007, 0.0
  %v1056 = vmax.f32 %v1009, 0.0
  %v1057 = vmax.f32 %v845, 0.0
  %v1058 = vmax.f32 %v847, 0.0
  %v1059 = vmax.f32 %v1011, 0.0
  %v1060 = vmax.f32 %v1013, 0.0
  %v1061 = vmax.f32 %v851, 0.0
  %v1062 = vmax.f32 %v853, 0.0
  %v1063 = vmax.f32 %v1017, 0.0
  %v1064 = vmax.f32 %v1019, 0.0
  %v1065 = vmax.f32 %v855, 0.0
  %v1066 = vmax.f32 %v857, 0.0
  %v1067 = vmax.f32 %v1021, 0.0
  %v1068 = vmax.f32 %v1023, 0.0
  %v1069 = vmax.f32 %v861, 0.0
  %v1070 = vmax.f32 %v863, 0.0
  %v1071 = vmax.f32 %v1027, 0.0
  %v1072 = vmax.f32 %v1029, 0.0
  %v1073 = vmax.f32 %v865, 0.0
  %v1074 = vmax.f32 %v867, 0.0
  %v1075 = vmax.f32 %v1031, 0.0
  %v1076 = vmax.f32 %v1033, 0.0
  %v1077 = vmax.f32 %v871, 0.0
  %v1078 = vmax.f32 %v873, 0.0
  %v1079 = vmax.f32 %v1037, 0.0
  %v1080 = vmax.f32 %v1039, 0.0
  %v1081 = vmax.f32 %v875, 0.0
  %v1082 = vmax.f32 %v877, 0.0
  %v1083 = vmax.f32 %v1041, 0.0
  %v1084 = vmax.f32 %v1043, 0.0
  %v1085 = vmax.f32 %v1045, %v1047
  %v1086 = vmax.f32 %v1046, %v1048
  %v1087 = vmax.f32 %v1049, %v1051
  %v1088 = vmax.f32 %v1050, %v1052
  %v1089 = vmax.f32 %v1053, %v1055
  %v1090 = vmax.f32 %v1054, %v1056
  %v1091 = vmax.f32 %v1057, %v1059
  %v1092 = vmax.f32 %v1058, %v1060
  %v1093 = vmax.f32 %v1061, %v1063
  %v1094 = vmax.f32 %v1062, %v1064
  %v1095 = vmax.f32 %v1065, %v1067
  %v1096 = vmax.f32 %v1066, %v1068
  %v1097 = vmax.f32 %v1069, %v1071
  %v1098 = vmax.f32 %v1070, %v1072
  %v1099 = vmax.f32 %v1073, %v1075
  %v1100 = vmax.f32 %v1074, %v1076
  %v1101 = vmax.f32 %v1077, %v1079
  %v1102 = vmax.f32 %v1078, %v1080
  %v1103 = vmax.f32 %v1081, %v1083
  %v1104 = vmax.f32 %v1082, %v1084
  %v1105 = vld [vmem:[%s1 + $0x300] sm:$0xff]
  %v1106 = vld [vmem:[%s1 + $0x310] sm:$0xff]
  %v1107 = vld [vmem:[%s1 + $0x320] sm:$0xff]
  %v1108 = vld [vmem:[%s1 + $0x330] sm:$0xff]
  %v1109 = vld [vmem:[%s1 + $0x340] sm:$0xff]
  %v1110 = vld [vmem:[%s1 + $0x350] sm:$0xff]
  %v1111 = vld [vmem:[%s1 + $0x360] sm:$0xff]
  %v1112 = vld [vmem:[%s1 + $0x370] sm:$0xff]
  %v1113 = vld [vmem:[%s1 + $0x380] sm:$0xff]
  %v1114 = vld [vmem:[%s1 + $0x390] sm:$0xff]
  %v1115 = vld [vmem:[%s1 + $0x3a0] sm:$0xff]
  %v1116 = vld [vmem:[%s1 + $0x3b0] sm:$0xff]
  %v1117 = vld [vmem:[%s1 + $0x3c0] sm:$0xff]
  %v1118 = vld [vmem:[%s1 + $0x3d0] sm:$0xff]
  %v1119 = vld [vmem:[%s1 + $0x3e0] sm:$0xff]
  %v1120 = vld [vmem:[%s1 + $0x3f0] sm:$0xff]
  %v1121 = vld [vmem:[%s1 + $0x400] sm:$0xff]
  %v1122 = vld [vmem:[%s1 + $0x410] sm:$0xff]
  %v1123 = vld [vmem:[%s1 + $0x420] sm:$0xff]
  %v1124 = vld [vmem:[%s1 + $0x430] sm:$0xff]
  %v1125 = vld [vmem:[%s1 + $0x440] sm:$0xff]
  %v1126 = vld [vmem:[%s1 + $0x450] sm:$0xff]
  %v1127 = vld [vmem:[%s1 + $0x460] sm:$0xff]
  %v1128 = vld [vmem:[%s1 + $0x470] sm:$0xff]
  %v1129 = vld [vmem:[%s1 + $0x480] sm:$0xff]
  %v1130 = vld [vmem:[%s1 + $0x490] sm:$0xff]
  %v1131 = vld [vmem:[%s1 + $0x4a0] sm:$0xff]
  %v1132 = vld [vmem:[%s1 + $0x4b0] sm:$0xff]
  %v1133 = vld [vmem:[%s1 + $0x4c0] sm:$0xff]
  %v1134 = vld [vmem:[%s1 + $0x4d0] sm:$0xff]
  %v1135 = vld [vmem:[%s1 + $0x4e0] sm:$0xff]
  %v1136 = vld [vmem:[%s1 + $0x4f0] sm:$0xff]
  %v1137 = vpack.c.bf16 %v1087, %v1085
  %v1138 = vpack.c.bf16 %v1088, %v1086
  %v1139 = vpack.c.bf16 %v1091, %v1089
  %v1140 = vpack.c.bf16 %v1092, %v1090
  %v1141 = vpack.c.bf16 %v1095, %v1093
  %v1142 = vpack.c.bf16 %v1096, %v1094
  %v1143 = vpack.c.bf16 %v1099, %v1097
  %v1144 = vpack.c.bf16 %v1100, %v1098
  %v1145 = vpack.c.bf16 %v1103, %v1101
  %v1146 = vpack.c.bf16 %v1104, %v1102
  %s1147 = scalar_lea.vmem %s2, 1
  %v1148 = vld [vmem:[%s1147] ss:$8 sm:$0x3]
  %v1150 = vlaneseq
  %v1151 = vshrl.u32 %v1150, 7
  %v1152 = vsub.s32 0, %v1151
  %v1153 = vrot.slane %v1148, %v1152
  %v1154 = vlaneseq
  %v1155 = vshrl.u32 %v1154, 7
  %v1156 = vsub.s32 1, %v1155
  %v1157 = vrot.slane %v1148, %v1156
  %v1192 = vunpack.c.l.b16 %v1105
  %v1193 = vunpack.c.h.b16 %v1105
  %v1194 = vunpack.c.l.b16 %v1106
  %v1195 = vunpack.c.h.b16 %v1106
  %v1196 = vunpack.c.l.b16 %v1107
  %v1197 = vunpack.c.h.b16 %v1107
  %v1198 = vunpack.c.l.b16 %v1108
  %v1199 = vunpack.c.h.b16 %v1108
  %v1200 = vunpack.c.l.b16 %v1109
  %v1201 = vunpack.c.h.b16 %v1109
  %v1202 = vunpack.c.l.b16 %v1110
  %v1203 = vunpack.c.h.b16 %v1110
  %v1204 = vunpack.c.l.b16 %v1111
  %v1205 = vunpack.c.h.b16 %v1111
  %v1206 = vunpack.c.l.b16 %v1112
  %v1207 = vunpack.c.h.b16 %v1112
  %v1208 = vunpack.c.l.b16 %v1113
  %v1209 = vunpack.c.h.b16 %v1113
  %v1210 = vunpack.c.l.b16 %v1114
  %v1211 = vunpack.c.h.b16 %v1114
  %v1212 = vunpack.c.l.b16 %v1115
  %v1213 = vunpack.c.h.b16 %v1115
  %v1214 = vunpack.c.l.b16 %v1116
  %v1215 = vunpack.c.h.b16 %v1116
  %v1216 = vunpack.c.l.b16 %v1117
  %v1217 = vunpack.c.h.b16 %v1117
  %v1218 = vunpack.c.l.b16 %v1118
  %v1219 = vunpack.c.h.b16 %v1118
  %v1220 = vunpack.c.l.b16 %v1119
  %v1221 = vunpack.c.h.b16 %v1119
  %v1222 = vunpack.c.l.b16 %v1120
  %v1223 = vunpack.c.h.b16 %v1120
  %v1224 = vunpack.c.l.b16 %v1121
  %v1225 = vunpack.c.h.b16 %v1121
  %v1226 = vunpack.c.l.b16 %v1122
  %v1227 = vunpack.c.h.b16 %v1122
  %v1228 = vunpack.c.l.b16 %v1123
  %v1229 = vunpack.c.h.b16 %v1123
  %v1230 = vunpack.c.l.b16 %v1124
  %v1231 = vunpack.c.h.b16 %v1124
  %v1232 = vunpack.c.l.b16 %v1125
  %v1233 = vunpack.c.h.b16 %v1125
  %v1234 = vunpack.c.l.b16 %v1126
  %v1235 = vunpack.c.h.b16 %v1126
  %v1236 = vunpack.c.l.b16 %v1127
  %v1237 = vunpack.c.h.b16 %v1127
  %v1238 = vunpack.c.l.b16 %v1128
  %v1239 = vunpack.c.h.b16 %v1128
  %v1240 = vunpack.c.l.b16 %v1129
  %v1241 = vunpack.c.h.b16 %v1129
  %v1242 = vunpack.c.l.b16 %v1130
  %v1243 = vunpack.c.h.b16 %v1130
  %v1244 = vunpack.c.l.b16 %v1131
  %v1245 = vunpack.c.h.b16 %v1131
  %v1246 = vunpack.c.l.b16 %v1132
  %v1247 = vunpack.c.h.b16 %v1132
  %v1248 = vunpack.c.l.b16 %v1133
  %v1249 = vunpack.c.h.b16 %v1133
  %v1250 = vunpack.c.l.b16 %v1134
  %v1251 = vunpack.c.h.b16 %v1134
  %v1252 = vunpack.c.l.b16 %v1135
  %v1253 = vunpack.c.h.b16 %v1135
  %v1254 = vunpack.c.l.b16 %v1136
  %v1255 = vunpack.c.h.b16 %v1136
  %v1256 = vpack.c.b16 %v1194, %v1192
  %v1257 = vpack.c.b16 %v1195, %v1193
  %v1258 = vpack.c.b16 %v1198, %v1196
  %v1259 = vpack.c.b16 %v1199, %v1197
  %v1260 = vpack.c.b16 %v1202, %v1200
  %v1261 = vpack.c.b16 %v1203, %v1201
  %v1262 = vpack.c.b16 %v1206, %v1204
  %v1263 = vpack.c.b16 %v1207, %v1205
  %v1264 = vpack.c.b16 %v1210, %v1208
  %v1265 = vpack.c.b16 %v1211, %v1209
  %v1266 = vpack.c.b16 %v1214, %v1212
  %v1267 = vpack.c.b16 %v1215, %v1213
  %v1268 = vpack.c.b16 %v1218, %v1216
  %v1269 = vpack.c.b16 %v1219, %v1217
  %v1270 = vpack.c.b16 %v1222, %v1220
  %v1271 = vpack.c.b16 %v1223, %v1221
  %v1272 = vpack.c.b16 %v1226, %v1224
  %v1273 = vpack.c.b16 %v1227, %v1225
  %v1274 = vpack.c.b16 %v1230, %v1228
  %v1275 = vpack.c.b16 %v1231, %v1229
  %v1276 = vpack.c.b16 %v1234, %v1232
  %v1277 = vpack.c.b16 %v1235, %v1233
  %v1278 = vpack.c.b16 %v1238, %v1236
  %v1279 = vpack.c.b16 %v1239, %v1237
  %v1280 = vpack.c.b16 %v1242, %v1240
  %v1281 = vpack.c.b16 %v1243, %v1241
  %v1282 = vpack.c.b16 %v1246, %v1244
  %v1283 = vpack.c.b16 %v1247, %v1245
  %v1284 = vpack.c.b16 %v1250, %v1248
  %v1285 = vpack.c.b16 %v1251, %v1249
  %v1286 = vpack.c.b16 %v1254, %v1252
  %v1287 = vpack.c.b16 %v1255, %v1253
  %1320 = vmatprep.subr.bf16.mxu0 %v1257
  %1321 = vmatpush1.bf16.msra.mxu0 %v1256
  %1322 = vmatprep.subr.bf16.mxu0 %v1259
  %1323 = vmatpush1.bf16.msra.mxu0 %v1258
  %1324 = vmatprep.subr.bf16.mxu0 %v1261
  %1325 = vmatpush1.bf16.msra.mxu0 %v1260
  %1326 = vmatprep.subr.bf16.mxu0 %v1263
  %1327 = vmatpush1.bf16.msra.mxu0 %v1262
  %1328 = vmatprep.subr.bf16.mxu0 %v1265
  %1329 = vmatpush1.bf16.msra.mxu0 %v1264
  %1330 = vmatprep.subr.bf16.mxu0 %v1267
  %1331 = vmatpush1.bf16.msra.mxu0 %v1266
  %1332 = vmatprep.subr.bf16.mxu0 %v1269
  %1333 = vmatpush1.bf16.msra.mxu0 %v1268
  %1334 = vmatprep.subr.bf16.mxu0 %v1271
  %1335 = vmatpush1.bf16.msra.mxu0 %v1270
  %1336 = vmatprep.subr.bf16.mxu0 %v1273
  %1337 = vmatpush1.bf16.msra.mxu0 %v1272
  %1338 = vmatprep.subr.bf16.mxu0 %v1275
  %1339 = vmatpush1.bf16.msra.mxu0 %v1274
  %1340 = vmatprep.subr.bf16.mxu0 %v1277
  %1341 = vmatpush1.bf16.msra.mxu0 %v1276
  %1342 = vmatprep.subr.bf16.mxu0 %v1279
  %1343 = vmatpush1.bf16.msra.mxu0 %v1278
  %1344 = vmatprep.subr.bf16.mxu0 %v1281
  %1345 = vmatpush1.bf16.msra.mxu0 %v1280
  %1346 = vmatprep.subr.bf16.mxu0 %v1283
  %1347 = vmatpush1.bf16.msra.mxu0 %v1282
  %1348 = vmatprep.subr.bf16.mxu0 %v1285
  %1349 = vmatpush1.bf16.msra.mxu0 %v1284
  %1350 = vmatprep.subr.bf16.mxu0 %v1287
  %1351 = vmatpush1.bf16.msra.mxu0 %v1286
  %1352 = vmatprep.mubr.bf16.mxu0 %v1138
  %1353 = vmatmul.mubr.bf16.gmra.mrb[0].mxu0 %v1137
  %v1354 = vpop.f32.mrb[0].mxu0
  %v1355 = vadd.f32 %v1153, %v1354
  %v1356 = vpop.f32.mrb[0].mxu0
  %v1357 = vadd.f32 %v1157, %v1356
  %v1358 = vpop.f32.mrb[0].mxu0
  %v1359 = vadd.f32 %v1153, %v1358
  %v1360 = vpop.f32.mrb[0].mxu0
  %v1361 = vadd.f32 %v1157, %v1360
  %1362 = vmatprep.mubr.bf16.mxu0 %v1140
  %1363 = vmatmul.mubr.bf16.gmra.mrb[0].mxu0 %v1139
  %v1364 = vpop.f32.mrb[0].mxu0
  %v1365 = vadd.f32 %v1153, %v1364
  %v1366 = vpop.f32.mrb[0].mxu0
  %v1367 = vadd.f32 %v1157, %v1366
  %v1368 = vpop.f32.mrb[0].mxu0
  %v1369 = vadd.f32 %v1153, %v1368
  %v1370 = vpop.f32.mrb[0].mxu0
  %v1371 = vadd.f32 %v1157, %v1370
  %1372 = vmatprep.mubr.bf16.mxu0 %v1142
  %1373 = vmatmul.mubr.bf16.gmra.mrb[0].mxu0 %v1141
  %v1374 = vpop.f32.mrb[0].mxu0
  %v1375 = vadd.f32 %v1153, %v1374
  %v1376 = vpop.f32.mrb[0].mxu0
  %v1377 = vadd.f32 %v1157, %v1376
  %v1378 = vpop.f32.mrb[0].mxu0
  %v1379 = vadd.f32 %v1153, %v1378
  %v1380 = vpop.f32.mrb[0].mxu0
  %v1381 = vadd.f32 %v1157, %v1380
  %1382 = vmatprep.mubr.bf16.mxu0 %v1144
  %1383 = vmatmul.mubr.bf16.gmra.mrb[0].mxu0 %v1143
  %v1384 = vpop.f32.mrb[0].mxu0
  %v1385 = vadd.f32 %v1153, %v1384
  %v1386 = vpop.f32.mrb[0].mxu0
  %v1387 = vadd.f32 %v1157, %v1386
  %v1388 = vpop.f32.mrb[0].mxu0
  %v1389 = vadd.f32 %v1153, %v1388
  %v1390 = vpop.f32.mrb[0].mxu0
  %v1391 = vadd.f32 %v1157, %v1390
  %1392 = vmatprep.mubr.bf16.mxu0 %v1146
  %1393 = vmatmul.mubr.bf16.gmra.mrb[0].mxu0 %v1145
  %v1394 = vpop.f32.mrb[0].mxu0
  %v1395 = vadd.f32 %v1153, %v1394
  %v1396 = vpop.f32.mrb[0].mxu0
  %v1397 = vadd.f32 %v1157, %v1396
  %v1398 = vpop.f32.mrb[0].mxu0
  %v1399 = vadd.f32 %v1153, %v1398
  %v1400 = vpop.f32.mrb[0].mxu0
  %v1401 = vadd.f32 %v1157, %v1400
  %1402 = vdwg.mxu0
  %v1403 = vmax.f32 %v1355, 0.0
  %v1404 = vmax.f32 %v1357, 0.0
  %v1405 = vmax.f32 %v1359, 0.0
  %v1406 = vmax.f32 %v1361, 0.0
  %v1407 = vmax.f32 %v1365, 0.0
  %v1408 = vmax.f32 %v1367, 0.0
  %v1409 = vmax.f32 %v1369, 0.0
  %v1410 = vmax.f32 %v1371, 0.0
  %v1411 = vmax.f32 %v1375, 0.0
  %v1412 = vmax.f32 %v1377, 0.0
  %v1413 = vmax.f32 %v1379, 0.0
  %v1414 = vmax.f32 %v1381, 0.0
  %v1415 = vmax.f32 %v1385, 0.0
  %v1416 = vmax.f32 %v1387, 0.0
  %v1417 = vmax.f32 %v1389, 0.0
  %v1418 = vmax.f32 %v1391, 0.0
  %v1419 = vmax.f32 %v1395, 0.0
  %v1420 = vmax.f32 %v1397, 0.0
  %v1421 = vmax.f32 %v1399, 0.0
  %v1422 = vmax.f32 %v1401, 0.0
  %v1423 = vmax.f32 %v1403, %v1404
  %v1424 = vmax.f32 %v1405, %v1406
  %v1425 = vmax.f32 %v1407, %v1408
  %v1426 = vmax.f32 %v1409, %v1410
  %v1427 = vmax.f32 %v1411, %v1412
  %v1428 = vmax.f32 %v1413, %v1414
  %v1429 = vmax.f32 %v1415, %v1416
  %v1430 = vmax.f32 %v1417, %v1418
  %v1431 = vmax.f32 %v1419, %v1420
  %v1432 = vmax.f32 %v1421, %v1422
  %v1433 = vld [vmem:[%s1 + $0x500] sm:$0xff]
  %v1434 = vld [vmem:[%s1 + $0x510] sm:$0xff]
  %v1435 = vld [vmem:[%s1 + $0x520] sm:$0xff]
  %v1436 = vld [vmem:[%s1 + $0x530] sm:$0xff]
  %v1437 = vld [vmem:[%s1 + $0x540] sm:$0xff]
  %v1438 = vld [vmem:[%s1 + $0x550] sm:$0xff]
  %v1439 = vld [vmem:[%s1 + $0x560] sm:$0xff]
  %v1440 = vld [vmem:[%s1 + $0x570] sm:$0xff]
  %v1441 = vld [vmem:[%s1 + $0x580] sm:$0xff]
  %v1442 = vld [vmem:[%s1 + $0x590] sm:$0xff]
  %v1443 = vld [vmem:[%s1 + $0x5a0] sm:$0xff]
  %v1444 = vld [vmem:[%s1 + $0x5b0] sm:$0xff]
  %v1445 = vld [vmem:[%s1 + $0x5c0] sm:$0xff]
  %v1446 = vld [vmem:[%s1 + $0x5d0] sm:$0xff]
  %v1447 = vld [vmem:[%s1 + $0x5e0] sm:$0xff]
  %v1448 = vld [vmem:[%s1 + $0x5f0] sm:$0xff]
  %v1449 = vpack.c.bf16 %v1424, %v1423
  %v1450 = vpack.c.bf16 %v1426, %v1425
  %v1451 = vpack.c.bf16 %v1428, %v1427
  %v1452 = vpack.c.bf16 %v1430, %v1429
  %v1453 = vpack.c.bf16 %v1432, %v1431
  %s1454 = scalar_lea.vmem %s2, 2
  %v1455 = vld [vmem:[%s1454] ss:$8 sm:$0x3]
  %v1457 = vlaneseq
  %v1458 = vshrl.u32 %v1457, 7
  %v1459 = vsub.s32 0, %v1458
  %v1460 = vrot.slane %v1455, %v1459
  %v1461 = vlaneseq
  %v1462 = vshrl.u32 %v1461, 7
  %v1463 = vsub.s32 1, %v1462
  %v1464 = vrot.slane %v1455, %v1463
  %v1483 = vunpack.c.l.b16 %v1433
  %v1484 = vunpack.c.h.b16 %v1433
  %v1485 = vunpack.c.l.b16 %v1434
  %v1486 = vunpack.c.h.b16 %v1434
  %v1487 = vunpack.c.l.b16 %v1435
  %v1488 = vunpack.c.h.b16 %v1435
  %v1489 = vunpack.c.l.b16 %v1436
  %v1490 = vunpack.c.h.b16 %v1436
  %v1491 = vunpack.c.l.b16 %v1437
  %v1492 = vunpack.c.h.b16 %v1437
  %v1493 = vunpack.c.l.b16 %v1438
  %v1494 = vunpack.c.h.b16 %v1438
  %v1495 = vunpack.c.l.b16 %v1439
  %v1496 = vunpack.c.h.b16 %v1439
  %v1497 = vunpack.c.l.b16 %v1440
  %v1498 = vunpack.c.h.b16 %v1440
  %v1499 = vunpack.c.l.b16 %v1441
  %v1500 = vunpack.c.h.b16 %v1441
  %v1501 = vunpack.c.l.b16 %v1442
  %v1502 = vunpack.c.h.b16 %v1442
  %v1503 = vunpack.c.l.b16 %v1443
  %v1504 = vunpack.c.h.b16 %v1443
  %v1505 = vunpack.c.l.b16 %v1444
  %v1506 = vunpack.c.h.b16 %v1444
  %v1507 = vunpack.c.l.b16 %v1445
  %v1508 = vunpack.c.h.b16 %v1445
  %v1509 = vunpack.c.l.b16 %v1446
  %v1510 = vunpack.c.h.b16 %v1446
  %v1511 = vunpack.c.l.b16 %v1447
  %v1512 = vunpack.c.h.b16 %v1447
  %v1513 = vunpack.c.l.b16 %v1448
  %v1514 = vunpack.c.h.b16 %v1448
  %v1515 = vpack.c.b16 %v1485, %v1483
  %v1516 = vpack.c.b16 %v1486, %v1484
  %v1517 = vpack.c.b16 %v1489, %v1487
  %v1518 = vpack.c.b16 %v1490, %v1488
  %v1519 = vpack.c.b16 %v1493, %v1491
  %v1520 = vpack.c.b16 %v1494, %v1492
  %v1521 = vpack.c.b16 %v1497, %v1495
  %v1522 = vpack.c.b16 %v1498, %v1496
  %v1523 = vpack.c.b16 %v1501, %v1499
  %v1524 = vpack.c.b16 %v1502, %v1500
  %v1525 = vpack.c.b16 %v1505, %v1503
  %v1526 = vpack.c.b16 %v1506, %v1504
  %v1527 = vpack.c.b16 %v1509, %v1507
  %v1528 = vpack.c.b16 %v1510, %v1508
  %v1529 = vpack.c.b16 %v1513, %v1511
  %v1530 = vpack.c.b16 %v1514, %v1512
  %1547 = vmatprep.subr.bf16.mxu0 %v1516
  %1548 = vmatpush1.bf16.msra.mxu0 %v1515
  %1549 = vmatprep.subr.bf16.mxu0 %v1518
  %1550 = vmatpush1.bf16.msra.mxu0 %v1517
  %1551 = vmatprep.subr.bf16.mxu0 %v1520
  %1552 = vmatpush1.bf16.msra.mxu0 %v1519
  %1553 = vmatprep.subr.bf16.mxu0 %v1522
  %1554 = vmatpush1.bf16.msra.mxu0 %v1521
  %1555 = vmatprep.subr.bf16.mxu0 %v1524
  %1556 = vmatpush1.bf16.msra.mxu0 %v1523
  %1557 = vmatprep.subr.bf16.mxu0 %v1526
  %1558 = vmatpush1.bf16.msra.mxu0 %v1525
  %1559 = vmatprep.subr.bf16.mxu0 %v1528
  %1560 = vmatpush1.bf16.msra.mxu0 %v1527
  %1561 = vmatprep.subr.bf16.mxu0 %v1530
  %1562 = vmatpush1.bf16.msra.mxu0 %v1529
  %1563 = vmatprep.subr.bf16.mxu0 0
  %1564 = vmatpush1.bf16.msra.mxu0 0
  %1565 = vmatprep.subr.bf16.mxu0 0
  %1566 = vmatpush1.bf16.msra.mxu0 0
  %1567 = vmatprep.subr.bf16.mxu0 0
  %1568 = vmatpush1.bf16.msra.mxu0 0
  %1569 = vmatprep.subr.bf16.mxu0 0
  %1570 = vmatpush1.bf16.msra.mxu0 0
  %1571 = vmatprep.subr.bf16.mxu0 0
  %1572 = vmatpush1.bf16.msra.mxu0 0
  %1573 = vmatprep.subr.bf16.mxu0 0
  %1574 = vmatpush1.bf16.msra.mxu0 0
  %1575 = vmatprep.subr.bf16.mxu0 0
  %1576 = vmatpush1.bf16.msra.mxu0 0
  %1577 = vmatprep.subr.bf16.mxu0 0
  %1578 = vmatpush1.bf16.msra.mxu0 0
  %1579 = vmatprep.mubr.bf16.mxu0 0
  %1580 = vmatmul.mubr.bf16.gmra.mrb[0].mxu0 %v1449
  %v1581 = vpop.f32.mrb[0].mxu0
  %v1582 = vadd.f32 %v1460, %v1581
  %v1583 = vpop.f32.mrb[0].mxu0
  %v1584 = vadd.f32 %v1464, %v1583
  %v1585 = vpop.f32.mrb[0].mxu0
  %v1586 = vadd.f32 %v1460, %v1585
  %v1587 = vpop.f32.mrb[0].mxu0
  %v1588 = vadd.f32 %v1464, %v1587
  %1589 = vmatprep.mubr.bf16.mxu0 0
  %1590 = vmatmul.mubr.bf16.gmra.mrb[0].mxu0 %v1450
  %v1591 = vpop.f32.mrb[0].mxu0
  %v1592 = vadd.f32 %v1460, %v1591
  %v1593 = vpop.f32.mrb[0].mxu0
  %v1594 = vadd.f32 %v1464, %v1593
  %v1595 = vpop.f32.mrb[0].mxu0
  %v1596 = vadd.f32 %v1460, %v1595
  %v1597 = vpop.f32.mrb[0].mxu0
  %v1598 = vadd.f32 %v1464, %v1597
  %1599 = vmatprep.mubr.bf16.mxu0 0
  %1600 = vmatmul.mubr.bf16.gmra.mrb[0].mxu0 %v1451
  %v1601 = vpop.f32.mrb[0].mxu0
  %v1602 = vadd.f32 %v1460, %v1601
  %v1603 = vpop.f32.mrb[0].mxu0
  %v1604 = vadd.f32 %v1464, %v1603
  %v1605 = vpop.f32.mrb[0].mxu0
  %v1606 = vadd.f32 %v1460, %v1605
  %v1607 = vpop.f32.mrb[0].mxu0
  %v1608 = vadd.f32 %v1464, %v1607
  %1609 = vmatprep.mubr.bf16.mxu0 0
  %1610 = vmatmul.mubr.bf16.gmra.mrb[0].mxu0 %v1452
  %v1611 = vpop.f32.mrb[0].mxu0
  %v1612 = vadd.f32 %v1460, %v1611
  %v1613 = vpop.f32.mrb[0].mxu0
  %v1614 = vadd.f32 %v1464, %v1613
  %v1615 = vpop.f32.mrb[0].mxu0
  %v1616 = vadd.f32 %v1460, %v1615
  %v1617 = vpop.f32.mrb[0].mxu0
  %v1618 = vadd.f32 %v1464, %v1617
  %1619 = vmatprep.mubr.bf16.mxu0 0
  %1620 = vmatmul.mubr.bf16.gmra.mrb[0].mxu0 %v1453
  %v1621 = vpop.f32.mrb[0].mxu0
  %v1622 = vadd.f32 %v1460, %v1621
  %v1623 = vpop.f32.mrb[0].mxu0
  %v1624 = vadd.f32 %v1464, %v1623
  %v1625 = vpop.f32.mrb[0].mxu0
  %v1626 = vadd.f32 %v1460, %v1625
  %v1627 = vpop.f32.mrb[0].mxu0
  %v1628 = vadd.f32 %v1464, %v1627
  %1629 = vdwg.mxu0
  %v1630 = vmax.f32 %v1582, 0.0
  %v1631 = vmax.f32 %v1584, 0.0
  %v1632 = vmax.f32 %v1586, 0.0
  %v1633 = vmax.f32 %v1588, 0.0
  %v1634 = vmax.f32 %v1592, 0.0
  %v1635 = vmax.f32 %v1594, 0.0
  %v1636 = vmax.f32 %v1596, 0.0
  %v1637 = vmax.f32 %v1598, 0.0
  %v1638 = vmax.f32 %v1602, 0.0
  %v1639 = vmax.f32 %v1604, 0.0
  %v1640 = vmax.f32 %v1606, 0.0
  %v1641 = vmax.f32 %v1608, 0.0
  %v1642 = vmax.f32 %v1612, 0.0
  %v1643 = vmax.f32 %v1614, 0.0
  %v1644 = vmax.f32 %v1616, 0.0
  %v1645 = vmax.f32 %v1618, 0.0
  %v1646 = vmax.f32 %v1622, 0.0
  %v1647 = vmax.f32 %v1624, 0.0
  %v1648 = vmax.f32 %v1626, 0.0
  %v1649 = vmax.f32 %v1628, 0.0
  %v1650 = vmax.f32 %v1630, %v1631
  %v1651 = vmax.f32 %v1632, %v1633
  %v1652 = vmax.f32 %v1634, %v1635
  %v1653 = vmax.f32 %v1636, %v1637
  %v1654 = vmax.f32 %v1638, %v1639
  %v1655 = vmax.f32 %v1640, %v1641
  %v1656 = vmax.f32 %v1642, %v1643
  %v1657 = vmax.f32 %v1644, %v1645
  %v1658 = vmax.f32 %v1646, %v1647
  %v1659 = vmax.f32 %v1648, %v1649
  %v1660 = vlaneseq
  %v1661 = vshrl.u32 %v1660, 7
  %v1662 = vsub.s32 0, %v1661
  %v1663 = vrot.slane %v38, %v1662
  %1664 = vmatprep.subr.mxu0 0.0
  %1665 = vmatpush1.msra.mxu0 %v18
  %1666 = vmatprep.subr.mxu0 0.0
  %1667 = vmatpush1.msra.mxu0 %v19
  %1668 = vmatprep.subr.mxu0 0.0
  %1669 = vmatpush1.msra.mxu0 %v20
  %1670 = vmatprep.subr.mxu0 0.0
  %1671 = vmatpush1.msra.mxu0 %v21
  %1672 = vmatprep.subr.mxu0 0.0
  %1673 = vmatpush1.msra.mxu0 %v22
  %1674 = vmatprep.subr.mxu0 0.0
  %1675 = vmatpush1.msra.mxu0 %v23
  %1676 = vmatprep.subr.mxu0 0.0
  %1677 = vmatpush1.msra.mxu0 %v24
  %1678 = vmatprep.subr.mxu0 0.0
  %1679 = vmatpush1.msra.mxu0 %v25
  %1680 = vmatprep.subr.mxu0 0.0
  %1681 = vmatpush1.msra.mxu0 %v26
  %1682 = vmatprep.subr.mxu0 0.0
  %1683 = vmatpush1.msra.mxu0 %v27
  %1684 = vmatprep.subr.mxu0 0.0
  %1685 = vmatpush1.msra.mxu0 %v28
  %1686 = vmatprep.subr.mxu0 0.0
  %1687 = vmatpush1.msra.mxu0 %v29
  %1688 = vmatprep.subr.mxu0 0.0
  %1689 = vmatpush1.msra.mxu0 %v30
  %1690 = vmatprep.subr.mxu0 0.0
  %1691 = vmatpush1.msra.mxu0 %v31
  %1692 = vmatprep.subr.mxu0 0.0
  %1693 = vmatpush1.msra.mxu0 %v32
  %1694 = vmatprep.subr.mxu0 0.0
  %1695 = vmatpush1.msra.mxu0 %v33
  %1696 = vmatprep.subr.mxu0 0.0
  %1697 = vmatpush1.msra.mxu0 0.0
  %1698 = vmatprep.subr.mxu0 0.0
  %1699 = vmatpush1.msra.mxu0 0.0
  %1700 = vmatprep.subr.mxu0 0.0
  %1701 = vmatpush1.msra.mxu0 0.0
  %1702 = vmatprep.subr.mxu0 0.0
  %1703 = vmatpush1.msra.mxu0 0.0
  %1704 = vmatprep.subr.mxu0 0.0
  %1705 = vmatpush1.msra.mxu0 0.0
  %1706 = vmatprep.subr.mxu0 0.0
  %1707 = vmatpush1.msra.mxu0 0.0
  %1708 = vmatprep.subr.mxu0 0.0
  %1709 = vmatpush1.msra.mxu0 0.0
  %1710 = vmatprep.subr.mxu0 0.0
  %1711 = vmatpush1.msra.mxu0 0.0
  %1712 = vmatprep.subr.mxu0 0.0
  %1713 = vmatpush1.msra.mxu0 0.0
  %1714 = vmatprep.subr.mxu0 0.0
  %1715 = vmatpush1.msra.mxu0 0.0
  %1716 = vmatprep.subr.mxu0 0.0
  %1717 = vmatpush1.msra.mxu0 0.0
  %1718 = vmatprep.subr.mxu0 0.0
  %1719 = vmatpush1.msra.mxu0 0.0
  %1720 = vmatprep.subr.mxu0 0.0
  %1721 = vmatpush1.msra.mxu0 0.0
  %1722 = vmatprep.subr.mxu0 0.0
  %1723 = vmatpush1.msra.mxu0 0.0
  %1724 = vmatprep.subr.mxu0 0.0
  %1725 = vmatpush1.msra.mxu0 0.0
  %1726 = vmatprep.subr.mxu0 0.0
  %1727 = vmatpush1.msra.mxu0 0.0
  %1728 = vmatprep.mubr.f32.mxu0 0.0
  %1729 = vmatmul.mubr.f32.gmra.mrb[0].mxu0 %v1650
  %v1730 = vpop.f32.mrb[0].mxu0
  %v1731 = vadd.f32 %v1663, %v1730
  %v1732 = vpop.f32.mrb[0].mxu0
  %1733 = vmatprep.mubr.f32.mxu0 0.0
  %1734 = vmatmul.mubr.f32.gmra.mrb[0].mxu0 %v1651
  %v1735 = vpop.f32.mrb[0].mxu0
  %v1736 = vadd.f32 %v1663, %v1735
  %v1737 = vpop.f32.mrb[0].mxu0
  %1738 = vmatprep.mubr.f32.mxu0 0.0
  %1739 = vmatmul.mubr.f32.gmra.mrb[0].mxu0 %v1652
  %v1740 = vpop.f32.mrb[0].mxu0
  %v1741 = vadd.f32 %v1663, %v1740
  %v1742 = vpop.f32.mrb[0].mxu0
  %1743 = vmatprep.mubr.f32.mxu0 0.0
  %1744 = vmatmul.mubr.f32.gmra.mrb[0].mxu0 %v1653
  %v1745 = vpop.f32.mrb[0].mxu0
  %v1746 = vadd.f32 %v1663, %v1745
  %v1747 = vpop.f32.mrb[0].mxu0
  %1748 = vmatprep.mubr.f32.mxu0 0.0
  %1749 = vmatmul.mubr.f32.gmra.mrb[0].mxu0 %v1654
  %v1750 = vpop.f32.mrb[0].mxu0
  %v1751 = vadd.f32 %v1663, %v1750
  %v1752 = vpop.f32.mrb[0].mxu0
  %1753 = vmatprep.mubr.f32.mxu0 0.0
  %1754 = vmatmul.mubr.f32.gmra.mrb[0].mxu0 %v1655
  %v1755 = vpop.f32.mrb[0].mxu0
  %v1756 = vadd.f32 %v1663, %v1755
  %v1757 = vpop.f32.mrb[0].mxu0
  %1758 = vmatprep.mubr.f32.mxu0 0.0
  %1759 = vmatmul.mubr.f32.gmra.mrb[0].mxu0 %v1656
  %v1760 = vpop.f32.mrb[0].mxu0
  %v1761 = vadd.f32 %v1663, %v1760
  %v1762 = vpop.f32.mrb[0].mxu0
  %1763 = vmatprep.mubr.f32.mxu0 0.0
  %1764 = vmatmul.mubr.f32.gmra.mrb[0].mxu0 %v1657
  %v1765 = vpop.f32.mrb[0].mxu0
  %v1766 = vadd.f32 %v1663, %v1765
  %v1767 = vpop.f32.mrb[0].mxu0
  %1768 = vmatprep.mubr.f32.mxu0 0.0
  %1769 = vmatmul.mubr.f32.gmra.mrb[0].mxu0 %v1658
  %v1770 = vpop.f32.mrb[0].mxu0
  %v1771 = vadd.f32 %v1663, %v1770
  %v1772 = vpop.f32.mrb[0].mxu0
  %1773 = vmatprep.mubr.f32.mxu0 0.0
  %1774 = vmatmul.mubr.f32.gmra.mrb[0].mxu0 %v1659
  %v1775 = vpop.f32.mrb[0].mxu0
  %v1776 = vadd.f32 %v1663, %v1775
  %v1777 = vpop.f32.mrb[0].mxu0
  %1778 = vdwg.mxu0
  %v1779 = vlaneseq
  %v1780 = vand.u32 %v1779, 127
  %vm1781 = vcmask 261120
  %v1783 = vsel %vm1781, 0.0, 0
  %1785 = vmatprep.subr.mxu0 0.0
  %1786 = vmatpush1.msra.mxu0 %v34
  %1787 = vmatprep.subr.mxu0 0.0
  %1788 = vmatpush1.msra.mxu0 %v35
  %1789 = vmatprep.subr.mxu0 0.0
  %1790 = vmatpush1.msra.mxu0 %v36
  %1791 = vmatprep.subr.mxu0 0.0
  %1792 = vmatpush1.msra.mxu0 %v37
  %1793 = vmatprep.subr.mxu0 0.0
  %1794 = vmatpush1.msra.mxu0 0.0
  %1795 = vmatprep.subr.mxu0 0.0
  %1796 = vmatpush1.msra.mxu0 0.0
  %1797 = vmatprep.subr.mxu0 0.0
  %1798 = vmatpush1.msra.mxu0 0.0
  %1799 = vmatprep.subr.mxu0 0.0
  %1800 = vmatpush1.msra.mxu0 0.0
  %1801 = vmatprep.subr.mxu0 0.0
  %1802 = vmatpush1.msra.mxu0 0.0
  %1803 = vmatprep.subr.mxu0 0.0
  %1804 = vmatpush1.msra.mxu0 0.0
  %1805 = vmatprep.subr.mxu0 0.0
  %1806 = vmatpush1.msra.mxu0 0.0
  %1807 = vmatprep.subr.mxu0 0.0
  %1808 = vmatpush1.msra.mxu0 0.0
  %1809 = vmatprep.subr.mxu0 0.0
  %1810 = vmatpush1.msra.mxu0 0.0
  %1811 = vmatprep.subr.mxu0 0.0
  %1812 = vmatpush1.msra.mxu0 0.0
  %1813 = vmatprep.subr.mxu0 0.0
  %1814 = vmatpush1.msra.mxu0 0.0
  %1815 = vmatprep.subr.mxu0 0.0
  %1816 = vmatpush1.msra.mxu0 0.0
  %1817 = vmatprep.subr.mxu0 0.0
  %1818 = vmatpush1.msra.mxu0 0.0
  %1819 = vmatprep.subr.mxu0 0.0
  %1820 = vmatpush1.msra.mxu0 0.0
  %1821 = vmatprep.subr.mxu0 0.0
  %1822 = vmatpush1.msra.mxu0 0.0
  %1823 = vmatprep.subr.mxu0 0.0
  %1824 = vmatpush1.msra.mxu0 0.0
  %1825 = vmatprep.subr.mxu0 0.0
  %1826 = vmatpush1.msra.mxu0 0.0
  %1827 = vmatprep.subr.mxu0 0.0
  %1828 = vmatpush1.msra.mxu0 0.0
  %1829 = vmatprep.subr.mxu0 0.0
  %1830 = vmatpush1.msra.mxu0 0.0
  %1831 = vmatprep.subr.mxu0 0.0
  %1832 = vmatpush1.msra.mxu0 0.0
  %1833 = vmatprep.subr.mxu0 0.0
  %1834 = vmatpush1.msra.mxu0 0.0
  %1835 = vmatprep.subr.mxu0 0.0
  %1836 = vmatpush1.msra.mxu0 0.0
  %1837 = vmatprep.subr.mxu0 0.0
  %1838 = vmatpush1.msra.mxu0 0.0
  %1839 = vmatprep.subr.mxu0 0.0
  %1840 = vmatpush1.msra.mxu0 0.0
  %1841 = vmatprep.subr.mxu0 0.0
  %1842 = vmatpush1.msra.mxu0 0.0
  %1843 = vmatprep.subr.mxu0 0.0
  %1844 = vmatpush1.msra.mxu0 0.0
  %1845 = vmatprep.subr.mxu0 0.0
  %1846 = vmatpush1.msra.mxu0 0.0
  %1847 = vmatprep.subr.mxu0 0.0
  %1848 = vmatpush1.msra.mxu0 0.0
  %1849 = vmatprep.mubr.f32.mxu0 0.0
  %1850 = vmatmul.mubr.f32.gmra.mrb[0].mxu0 %v1783
  %v1851 = vpop.f32.mrb[0].mxu0
  %v1852 = vadd.f32 0.0, %v1851
  %v1853 = vpop.f32.mrb[0].mxu0
  %1854 = vdwg.mxu0
  %v1855 = vadd.f32 %v1731, %v1852
  %v1856 = vmul.f32 %v1855, 0.5
  %v1857 = vtanh.pop %v1856
  %v1858 = vmul.f32 %v1857, 0.5
  %v1859 = vadd.f32 %v1858, 0.5
  %v1860 = vtanh.pop %v1855
  %v1861 = vmul.f32 %v1859, 0.0
  %1863 = vrot.lane.b32.xlu0 %v1860, 64
  %v1864 = vpop.permute.xlu0 %1863
  %v1866 = vmul.f32 %v1859, %v1864
  %1868 = vrot.lane.b32.xlu0 %v1866, 32
  %v1869 = vpop.permute.xlu0 %1868
  %v1871 = vadd.f32 %v1861, %v1869
  %v1872 = vtanh.pop %v1871
  %1874 = vrot.lane.b32.xlu0 %v1872, 64
  %v1875 = vpop.permute.xlu0 %1874
  %v1877 = vmul.f32 %v1859, %v1875
  %v1878 = vlaneseq
  %v1879 = vshrl.u32 %v1878, 7
  %v1880 = vsub.s32 0, %v1879
  %v1881 = vrot.slane %v43, %v1880
  %1883 = vrot.lane.b32.xlu0 %v1877, 32
  %v1884 = vpop.permute.xlu0 %1883
  %v1885 = vsel %vm1781, %v1884, 0
  %1887 = vmatprep.subr.mxu0 0.0
  %1888 = vmatpush1.msra.mxu0 %v39
  %1889 = vmatprep.subr.mxu0 0.0
  %1890 = vmatpush1.msra.mxu0 %v40
  %1891 = vmatprep.subr.mxu0 0.0
  %1892 = vmatpush1.msra.mxu0 %v41
  %1893 = vmatprep.subr.mxu0 0.0
  %1894 = vmatpush1.msra.mxu0 %v42
  %1895 = vmatprep.subr.mxu0 0.0
  %1896 = vmatpush1.msra.mxu0 0.0
  %1897 = vmatprep.subr.mxu0 0.0
  %1898 = vmatpush1.msra.mxu0 0.0
  %1899 = vmatprep.subr.mxu0 0.0
  %1900 = vmatpush1.msra.mxu0 0.0
  %1901 = vmatprep.subr.mxu0 0.0
  %1902 = vmatpush1.msra.mxu0 0.0
  %1903 = vmatprep.subr.mxu0 0.0
  %1904 = vmatpush1.msra.mxu0 0.0
  %1905 = vmatprep.subr.mxu0 0.0
  %1906 = vmatpush1.msra.mxu0 0.0
  %1907 = vmatprep.subr.mxu0 0.0
  %1908 = vmatpush1.msra.mxu0 0.0
  %1909 = vmatprep.subr.mxu0 0.0
  %1910 = vmatpush1.msra.mxu0 0.0
  %1911 = vmatprep.subr.mxu0 0.0
  %1912 = vmatpush1.msra.mxu0 0.0
  %1913 = vmatprep.subr.mxu0 0.0
  %1914 = vmatpush1.msra.mxu0 0.0
  %1915 = vmatprep.subr.mxu0 0.0
  %1916 = vmatpush1.msra.mxu0 0.0
  %1917 = vmatprep.subr.mxu0 0.0
  %1918 = vmatpush1.msra.mxu0 0.0
  %1919 = vmatprep.subr.mxu0 0.0
  %1920 = vmatpush1.msra.mxu0 0.0
  %1921 = vmatprep.subr.mxu0 0.0
  %1922 = vmatpush1.msra.mxu0 0.0
  %1923 = vmatprep.subr.mxu0 0.0
  %1924 = vmatpush1.msra.mxu0 0.0
  %1925 = vmatprep.subr.mxu0 0.0
  %1926 = vmatpush1.msra.mxu0 0.0
  %1927 = vmatprep.subr.mxu0 0.0
  %1928 = vmatpush1.msra.mxu0 0.0
  %1929 = vmatprep.subr.mxu0 0.0
  %1930 = vmatpush1.msra.mxu0 0.0
  %1931 = vmatprep.subr.mxu0 0.0
  %1932 = vmatpush1.msra.mxu0 0.0
  %1933 = vmatprep.subr.mxu0 0.0
  %1934 = vmatpush1.msra.mxu0 0.0
  %1935 = vmatprep.subr.mxu0 0.0
  %1936 = vmatpush1.msra.mxu0 0.0
  %1937 = vmatprep.subr.mxu0 0.0
  %1938 = vmatpush1.msra.mxu0 0.0
  %1939 = vmatprep.subr.mxu0 0.0
  %1940 = vmatpush1.msra.mxu0 0.0
  %1941 = vmatprep.subr.mxu0 0.0
  %1942 = vmatpush1.msra.mxu0 0.0
  %1943 = vmatprep.subr.mxu0 0.0
  %1944 = vmatpush1.msra.mxu0 0.0
  %1945 = vmatprep.subr.mxu0 0.0
  %1946 = vmatpush1.msra.mxu0 0.0
  %1947 = vmatprep.subr.mxu0 0.0
  %1948 = vmatpush1.msra.mxu0 0.0
  %1949 = vmatprep.subr.mxu0 0.0
  %1950 = vmatpush1.msra.mxu0 0.0
  %1951 = vmatprep.mubr.f32.mxu0 0.0
  %1952 = vmatmul.mubr.f32.gmra.mrb[0].mxu0 %v1885
  %v1953 = vpop.f32.mrb[0].mxu0
  %v1954 = vadd.f32 %v1881, %v1953
  %v1955 = vpop.f32.mrb[0].mxu0
  %1956 = vdwg.mxu0
  %v1957 = vlaneseq
  %v1958 = vshrl.u32 %v1957, 7
  %v1959 = vsub.s32 0, %v1958
  %v1960 = vrot.slane %v52, %v1959
  %v1962 = vsel %vm1781, %v1954, 0
  %1964 = vmatprep.subr.mxu0 0.0
  %1965 = vmatpush1.msra.mxu0 %v44
  %1966 = vmatprep.subr.mxu0 0.0
  %1967 = vmatpush1.msra.mxu0 %v45
  %1968 = vmatprep.subr.mxu0 0.0
  %1969 = vmatpush1.msra.mxu0 %v46
  %1970 = vmatprep.subr.mxu0 0.0
  %1971 = vmatpush1.msra.mxu0 %v47
  %1972 = vmatprep.subr.mxu0 0.0
  %1973 = vmatpush1.msra.mxu0 0.0
  %1974 = vmatprep.subr.mxu0 0.0
  %1975 = vmatpush1.msra.mxu0 0.0
  %1976 = vmatprep.subr.mxu0 0.0
  %1977 = vmatpush1.msra.mxu0 0.0
  %1978 = vmatprep.subr.mxu0 0.0
  %1979 = vmatpush1.msra.mxu0 0.0
  %1980 = vmatprep.subr.mxu0 0.0
  %1981 = vmatpush1.msra.mxu0 0.0
  %1982 = vmatprep.subr.mxu0 0.0
  %1983 = vmatpush1.msra.mxu0 0.0
  %1984 = vmatprep.subr.mxu0 0.0
  %1985 = vmatpush1.msra.mxu0 0.0
  %1986 = vmatprep.subr.mxu0 0.0
  %1987 = vmatpush1.msra.mxu0 0.0
  %1988 = vmatprep.subr.mxu0 0.0
  %1989 = vmatpush1.msra.mxu0 0.0
  %1990 = vmatprep.subr.mxu0 0.0
  %1991 = vmatpush1.msra.mxu0 0.0
  %1992 = vmatprep.subr.mxu0 0.0
  %1993 = vmatpush1.msra.mxu0 0.0
  %1994 = vmatprep.subr.mxu0 0.0
  %1995 = vmatpush1.msra.mxu0 0.0
  %1996 = vmatprep.subr.mxu0 0.0
  %1997 = vmatpush1.msra.mxu0 0.0
  %1998 = vmatprep.subr.mxu0 0.0
  %1999 = vmatpush1.msra.mxu0 0.0
  %2000 = vmatprep.subr.mxu0 0.0
  %2001 = vmatpush1.msra.mxu0 0.0
  %2002 = vmatprep.subr.mxu0 0.0
  %2003 = vmatpush1.msra.mxu0 0.0
  %2004 = vmatprep.subr.mxu0 0.0
  %2005 = vmatpush1.msra.mxu0 0.0
  %2006 = vmatprep.subr.mxu0 0.0
  %2007 = vmatpush1.msra.mxu0 0.0
  %2008 = vmatprep.subr.mxu0 0.0
  %2009 = vmatpush1.msra.mxu0 0.0
  %2010 = vmatprep.subr.mxu0 0.0
  %2011 = vmatpush1.msra.mxu0 0.0
  %2012 = vmatprep.subr.mxu0 0.0
  %2013 = vmatpush1.msra.mxu0 0.0
  %2014 = vmatprep.subr.mxu0 0.0
  %2015 = vmatpush1.msra.mxu0 0.0
  %2016 = vmatprep.subr.mxu0 0.0
  %2017 = vmatpush1.msra.mxu0 0.0
  %2018 = vmatprep.subr.mxu0 0.0
  %2019 = vmatpush1.msra.mxu0 0.0
  %2020 = vmatprep.subr.mxu0 0.0
  %2021 = vmatpush1.msra.mxu0 0.0
  %2022 = vmatprep.subr.mxu0 0.0
  %2023 = vmatpush1.msra.mxu0 0.0
  %2024 = vmatprep.subr.mxu0 0.0
  %2025 = vmatpush1.msra.mxu0 0.0
  %2026 = vmatprep.subr.mxu0 0.0
  %2027 = vmatpush1.msra.mxu0 0.0
  %2028 = vmatprep.mubr.f32.mxu0 0.0
  %2029 = vmatmul.mubr.f32.gmra.mrb[0].mxu0 %v1962
  %v2030 = vpop.f32.mrb[0].mxu0
  %v2031 = vadd.f32 %v1960, %v2030
  %v2032 = vpop.f32.mrb[0].mxu0
  %2033 = vdwg.mxu0
  %2034 = vmatprep.subr.mxu0 0.0
  %2035 = vmatpush1.msra.mxu0 %v34
  %2036 = vmatprep.subr.mxu0 0.0
  %2037 = vmatpush1.msra.mxu0 %v35
  %2038 = vmatprep.subr.mxu0 0.0
  %2039 = vmatpush1.msra.mxu0 %v36
  %2040 = vmatprep.subr.mxu0 0.0
  %2041 = vmatpush1.msra.mxu0 %v37
  %2042 = vmatprep.subr.mxu0 0.0
  %2043 = vmatpush1.msra.mxu0 0.0
  %2044 = vmatprep.subr.mxu0 0.0
  %2045 = vmatpush1.msra.mxu0 0.0
  %2046 = vmatprep.subr.mxu0 0.0
  %2047 = vmatpush1.msra.mxu0 0.0
  %2048 = vmatprep.subr.mxu0 0.0
  %2049 = vmatpush1.msra.mxu0 0.0
  %2050 = vmatprep.subr.mxu0 0.0
  %2051 = vmatpush1.msra.mxu0 0.0
  %2052 = vmatprep.subr.mxu0 0.0
  %2053 = vmatpush1.msra.mxu0 0.0
  %2054 = vmatprep.subr.mxu0 0.0
  %2055 = vmatpush1.msra.mxu0 0.0
  %2056 = vmatprep.subr.mxu0 0.0
  %2057 = vmatpush1.msra.mxu0 0.0
  %2058 = vmatprep.subr.mxu0 0.0
  %2059 = vmatpush1.msra.mxu0 0.0
  %2060 = vmatprep.subr.mxu0 0.0
  %2061 = vmatpush1.msra.mxu0 0.0
  %2062 = vmatprep.subr.mxu0 0.0
  %2063 = vmatpush1.msra.mxu0 0.0
  %2064 = vmatprep.subr.mxu0 0.0
  %2065 = vmatpush1.msra.mxu0 0.0
  %2066 = vmatprep.subr.mxu0 0.0
  %2067 = vmatpush1.msra.mxu0 0.0
  %2068 = vmatprep.subr.mxu0 0.0
  %2069 = vmatpush1.msra.mxu0 0.0
  %2070 = vmatprep.subr.mxu0 0.0
  %2071 = vmatpush1.msra.mxu0 0.0
  %2072 = vmatprep.subr.mxu0 0.0
  %2073 = vmatpush1.msra.mxu0 0.0
  %2074 = vmatprep.subr.mxu0 0.0
  %2075 = vmatpush1.msra.mxu0 0.0
  %2076 = vmatprep.subr.mxu0 0.0
  %2077 = vmatpush1.msra.mxu0 0.0
  %2078 = vmatprep.subr.mxu0 0.0
  %2079 = vmatpush1.msra.mxu0 0.0
  %2080 = vmatprep.subr.mxu0 0.0
  %2081 = vmatpush1.msra.mxu0 0.0
  %2082 = vmatprep.subr.mxu0 0.0
  %2083 = vmatpush1.msra.mxu0 0.0
  %2084 = vmatprep.subr.mxu0 0.0
  %2085 = vmatpush1.msra.mxu0 0.0
  %2086 = vmatprep.subr.mxu0 0.0
  %2087 = vmatpush1.msra.mxu0 0.0
  %2088 = vmatprep.subr.mxu0 0.0
  %2089 = vmatpush1.msra.mxu0 0.0
  %2090 = vmatprep.subr.mxu0 0.0
  %2091 = vmatpush1.msra.mxu0 0.0
  %2092 = vmatprep.subr.mxu0 0.0
  %2093 = vmatpush1.msra.mxu0 0.0
  %2094 = vmatprep.subr.mxu0 0.0
  %2095 = vmatpush1.msra.mxu0 0.0
  %2096 = vmatprep.subr.mxu0 0.0
  %2097 = vmatpush1.msra.mxu0 0.0
  %2098 = vmatprep.mubr.f32.mxu0 0.0
  %2099 = vmatmul.mubr.f32.gmra.mrb[0].mxu0 %v1885
  %v2100 = vpop.f32.mrb[0].mxu0
  %v2101 = vadd.f32 0.0, %v2100
  %v2102 = vpop.f32.mrb[0].mxu0
  %2103 = vdwg.mxu0
  %v2104 = vadd.f32 %v1736, %v2101
  %v2105 = vmul.f32 %v2104, 0.5
  %v2106 = vtanh.pop %v2105
  %v2107 = vmul.f32 %v2106, 0.5
  %v2108 = vadd.f32 %v2107, 0.5
  %v2109 = vtanh.pop %v2104
  %v2110 = vmul.f32 %v2108, %v1871
  %2112 = vrot.lane.b32.xlu0 %v2109, 64
  %v2113 = vpop.permute.xlu0 %2112
  %v2115 = vmul.f32 %v2108, %v2113
  %2117 = vrot.lane.b32.xlu0 %v2115, 32
  %v2118 = vpop.permute.xlu0 %2117
  %v2120 = vadd.f32 %v2110, %v2118
  %v2121 = vtanh.pop %v2120
  %2123 = vrot.lane.b32.xlu0 %v2121, 64
  %v2124 = vpop.permute.xlu0 %2123
  %v2126 = vmul.f32 %v2108, %v2124
  %2128 = vrot.lane.b32.xlu0 %v2126, 32
  %v2129 = vpop.permute.xlu0 %2128
  %v2130 = vsel %vm1781, %v2129, 0
  %2132 = vmatprep.subr.mxu0 0.0
  %2133 = vmatpush1.msra.mxu0 %v39
  %2134 = vmatprep.subr.mxu0 0.0
  %2135 = vmatpush1.msra.mxu0 %v40
  %2136 = vmatprep.subr.mxu0 0.0
  %2137 = vmatpush1.msra.mxu0 %v41
  %2138 = vmatprep.subr.mxu0 0.0
  %2139 = vmatpush1.msra.mxu0 %v42
  %2140 = vmatprep.subr.mxu0 0.0
  %2141 = vmatpush1.msra.mxu0 0.0
  %2142 = vmatprep.subr.mxu0 0.0
  %2143 = vmatpush1.msra.mxu0 0.0
  %2144 = vmatprep.subr.mxu0 0.0
  %2145 = vmatpush1.msra.mxu0 0.0
  %2146 = vmatprep.subr.mxu0 0.0
  %2147 = vmatpush1.msra.mxu0 0.0
  %2148 = vmatprep.subr.mxu0 0.0
  %2149 = vmatpush1.msra.mxu0 0.0
  %2150 = vmatprep.subr.mxu0 0.0
  %2151 = vmatpush1.msra.mxu0 0.0
  %2152 = vmatprep.subr.mxu0 0.0
  %2153 = vmatpush1.msra.mxu0 0.0
  %2154 = vmatprep.subr.mxu0 0.0
  %2155 = vmatpush1.msra.mxu0 0.0
  %2156 = vmatprep.subr.mxu0 0.0
  %2157 = vmatpush1.msra.mxu0 0.0
  %2158 = vmatprep.subr.mxu0 0.0
  %2159 = vmatpush1.msra.mxu0 0.0
  %2160 = vmatprep.subr.mxu0 0.0
  %2161 = vmatpush1.msra.mxu0 0.0
  %2162 = vmatprep.subr.mxu0 0.0
  %2163 = vmatpush1.msra.mxu0 0.0
  %2164 = vmatprep.subr.mxu0 0.0
  %2165 = vmatpush1.msra.mxu0 0.0
  %2166 = vmatprep.subr.mxu0 0.0
  %2167 = vmatpush1.msra.mxu0 0.0
  %2168 = vmatprep.subr.mxu0 0.0
  %2169 = vmatpush1.msra.mxu0 0.0
  %2170 = vmatprep.subr.mxu0 0.0
  %2171 = vmatpush1.msra.mxu0 0.0
  %2172 = vmatprep.subr.mxu0 0.0
  %2173 = vmatpush1.msra.mxu0 0.0
  %2174 = vmatprep.subr.mxu0 0.0
  %2175 = vmatpush1.msra.mxu0 0.0
  %2176 = vmatprep.subr.mxu0 0.0
  %2177 = vmatpush1.msra.mxu0 0.0
  %2178 = vmatprep.subr.mxu0 0.0
  %2179 = vmatpush1.msra.mxu0 0.0
  %2180 = vmatprep.subr.mxu0 0.0
  %2181 = vmatpush1.msra.mxu0 0.0
  %2182 = vmatprep.subr.mxu0 0.0
  %2183 = vmatpush1.msra.mxu0 0.0
  %2184 = vmatprep.subr.mxu0 0.0
  %2185 = vmatpush1.msra.mxu0 0.0
  %2186 = vmatprep.subr.mxu0 0.0
  %2187 = vmatpush1.msra.mxu0 0.0
  %2188 = vmatprep.subr.mxu0 0.0
  %2189 = vmatpush1.msra.mxu0 0.0
  %2190 = vmatprep.subr.mxu0 0.0
  %2191 = vmatpush1.msra.mxu0 0.0
  %2192 = vmatprep.subr.mxu0 0.0
  %2193 = vmatpush1.msra.mxu0 0.0
  %2194 = vmatprep.subr.mxu0 0.0
  %2195 = vmatpush1.msra.mxu0 0.0
  %2196 = vmatprep.mubr.f32.mxu0 0.0
  %2197 = vmatmul.mubr.f32.gmra.mrb[0].mxu0 %v2130
  %v2198 = vpop.f32.mrb[0].mxu0
  %v2199 = vadd.f32 %v1881, %v2198
  %v2200 = vpop.f32.mrb[0].mxu0
  %2201 = vdwg.mxu0
  %v2203 = vsel %vm1781, %v2199, 0
  %2205 = vmatprep.subr.mxu0 0.0
  %2206 = vmatpush1.msra.mxu0 %v44
  %2207 = vmatprep.subr.mxu0 0.0
  %2208 = vmatpush1.msra.mxu0 %v45
  %2209 = vmatprep.subr.mxu0 0.0
  %2210 = vmatpush1.msra.mxu0 %v46
  %2211 = vmatprep.subr.mxu0 0.0
  %2212 = vmatpush1.msra.mxu0 %v47
  %2213 = vmatprep.subr.mxu0 0.0
  %2214 = vmatpush1.msra.mxu0 0.0
  %2215 = vmatprep.subr.mxu0 0.0
  %2216 = vmatpush1.msra.mxu0 0.0
  %2217 = vmatprep.subr.mxu0 0.0
  %2218 = vmatpush1.msra.mxu0 0.0
  %2219 = vmatprep.subr.mxu0 0.0
  %2220 = vmatpush1.msra.mxu0 0.0
  %2221 = vmatprep.subr.mxu0 0.0
  %2222 = vmatpush1.msra.mxu0 0.0
  %2223 = vmatprep.subr.mxu0 0.0
  %2224 = vmatpush1.msra.mxu0 0.0
  %2225 = vmatprep.subr.mxu0 0.0
  %2226 = vmatpush1.msra.mxu0 0.0
  %2227 = vmatprep.subr.mxu0 0.0
  %2228 = vmatpush1.msra.mxu0 0.0
  %2229 = vmatprep.subr.mxu0 0.0
  %2230 = vmatpush1.msra.mxu0 0.0
  %2231 = vmatprep.subr.mxu0 0.0
  %2232 = vmatpush1.msra.mxu0 0.0
  %2233 = vmatprep.subr.mxu0 0.0
  %2234 = vmatpush1.msra.mxu0 0.0
  %2235 = vmatprep.subr.mxu0 0.0
  %2236 = vmatpush1.msra.mxu0 0.0
  %2237 = vmatprep.subr.mxu0 0.0
  %2238 = vmatpush1.msra.mxu0 0.0
  %2239 = vmatprep.subr.mxu0 0.0
  %2240 = vmatpush1.msra.mxu0 0.0
  %2241 = vmatprep.subr.mxu0 0.0
  %2242 = vmatpush1.msra.mxu0 0.0
  %2243 = vmatprep.subr.mxu0 0.0
  %2244 = vmatpush1.msra.mxu0 0.0
  %2245 = vmatprep.subr.mxu0 0.0
  %2246 = vmatpush1.msra.mxu0 0.0
  %2247 = vmatprep.subr.mxu0 0.0
  %2248 = vmatpush1.msra.mxu0 0.0
  %2249 = vmatprep.subr.mxu0 0.0
  %2250 = vmatpush1.msra.mxu0 0.0
  %2251 = vmatprep.subr.mxu0 0.0
  %2252 = vmatpush1.msra.mxu0 0.0
  %2253 = vmatprep.subr.mxu0 0.0
  %2254 = vmatpush1.msra.mxu0 0.0
  %2255 = vmatprep.subr.mxu0 0.0
  %2256 = vmatpush1.msra.mxu0 0.0
  %2257 = vmatprep.subr.mxu0 0.0
  %2258 = vmatpush1.msra.mxu0 0.0
  %2259 = vmatprep.subr.mxu0 0.0
  %2260 = vmatpush1.msra.mxu0 0.0
  %2261 = vmatprep.subr.mxu0 0.0
  %2262 = vmatpush1.msra.mxu0 0.0
  %2263 = vmatprep.subr.mxu0 0.0
  %2264 = vmatpush1.msra.mxu0 0.0
  %2265 = vmatprep.subr.mxu0 0.0
  %2266 = vmatpush1.msra.mxu0 0.0
  %2267 = vmatprep.subr.mxu0 0.0
  %2268 = vmatpush1.msra.mxu0 0.0
  %2269 = vmatprep.mubr.f32.mxu0 0.0
  %2270 = vmatmul.mubr.f32.gmra.mrb[0].mxu0 %v2203
  %v2271 = vpop.f32.mrb[0].mxu0
  %v2272 = vadd.f32 %v1960, %v2271
  %v2273 = vpop.f32.mrb[0].mxu0
  %2274 = vdwg.mxu0
  %2275 = vmatprep.subr.mxu0 0.0
  %2276 = vmatpush1.msra.mxu0 %v48
  %2277 = vmatprep.subr.mxu0 0.0
  %2278 = vmatpush1.msra.mxu0 %v49
  %2279 = vmatprep.subr.mxu0 0.0
  %2280 = vmatpush1.msra.mxu0 %v50
  %2281 = vmatprep.subr.mxu0 0.0
  %2282 = vmatpush1.msra.mxu0 %v51
  %2283 = vmatprep.subr.mxu0 0.0
  %2284 = vmatpush1.msra.mxu0 0.0
  %2285 = vmatprep.subr.mxu0 0.0
  %2286 = vmatpush1.msra.mxu0 0.0
  %2287 = vmatprep.subr.mxu0 0.0
  %2288 = vmatpush1.msra.mxu0 0.0
  %2289 = vmatprep.subr.mxu0 0.0
  %2290 = vmatpush1.msra.mxu0 0.0
  %2291 = vmatprep.subr.mxu0 0.0
  %2292 = vmatpush1.msra.mxu0 0.0
  %2293 = vmatprep.subr.mxu0 0.0
  %2294 = vmatpush1.msra.mxu0 0.0
  %2295 = vmatprep.subr.mxu0 0.0
  %2296 = vmatpush1.msra.mxu0 0.0
  %2297 = vmatprep.subr.mxu0 0.0
  %2298 = vmatpush1.msra.mxu0 0.0
  %2299 = vmatprep.subr.mxu0 0.0
  %2300 = vmatpush1.msra.mxu0 0.0
  %2301 = vmatprep.subr.mxu0 0.0
  %2302 = vmatpush1.msra.mxu0 0.0
  %2303 = vmatprep.subr.mxu0 0.0
  %2304 = vmatpush1.msra.mxu0 0.0
  %2305 = vmatprep.subr.mxu0 0.0
  %2306 = vmatpush1.msra.mxu0 0.0
  %2307 = vmatprep.subr.mxu0 0.0
  %2308 = vmatpush1.msra.mxu0 0.0
  %2309 = vmatprep.subr.mxu0 0.0
  %2310 = vmatpush1.msra.mxu0 0.0
  %2311 = vmatprep.subr.mxu0 0.0
  %2312 = vmatpush1.msra.mxu0 0.0
  %2313 = vmatprep.subr.mxu0 0.0
  %2314 = vmatpush1.msra.mxu0 0.0
  %2315 = vmatprep.subr.mxu0 0.0
  %2316 = vmatpush1.msra.mxu0 0.0
  %2317 = vmatprep.subr.mxu0 0.0
  %2318 = vmatpush1.msra.mxu0 0.0
  %2319 = vmatprep.subr.mxu0 0.0
  %2320 = vmatpush1.msra.mxu0 0.0
  %2321 = vmatprep.subr.mxu0 0.0
  %2322 = vmatpush1.msra.mxu0 0.0
  %2323 = vmatprep.subr.mxu0 0.0
  %2324 = vmatpush1.msra.mxu0 0.0
  %2325 = vmatprep.subr.mxu0 0.0
  %2326 = vmatpush1.msra.mxu0 0.0
  %2327 = vmatprep.subr.mxu0 0.0
  %2328 = vmatpush1.msra.mxu0 0.0
  %2329 = vmatprep.subr.mxu0 0.0
  %2330 = vmatpush1.msra.mxu0 0.0
  %2331 = vmatprep.subr.mxu0 0.0
  %2332 = vmatpush1.msra.mxu0 0.0
  %2333 = vmatprep.subr.mxu0 0.0
  %2334 = vmatpush1.msra.mxu0 0.0
  %2335 = vmatprep.subr.mxu0 0.0
  %2336 = vmatpush1.msra.mxu0 0.0
  %2337 = vmatprep.subr.mxu0 0.0
  %2338 = vmatpush1.msra.mxu0 0.0
  %2339 = vmatprep.mubr.f32.mxu0 0.0
  %2340 = vmatmul.mubr.f32.gmra.mrb[0].mxu0 %v1783
  %v2341 = vpop.f32.mrb[0].mxu0
  %v2342 = vadd.f32 0.0, %v2341
  %v2343 = vpop.f32.mrb[0].mxu0
  %2344 = vdwg.mxu0
  %v2345 = vadd.f32 %v2031, %v2342
  %v2346 = vmul.f32 %v2345, 0.5
  %v2347 = vtanh.pop %v2346
  %v2348 = vmul.f32 %v2347, 0.5
  %v2349 = vadd.f32 %v2348, 0.5
  %v2350 = vtanh.pop %v2345
  %v2351 = vmul.f32 %v2349, 0.0
  %2353 = vrot.lane.b32.xlu0 %v2350, 64
  %v2354 = vpop.permute.xlu0 %2353
  %v2356 = vmul.f32 %v2349, %v2354
  %2358 = vrot.lane.b32.xlu0 %v2356, 32
  %v2359 = vpop.permute.xlu0 %2358
  %v2361 = vadd.f32 %v2351, %v2359
  %v2362 = vtanh.pop %v2361
  %2364 = vrot.lane.b32.xlu0 %v2362, 64
  %v2365 = vpop.permute.xlu0 %2364
  %v2367 = vmul.f32 %v2349, %v2365
  %v2368 = vlaneseq
  %v2369 = vshrl.u32 %v2368, 7
  %v2370 = vsub.s32 0, %v2369
  %v2371 = vrot.slane %v57, %v2370
  %2373 = vrot.lane.b32.xlu0 %v2367, 32
  %v2374 = vpop.permute.xlu0 %2373
  %v2375 = vsel %vm1781, %v2374, 0
  %2377 = vmatprep.subr.mxu0 0.0
  %2378 = vmatpush1.msra.mxu0 %v53
  %2379 = vmatprep.subr.mxu0 0.0
  %2380 = vmatpush1.msra.mxu0 %v54
  %2381 = vmatprep.subr.mxu0 0.0
  %2382 = vmatpush1.msra.mxu0 %v55
  %2383 = vmatprep.subr.mxu0 0.0
  %2384 = vmatpush1.msra.mxu0 %v56
  %2385 = vmatprep.subr.mxu0 0.0
  %2386 = vmatpush1.msra.mxu0 0.0
  %2387 = vmatprep.subr.mxu0 0.0
  %2388 = vmatpush1.msra.mxu0 0.0
  %2389 = vmatprep.subr.mxu0 0.0
  %2390 = vmatpush1.msra.mxu0 0.0
  %2391 = vmatprep.subr.mxu0 0.0
  %2392 = vmatpush1.msra.mxu0 0.0
  %2393 = vmatprep.subr.mxu0 0.0
  %2394 = vmatpush1.msra.mxu0 0.0
  %2395 = vmatprep.subr.mxu0 0.0
  %2396 = vmatpush1.msra.mxu0 0.0
  %2397 = vmatprep.subr.mxu0 0.0
  %2398 = vmatpush1.msra.mxu0 0.0
  %2399 = vmatprep.subr.mxu0 0.0
  %2400 = vmatpush1.msra.mxu0 0.0
  %2401 = vmatprep.subr.mxu0 0.0
  %2402 = vmatpush1.msra.mxu0 0.0
  %2403 = vmatprep.subr.mxu0 0.0
  %2404 = vmatpush1.msra.mxu0 0.0
  %2405 = vmatprep.subr.mxu0 0.0
  %2406 = vmatpush1.msra.mxu0 0.0
  %2407 = vmatprep.subr.mxu0 0.0
  %2408 = vmatpush1.msra.mxu0 0.0
  %2409 = vmatprep.subr.mxu0 0.0
  %2410 = vmatpush1.msra.mxu0 0.0
  %2411 = vmatprep.subr.mxu0 0.0
  %2412 = vmatpush1.msra.mxu0 0.0
  %2413 = vmatprep.subr.mxu0 0.0
  %2414 = vmatpush1.msra.mxu0 0.0
  %2415 = vmatprep.subr.mxu0 0.0
  %2416 = vmatpush1.msra.mxu0 0.0
  %2417 = vmatprep.subr.mxu0 0.0
  %2418 = vmatpush1.msra.mxu0 0.0
  %2419 = vmatprep.subr.mxu0 0.0
  %2420 = vmatpush1.msra.mxu0 0.0
  %2421 = vmatprep.subr.mxu0 0.0
  %2422 = vmatpush1.msra.mxu0 0.0
  %2423 = vmatprep.subr.mxu0 0.0
  %2424 = vmatpush1.msra.mxu0 0.0
  %2425 = vmatprep.subr.mxu0 0.0
  %2426 = vmatpush1.msra.mxu0 0.0
  %2427 = vmatprep.subr.mxu0 0.0
  %2428 = vmatpush1.msra.mxu0 0.0
  %2429 = vmatprep.subr.mxu0 0.0
  %2430 = vmatpush1.msra.mxu0 0.0
  %2431 = vmatprep.subr.mxu0 0.0
  %2432 = vmatpush1.msra.mxu0 0.0
  %2433 = vmatprep.subr.mxu0 0.0
  %2434 = vmatpush1.msra.mxu0 0.0
  %2435 = vmatprep.subr.mxu0 0.0
  %2436 = vmatpush1.msra.mxu0 0.0
  %2437 = vmatprep.subr.mxu0 0.0
  %2438 = vmatpush1.msra.mxu0 0.0
  %2439 = vmatprep.subr.mxu0 0.0
  %2440 = vmatpush1.msra.mxu0 0.0
  %2441 = vmatprep.mubr.f32.mxu0 0.0
  %2442 = vmatmul.mubr.f32.gmra.mrb[0].mxu0 %v2375
  %v2443 = vpop.f32.mrb[0].mxu0
  %v2444 = vadd.f32 %v2371, %v2443
  %v2445 = vpop.f32.mrb[0].mxu0
  %2446 = vdwg.mxu0
  %v2447 = vlaneseq
  %v2448 = vshrl.u32 %v2447, 7
  %v2449 = vsub.s32 0, %v2448
  %v2450 = vrot.slane %v66, %v2449
  %vm2451 = vcmask 523264
  %v2453 = vsel %vm2451, %v2444, 0
  %2455 = vmatprep.subr.mxu0 0.0
  %2456 = vmatpush1.msra.mxu0 %v58
  %2457 = vmatprep.subr.mxu0 0.0
  %2458 = vmatpush1.msra.mxu0 %v59
  %2459 = vmatprep.subr.mxu0 0.0
  %2460 = vmatpush1.msra.mxu0 %v60
  %2461 = vmatprep.subr.mxu0 0.0
  %2462 = vmatpush1.msra.mxu0 %v61
  %2463 = vmatprep.subr.mxu0 0.0
  %2464 = vmatpush1.msra.mxu0 %v62
  %2465 = vmatprep.subr.mxu0 0.0
  %2466 = vmatpush1.msra.mxu0 %v63
  %2467 = vmatprep.subr.mxu0 0.0
  %2468 = vmatpush1.msra.mxu0 %v64
  %2469 = vmatprep.subr.mxu0 0.0
  %2470 = vmatpush1.msra.mxu0 %v65
  %2471 = vmatprep.subr.mxu0 0.0
  %2472 = vmatpush1.msra.mxu0 0.0
  %2473 = vmatprep.subr.mxu0 0.0
  %2474 = vmatpush1.msra.mxu0 0.0
  %2475 = vmatprep.subr.mxu0 0.0
  %2476 = vmatpush1.msra.mxu0 0.0
  %2477 = vmatprep.subr.mxu0 0.0
  %2478 = vmatpush1.msra.mxu0 0.0
  %2479 = vmatprep.subr.mxu0 0.0
  %2480 = vmatpush1.msra.mxu0 0.0
  %2481 = vmatprep.subr.mxu0 0.0
  %2482 = vmatpush1.msra.mxu0 0.0
  %2483 = vmatprep.subr.mxu0 0.0
  %2484 = vmatpush1.msra.mxu0 0.0
  %2485 = vmatprep.subr.mxu0 0.0
  %2486 = vmatpush1.msra.mxu0 0.0
  %2487 = vmatprep.subr.mxu0 0.0
  %2488 = vmatpush1.msra.mxu0 0.0
  %2489 = vmatprep.subr.mxu0 0.0
  %2490 = vmatpush1.msra.mxu0 0.0
  %2491 = vmatprep.subr.mxu0 0.0
  %2492 = vmatpush1.msra.mxu0 0.0
  %2493 = vmatprep.subr.mxu0 0.0
  %2494 = vmatpush1.msra.mxu0 0.0
  %2495 = vmatprep.subr.mxu0 0.0
  %2496 = vmatpush1.msra.mxu0 0.0
  %2497 = vmatprep.subr.mxu0 0.0
  %2498 = vmatpush1.msra.mxu0 0.0
  %2499 = vmatprep.subr.mxu0 0.0
  %2500 = vmatpush1.msra.mxu0 0.0
  %2501 = vmatprep.subr.mxu0 0.0
  %2502 = vmatpush1.msra.mxu0 0.0
  %2503 = vmatprep.subr.mxu0 0.0
  %2504 = vmatpush1.msra.mxu0 0.0
  %2505 = vmatprep.subr.mxu0 0.0
  %2506 = vmatpush1.msra.mxu0 0.0
  %2507 = vmatprep.subr.mxu0 0.0
  %2508 = vmatpush1.msra.mxu0 0.0
  %2509 = vmatprep.subr.mxu0 0.0
  %2510 = vmatpush1.msra.mxu0 0.0
  %2511 = vmatprep.subr.mxu0 0.0
  %2512 = vmatpush1.msra.mxu0 0.0
  %2513 = vmatprep.subr.mxu0 0.0
  %2514 = vmatpush1.msra.mxu0 0.0
  %2515 = vmatprep.subr.mxu0 0.0
  %2516 = vmatpush1.msra.mxu0 0.0
  %2517 = vmatprep.subr.mxu0 0.0
  %2518 = vmatpush1.msra.mxu0 0.0
  %2519 = vmatprep.mubr.f32.mxu0 0.0
  %2520 = vmatmul.mubr.f32.gmra.mrb[0].mxu0 %v2453
  %v2521 = vpop.f32.mrb[0].mxu0
  %v2522 = vadd.f32 %v2450, %v2521
  %v2523 = vpop.f32.mrb[0].mxu0
  %2524 = vdwg.mxu0
  %vm2525 = vcmp.eq.s32.totalorder %v1780, 0
  %2527 = vset.pattern.permute.xlu0 0
  %2528 = vperm.xlu0 %2527, %v2522
  %v2529 = vpop.permute.xlu0 %2528
  %v2531 = vsel %vm2525, %v2529, 0.0
  %2532 = vmatprep.subr.mxu0 0.0
  %2533 = vmatpush1.msra.mxu0 %v34
  %2534 = vmatprep.subr.mxu0 0.0
  %2535 = vmatpush1.msra.mxu0 %v35
  %2536 = vmatprep.subr.mxu0 0.0
  %2537 = vmatpush1.msra.mxu0 %v36
  %2538 = vmatprep.subr.mxu0 0.0
  %2539 = vmatpush1.msra.mxu0 %v37
  %2540 = vmatprep.subr.mxu0 0.0
  %2541 = vmatpush1.msra.mxu0 0.0
  %2542 = vmatprep.subr.mxu0 0.0
  %2543 = vmatpush1.msra.mxu0 0.0
  %2544 = vmatprep.subr.mxu0 0.0
  %2545 = vmatpush1.msra.mxu0 0.0
  %2546 = vmatprep.subr.mxu0 0.0
  %2547 = vmatpush1.msra.mxu0 0.0
  %2548 = vmatprep.subr.mxu0 0.0
  %2549 = vmatpush1.msra.mxu0 0.0
  %2550 = vmatprep.subr.mxu0 0.0
  %2551 = vmatpush1.msra.mxu0 0.0
  %2552 = vmatprep.subr.mxu0 0.0
  %2553 = vmatpush1.msra.mxu0 0.0
  %2554 = vmatprep.subr.mxu0 0.0
  %2555 = vmatpush1.msra.mxu0 0.0
  %2556 = vmatprep.subr.mxu0 0.0
  %2557 = vmatpush1.msra.mxu0 0.0
  %2558 = vmatprep.subr.mxu0 0.0
  %2559 = vmatpush1.msra.mxu0 0.0
  %2560 = vmatprep.subr.mxu0 0.0
  %2561 = vmatpush1.msra.mxu0 0.0
  %2562 = vmatprep.subr.mxu0 0.0
  %2563 = vmatpush1.msra.mxu0 0.0
  %2564 = vmatprep.subr.mxu0 0.0
  %2565 = vmatpush1.msra.mxu0 0.0
  %2566 = vmatprep.subr.mxu0 0.0
  %2567 = vmatpush1.msra.mxu0 0.0
  %2568 = vmatprep.subr.mxu0 0.0
  %2569 = vmatpush1.msra.mxu0 0.0
  %2570 = vmatprep.subr.mxu0 0.0
  %2571 = vmatpush1.msra.mxu0 0.0
  %2572 = vmatprep.subr.mxu0 0.0
  %2573 = vmatpush1.msra.mxu0 0.0
  %2574 = vmatprep.subr.mxu0 0.0
  %2575 = vmatpush1.msra.mxu0 0.0
  %2576 = vmatprep.subr.mxu0 0.0
  %2577 = vmatpush1.msra.mxu0 0.0
  %2578 = vmatprep.subr.mxu0 0.0
  %2579 = vmatpush1.msra.mxu0 0.0
  %2580 = vmatprep.subr.mxu0 0.0
  %2581 = vmatpush1.msra.mxu0 0.0
  %2582 = vmatprep.subr.mxu0 0.0
  %2583 = vmatpush1.msra.mxu0 0.0
  %2584 = vmatprep.subr.mxu0 0.0
  %2585 = vmatpush1.msra.mxu0 0.0
  %2586 = vmatprep.subr.mxu0 0.0
  %2587 = vmatpush1.msra.mxu0 0.0
  %2588 = vmatprep.subr.mxu0 0.0
  %2589 = vmatpush1.msra.mxu0 0.0
  %2590 = vmatprep.subr.mxu0 0.0
  %2591 = vmatpush1.msra.mxu0 0.0
  %2592 = vmatprep.subr.mxu0 0.0
  %2593 = vmatpush1.msra.mxu0 0.0
  %2594 = vmatprep.subr.mxu0 0.0
  %2595 = vmatpush1.msra.mxu0 0.0
  %2596 = vmatprep.mubr.f32.mxu0 0.0
  %2597 = vmatmul.mubr.f32.gmra.mrb[0].mxu0 %v2130
  %v2598 = vpop.f32.mrb[0].mxu0
  %v2599 = vadd.f32 0.0, %v2598
  %v2600 = vpop.f32.mrb[0].mxu0
  %2601 = vdwg.mxu0
  %v2602 = vadd.f32 %v1741, %v2599
  %v2603 = vmul.f32 %v2602, 0.5
  %v2604 = vtanh.pop %v2603
  %v2605 = vmul.f32 %v2604, 0.5
  %v2606 = vadd.f32 %v2605, 0.5
  %v2607 = vtanh.pop %v2602
  %v2608 = vmul.f32 %v2606, %v2120
  %2610 = vrot.lane.b32.xlu0 %v2607, 64
  %v2611 = vpop.permute.xlu0 %2610
  %v2613 = vmul.f32 %v2606, %v2611
  %2615 = vrot.lane.b32.xlu0 %v2613, 32
  %v2616 = vpop.permute.xlu0 %2615
  %v2618 = vadd.f32 %v2608, %v2616
  %v2619 = vtanh.pop %v2618
  %2621 = vrot.lane.b32.xlu0 %v2619, 64
  %v2622 = vpop.permute.xlu0 %2621
  %v2624 = vmul.f32 %v2606, %v2622
  %2626 = vrot.lane.b32.xlu0 %v2624, 32
  %v2627 = vpop.permute.xlu0 %2626
  %v2628 = vsel %vm1781, %v2627, 0
  %2630 = vmatprep.subr.mxu0 0.0
  %2631 = vmatpush1.msra.mxu0 %v39
  %2632 = vmatprep.subr.mxu0 0.0
  %2633 = vmatpush1.msra.mxu0 %v40
  %2634 = vmatprep.subr.mxu0 0.0
  %2635 = vmatpush1.msra.mxu0 %v41
  %2636 = vmatprep.subr.mxu0 0.0
  %2637 = vmatpush1.msra.mxu0 %v42
  %2638 = vmatprep.subr.mxu0 0.0
  %2639 = vmatpush1.msra.mxu0 0.0
  %2640 = vmatprep.subr.mxu0 0.0
  %2641 = vmatpush1.msra.mxu0 0.0
  %2642 = vmatprep.subr.mxu0 0.0
  %2643 = vmatpush1.msra.mxu0 0.0
  %2644 = vmatprep.subr.mxu0 0.0
  %2645 = vmatpush1.msra.mxu0 0.0
  %2646 = vmatprep.subr.mxu0 0.0
  %2647 = vmatpush1.msra.mxu0 0.0
  %2648 = vmatprep.subr.mxu0 0.0
  %2649 = vmatpush1.msra.mxu0 0.0
  %2650 = vmatprep.subr.mxu0 0.0
  %2651 = vmatpush1.msra.mxu0 0.0
  %2652 = vmatprep.subr.mxu0 0.0
  %2653 = vmatpush1.msra.mxu0 0.0
  %2654 = vmatprep.subr.mxu0 0.0
  %2655 = vmatpush1.msra.mxu0 0.0
  %2656 = vmatprep.subr.mxu0 0.0
  %2657 = vmatpush1.msra.mxu0 0.0
  %2658 = vmatprep.subr.mxu0 0.0
  %2659 = vmatpush1.msra.mxu0 0.0
  %2660 = vmatprep.subr.mxu0 0.0
  %2661 = vmatpush1.msra.mxu0 0.0
  %2662 = vmatprep.subr.mxu0 0.0
  %2663 = vmatpush1.msra.mxu0 0.0
  %2664 = vmatprep.subr.mxu0 0.0
  %2665 = vmatpush1.msra.mxu0 0.0
  %2666 = vmatprep.subr.mxu0 0.0
  %2667 = vmatpush1.msra.mxu0 0.0
  %2668 = vmatprep.subr.mxu0 0.0
  %2669 = vmatpush1.msra.mxu0 0.0
  %2670 = vmatprep.subr.mxu0 0.0
  %2671 = vmatpush1.msra.mxu0 0.0
  %2672 = vmatprep.subr.mxu0 0.0
  %2673 = vmatpush1.msra.mxu0 0.0
  %2674 = vmatprep.subr.mxu0 0.0
  %2675 = vmatpush1.msra.mxu0 0.0
  %2676 = vmatprep.subr.mxu0 0.0
  %2677 = vmatpush1.msra.mxu0 0.0
  %2678 = vmatprep.subr.mxu0 0.0
  %2679 = vmatpush1.msra.mxu0 0.0
  %2680 = vmatprep.subr.mxu0 0.0
  %2681 = vmatpush1.msra.mxu0 0.0
  %2682 = vmatprep.subr.mxu0 0.0
  %2683 = vmatpush1.msra.mxu0 0.0
  %2684 = vmatprep.subr.mxu0 0.0
  %2685 = vmatpush1.msra.mxu0 0.0
  %2686 = vmatprep.subr.mxu0 0.0
  %2687 = vmatpush1.msra.mxu0 0.0
  %2688 = vmatprep.subr.mxu0 0.0
  %2689 = vmatpush1.msra.mxu0 0.0
  %2690 = vmatprep.subr.mxu0 0.0
  %2691 = vmatpush1.msra.mxu0 0.0
  %2692 = vmatprep.subr.mxu0 0.0
  %2693 = vmatpush1.msra.mxu0 0.0
  %2694 = vmatprep.mubr.f32.mxu0 0.0
  %2695 = vmatmul.mubr.f32.gmra.mrb[0].mxu0 %v2628
  %v2696 = vpop.f32.mrb[0].mxu0
  %v2697 = vadd.f32 %v1881, %v2696
  %v2698 = vpop.f32.mrb[0].mxu0
  %2699 = vdwg.mxu0
  %v2701 = vsel %vm1781, %v2697, 0
  %2703 = vmatprep.subr.mxu0 0.0
  %2704 = vmatpush1.msra.mxu0 %v44
  %2705 = vmatprep.subr.mxu0 0.0
  %2706 = vmatpush1.msra.mxu0 %v45
  %2707 = vmatprep.subr.mxu0 0.0
  %2708 = vmatpush1.msra.mxu0 %v46
  %2709 = vmatprep.subr.mxu0 0.0
  %2710 = vmatpush1.msra.mxu0 %v47
  %2711 = vmatprep.subr.mxu0 0.0
  %2712 = vmatpush1.msra.mxu0 0.0
  %2713 = vmatprep.subr.mxu0 0.0
  %2714 = vmatpush1.msra.mxu0 0.0
  %2715 = vmatprep.subr.mxu0 0.0
  %2716 = vmatpush1.msra.mxu0 0.0
  %2717 = vmatprep.subr.mxu0 0.0
  %2718 = vmatpush1.msra.mxu0 0.0
  %2719 = vmatprep.subr.mxu0 0.0
  %2720 = vmatpush1.msra.mxu0 0.0
  %2721 = vmatprep.subr.mxu0 0.0
  %2722 = vmatpush1.msra.mxu0 0.0
  %2723 = vmatprep.subr.mxu0 0.0
  %2724 = vmatpush1.msra.mxu0 0.0
  %2725 = vmatprep.subr.mxu0 0.0
  %2726 = vmatpush1.msra.mxu0 0.0
  %2727 = vmatprep.subr.mxu0 0.0
  %2728 = vmatpush1.msra.mxu0 0.0
  %2729 = vmatprep.subr.mxu0 0.0
  %2730 = vmatpush1.msra.mxu0 0.0
  %2731 = vmatprep.subr.mxu0 0.0
  %2732 = vmatpush1.msra.mxu0 0.0
  %2733 = vmatprep.subr.mxu0 0.0
  %2734 = vmatpush1.msra.mxu0 0.0
  %2735 = vmatprep.subr.mxu0 0.0
  %2736 = vmatpush1.msra.mxu0 0.0
  %2737 = vmatprep.subr.mxu0 0.0
  %2738 = vmatpush1.msra.mxu0 0.0
  %2739 = vmatprep.subr.mxu0 0.0
  %2740 = vmatpush1.msra.mxu0 0.0
  %2741 = vmatprep.subr.mxu0 0.0
  %2742 = vmatpush1.msra.mxu0 0.0
  %2743 = vmatprep.subr.mxu0 0.0
  %2744 = vmatpush1.msra.mxu0 0.0
  %2745 = vmatprep.subr.mxu0 0.0
  %2746 = vmatpush1.msra.mxu0 0.0
  %2747 = vmatprep.subr.mxu0 0.0
  %2748 = vmatpush1.msra.mxu0 0.0
  %2749 = vmatprep.subr.mxu0 0.0
  %2750 = vmatpush1.msra.mxu0 0.0
  %2751 = vmatprep.subr.mxu0 0.0
  %2752 = vmatpush1.msra.mxu0 0.0
  %2753 = vmatprep.subr.mxu0 0.0
  %2754 = vmatpush1.msra.mxu0 0.0
  %2755 = vmatprep.subr.mxu0 0.0
  %2756 = vmatpush1.msra.mxu0 0.0
  %2757 = vmatprep.subr.mxu0 0.0
  %2758 = vmatpush1.msra.mxu0 0.0
  %2759 = vmatprep.subr.mxu0 0.0
  %2760 = vmatpush1.msra.mxu0 0.0
  %2761 = vmatprep.subr.mxu0 0.0
  %2762 = vmatpush1.msra.mxu0 0.0
  %2763 = vmatprep.subr.mxu0 0.0
  %2764 = vmatpush1.msra.mxu0 0.0
  %2765 = vmatprep.subr.mxu0 0.0
  %2766 = vmatpush1.msra.mxu0 0.0
  %2767 = vmatprep.mubr.f32.mxu0 0.0
  %2768 = vmatmul.mubr.f32.gmra.mrb[0].mxu0 %v2701
  %v2769 = vpop.f32.mrb[0].mxu0
  %v2770 = vadd.f32 %v1960, %v2769
  %v2771 = vpop.f32.mrb[0].mxu0
  %2772 = vdwg.mxu0
  %2773 = vmatprep.subr.mxu0 0.0
  %2774 = vmatpush1.msra.mxu0 %v48
  %2775 = vmatprep.subr.mxu0 0.0
  %2776 = vmatpush1.msra.mxu0 %v49
  %2777 = vmatprep.subr.mxu0 0.0
  %2778 = vmatpush1.msra.mxu0 %v50
  %2779 = vmatprep.subr.mxu0 0.0
  %2780 = vmatpush1.msra.mxu0 %v51
  %2781 = vmatprep.subr.mxu0 0.0
  %2782 = vmatpush1.msra.mxu0 0.0
  %2783 = vmatprep.subr.mxu0 0.0
  %2784 = vmatpush1.msra.mxu0 0.0
  %2785 = vmatprep.subr.mxu0 0.0
  %2786 = vmatpush1.msra.mxu0 0.0
  %2787 = vmatprep.subr.mxu0 0.0
  %2788 = vmatpush1.msra.mxu0 0.0
  %2789 = vmatprep.subr.mxu0 0.0
  %2790 = vmatpush1.msra.mxu0 0.0
  %2791 = vmatprep.subr.mxu0 0.0
  %2792 = vmatpush1.msra.mxu0 0.0
  %2793 = vmatprep.subr.mxu0 0.0
  %2794 = vmatpush1.msra.mxu0 0.0
  %2795 = vmatprep.subr.mxu0 0.0
  %2796 = vmatpush1.msra.mxu0 0.0
  %2797 = vmatprep.subr.mxu0 0.0
  %2798 = vmatpush1.msra.mxu0 0.0
  %2799 = vmatprep.subr.mxu0 0.0
  %2800 = vmatpush1.msra.mxu0 0.0
  %2801 = vmatprep.subr.mxu0 0.0
  %2802 = vmatpush1.msra.mxu0 0.0
  %2803 = vmatprep.subr.mxu0 0.0
  %2804 = vmatpush1.msra.mxu0 0.0
  %2805 = vmatprep.subr.mxu0 0.0
  %2806 = vmatpush1.msra.mxu0 0.0
  %2807 = vmatprep.subr.mxu0 0.0
  %2808 = vmatpush1.msra.mxu0 0.0
  %2809 = vmatprep.subr.mxu0 0.0
  %2810 = vmatpush1.msra.mxu0 0.0
  %2811 = vmatprep.subr.mxu0 0.0
  %2812 = vmatpush1.msra.mxu0 0.0
  %2813 = vmatprep.subr.mxu0 0.0
  %2814 = vmatpush1.msra.mxu0 0.0
  %2815 = vmatprep.subr.mxu0 0.0
  %2816 = vmatpush1.msra.mxu0 0.0
  %2817 = vmatprep.subr.mxu0 0.0
  %2818 = vmatpush1.msra.mxu0 0.0
  %2819 = vmatprep.subr.mxu0 0.0
  %2820 = vmatpush1.msra.mxu0 0.0
  %2821 = vmatprep.subr.mxu0 0.0
  %2822 = vmatpush1.msra.mxu0 0.0
  %2823 = vmatprep.subr.mxu0 0.0
  %2824 = vmatpush1.msra.mxu0 0.0
  %2825 = vmatprep.subr.mxu0 0.0
  %2826 = vmatpush1.msra.mxu0 0.0
  %2827 = vmatprep.subr.mxu0 0.0
  %2828 = vmatpush1.msra.mxu0 0.0
  %2829 = vmatprep.subr.mxu0 0.0
  %2830 = vmatpush1.msra.mxu0 0.0
  %2831 = vmatprep.subr.mxu0 0.0
  %2832 = vmatpush1.msra.mxu0 0.0
  %2833 = vmatprep.subr.mxu0 0.0
  %2834 = vmatpush1.msra.mxu0 0.0
  %2835 = vmatprep.subr.mxu0 0.0
  %2836 = vmatpush1.msra.mxu0 0.0
  %2837 = vmatprep.mubr.f32.mxu0 0.0
  %2838 = vmatmul.mubr.f32.gmra.mrb[0].mxu0 %v2375
  %v2839 = vpop.f32.mrb[0].mxu0
  %v2840 = vadd.f32 0.0, %v2839
  %v2841 = vpop.f32.mrb[0].mxu0
  %2842 = vdwg.mxu0
  %v2843 = vadd.f32 %v2272, %v2840
  %v2844 = vmul.f32 %v2843, 0.5
  %v2845 = vtanh.pop %v2844
  %v2846 = vmul.f32 %v2845, 0.5
  %v2847 = vadd.f32 %v2846, 0.5
  %v2848 = vtanh.pop %v2843
  %v2849 = vmul.f32 %v2847, %v2361
  %2851 = vrot.lane.b32.xlu0 %v2848, 64
  %v2852 = vpop.permute.xlu0 %2851
  %v2854 = vmul.f32 %v2847, %v2852
  %2856 = vrot.lane.b32.xlu0 %v2854, 32
  %v2857 = vpop.permute.xlu0 %2856
  %v2859 = vadd.f32 %v2849, %v2857
  %v2860 = vtanh.pop %v2859
  %2862 = vrot.lane.b32.xlu0 %v2860, 64
  %v2863 = vpop.permute.xlu0 %2862
  %v2865 = vmul.f32 %v2847, %v2863
  %2867 = vrot.lane.b32.xlu0 %v2865, 32
  %v2868 = vpop.permute.xlu0 %2867
  %v2869 = vsel %vm1781, %v2868, 0
  %2871 = vmatprep.subr.mxu0 0.0
  %2872 = vmatpush1.msra.mxu0 %v53
  %2873 = vmatprep.subr.mxu0 0.0
  %2874 = vmatpush1.msra.mxu0 %v54
  %2875 = vmatprep.subr.mxu0 0.0
  %2876 = vmatpush1.msra.mxu0 %v55
  %2877 = vmatprep.subr.mxu0 0.0
  %2878 = vmatpush1.msra.mxu0 %v56
  %2879 = vmatprep.subr.mxu0 0.0
  %2880 = vmatpush1.msra.mxu0 0.0
  %2881 = vmatprep.subr.mxu0 0.0
  %2882 = vmatpush1.msra.mxu0 0.0
  %2883 = vmatprep.subr.mxu0 0.0
  %2884 = vmatpush1.msra.mxu0 0.0
  %2885 = vmatprep.subr.mxu0 0.0
  %2886 = vmatpush1.msra.mxu0 0.0
  %2887 = vmatprep.subr.mxu0 0.0
  %2888 = vmatpush1.msra.mxu0 0.0
  %2889 = vmatprep.subr.mxu0 0.0
  %2890 = vmatpush1.msra.mxu0 0.0
  %2891 = vmatprep.subr.mxu0 0.0
  %2892 = vmatpush1.msra.mxu0 0.0
  %2893 = vmatprep.subr.mxu0 0.0
  %2894 = vmatpush1.msra.mxu0 0.0
  %2895 = vmatprep.subr.mxu0 0.0
  %2896 = vmatpush1.msra.mxu0 0.0
  %2897 = vmatprep.subr.mxu0 0.0
  %2898 = vmatpush1.msra.mxu0 0.0
  %2899 = vmatprep.subr.mxu0 0.0
  %2900 = vmatpush1.msra.mxu0 0.0
  %2901 = vmatprep.subr.mxu0 0.0
  %2902 = vmatpush1.msra.mxu0 0.0
  %2903 = vmatprep.subr.mxu0 0.0
  %2904 = vmatpush1.msra.mxu0 0.0
  %2905 = vmatprep.subr.mxu0 0.0
  %2906 = vmatpush1.msra.mxu0 0.0
  %2907 = vmatprep.subr.mxu0 0.0
  %2908 = vmatpush1.msra.mxu0 0.0
  %2909 = vmatprep.subr.mxu0 0.0
  %2910 = vmatpush1.msra.mxu0 0.0
  %2911 = vmatprep.subr.mxu0 0.0
  %2912 = vmatpush1.msra.mxu0 0.0
  %2913 = vmatprep.subr.mxu0 0.0
  %2914 = vmatpush1.msra.mxu0 0.0
  %2915 = vmatprep.subr.mxu0 0.0
  %2916 = vmatpush1.msra.mxu0 0.0
  %2917 = vmatprep.subr.mxu0 0.0
  %2918 = vmatpush1.msra.mxu0 0.0
  %2919 = vmatprep.subr.mxu0 0.0
  %2920 = vmatpush1.msra.mxu0 0.0
  %2921 = vmatprep.subr.mxu0 0.0
  %2922 = vmatpush1.msra.mxu0 0.0
  %2923 = vmatprep.subr.mxu0 0.0
  %2924 = vmatpush1.msra.mxu0 0.0
  %2925 = vmatprep.subr.mxu0 0.0
  %2926 = vmatpush1.msra.mxu0 0.0
  %2927 = vmatprep.subr.mxu0 0.0
  %2928 = vmatpush1.msra.mxu0 0.0
  %2929 = vmatprep.subr.mxu0 0.0
  %2930 = vmatpush1.msra.mxu0 0.0
  %2931 = vmatprep.subr.mxu0 0.0
  %2932 = vmatpush1.msra.mxu0 0.0
  %2933 = vmatprep.subr.mxu0 0.0
  %2934 = vmatpush1.msra.mxu0 0.0
  %2935 = vmatprep.mubr.f32.mxu0 0.0
  %2936 = vmatmul.mubr.f32.gmra.mrb[0].mxu0 %v2869
  %v2937 = vpop.f32.mrb[0].mxu0
  %v2938 = vadd.f32 %v2371, %v2937
  %v2939 = vpop.f32.mrb[0].mxu0
  %2940 = vdwg.mxu0
  %v2942 = vsel %vm2451, %v2938, 0
  %2944 = vmatprep.subr.mxu0 0.0
  %2945 = vmatpush1.msra.mxu0 %v58
  %2946 = vmatprep.subr.mxu0 0.0
  %2947 = vmatpush1.msra.mxu0 %v59
  %2948 = vmatprep.subr.mxu0 0.0
  %2949 = vmatpush1.msra.mxu0 %v60
  %2950 = vmatprep.subr.mxu0 0.0
  %2951 = vmatpush1.msra.mxu0 %v61
  %2952 = vmatprep.subr.mxu0 0.0
  %2953 = vmatpush1.msra.mxu0 %v62
  %2954 = vmatprep.subr.mxu0 0.0
  %2955 = vmatpush1.msra.mxu0 %v63
  %2956 = vmatprep.subr.mxu0 0.0
  %2957 = vmatpush1.msra.mxu0 %v64
  %2958 = vmatprep.subr.mxu0 0.0
  %2959 = vmatpush1.msra.mxu0 %v65
  %2960 = vmatprep.subr.mxu0 0.0
  %2961 = vmatpush1.msra.mxu0 0.0
  %2962 = vmatprep.subr.mxu0 0.0
  %2963 = vmatpush1.msra.mxu0 0.0
  %2964 = vmatprep.subr.mxu0 0.0
  %2965 = vmatpush1.msra.mxu0 0.0
  %2966 = vmatprep.subr.mxu0 0.0
  %2967 = vmatpush1.msra.mxu0 0.0
  %2968 = vmatprep.subr.mxu0 0.0
  %2969 = vmatpush1.msra.mxu0 0.0
  %2970 = vmatprep.subr.mxu0 0.0
  %2971 = vmatpush1.msra.mxu0 0.0
  %2972 = vmatprep.subr.mxu0 0.0
  %2973 = vmatpush1.msra.mxu0 0.0
  %2974 = vmatprep.subr.mxu0 0.0
  %2975 = vmatpush1.msra.mxu0 0.0
  %2976 = vmatprep.subr.mxu0 0.0
  %2977 = vmatpush1.msra.mxu0 0.0
  %2978 = vmatprep.subr.mxu0 0.0
  %2979 = vmatpush1.msra.mxu0 0.0
  %2980 = vmatprep.subr.mxu0 0.0
  %2981 = vmatpush1.msra.mxu0 0.0
  %2982 = vmatprep.subr.mxu0 0.0
  %2983 = vmatpush1.msra.mxu0 0.0
  %2984 = vmatprep.subr.mxu0 0.0
  %2985 = vmatpush1.msra.mxu0 0.0
  %2986 = vmatprep.subr.mxu0 0.0
  %2987 = vmatpush1.msra.mxu0 0.0
  %2988 = vmatprep.subr.mxu0 0.0
  %2989 = vmatpush1.msra.mxu0 0.0
  %2990 = vmatprep.subr.mxu0 0.0
  %2991 = vmatpush1.msra.mxu0 0.0
  %2992 = vmatprep.subr.mxu0 0.0
  %2993 = vmatpush1.msra.mxu0 0.0
  %2994 = vmatprep.subr.mxu0 0.0
  %2995 = vmatpush1.msra.mxu0 0.0
  %2996 = vmatprep.subr.mxu0 0.0
  %2997 = vmatpush1.msra.mxu0 0.0
  %2998 = vmatprep.subr.mxu0 0.0
  %2999 = vmatpush1.msra.mxu0 0.0
  %3000 = vmatprep.subr.mxu0 0.0
  %3001 = vmatpush1.msra.mxu0 0.0
  %3002 = vmatprep.subr.mxu0 0.0
  %3003 = vmatpush1.msra.mxu0 0.0
  %3004 = vmatprep.subr.mxu0 0.0
  %3005 = vmatpush1.msra.mxu0 0.0
  %3006 = vmatprep.subr.mxu0 0.0
  %3007 = vmatpush1.msra.mxu0 0.0
  %3008 = vmatprep.mubr.f32.mxu0 0.0
  %3009 = vmatmul.mubr.f32.gmra.mrb[0].mxu0 %v2942
  %v3010 = vpop.f32.mrb[0].mxu0
  %v3011 = vadd.f32 %v2450, %v3010
  %v3012 = vpop.f32.mrb[0].mxu0
  %3013 = vdwg.mxu0
  %vm3014 = vcmp.eq.s32.totalorder %v1780, 1
  %3016 = vset.pattern.permute.xlu0 0
  %3017 = vperm.xlu0 %3016, %v3011
  %v3018 = vpop.permute.xlu0 %3017
  %v3020 = vsel %vm3014, %v3018, %v2531
  %3021 = vmatprep.subr.mxu0 0.0
  %3022 = vmatpush1.msra.mxu0 %v34
  %3023 = vmatprep.subr.mxu0 0.0
  %3024 = vmatpush1.msra.mxu0 %v35
  %3025 = vmatprep.subr.mxu0 0.0
  %3026 = vmatpush1.msra.mxu0 %v36
  %3027 = vmatprep.subr.mxu0 0.0
  %3028 = vmatpush1.msra.mxu0 %v37
  %3029 = vmatprep.subr.mxu0 0.0
  %3030 = vmatpush1.msra.mxu0 0.0
  %3031 = vmatprep.subr.mxu0 0.0
  %3032 = vmatpush1.msra.mxu0 0.0
  %3033 = vmatprep.subr.mxu0 0.0
  %3034 = vmatpush1.msra.mxu0 0.0
  %3035 = vmatprep.subr.mxu0 0.0
  %3036 = vmatpush1.msra.mxu0 0.0
  %3037 = vmatprep.subr.mxu0 0.0
  %3038 = vmatpush1.msra.mxu0 0.0
  %3039 = vmatprep.subr.mxu0 0.0
  %3040 = vmatpush1.msra.mxu0 0.0
  %3041 = vmatprep.subr.mxu0 0.0
  %3042 = vmatpush1.msra.mxu0 0.0
  %3043 = vmatprep.subr.mxu0 0.0
  %3044 = vmatpush1.msra.mxu0 0.0
  %3045 = vmatprep.subr.mxu0 0.0
  %3046 = vmatpush1.msra.mxu0 0.0
  %3047 = vmatprep.subr.mxu0 0.0
  %3048 = vmatpush1.msra.mxu0 0.0
  %3049 = vmatprep.subr.mxu0 0.0
  %3050 = vmatpush1.msra.mxu0 0.0
  %3051 = vmatprep.subr.mxu0 0.0
  %3052 = vmatpush1.msra.mxu0 0.0
  %3053 = vmatprep.subr.mxu0 0.0
  %3054 = vmatpush1.msra.mxu0 0.0
  %3055 = vmatprep.subr.mxu0 0.0
  %3056 = vmatpush1.msra.mxu0 0.0
  %3057 = vmatprep.subr.mxu0 0.0
  %3058 = vmatpush1.msra.mxu0 0.0
  %3059 = vmatprep.subr.mxu0 0.0
  %3060 = vmatpush1.msra.mxu0 0.0
  %3061 = vmatprep.subr.mxu0 0.0
  %3062 = vmatpush1.msra.mxu0 0.0
  %3063 = vmatprep.subr.mxu0 0.0
  %3064 = vmatpush1.msra.mxu0 0.0
  %3065 = vmatprep.subr.mxu0 0.0
  %3066 = vmatpush1.msra.mxu0 0.0
  %3067 = vmatprep.subr.mxu0 0.0
  %3068 = vmatpush1.msra.mxu0 0.0
  %3069 = vmatprep.subr.mxu0 0.0
  %3070 = vmatpush1.msra.mxu0 0.0
  %3071 = vmatprep.subr.mxu0 0.0
  %3072 = vmatpush1.msra.mxu0 0.0
  %3073 = vmatprep.subr.mxu0 0.0
  %3074 = vmatpush1.msra.mxu0 0.0
  %3075 = vmatprep.subr.mxu0 0.0
  %3076 = vmatpush1.msra.mxu0 0.0
  %3077 = vmatprep.subr.mxu0 0.0
  %3078 = vmatpush1.msra.mxu0 0.0
  %3079 = vmatprep.subr.mxu0 0.0
  %3080 = vmatpush1.msra.mxu0 0.0
  %3081 = vmatprep.subr.mxu0 0.0
  %3082 = vmatpush1.msra.mxu0 0.0
  %3083 = vmatprep.subr.mxu0 0.0
  %3084 = vmatpush1.msra.mxu0 0.0
  %3085 = vmatprep.mubr.f32.mxu0 0.0
  %3086 = vmatmul.mubr.f32.gmra.mrb[0].mxu0 %v2628
  %v3087 = vpop.f32.mrb[0].mxu0
  %v3088 = vadd.f32 0.0, %v3087
  %v3089 = vpop.f32.mrb[0].mxu0
  %3090 = vdwg.mxu0
  %v3091 = vadd.f32 %v1746, %v3088
  %v3092 = vmul.f32 %v3091, 0.5
  %v3093 = vtanh.pop %v3092
  %v3094 = vmul.f32 %v3093, 0.5
  %v3095 = vadd.f32 %v3094, 0.5
  %v3096 = vtanh.pop %v3091
  %v3097 = vmul.f32 %v3095, %v2618
  %3099 = vrot.lane.b32.xlu0 %v3096, 64
  %v3100 = vpop.permute.xlu0 %3099
  %v3102 = vmul.f32 %v3095, %v3100
  %3104 = vrot.lane.b32.xlu0 %v3102, 32
  %v3105 = vpop.permute.xlu0 %3104
  %v3107 = vadd.f32 %v3097, %v3105
  %v3108 = vtanh.pop %v3107
  %3110 = vrot.lane.b32.xlu0 %v3108, 64
  %v3111 = vpop.permute.xlu0 %3110
  %v3113 = vmul.f32 %v3095, %v3111
  %3115 = vrot.lane.b32.xlu0 %v3113, 32
  %v3116 = vpop.permute.xlu0 %3115
  %v3117 = vsel %vm1781, %v3116, 0
  %3119 = vmatprep.subr.mxu0 0.0
  %3120 = vmatpush1.msra.mxu0 %v39
  %3121 = vmatprep.subr.mxu0 0.0
  %3122 = vmatpush1.msra.mxu0 %v40
  %3123 = vmatprep.subr.mxu0 0.0
  %3124 = vmatpush1.msra.mxu0 %v41
  %3125 = vmatprep.subr.mxu0 0.0
  %3126 = vmatpush1.msra.mxu0 %v42
  %3127 = vmatprep.subr.mxu0 0.0
  %3128 = vmatpush1.msra.mxu0 0.0
  %3129 = vmatprep.subr.mxu0 0.0
  %3130 = vmatpush1.msra.mxu0 0.0
  %3131 = vmatprep.subr.mxu0 0.0
  %3132 = vmatpush1.msra.mxu0 0.0
  %3133 = vmatprep.subr.mxu0 0.0
  %3134 = vmatpush1.msra.mxu0 0.0
  %3135 = vmatprep.subr.mxu0 0.0
  %3136 = vmatpush1.msra.mxu0 0.0
  %3137 = vmatprep.subr.mxu0 0.0
  %3138 = vmatpush1.msra.mxu0 0.0
  %3139 = vmatprep.subr.mxu0 0.0
  %3140 = vmatpush1.msra.mxu0 0.0
  %3141 = vmatprep.subr.mxu0 0.0
  %3142 = vmatpush1.msra.mxu0 0.0
  %3143 = vmatprep.subr.mxu0 0.0
  %3144 = vmatpush1.msra.mxu0 0.0
  %3145 = vmatprep.subr.mxu0 0.0
  %3146 = vmatpush1.msra.mxu0 0.0
  %3147 = vmatprep.subr.mxu0 0.0
  %3148 = vmatpush1.msra.mxu0 0.0
  %3149 = vmatprep.subr.mxu0 0.0
  %3150 = vmatpush1.msra.mxu0 0.0
  %3151 = vmatprep.subr.mxu0 0.0
  %3152 = vmatpush1.msra.mxu0 0.0
  %3153 = vmatprep.subr.mxu0 0.0
  %3154 = vmatpush1.msra.mxu0 0.0
  %3155 = vmatprep.subr.mxu0 0.0
  %3156 = vmatpush1.msra.mxu0 0.0
  %3157 = vmatprep.subr.mxu0 0.0
  %3158 = vmatpush1.msra.mxu0 0.0
  %3159 = vmatprep.subr.mxu0 0.0
  %3160 = vmatpush1.msra.mxu0 0.0
  %3161 = vmatprep.subr.mxu0 0.0
  %3162 = vmatpush1.msra.mxu0 0.0
  %3163 = vmatprep.subr.mxu0 0.0
  %3164 = vmatpush1.msra.mxu0 0.0
  %3165 = vmatprep.subr.mxu0 0.0
  %3166 = vmatpush1.msra.mxu0 0.0
  %3167 = vmatprep.subr.mxu0 0.0
  %3168 = vmatpush1.msra.mxu0 0.0
  %3169 = vmatprep.subr.mxu0 0.0
  %3170 = vmatpush1.msra.mxu0 0.0
  %3171 = vmatprep.subr.mxu0 0.0
  %3172 = vmatpush1.msra.mxu0 0.0
  %3173 = vmatprep.subr.mxu0 0.0
  %3174 = vmatpush1.msra.mxu0 0.0
  %3175 = vmatprep.subr.mxu0 0.0
  %3176 = vmatpush1.msra.mxu0 0.0
  %3177 = vmatprep.subr.mxu0 0.0
  %3178 = vmatpush1.msra.mxu0 0.0
  %3179 = vmatprep.subr.mxu0 0.0
  %3180 = vmatpush1.msra.mxu0 0.0
  %3181 = vmatprep.subr.mxu0 0.0
  %3182 = vmatpush1.msra.mxu0 0.0
  %3183 = vmatprep.mubr.f32.mxu0 0.0
  %3184 = vmatmul.mubr.f32.gmra.mrb[0].mxu0 %v3117
  %v3185 = vpop.f32.mrb[0].mxu0
  %v3186 = vadd.f32 %v1881, %v3185
  %v3187 = vpop.f32.mrb[0].mxu0
  %3188 = vdwg.mxu0
  %v3190 = vsel %vm1781, %v3186, 0
  %3192 = vmatprep.subr.mxu0 0.0
  %3193 = vmatpush1.msra.mxu0 %v44
  %3194 = vmatprep.subr.mxu0 0.0
  %3195 = vmatpush1.msra.mxu0 %v45
  %3196 = vmatprep.subr.mxu0 0.0
  %3197 = vmatpush1.msra.mxu0 %v46
  %3198 = vmatprep.subr.mxu0 0.0
  %3199 = vmatpush1.msra.mxu0 %v47
  %3200 = vmatprep.subr.mxu0 0.0
  %3201 = vmatpush1.msra.mxu0 0.0
  %3202 = vmatprep.subr.mxu0 0.0
  %3203 = vmatpush1.msra.mxu0 0.0
  %3204 = vmatprep.subr.mxu0 0.0
  %3205 = vmatpush1.msra.mxu0 0.0
  %3206 = vmatprep.subr.mxu0 0.0
  %3207 = vmatpush1.msra.mxu0 0.0
  %3208 = vmatprep.subr.mxu0 0.0
  %3209 = vmatpush1.msra.mxu0 0.0
  %3210 = vmatprep.subr.mxu0 0.0
  %3211 = vmatpush1.msra.mxu0 0.0
  %3212 = vmatprep.subr.mxu0 0.0
  %3213 = vmatpush1.msra.mxu0 0.0
  %3214 = vmatprep.subr.mxu0 0.0
  %3215 = vmatpush1.msra.mxu0 0.0
  %3216 = vmatprep.subr.mxu0 0.0
  %3217 = vmatpush1.msra.mxu0 0.0
  %3218 = vmatprep.subr.mxu0 0.0
  %3219 = vmatpush1.msra.mxu0 0.0
  %3220 = vmatprep.subr.mxu0 0.0
  %3221 = vmatpush1.msra.mxu0 0.0
  %3222 = vmatprep.subr.mxu0 0.0
  %3223 = vmatpush1.msra.mxu0 0.0
  %3224 = vmatprep.subr.mxu0 0.0
  %3225 = vmatpush1.msra.mxu0 0.0
  %3226 = vmatprep.subr.mxu0 0.0
  %3227 = vmatpush1.msra.mxu0 0.0
  %3228 = vmatprep.subr.mxu0 0.0
  %3229 = vmatpush1.msra.mxu0 0.0
  %3230 = vmatprep.subr.mxu0 0.0
  %3231 = vmatpush1.msra.mxu0 0.0
  %3232 = vmatprep.subr.mxu0 0.0
  %3233 = vmatpush1.msra.mxu0 0.0
  %3234 = vmatprep.subr.mxu0 0.0
  %3235 = vmatpush1.msra.mxu0 0.0
  %3236 = vmatprep.subr.mxu0 0.0
  %3237 = vmatpush1.msra.mxu0 0.0
  %3238 = vmatprep.subr.mxu0 0.0
  %3239 = vmatpush1.msra.mxu0 0.0
  %3240 = vmatprep.subr.mxu0 0.0
  %3241 = vmatpush1.msra.mxu0 0.0
  %3242 = vmatprep.subr.mxu0 0.0
  %3243 = vmatpush1.msra.mxu0 0.0
  %3244 = vmatprep.subr.mxu0 0.0
  %3245 = vmatpush1.msra.mxu0 0.0
  %3246 = vmatprep.subr.mxu0 0.0
  %3247 = vmatpush1.msra.mxu0 0.0
  %3248 = vmatprep.subr.mxu0 0.0
  %3249 = vmatpush1.msra.mxu0 0.0
  %3250 = vmatprep.subr.mxu0 0.0
  %3251 = vmatpush1.msra.mxu0 0.0
  %3252 = vmatprep.subr.mxu0 0.0
  %3253 = vmatpush1.msra.mxu0 0.0
  %3254 = vmatprep.subr.mxu0 0.0
  %3255 = vmatpush1.msra.mxu0 0.0
  %3256 = vmatprep.mubr.f32.mxu0 0.0
  %3257 = vmatmul.mubr.f32.gmra.mrb[0].mxu0 %v3190
  %v3258 = vpop.f32.mrb[0].mxu0
  %v3259 = vadd.f32 %v1960, %v3258
  %v3260 = vpop.f32.mrb[0].mxu0
  %3261 = vdwg.mxu0
  %3262 = vmatprep.subr.mxu0 0.0
  %3263 = vmatpush1.msra.mxu0 %v48
  %3264 = vmatprep.subr.mxu0 0.0
  %3265 = vmatpush1.msra.mxu0 %v49
  %3266 = vmatprep.subr.mxu0 0.0
  %3267 = vmatpush1.msra.mxu0 %v50
  %3268 = vmatprep.subr.mxu0 0.0
  %3269 = vmatpush1.msra.mxu0 %v51
  %3270 = vmatprep.subr.mxu0 0.0
  %3271 = vmatpush1.msra.mxu0 0.0
  %3272 = vmatprep.subr.mxu0 0.0
  %3273 = vmatpush1.msra.mxu0 0.0
  %3274 = vmatprep.subr.mxu0 0.0
  %3275 = vmatpush1.msra.mxu0 0.0
  %3276 = vmatprep.subr.mxu0 0.0
  %3277 = vmatpush1.msra.mxu0 0.0
  %3278 = vmatprep.subr.mxu0 0.0
  %3279 = vmatpush1.msra.mxu0 0.0
  %3280 = vmatprep.subr.mxu0 0.0
  %3281 = vmatpush1.msra.mxu0 0.0
  %3282 = vmatprep.subr.mxu0 0.0
  %3283 = vmatpush1.msra.mxu0 0.0
  %3284 = vmatprep.subr.mxu0 0.0
  %3285 = vmatpush1.msra.mxu0 0.0
  %3286 = vmatprep.subr.mxu0 0.0
  %3287 = vmatpush1.msra.mxu0 0.0
  %3288 = vmatprep.subr.mxu0 0.0
  %3289 = vmatpush1.msra.mxu0 0.0
  %3290 = vmatprep.subr.mxu0 0.0
  %3291 = vmatpush1.msra.mxu0 0.0
  %3292 = vmatprep.subr.mxu0 0.0
  %3293 = vmatpush1.msra.mxu0 0.0
  %3294 = vmatprep.subr.mxu0 0.0
  %3295 = vmatpush1.msra.mxu0 0.0
  %3296 = vmatprep.subr.mxu0 0.0
  %3297 = vmatpush1.msra.mxu0 0.0
  %3298 = vmatprep.subr.mxu0 0.0
  %3299 = vmatpush1.msra.mxu0 0.0
  %3300 = vmatprep.subr.mxu0 0.0
  %3301 = vmatpush1.msra.mxu0 0.0
  %3302 = vmatprep.subr.mxu0 0.0
  %3303 = vmatpush1.msra.mxu0 0.0
  %3304 = vmatprep.subr.mxu0 0.0
  %3305 = vmatpush1.msra.mxu0 0.0
  %3306 = vmatprep.subr.mxu0 0.0
  %3307 = vmatpush1.msra.mxu0 0.0
  %3308 = vmatprep.subr.mxu0 0.0
  %3309 = vmatpush1.msra.mxu0 0.0
  %3310 = vmatprep.subr.mxu0 0.0
  %3311 = vmatpush1.msra.mxu0 0.0
  %3312 = vmatprep.subr.mxu0 0.0
  %3313 = vmatpush1.msra.mxu0 0.0
  %3314 = vmatprep.subr.mxu0 0.0
  %3315 = vmatpush1.msra.mxu0 0.0
  %3316 = vmatprep.subr.mxu0 0.0
  %3317 = vmatpush1.msra.mxu0 0.0
  %3318 = vmatprep.subr.mxu0 0.0
  %3319 = vmatpush1.msra.mxu0 0.0
  %3320 = vmatprep.subr.mxu0 0.0
  %3321 = vmatpush1.msra.mxu0 0.0
  %3322 = vmatprep.subr.mxu0 0.0
  %3323 = vmatpush1.msra.mxu0 0.0
  %3324 = vmatprep.subr.mxu0 0.0
  %3325 = vmatpush1.msra.mxu0 0.0
  %3326 = vmatprep.mubr.f32.mxu0 0.0
  %3327 = vmatmul.mubr.f32.gmra.mrb[0].mxu0 %v2869
  %v3328 = vpop.f32.mrb[0].mxu0
  %v3329 = vadd.f32 0.0, %v3328
  %v3330 = vpop.f32.mrb[0].mxu0
  %3331 = vdwg.mxu0
  %v3332 = vadd.f32 %v2770, %v3329
  %v3333 = vmul.f32 %v3332, 0.5
  %v3334 = vtanh.pop %v3333
  %v3335 = vmul.f32 %v3334, 0.5
  %v3336 = vadd.f32 %v3335, 0.5
  %v3337 = vtanh.pop %v3332
  %v3338 = vmul.f32 %v3336, %v2859
  %3340 = vrot.lane.b32.xlu0 %v3337, 64
  %v3341 = vpop.permute.xlu0 %3340
  %v3343 = vmul.f32 %v3336, %v3341
  %3345 = vrot.lane.b32.xlu0 %v3343, 32
  %v3346 = vpop.permute.xlu0 %3345
  %v3348 = vadd.f32 %v3338, %v3346
  %v3349 = vtanh.pop %v3348
  %3351 = vrot.lane.b32.xlu0 %v3349, 64
  %v3352 = vpop.permute.xlu0 %3351
  %v3354 = vmul.f32 %v3336, %v3352
  %3356 = vrot.lane.b32.xlu0 %v3354, 32
  %v3357 = vpop.permute.xlu0 %3356
  %v3358 = vsel %vm1781, %v3357, 0
  %3360 = vmatprep.subr.mxu0 0.0
  %3361 = vmatpush1.msra.mxu0 %v53
  %3362 = vmatprep.subr.mxu0 0.0
  %3363 = vmatpush1.msra.mxu0 %v54
  %3364 = vmatprep.subr.mxu0 0.0
  %3365 = vmatpush1.msra.mxu0 %v55
  %3366 = vmatprep.subr.mxu0 0.0
  %3367 = vmatpush1.msra.mxu0 %v56
  %3368 = vmatprep.subr.mxu0 0.0
  %3369 = vmatpush1.msra.mxu0 0.0
  %3370 = vmatprep.subr.mxu0 0.0
  %3371 = vmatpush1.msra.mxu0 0.0
  %3372 = vmatprep.subr.mxu0 0.0
  %3373 = vmatpush1.msra.mxu0 0.0
  %3374 = vmatprep.subr.mxu0 0.0
  %3375 = vmatpush1.msra.mxu0 0.0
  %3376 = vmatprep.subr.mxu0 0.0
  %3377 = vmatpush1.msra.mxu0 0.0
  %3378 = vmatprep.subr.mxu0 0.0
  %3379 = vmatpush1.msra.mxu0 0.0
  %3380 = vmatprep.subr.mxu0 0.0
  %3381 = vmatpush1.msra.mxu0 0.0
  %3382 = vmatprep.subr.mxu0 0.0
  %3383 = vmatpush1.msra.mxu0 0.0
  %3384 = vmatprep.subr.mxu0 0.0
  %3385 = vmatpush1.msra.mxu0 0.0
  %3386 = vmatprep.subr.mxu0 0.0
  %3387 = vmatpush1.msra.mxu0 0.0
  %3388 = vmatprep.subr.mxu0 0.0
  %3389 = vmatpush1.msra.mxu0 0.0
  %3390 = vmatprep.subr.mxu0 0.0
  %3391 = vmatpush1.msra.mxu0 0.0
  %3392 = vmatprep.subr.mxu0 0.0
  %3393 = vmatpush1.msra.mxu0 0.0
  %3394 = vmatprep.subr.mxu0 0.0
  %3395 = vmatpush1.msra.mxu0 0.0
  %3396 = vmatprep.subr.mxu0 0.0
  %3397 = vmatpush1.msra.mxu0 0.0
  %3398 = vmatprep.subr.mxu0 0.0
  %3399 = vmatpush1.msra.mxu0 0.0
  %3400 = vmatprep.subr.mxu0 0.0
  %3401 = vmatpush1.msra.mxu0 0.0
  %3402 = vmatprep.subr.mxu0 0.0
  %3403 = vmatpush1.msra.mxu0 0.0
  %3404 = vmatprep.subr.mxu0 0.0
  %3405 = vmatpush1.msra.mxu0 0.0
  %3406 = vmatprep.subr.mxu0 0.0
  %3407 = vmatpush1.msra.mxu0 0.0
  %3408 = vmatprep.subr.mxu0 0.0
  %3409 = vmatpush1.msra.mxu0 0.0
  %3410 = vmatprep.subr.mxu0 0.0
  %3411 = vmatpush1.msra.mxu0 0.0
  %3412 = vmatprep.subr.mxu0 0.0
  %3413 = vmatpush1.msra.mxu0 0.0
  %3414 = vmatprep.subr.mxu0 0.0
  %3415 = vmatpush1.msra.mxu0 0.0
  %3416 = vmatprep.subr.mxu0 0.0
  %3417 = vmatpush1.msra.mxu0 0.0
  %3418 = vmatprep.subr.mxu0 0.0
  %3419 = vmatpush1.msra.mxu0 0.0
  %3420 = vmatprep.subr.mxu0 0.0
  %3421 = vmatpush1.msra.mxu0 0.0
  %3422 = vmatprep.subr.mxu0 0.0
  %3423 = vmatpush1.msra.mxu0 0.0
  %3424 = vmatprep.mubr.f32.mxu0 0.0
  %3425 = vmatmul.mubr.f32.gmra.mrb[0].mxu0 %v3358
  %v3426 = vpop.f32.mrb[0].mxu0
  %v3427 = vadd.f32 %v2371, %v3426
  %v3428 = vpop.f32.mrb[0].mxu0
  %3429 = vdwg.mxu0
  %v3431 = vsel %vm2451, %v3427, 0
  %3433 = vmatprep.subr.mxu0 0.0
  %3434 = vmatpush1.msra.mxu0 %v58
  %3435 = vmatprep.subr.mxu0 0.0
  %3436 = vmatpush1.msra.mxu0 %v59
  %3437 = vmatprep.subr.mxu0 0.0
  %3438 = vmatpush1.msra.mxu0 %v60
  %3439 = vmatprep.subr.mxu0 0.0
  %3440 = vmatpush1.msra.mxu0 %v61
  %3441 = vmatprep.subr.mxu0 0.0
  %3442 = vmatpush1.msra.mxu0 %v62
  %3443 = vmatprep.subr.mxu0 0.0
  %3444 = vmatpush1.msra.mxu0 %v63
  %3445 = vmatprep.subr.mxu0 0.0
  %3446 = vmatpush1.msra.mxu0 %v64
  %3447 = vmatprep.subr.mxu0 0.0
  %3448 = vmatpush1.msra.mxu0 %v65
  %3449 = vmatprep.subr.mxu0 0.0
  %3450 = vmatpush1.msra.mxu0 0.0
  %3451 = vmatprep.subr.mxu0 0.0
  %3452 = vmatpush1.msra.mxu0 0.0
  %3453 = vmatprep.subr.mxu0 0.0
  %3454 = vmatpush1.msra.mxu0 0.0
  %3455 = vmatprep.subr.mxu0 0.0
  %3456 = vmatpush1.msra.mxu0 0.0
  %3457 = vmatprep.subr.mxu0 0.0
  %3458 = vmatpush1.msra.mxu0 0.0
  %3459 = vmatprep.subr.mxu0 0.0
  %3460 = vmatpush1.msra.mxu0 0.0
  %3461 = vmatprep.subr.mxu0 0.0
  %3462 = vmatpush1.msra.mxu0 0.0
  %3463 = vmatprep.subr.mxu0 0.0
  %3464 = vmatpush1.msra.mxu0 0.0
  %3465 = vmatprep.subr.mxu0 0.0
  %3466 = vmatpush1.msra.mxu0 0.0
  %3467 = vmatprep.subr.mxu0 0.0
  %3468 = vmatpush1.msra.mxu0 0.0
  %3469 = vmatprep.subr.mxu0 0.0
  %3470 = vmatpush1.msra.mxu0 0.0
  %3471 = vmatprep.subr.mxu0 0.0
  %3472 = vmatpush1.msra.mxu0 0.0
  %3473 = vmatprep.subr.mxu0 0.0
  %3474 = vmatpush1.msra.mxu0 0.0
  %3475 = vmatprep.subr.mxu0 0.0
  %3476 = vmatpush1.msra.mxu0 0.0
  %3477 = vmatprep.subr.mxu0 0.0
  %3478 = vmatpush1.msra.mxu0 0.0
  %3479 = vmatprep.subr.mxu0 0.0
  %3480 = vmatpush1.msra.mxu0 0.0
  %3481 = vmatprep.subr.mxu0 0.0
  %3482 = vmatpush1.msra.mxu0 0.0
  %3483 = vmatprep.subr.mxu0 0.0
  %3484 = vmatpush1.msra.mxu0 0.0
  %3485 = vmatprep.subr.mxu0 0.0
  %3486 = vmatpush1.msra.mxu0 0.0
  %3487 = vmatprep.subr.mxu0 0.0
  %3488 = vmatpush1.msra.mxu0 0.0
  %3489 = vmatprep.subr.mxu0 0.0
  %3490 = vmatpush1.msra.mxu0 0.0
  %3491 = vmatprep.subr.mxu0 0.0
  %3492 = vmatpush1.msra.mxu0 0.0
  %3493 = vmatprep.subr.mxu0 0.0
  %3494 = vmatpush1.msra.mxu0 0.0
  %3495 = vmatprep.subr.mxu0 0.0
  %3496 = vmatpush1.msra.mxu0 0.0
  %3497 = vmatprep.mubr.f32.mxu0 0.0
  %3498 = vmatmul.mubr.f32.gmra.mrb[0].mxu0 %v3431
  %v3499 = vpop.f32.mrb[0].mxu0
  %v3500 = vadd.f32 %v2450, %v3499
  %v3501 = vpop.f32.mrb[0].mxu0
  %3502 = vdwg.mxu0
  %vm3503 = vcmp.eq.s32.totalorder %v1780, 2
  %3505 = vset.pattern.permute.xlu0 0
  %3506 = vperm.xlu0 %3505, %v3500
  %v3507 = vpop.permute.xlu0 %3506
  %v3509 = vsel %vm3503, %v3507, %v3020
  %3510 = vmatprep.subr.mxu0 0.0
  %3511 = vmatpush1.msra.mxu0 %v34
  %3512 = vmatprep.subr.mxu0 0.0
  %3513 = vmatpush1.msra.mxu0 %v35
  %3514 = vmatprep.subr.mxu0 0.0
  %3515 = vmatpush1.msra.mxu0 %v36
  %3516 = vmatprep.subr.mxu0 0.0
  %3517 = vmatpush1.msra.mxu0 %v37
  %3518 = vmatprep.subr.mxu0 0.0
  %3519 = vmatpush1.msra.mxu0 0.0
  %3520 = vmatprep.subr.mxu0 0.0
  %3521 = vmatpush1.msra.mxu0 0.0
  %3522 = vmatprep.subr.mxu0 0.0
  %3523 = vmatpush1.msra.mxu0 0.0
  %3524 = vmatprep.subr.mxu0 0.0
  %3525 = vmatpush1.msra.mxu0 0.0
  %3526 = vmatprep.subr.mxu0 0.0
  %3527 = vmatpush1.msra.mxu0 0.0
  %3528 = vmatprep.subr.mxu0 0.0
  %3529 = vmatpush1.msra.mxu0 0.0
  %3530 = vmatprep.subr.mxu0 0.0
  %3531 = vmatpush1.msra.mxu0 0.0
  %3532 = vmatprep.subr.mxu0 0.0
  %3533 = vmatpush1.msra.mxu0 0.0
  %3534 = vmatprep.subr.mxu0 0.0
  %3535 = vmatpush1.msra.mxu0 0.0
  %3536 = vmatprep.subr.mxu0 0.0
  %3537 = vmatpush1.msra.mxu0 0.0
  %3538 = vmatprep.subr.mxu0 0.0
  %3539 = vmatpush1.msra.mxu0 0.0
  %3540 = vmatprep.subr.mxu0 0.0
  %3541 = vmatpush1.msra.mxu0 0.0
  %3542 = vmatprep.subr.mxu0 0.0
  %3543 = vmatpush1.msra.mxu0 0.0
  %3544 = vmatprep.subr.mxu0 0.0
  %3545 = vmatpush1.msra.mxu0 0.0
  %3546 = vmatprep.subr.mxu0 0.0
  %3547 = vmatpush1.msra.mxu0 0.0
  %3548 = vmatprep.subr.mxu0 0.0
  %3549 = vmatpush1.msra.mxu0 0.0
  %3550 = vmatprep.subr.mxu0 0.0
  %3551 = vmatpush1.msra.mxu0 0.0
  %3552 = vmatprep.subr.mxu0 0.0
  %3553 = vmatpush1.msra.mxu0 0.0
  %3554 = vmatprep.subr.mxu0 0.0
  %3555 = vmatpush1.msra.mxu0 0.0
  %3556 = vmatprep.subr.mxu0 0.0
  %3557 = vmatpush1.msra.mxu0 0.0
  %3558 = vmatprep.subr.mxu0 0.0
  %3559 = vmatpush1.msra.mxu0 0.0
  %3560 = vmatprep.subr.mxu0 0.0
  %3561 = vmatpush1.msra.mxu0 0.0
  %3562 = vmatprep.subr.mxu0 0.0
  %3563 = vmatpush1.msra.mxu0 0.0
  %3564 = vmatprep.subr.mxu0 0.0
  %3565 = vmatpush1.msra.mxu0 0.0
  %3566 = vmatprep.subr.mxu0 0.0
  %3567 = vmatpush1.msra.mxu0 0.0
  %3568 = vmatprep.subr.mxu0 0.0
  %3569 = vmatpush1.msra.mxu0 0.0
  %3570 = vmatprep.subr.mxu0 0.0
  %3571 = vmatpush1.msra.mxu0 0.0
  %3572 = vmatprep.subr.mxu0 0.0
  %3573 = vmatpush1.msra.mxu0 0.0
  %3574 = vmatprep.mubr.f32.mxu0 0.0
  %3575 = vmatmul.mubr.f32.gmra.mrb[0].mxu0 %v3117
  %v3576 = vpop.f32.mrb[0].mxu0
  %v3577 = vadd.f32 0.0, %v3576
  %v3578 = vpop.f32.mrb[0].mxu0
  %3579 = vdwg.mxu0
  %v3580 = vadd.f32 %v1751, %v3577
  %v3581 = vmul.f32 %v3580, 0.5
  %v3582 = vtanh.pop %v3581
  %v3583 = vmul.f32 %v3582, 0.5
  %v3584 = vadd.f32 %v3583, 0.5
  %v3585 = vtanh.pop %v3580
  %v3586 = vmul.f32 %v3584, %v3107
  %3588 = vrot.lane.b32.xlu0 %v3585, 64
  %v3589 = vpop.permute.xlu0 %3588
  %v3591 = vmul.f32 %v3584, %v3589
  %3593 = vrot.lane.b32.xlu0 %v3591, 32
  %v3594 = vpop.permute.xlu0 %3593
  %v3596 = vadd.f32 %v3586, %v3594
  %v3597 = vtanh.pop %v3596
  %3599 = vrot.lane.b32.xlu0 %v3597, 64
  %v3600 = vpop.permute.xlu0 %3599
  %v3602 = vmul.f32 %v3584, %v3600
  %3604 = vrot.lane.b32.xlu0 %v3602, 32
  %v3605 = vpop.permute.xlu0 %3604
  %v3606 = vsel %vm1781, %v3605, 0
  %3608 = vmatprep.subr.mxu0 0.0
  %3609 = vmatpush1.msra.mxu0 %v39
  %3610 = vmatprep.subr.mxu0 0.0
  %3611 = vmatpush1.msra.mxu0 %v40
  %3612 = vmatprep.subr.mxu0 0.0
  %3613 = vmatpush1.msra.mxu0 %v41
  %3614 = vmatprep.subr.mxu0 0.0
  %3615 = vmatpush1.msra.mxu0 %v42
  %3616 = vmatprep.subr.mxu0 0.0
  %3617 = vmatpush1.msra.mxu0 0.0
  %3618 = vmatprep.subr.mxu0 0.0
  %3619 = vmatpush1.msra.mxu0 0.0
  %3620 = vmatprep.subr.mxu0 0.0
  %3621 = vmatpush1.msra.mxu0 0.0
  %3622 = vmatprep.subr.mxu0 0.0
  %3623 = vmatpush1.msra.mxu0 0.0
  %3624 = vmatprep.subr.mxu0 0.0
  %3625 = vmatpush1.msra.mxu0 0.0
  %3626 = vmatprep.subr.mxu0 0.0
  %3627 = vmatpush1.msra.mxu0 0.0
  %3628 = vmatprep.subr.mxu0 0.0
  %3629 = vmatpush1.msra.mxu0 0.0
  %3630 = vmatprep.subr.mxu0 0.0
  %3631 = vmatpush1.msra.mxu0 0.0
  %3632 = vmatprep.subr.mxu0 0.0
  %3633 = vmatpush1.msra.mxu0 0.0
  %3634 = vmatprep.subr.mxu0 0.0
  %3635 = vmatpush1.msra.mxu0 0.0
  %3636 = vmatprep.subr.mxu0 0.0
  %3637 = vmatpush1.msra.mxu0 0.0
  %3638 = vmatprep.subr.mxu0 0.0
  %3639 = vmatpush1.msra.mxu0 0.0
  %3640 = vmatprep.subr.mxu0 0.0
  %3641 = vmatpush1.msra.mxu0 0.0
  %3642 = vmatprep.subr.mxu0 0.0
  %3643 = vmatpush1.msra.mxu0 0.0
  %3644 = vmatprep.subr.mxu0 0.0
  %3645 = vmatpush1.msra.mxu0 0.0
  %3646 = vmatprep.subr.mxu0 0.0
  %3647 = vmatpush1.msra.mxu0 0.0
  %3648 = vmatprep.subr.mxu0 0.0
  %3649 = vmatpush1.msra.mxu0 0.0
  %3650 = vmatprep.subr.mxu0 0.0
  %3651 = vmatpush1.msra.mxu0 0.0
  %3652 = vmatprep.subr.mxu0 0.0
  %3653 = vmatpush1.msra.mxu0 0.0
  %3654 = vmatprep.subr.mxu0 0.0
  %3655 = vmatpush1.msra.mxu0 0.0
  %3656 = vmatprep.subr.mxu0 0.0
  %3657 = vmatpush1.msra.mxu0 0.0
  %3658 = vmatprep.subr.mxu0 0.0
  %3659 = vmatpush1.msra.mxu0 0.0
  %3660 = vmatprep.subr.mxu0 0.0
  %3661 = vmatpush1.msra.mxu0 0.0
  %3662 = vmatprep.subr.mxu0 0.0
  %3663 = vmatpush1.msra.mxu0 0.0
  %3664 = vmatprep.subr.mxu0 0.0
  %3665 = vmatpush1.msra.mxu0 0.0
  %3666 = vmatprep.subr.mxu0 0.0
  %3667 = vmatpush1.msra.mxu0 0.0
  %3668 = vmatprep.subr.mxu0 0.0
  %3669 = vmatpush1.msra.mxu0 0.0
  %3670 = vmatprep.subr.mxu0 0.0
  %3671 = vmatpush1.msra.mxu0 0.0
  %3672 = vmatprep.mubr.f32.mxu0 0.0
  %3673 = vmatmul.mubr.f32.gmra.mrb[0].mxu0 %v3606
  %v3674 = vpop.f32.mrb[0].mxu0
  %v3675 = vadd.f32 %v1881, %v3674
  %v3676 = vpop.f32.mrb[0].mxu0
  %3677 = vdwg.mxu0
  %v3679 = vsel %vm1781, %v3675, 0
  %3681 = vmatprep.subr.mxu0 0.0
  %3682 = vmatpush1.msra.mxu0 %v44
  %3683 = vmatprep.subr.mxu0 0.0
  %3684 = vmatpush1.msra.mxu0 %v45
  %3685 = vmatprep.subr.mxu0 0.0
  %3686 = vmatpush1.msra.mxu0 %v46
  %3687 = vmatprep.subr.mxu0 0.0
  %3688 = vmatpush1.msra.mxu0 %v47
  %3689 = vmatprep.subr.mxu0 0.0
  %3690 = vmatpush1.msra.mxu0 0.0
  %3691 = vmatprep.subr.mxu0 0.0
  %3692 = vmatpush1.msra.mxu0 0.0
  %3693 = vmatprep.subr.mxu0 0.0
  %3694 = vmatpush1.msra.mxu0 0.0
  %3695 = vmatprep.subr.mxu0 0.0
  %3696 = vmatpush1.msra.mxu0 0.0
  %3697 = vmatprep.subr.mxu0 0.0
  %3698 = vmatpush1.msra.mxu0 0.0
  %3699 = vmatprep.subr.mxu0 0.0
  %3700 = vmatpush1.msra.mxu0 0.0
  %3701 = vmatprep.subr.mxu0 0.0
  %3702 = vmatpush1.msra.mxu0 0.0
  %3703 = vmatprep.subr.mxu0 0.0
  %3704 = vmatpush1.msra.mxu0 0.0
  %3705 = vmatprep.subr.mxu0 0.0
  %3706 = vmatpush1.msra.mxu0 0.0
  %3707 = vmatprep.subr.mxu0 0.0
  %3708 = vmatpush1.msra.mxu0 0.0
  %3709 = vmatprep.subr.mxu0 0.0
  %3710 = vmatpush1.msra.mxu0 0.0
  %3711 = vmatprep.subr.mxu0 0.0
  %3712 = vmatpush1.msra.mxu0 0.0
  %3713 = vmatprep.subr.mxu0 0.0
  %3714 = vmatpush1.msra.mxu0 0.0
  %3715 = vmatprep.subr.mxu0 0.0
  %3716 = vmatpush1.msra.mxu0 0.0
  %3717 = vmatprep.subr.mxu0 0.0
  %3718 = vmatpush1.msra.mxu0 0.0
  %3719 = vmatprep.subr.mxu0 0.0
  %3720 = vmatpush1.msra.mxu0 0.0
  %3721 = vmatprep.subr.mxu0 0.0
  %3722 = vmatpush1.msra.mxu0 0.0
  %3723 = vmatprep.subr.mxu0 0.0
  %3724 = vmatpush1.msra.mxu0 0.0
  %3725 = vmatprep.subr.mxu0 0.0
  %3726 = vmatpush1.msra.mxu0 0.0
  %3727 = vmatprep.subr.mxu0 0.0
  %3728 = vmatpush1.msra.mxu0 0.0
  %3729 = vmatprep.subr.mxu0 0.0
  %3730 = vmatpush1.msra.mxu0 0.0
  %3731 = vmatprep.subr.mxu0 0.0
  %3732 = vmatpush1.msra.mxu0 0.0
  %3733 = vmatprep.subr.mxu0 0.0
  %3734 = vmatpush1.msra.mxu0 0.0
  %3735 = vmatprep.subr.mxu0 0.0
  %3736 = vmatpush1.msra.mxu0 0.0
  %3737 = vmatprep.subr.mxu0 0.0
  %3738 = vmatpush1.msra.mxu0 0.0
  %3739 = vmatprep.subr.mxu0 0.0
  %3740 = vmatpush1.msra.mxu0 0.0
  %3741 = vmatprep.subr.mxu0 0.0
  %3742 = vmatpush1.msra.mxu0 0.0
  %3743 = vmatprep.subr.mxu0 0.0
  %3744 = vmatpush1.msra.mxu0 0.0
  %3745 = vmatprep.mubr.f32.mxu0 0.0
  %3746 = vmatmul.mubr.f32.gmra.mrb[0].mxu0 %v3679
  %v3747 = vpop.f32.mrb[0].mxu0
  %v3748 = vadd.f32 %v1960, %v3747
  %v3749 = vpop.f32.mrb[0].mxu0
  %3750 = vdwg.mxu0
  %3751 = vmatprep.subr.mxu0 0.0
  %3752 = vmatpush1.msra.mxu0 %v48
  %3753 = vmatprep.subr.mxu0 0.0
  %3754 = vmatpush1.msra.mxu0 %v49
  %3755 = vmatprep.subr.mxu0 0.0
  %3756 = vmatpush1.msra.mxu0 %v50
  %3757 = vmatprep.subr.mxu0 0.0
  %3758 = vmatpush1.msra.mxu0 %v51
  %3759 = vmatprep.subr.mxu0 0.0
  %3760 = vmatpush1.msra.mxu0 0.0
  %3761 = vmatprep.subr.mxu0 0.0
  %3762 = vmatpush1.msra.mxu0 0.0
  %3763 = vmatprep.subr.mxu0 0.0
  %3764 = vmatpush1.msra.mxu0 0.0
  %3765 = vmatprep.subr.mxu0 0.0
  %3766 = vmatpush1.msra.mxu0 0.0
  %3767 = vmatprep.subr.mxu0 0.0
  %3768 = vmatpush1.msra.mxu0 0.0
  %3769 = vmatprep.subr.mxu0 0.0
  %3770 = vmatpush1.msra.mxu0 0.0
  %3771 = vmatprep.subr.mxu0 0.0
  %3772 = vmatpush1.msra.mxu0 0.0
  %3773 = vmatprep.subr.mxu0 0.0
  %3774 = vmatpush1.msra.mxu0 0.0
  %3775 = vmatprep.subr.mxu0 0.0
  %3776 = vmatpush1.msra.mxu0 0.0
  %3777 = vmatprep.subr.mxu0 0.0
  %3778 = vmatpush1.msra.mxu0 0.0
  %3779 = vmatprep.subr.mxu0 0.0
  %3780 = vmatpush1.msra.mxu0 0.0
  %3781 = vmatprep.subr.mxu0 0.0
  %3782 = vmatpush1.msra.mxu0 0.0
  %3783 = vmatprep.subr.mxu0 0.0
  %3784 = vmatpush1.msra.mxu0 0.0
  %3785 = vmatprep.subr.mxu0 0.0
  %3786 = vmatpush1.msra.mxu0 0.0
  %3787 = vmatprep.subr.mxu0 0.0
  %3788 = vmatpush1.msra.mxu0 0.0
  %3789 = vmatprep.subr.mxu0 0.0
  %3790 = vmatpush1.msra.mxu0 0.0
  %3791 = vmatprep.subr.mxu0 0.0
  %3792 = vmatpush1.msra.mxu0 0.0
  %3793 = vmatprep.subr.mxu0 0.0
  %3794 = vmatpush1.msra.mxu0 0.0
  %3795 = vmatprep.subr.mxu0 0.0
  %3796 = vmatpush1.msra.mxu0 0.0
  %3797 = vmatprep.subr.mxu0 0.0
  %3798 = vmatpush1.msra.mxu0 0.0
  %3799 = vmatprep.subr.mxu0 0.0
  %3800 = vmatpush1.msra.mxu0 0.0
  %3801 = vmatprep.subr.mxu0 0.0
  %3802 = vmatpush1.msra.mxu0 0.0
  %3803 = vmatprep.subr.mxu0 0.0
  %3804 = vmatpush1.msra.mxu0 0.0
  %3805 = vmatprep.subr.mxu0 0.0
  %3806 = vmatpush1.msra.mxu0 0.0
  %3807 = vmatprep.subr.mxu0 0.0
  %3808 = vmatpush1.msra.mxu0 0.0
  %3809 = vmatprep.subr.mxu0 0.0
  %3810 = vmatpush1.msra.mxu0 0.0
  %3811 = vmatprep.subr.mxu0 0.0
  %3812 = vmatpush1.msra.mxu0 0.0
  %3813 = vmatprep.subr.mxu0 0.0
  %3814 = vmatpush1.msra.mxu0 0.0
  %3815 = vmatprep.mubr.f32.mxu0 0.0
  %3816 = vmatmul.mubr.f32.gmra.mrb[0].mxu0 %v3358
  %v3817 = vpop.f32.mrb[0].mxu0
  %v3818 = vadd.f32 0.0, %v3817
  %v3819 = vpop.f32.mrb[0].mxu0
  %3820 = vdwg.mxu0
  %v3821 = vadd.f32 %v3259, %v3818
  %v3822 = vmul.f32 %v3821, 0.5
  %v3823 = vtanh.pop %v3822
  %v3824 = vmul.f32 %v3823, 0.5
  %v3825 = vadd.f32 %v3824, 0.5
  %v3826 = vtanh.pop %v3821
  %v3827 = vmul.f32 %v3825, %v3348
  %3829 = vrot.lane.b32.xlu0 %v3826, 64
  %v3830 = vpop.permute.xlu0 %3829
  %v3832 = vmul.f32 %v3825, %v3830
  %3834 = vrot.lane.b32.xlu0 %v3832, 32
  %v3835 = vpop.permute.xlu0 %3834
  %v3837 = vadd.f32 %v3827, %v3835
  %v3838 = vtanh.pop %v3837
  %3840 = vrot.lane.b32.xlu0 %v3838, 64
  %v3841 = vpop.permute.xlu0 %3840
  %v3843 = vmul.f32 %v3825, %v3841
  %3845 = vrot.lane.b32.xlu0 %v3843, 32
  %v3846 = vpop.permute.xlu0 %3845
  %v3847 = vsel %vm1781, %v3846, 0
  %3849 = vmatprep.subr.mxu0 0.0
  %3850 = vmatpush1.msra.mxu0 %v53
  %3851 = vmatprep.subr.mxu0 0.0
  %3852 = vmatpush1.msra.mxu0 %v54
  %3853 = vmatprep.subr.mxu0 0.0
  %3854 = vmatpush1.msra.mxu0 %v55
  %3855 = vmatprep.subr.mxu0 0.0
  %3856 = vmatpush1.msra.mxu0 %v56
  %3857 = vmatprep.subr.mxu0 0.0
  %3858 = vmatpush1.msra.mxu0 0.0
  %3859 = vmatprep.subr.mxu0 0.0
  %3860 = vmatpush1.msra.mxu0 0.0
  %3861 = vmatprep.subr.mxu0 0.0
  %3862 = vmatpush1.msra.mxu0 0.0
  %3863 = vmatprep.subr.mxu0 0.0
  %3864 = vmatpush1.msra.mxu0 0.0
  %3865 = vmatprep.subr.mxu0 0.0
  %3866 = vmatpush1.msra.mxu0 0.0
  %3867 = vmatprep.subr.mxu0 0.0
  %3868 = vmatpush1.msra.mxu0 0.0
  %3869 = vmatprep.subr.mxu0 0.0
  %3870 = vmatpush1.msra.mxu0 0.0
  %3871 = vmatprep.subr.mxu0 0.0
  %3872 = vmatpush1.msra.mxu0 0.0
  %3873 = vmatprep.subr.mxu0 0.0
  %3874 = vmatpush1.msra.mxu0 0.0
  %3875 = vmatprep.subr.mxu0 0.0
  %3876 = vmatpush1.msra.mxu0 0.0
  %3877 = vmatprep.subr.mxu0 0.0
  %3878 = vmatpush1.msra.mxu0 0.0
  %3879 = vmatprep.subr.mxu0 0.0
  %3880 = vmatpush1.msra.mxu0 0.0
  %3881 = vmatprep.subr.mxu0 0.0
  %3882 = vmatpush1.msra.mxu0 0.0
  %3883 = vmatprep.subr.mxu0 0.0
  %3884 = vmatpush1.msra.mxu0 0.0
  %3885 = vmatprep.subr.mxu0 0.0
  %3886 = vmatpush1.msra.mxu0 0.0
  %3887 = vmatprep.subr.mxu0 0.0
  %3888 = vmatpush1.msra.mxu0 0.0
  %3889 = vmatprep.subr.mxu0 0.0
  %3890 = vmatpush1.msra.mxu0 0.0
  %3891 = vmatprep.subr.mxu0 0.0
  %3892 = vmatpush1.msra.mxu0 0.0
  %3893 = vmatprep.subr.mxu0 0.0
  %3894 = vmatpush1.msra.mxu0 0.0
  %3895 = vmatprep.subr.mxu0 0.0
  %3896 = vmatpush1.msra.mxu0 0.0
  %3897 = vmatprep.subr.mxu0 0.0
  %3898 = vmatpush1.msra.mxu0 0.0
  %3899 = vmatprep.subr.mxu0 0.0
  %3900 = vmatpush1.msra.mxu0 0.0
  %3901 = vmatprep.subr.mxu0 0.0
  %3902 = vmatpush1.msra.mxu0 0.0
  %3903 = vmatprep.subr.mxu0 0.0
  %3904 = vmatpush1.msra.mxu0 0.0
  %3905 = vmatprep.subr.mxu0 0.0
  %3906 = vmatpush1.msra.mxu0 0.0
  %3907 = vmatprep.subr.mxu0 0.0
  %3908 = vmatpush1.msra.mxu0 0.0
  %3909 = vmatprep.subr.mxu0 0.0
  %3910 = vmatpush1.msra.mxu0 0.0
  %3911 = vmatprep.subr.mxu0 0.0
  %3912 = vmatpush1.msra.mxu0 0.0
  %3913 = vmatprep.mubr.f32.mxu0 0.0
  %3914 = vmatmul.mubr.f32.gmra.mrb[0].mxu0 %v3847
  %v3915 = vpop.f32.mrb[0].mxu0
  %v3916 = vadd.f32 %v2371, %v3915
  %v3917 = vpop.f32.mrb[0].mxu0
  %3918 = vdwg.mxu0
  %v3920 = vsel %vm2451, %v3916, 0
  %3922 = vmatprep.subr.mxu0 0.0
  %3923 = vmatpush1.msra.mxu0 %v58
  %3924 = vmatprep.subr.mxu0 0.0
  %3925 = vmatpush1.msra.mxu0 %v59
  %3926 = vmatprep.subr.mxu0 0.0
  %3927 = vmatpush1.msra.mxu0 %v60
  %3928 = vmatprep.subr.mxu0 0.0
  %3929 = vmatpush1.msra.mxu0 %v61
  %3930 = vmatprep.subr.mxu0 0.0
  %3931 = vmatpush1.msra.mxu0 %v62
  %3932 = vmatprep.subr.mxu0 0.0
  %3933 = vmatpush1.msra.mxu0 %v63
  %3934 = vmatprep.subr.mxu0 0.0
  %3935 = vmatpush1.msra.mxu0 %v64
  %3936 = vmatprep.subr.mxu0 0.0
  %3937 = vmatpush1.msra.mxu0 %v65
  %3938 = vmatprep.subr.mxu0 0.0
  %3939 = vmatpush1.msra.mxu0 0.0
  %3940 = vmatprep.subr.mxu0 0.0
  %3941 = vmatpush1.msra.mxu0 0.0
  %3942 = vmatprep.subr.mxu0 0.0
  %3943 = vmatpush1.msra.mxu0 0.0
  %3944 = vmatprep.subr.mxu0 0.0
  %3945 = vmatpush1.msra.mxu0 0.0
  %3946 = vmatprep.subr.mxu0 0.0
  %3947 = vmatpush1.msra.mxu0 0.0
  %3948 = vmatprep.subr.mxu0 0.0
  %3949 = vmatpush1.msra.mxu0 0.0
  %3950 = vmatprep.subr.mxu0 0.0
  %3951 = vmatpush1.msra.mxu0 0.0
  %3952 = vmatprep.subr.mxu0 0.0
  %3953 = vmatpush1.msra.mxu0 0.0
  %3954 = vmatprep.subr.mxu0 0.0
  %3955 = vmatpush1.msra.mxu0 0.0
  %3956 = vmatprep.subr.mxu0 0.0
  %3957 = vmatpush1.msra.mxu0 0.0
  %3958 = vmatprep.subr.mxu0 0.0
  %3959 = vmatpush1.msra.mxu0 0.0
  %3960 = vmatprep.subr.mxu0 0.0
  %3961 = vmatpush1.msra.mxu0 0.0
  %3962 = vmatprep.subr.mxu0 0.0
  %3963 = vmatpush1.msra.mxu0 0.0
  %3964 = vmatprep.subr.mxu0 0.0
  %3965 = vmatpush1.msra.mxu0 0.0
  %3966 = vmatprep.subr.mxu0 0.0
  %3967 = vmatpush1.msra.mxu0 0.0
  %3968 = vmatprep.subr.mxu0 0.0
  %3969 = vmatpush1.msra.mxu0 0.0
  %3970 = vmatprep.subr.mxu0 0.0
  %3971 = vmatpush1.msra.mxu0 0.0
  %3972 = vmatprep.subr.mxu0 0.0
  %3973 = vmatpush1.msra.mxu0 0.0
  %3974 = vmatprep.subr.mxu0 0.0
  %3975 = vmatpush1.msra.mxu0 0.0
  %3976 = vmatprep.subr.mxu0 0.0
  %3977 = vmatpush1.msra.mxu0 0.0
  %3978 = vmatprep.subr.mxu0 0.0
  %3979 = vmatpush1.msra.mxu0 0.0
  %3980 = vmatprep.subr.mxu0 0.0
  %3981 = vmatpush1.msra.mxu0 0.0
  %3982 = vmatprep.subr.mxu0 0.0
  %3983 = vmatpush1.msra.mxu0 0.0
  %3984 = vmatprep.subr.mxu0 0.0
  %3985 = vmatpush1.msra.mxu0 0.0
  %3986 = vmatprep.mubr.f32.mxu0 0.0
  %3987 = vmatmul.mubr.f32.gmra.mrb[0].mxu0 %v3920
  %v3988 = vpop.f32.mrb[0].mxu0
  %v3989 = vadd.f32 %v2450, %v3988
  %v3990 = vpop.f32.mrb[0].mxu0
  %3991 = vdwg.mxu0
  %vm3992 = vcmp.eq.s32.totalorder %v1780, 3
  %3994 = vset.pattern.permute.xlu0 0
  %3995 = vperm.xlu0 %3994, %v3989
  %v3996 = vpop.permute.xlu0 %3995
  %v3998 = vsel %vm3992, %v3996, %v3509
  %3999 = vmatprep.subr.mxu0 0.0
  %4000 = vmatpush1.msra.mxu0 %v34
  %4001 = vmatprep.subr.mxu0 0.0
  %4002 = vmatpush1.msra.mxu0 %v35
  %4003 = vmatprep.subr.mxu0 0.0
  %4004 = vmatpush1.msra.mxu0 %v36
  %4005 = vmatprep.subr.mxu0 0.0
  %4006 = vmatpush1.msra.mxu0 %v37
  %4007 = vmatprep.subr.mxu0 0.0
  %4008 = vmatpush1.msra.mxu0 0.0
  %4009 = vmatprep.subr.mxu0 0.0
  %4010 = vmatpush1.msra.mxu0 0.0
  %4011 = vmatprep.subr.mxu0 0.0
  %4012 = vmatpush1.msra.mxu0 0.0
  %4013 = vmatprep.subr.mxu0 0.0
  %4014 = vmatpush1.msra.mxu0 0.0
  %4015 = vmatprep.subr.mxu0 0.0
  %4016 = vmatpush1.msra.mxu0 0.0
  %4017 = vmatprep.subr.mxu0 0.0
  %4018 = vmatpush1.msra.mxu0 0.0
  %4019 = vmatprep.subr.mxu0 0.0
  %4020 = vmatpush1.msra.mxu0 0.0
  %4021 = vmatprep.subr.mxu0 0.0
  %4022 = vmatpush1.msra.mxu0 0.0
  %4023 = vmatprep.subr.mxu0 0.0
  %4024 = vmatpush1.msra.mxu0 0.0
  %4025 = vmatprep.subr.mxu0 0.0
  %4026 = vmatpush1.msra.mxu0 0.0
  %4027 = vmatprep.subr.mxu0 0.0
  %4028 = vmatpush1.msra.mxu0 0.0
  %4029 = vmatprep.subr.mxu0 0.0
  %4030 = vmatpush1.msra.mxu0 0.0
  %4031 = vmatprep.subr.mxu0 0.0
  %4032 = vmatpush1.msra.mxu0 0.0
  %4033 = vmatprep.subr.mxu0 0.0
  %4034 = vmatpush1.msra.mxu0 0.0
  %4035 = vmatprep.subr.mxu0 0.0
  %4036 = vmatpush1.msra.mxu0 0.0
  %4037 = vmatprep.subr.mxu0 0.0
  %4038 = vmatpush1.msra.mxu0 0.0
  %4039 = vmatprep.subr.mxu0 0.0
  %4040 = vmatpush1.msra.mxu0 0.0
  %4041 = vmatprep.subr.mxu0 0.0
  %4042 = vmatpush1.msra.mxu0 0.0
  %4043 = vmatprep.subr.mxu0 0.0
  %4044 = vmatpush1.msra.mxu0 0.0
  %4045 = vmatprep.subr.mxu0 0.0
  %4046 = vmatpush1.msra.mxu0 0.0
  %4047 = vmatprep.subr.mxu0 0.0
  %4048 = vmatpush1.msra.mxu0 0.0
  %4049 = vmatprep.subr.mxu0 0.0
  %4050 = vmatpush1.msra.mxu0 0.0
  %4051 = vmatprep.subr.mxu0 0.0
  %4052 = vmatpush1.msra.mxu0 0.0
  %4053 = vmatprep.subr.mxu0 0.0
  %4054 = vmatpush1.msra.mxu0 0.0
  %4055 = vmatprep.subr.mxu0 0.0
  %4056 = vmatpush1.msra.mxu0 0.0
  %4057 = vmatprep.subr.mxu0 0.0
  %4058 = vmatpush1.msra.mxu0 0.0
  %4059 = vmatprep.subr.mxu0 0.0
  %4060 = vmatpush1.msra.mxu0 0.0
  %4061 = vmatprep.subr.mxu0 0.0
  %4062 = vmatpush1.msra.mxu0 0.0
  %4063 = vmatprep.mubr.f32.mxu0 0.0
  %4064 = vmatmul.mubr.f32.gmra.mrb[0].mxu0 %v3606
  %v4065 = vpop.f32.mrb[0].mxu0
  %v4066 = vadd.f32 0.0, %v4065
  %v4067 = vpop.f32.mrb[0].mxu0
  %4068 = vdwg.mxu0
  %v4069 = vadd.f32 %v1756, %v4066
  %v4070 = vmul.f32 %v4069, 0.5
  %v4071 = vtanh.pop %v4070
  %v4072 = vmul.f32 %v4071, 0.5
  %v4073 = vadd.f32 %v4072, 0.5
  %v4074 = vtanh.pop %v4069
  %v4075 = vmul.f32 %v4073, %v3596
  %4077 = vrot.lane.b32.xlu0 %v4074, 64
  %v4078 = vpop.permute.xlu0 %4077
  %v4080 = vmul.f32 %v4073, %v4078
  %4082 = vrot.lane.b32.xlu0 %v4080, 32
  %v4083 = vpop.permute.xlu0 %4082
  %v4085 = vadd.f32 %v4075, %v4083
  %v4086 = vtanh.pop %v4085
  %4088 = vrot.lane.b32.xlu0 %v4086, 64
  %v4089 = vpop.permute.xlu0 %4088
  %v4091 = vmul.f32 %v4073, %v4089
  %4093 = vrot.lane.b32.xlu0 %v4091, 32
  %v4094 = vpop.permute.xlu0 %4093
  %v4095 = vsel %vm1781, %v4094, 0
  %4097 = vmatprep.subr.mxu0 0.0
  %4098 = vmatpush1.msra.mxu0 %v39
  %4099 = vmatprep.subr.mxu0 0.0
  %4100 = vmatpush1.msra.mxu0 %v40
  %4101 = vmatprep.subr.mxu0 0.0
  %4102 = vmatpush1.msra.mxu0 %v41
  %4103 = vmatprep.subr.mxu0 0.0
  %4104 = vmatpush1.msra.mxu0 %v42
  %4105 = vmatprep.subr.mxu0 0.0
  %4106 = vmatpush1.msra.mxu0 0.0
  %4107 = vmatprep.subr.mxu0 0.0
  %4108 = vmatpush1.msra.mxu0 0.0
  %4109 = vmatprep.subr.mxu0 0.0
  %4110 = vmatpush1.msra.mxu0 0.0
  %4111 = vmatprep.subr.mxu0 0.0
  %4112 = vmatpush1.msra.mxu0 0.0
  %4113 = vmatprep.subr.mxu0 0.0
  %4114 = vmatpush1.msra.mxu0 0.0
  %4115 = vmatprep.subr.mxu0 0.0
  %4116 = vmatpush1.msra.mxu0 0.0
  %4117 = vmatprep.subr.mxu0 0.0
  %4118 = vmatpush1.msra.mxu0 0.0
  %4119 = vmatprep.subr.mxu0 0.0
  %4120 = vmatpush1.msra.mxu0 0.0
  %4121 = vmatprep.subr.mxu0 0.0
  %4122 = vmatpush1.msra.mxu0 0.0
  %4123 = vmatprep.subr.mxu0 0.0
  %4124 = vmatpush1.msra.mxu0 0.0
  %4125 = vmatprep.subr.mxu0 0.0
  %4126 = vmatpush1.msra.mxu0 0.0
  %4127 = vmatprep.subr.mxu0 0.0
  %4128 = vmatpush1.msra.mxu0 0.0
  %4129 = vmatprep.subr.mxu0 0.0
  %4130 = vmatpush1.msra.mxu0 0.0
  %4131 = vmatprep.subr.mxu0 0.0
  %4132 = vmatpush1.msra.mxu0 0.0
  %4133 = vmatprep.subr.mxu0 0.0
  %4134 = vmatpush1.msra.mxu0 0.0
  %4135 = vmatprep.subr.mxu0 0.0
  %4136 = vmatpush1.msra.mxu0 0.0
  %4137 = vmatprep.subr.mxu0 0.0
  %4138 = vmatpush1.msra.mxu0 0.0
  %4139 = vmatprep.subr.mxu0 0.0
  %4140 = vmatpush1.msra.mxu0 0.0
  %4141 = vmatprep.subr.mxu0 0.0
  %4142 = vmatpush1.msra.mxu0 0.0
  %4143 = vmatprep.subr.mxu0 0.0
  %4144 = vmatpush1.msra.mxu0 0.0
  %4145 = vmatprep.subr.mxu0 0.0
  %4146 = vmatpush1.msra.mxu0 0.0
  %4147 = vmatprep.subr.mxu0 0.0
  %4148 = vmatpush1.msra.mxu0 0.0
  %4149 = vmatprep.subr.mxu0 0.0
  %4150 = vmatpush1.msra.mxu0 0.0
  %4151 = vmatprep.subr.mxu0 0.0
  %4152 = vmatpush1.msra.mxu0 0.0
  %4153 = vmatprep.subr.mxu0 0.0
  %4154 = vmatpush1.msra.mxu0 0.0
  %4155 = vmatprep.subr.mxu0 0.0
  %4156 = vmatpush1.msra.mxu0 0.0
  %4157 = vmatprep.subr.mxu0 0.0
  %4158 = vmatpush1.msra.mxu0 0.0
  %4159 = vmatprep.subr.mxu0 0.0
  %4160 = vmatpush1.msra.mxu0 0.0
  %4161 = vmatprep.mubr.f32.mxu0 0.0
  %4162 = vmatmul.mubr.f32.gmra.mrb[0].mxu0 %v4095
  %v4163 = vpop.f32.mrb[0].mxu0
  %v4164 = vadd.f32 %v1881, %v4163
  %v4165 = vpop.f32.mrb[0].mxu0
  %4166 = vdwg.mxu0
  %v4168 = vsel %vm1781, %v4164, 0
  %4170 = vmatprep.subr.mxu0 0.0
  %4171 = vmatpush1.msra.mxu0 %v44
  %4172 = vmatprep.subr.mxu0 0.0
  %4173 = vmatpush1.msra.mxu0 %v45
  %4174 = vmatprep.subr.mxu0 0.0
  %4175 = vmatpush1.msra.mxu0 %v46
  %4176 = vmatprep.subr.mxu0 0.0
  %4177 = vmatpush1.msra.mxu0 %v47
  %4178 = vmatprep.subr.mxu0 0.0
  %4179 = vmatpush1.msra.mxu0 0.0
  %4180 = vmatprep.subr.mxu0 0.0
  %4181 = vmatpush1.msra.mxu0 0.0
  %4182 = vmatprep.subr.mxu0 0.0
  %4183 = vmatpush1.msra.mxu0 0.0
  %4184 = vmatprep.subr.mxu0 0.0
  %4185 = vmatpush1.msra.mxu0 0.0
  %4186 = vmatprep.subr.mxu0 0.0
  %4187 = vmatpush1.msra.mxu0 0.0
  %4188 = vmatprep.subr.mxu0 0.0
  %4189 = vmatpush1.msra.mxu0 0.0
  %4190 = vmatprep.subr.mxu0 0.0
  %4191 = vmatpush1.msra.mxu0 0.0
  %4192 = vmatprep.subr.mxu0 0.0
  %4193 = vmatpush1.msra.mxu0 0.0
  %4194 = vmatprep.subr.mxu0 0.0
  %4195 = vmatpush1.msra.mxu0 0.0
  %4196 = vmatprep.subr.mxu0 0.0
  %4197 = vmatpush1.msra.mxu0 0.0
  %4198 = vmatprep.subr.mxu0 0.0
  %4199 = vmatpush1.msra.mxu0 0.0
  %4200 = vmatprep.subr.mxu0 0.0
  %4201 = vmatpush1.msra.mxu0 0.0
  %4202 = vmatprep.subr.mxu0 0.0
  %4203 = vmatpush1.msra.mxu0 0.0
  %4204 = vmatprep.subr.mxu0 0.0
  %4205 = vmatpush1.msra.mxu0 0.0
  %4206 = vmatprep.subr.mxu0 0.0
  %4207 = vmatpush1.msra.mxu0 0.0
  %4208 = vmatprep.subr.mxu0 0.0
  %4209 = vmatpush1.msra.mxu0 0.0
  %4210 = vmatprep.subr.mxu0 0.0
  %4211 = vmatpush1.msra.mxu0 0.0
  %4212 = vmatprep.subr.mxu0 0.0
  %4213 = vmatpush1.msra.mxu0 0.0
  %4214 = vmatprep.subr.mxu0 0.0
  %4215 = vmatpush1.msra.mxu0 0.0
  %4216 = vmatprep.subr.mxu0 0.0
  %4217 = vmatpush1.msra.mxu0 0.0
  %4218 = vmatprep.subr.mxu0 0.0
  %4219 = vmatpush1.msra.mxu0 0.0
  %4220 = vmatprep.subr.mxu0 0.0
  %4221 = vmatpush1.msra.mxu0 0.0
  %4222 = vmatprep.subr.mxu0 0.0
  %4223 = vmatpush1.msra.mxu0 0.0
  %4224 = vmatprep.subr.mxu0 0.0
  %4225 = vmatpush1.msra.mxu0 0.0
  %4226 = vmatprep.subr.mxu0 0.0
  %4227 = vmatpush1.msra.mxu0 0.0
  %4228 = vmatprep.subr.mxu0 0.0
  %4229 = vmatpush1.msra.mxu0 0.0
  %4230 = vmatprep.subr.mxu0 0.0
  %4231 = vmatpush1.msra.mxu0 0.0
  %4232 = vmatprep.subr.mxu0 0.0
  %4233 = vmatpush1.msra.mxu0 0.0
  %4234 = vmatprep.mubr.f32.mxu0 0.0
  %4235 = vmatmul.mubr.f32.gmra.mrb[0].mxu0 %v4168
  %v4236 = vpop.f32.mrb[0].mxu0
  %v4237 = vadd.f32 %v1960, %v4236
  %v4238 = vpop.f32.mrb[0].mxu0
  %4239 = vdwg.mxu0
  %4240 = vmatprep.subr.mxu0 0.0
  %4241 = vmatpush1.msra.mxu0 %v48
  %4242 = vmatprep.subr.mxu0 0.0
  %4243 = vmatpush1.msra.mxu0 %v49
  %4244 = vmatprep.subr.mxu0 0.0
  %4245 = vmatpush1.msra.mxu0 %v50
  %4246 = vmatprep.subr.mxu0 0.0
  %4247 = vmatpush1.msra.mxu0 %v51
  %4248 = vmatprep.subr.mxu0 0.0
  %4249 = vmatpush1.msra.mxu0 0.0
  %4250 = vmatprep.subr.mxu0 0.0
  %4251 = vmatpush1.msra.mxu0 0.0
  %4252 = vmatprep.subr.mxu0 0.0
  %4253 = vmatpush1.msra.mxu0 0.0
  %4254 = vmatprep.subr.mxu0 0.0
  %4255 = vmatpush1.msra.mxu0 0.0
  %4256 = vmatprep.subr.mxu0 0.0
  %4257 = vmatpush1.msra.mxu0 0.0
  %4258 = vmatprep.subr.mxu0 0.0
  %4259 = vmatpush1.msra.mxu0 0.0
  %4260 = vmatprep.subr.mxu0 0.0
  %4261 = vmatpush1.msra.mxu0 0.0
  %4262 = vmatprep.subr.mxu0 0.0
  %4263 = vmatpush1.msra.mxu0 0.0
  %4264 = vmatprep.subr.mxu0 0.0
  %4265 = vmatpush1.msra.mxu0 0.0
  %4266 = vmatprep.subr.mxu0 0.0
  %4267 = vmatpush1.msra.mxu0 0.0
  %4268 = vmatprep.subr.mxu0 0.0
  %4269 = vmatpush1.msra.mxu0 0.0
  %4270 = vmatprep.subr.mxu0 0.0
  %4271 = vmatpush1.msra.mxu0 0.0
  %4272 = vmatprep.subr.mxu0 0.0
  %4273 = vmatpush1.msra.mxu0 0.0
  %4274 = vmatprep.subr.mxu0 0.0
  %4275 = vmatpush1.msra.mxu0 0.0
  %4276 = vmatprep.subr.mxu0 0.0
  %4277 = vmatpush1.msra.mxu0 0.0
  %4278 = vmatprep.subr.mxu0 0.0
  %4279 = vmatpush1.msra.mxu0 0.0
  %4280 = vmatprep.subr.mxu0 0.0
  %4281 = vmatpush1.msra.mxu0 0.0
  %4282 = vmatprep.subr.mxu0 0.0
  %4283 = vmatpush1.msra.mxu0 0.0
  %4284 = vmatprep.subr.mxu0 0.0
  %4285 = vmatpush1.msra.mxu0 0.0
  %4286 = vmatprep.subr.mxu0 0.0
  %4287 = vmatpush1.msra.mxu0 0.0
  %4288 = vmatprep.subr.mxu0 0.0
  %4289 = vmatpush1.msra.mxu0 0.0
  %4290 = vmatprep.subr.mxu0 0.0
  %4291 = vmatpush1.msra.mxu0 0.0
  %4292 = vmatprep.subr.mxu0 0.0
  %4293 = vmatpush1.msra.mxu0 0.0
  %4294 = vmatprep.subr.mxu0 0.0
  %4295 = vmatpush1.msra.mxu0 0.0
  %4296 = vmatprep.subr.mxu0 0.0
  %4297 = vmatpush1.msra.mxu0 0.0
  %4298 = vmatprep.subr.mxu0 0.0
  %4299 = vmatpush1.msra.mxu0 0.0
  %4300 = vmatprep.subr.mxu0 0.0
  %4301 = vmatpush1.msra.mxu0 0.0
  %4302 = vmatprep.subr.mxu0 0.0
  %4303 = vmatpush1.msra.mxu0 0.0
  %4304 = vmatprep.mubr.f32.mxu0 0.0
  %4305 = vmatmul.mubr.f32.gmra.mrb[0].mxu0 %v3847
  %v4306 = vpop.f32.mrb[0].mxu0
  %v4307 = vadd.f32 0.0, %v4306
  %v4308 = vpop.f32.mrb[0].mxu0
  %4309 = vdwg.mxu0
  %v4310 = vadd.f32 %v3748, %v4307
  %v4311 = vmul.f32 %v4310, 0.5
  %v4312 = vtanh.pop %v4311
  %v4313 = vmul.f32 %v4312, 0.5
  %v4314 = vadd.f32 %v4313, 0.5
  %v4315 = vtanh.pop %v4310
  %v4316 = vmul.f32 %v4314, %v3837
  %4318 = vrot.lane.b32.xlu0 %v4315, 64
  %v4319 = vpop.permute.xlu0 %4318
  %v4321 = vmul.f32 %v4314, %v4319
  %4323 = vrot.lane.b32.xlu0 %v4321, 32
  %v4324 = vpop.permute.xlu0 %4323
  %v4326 = vadd.f32 %v4316, %v4324
  %v4327 = vtanh.pop %v4326
  %4329 = vrot.lane.b32.xlu0 %v4327, 64
  %v4330 = vpop.permute.xlu0 %4329
  %v4332 = vmul.f32 %v4314, %v4330
  %4334 = vrot.lane.b32.xlu0 %v4332, 32
  %v4335 = vpop.permute.xlu0 %4334
  %v4336 = vsel %vm1781, %v4335, 0
  %4338 = vmatprep.subr.mxu0 0.0
  %4339 = vmatpush1.msra.mxu0 %v53
  %4340 = vmatprep.subr.mxu0 0.0
  %4341 = vmatpush1.msra.mxu0 %v54
  %4342 = vmatprep.subr.mxu0 0.0
  %4343 = vmatpush1.msra.mxu0 %v55
  %4344 = vmatprep.subr.mxu0 0.0
  %4345 = vmatpush1.msra.mxu0 %v56
  %4346 = vmatprep.subr.mxu0 0.0
  %4347 = vmatpush1.msra.mxu0 0.0
  %4348 = vmatprep.subr.mxu0 0.0
  %4349 = vmatpush1.msra.mxu0 0.0
  %4350 = vmatprep.subr.mxu0 0.0
  %4351 = vmatpush1.msra.mxu0 0.0
  %4352 = vmatprep.subr.mxu0 0.0
  %4353 = vmatpush1.msra.mxu0 0.0
  %4354 = vmatprep.subr.mxu0 0.0
  %4355 = vmatpush1.msra.mxu0 0.0
  %4356 = vmatprep.subr.mxu0 0.0
  %4357 = vmatpush1.msra.mxu0 0.0
  %4358 = vmatprep.subr.mxu0 0.0
  %4359 = vmatpush1.msra.mxu0 0.0
  %4360 = vmatprep.subr.mxu0 0.0
  %4361 = vmatpush1.msra.mxu0 0.0
  %4362 = vmatprep.subr.mxu0 0.0
  %4363 = vmatpush1.msra.mxu0 0.0
  %4364 = vmatprep.subr.mxu0 0.0
  %4365 = vmatpush1.msra.mxu0 0.0
  %4366 = vmatprep.subr.mxu0 0.0
  %4367 = vmatpush1.msra.mxu0 0.0
  %4368 = vmatprep.subr.mxu0 0.0
  %4369 = vmatpush1.msra.mxu0 0.0
  %4370 = vmatprep.subr.mxu0 0.0
  %4371 = vmatpush1.msra.mxu0 0.0
  %4372 = vmatprep.subr.mxu0 0.0
  %4373 = vmatpush1.msra.mxu0 0.0
  %4374 = vmatprep.subr.mxu0 0.0
  %4375 = vmatpush1.msra.mxu0 0.0
  %4376 = vmatprep.subr.mxu0 0.0
  %4377 = vmatpush1.msra.mxu0 0.0
  %4378 = vmatprep.subr.mxu0 0.0
  %4379 = vmatpush1.msra.mxu0 0.0
  %4380 = vmatprep.subr.mxu0 0.0
  %4381 = vmatpush1.msra.mxu0 0.0
  %4382 = vmatprep.subr.mxu0 0.0
  %4383 = vmatpush1.msra.mxu0 0.0
  %4384 = vmatprep.subr.mxu0 0.0
  %4385 = vmatpush1.msra.mxu0 0.0
  %4386 = vmatprep.subr.mxu0 0.0
  %4387 = vmatpush1.msra.mxu0 0.0
  %4388 = vmatprep.subr.mxu0 0.0
  %4389 = vmatpush1.msra.mxu0 0.0
  %4390 = vmatprep.subr.mxu0 0.0
  %4391 = vmatpush1.msra.mxu0 0.0
  %4392 = vmatprep.subr.mxu0 0.0
  %4393 = vmatpush1.msra.mxu0 0.0
  %4394 = vmatprep.subr.mxu0 0.0
  %4395 = vmatpush1.msra.mxu0 0.0
  %4396 = vmatprep.subr.mxu0 0.0
  %4397 = vmatpush1.msra.mxu0 0.0
  %4398 = vmatprep.subr.mxu0 0.0
  %4399 = vmatpush1.msra.mxu0 0.0
  %4400 = vmatprep.subr.mxu0 0.0
  %4401 = vmatpush1.msra.mxu0 0.0
  %4402 = vmatprep.mubr.f32.mxu0 0.0
  %4403 = vmatmul.mubr.f32.gmra.mrb[0].mxu0 %v4336
  %v4404 = vpop.f32.mrb[0].mxu0
  %v4405 = vadd.f32 %v2371, %v4404
  %v4406 = vpop.f32.mrb[0].mxu0
  %4407 = vdwg.mxu0
  %v4409 = vsel %vm2451, %v4405, 0
  %4411 = vmatprep.subr.mxu0 0.0
  %4412 = vmatpush1.msra.mxu0 %v58
  %4413 = vmatprep.subr.mxu0 0.0
  %4414 = vmatpush1.msra.mxu0 %v59
  %4415 = vmatprep.subr.mxu0 0.0
  %4416 = vmatpush1.msra.mxu0 %v60
  %4417 = vmatprep.subr.mxu0 0.0
  %4418 = vmatpush1.msra.mxu0 %v61
  %4419 = vmatprep.subr.mxu0 0.0
  %4420 = vmatpush1.msra.mxu0 %v62
  %4421 = vmatprep.subr.mxu0 0.0
  %4422 = vmatpush1.msra.mxu0 %v63
  %4423 = vmatprep.subr.mxu0 0.0
  %4424 = vmatpush1.msra.mxu0 %v64
  %4425 = vmatprep.subr.mxu0 0.0
  %4426 = vmatpush1.msra.mxu0 %v65
  %4427 = vmatprep.subr.mxu0 0.0
  %4428 = vmatpush1.msra.mxu0 0.0
  %4429 = vmatprep.subr.mxu0 0.0
  %4430 = vmatpush1.msra.mxu0 0.0
  %4431 = vmatprep.subr.mxu0 0.0
  %4432 = vmatpush1.msra.mxu0 0.0
  %4433 = vmatprep.subr.mxu0 0.0
  %4434 = vmatpush1.msra.mxu0 0.0
  %4435 = vmatprep.subr.mxu0 0.0
  %4436 = vmatpush1.msra.mxu0 0.0
  %4437 = vmatprep.subr.mxu0 0.0
  %4438 = vmatpush1.msra.mxu0 0.0
  %4439 = vmatprep.subr.mxu0 0.0
  %4440 = vmatpush1.msra.mxu0 0.0
  %4441 = vmatprep.subr.mxu0 0.0
  %4442 = vmatpush1.msra.mxu0 0.0
  %4443 = vmatprep.subr.mxu0 0.0
  %4444 = vmatpush1.msra.mxu0 0.0
  %4445 = vmatprep.subr.mxu0 0.0
  %4446 = vmatpush1.msra.mxu0 0.0
  %4447 = vmatprep.subr.mxu0 0.0
  %4448 = vmatpush1.msra.mxu0 0.0
  %4449 = vmatprep.subr.mxu0 0.0
  %4450 = vmatpush1.msra.mxu0 0.0
  %4451 = vmatprep.subr.mxu0 0.0
  %4452 = vmatpush1.msra.mxu0 0.0
  %4453 = vmatprep.subr.mxu0 0.0
  %4454 = vmatpush1.msra.mxu0 0.0
  %4455 = vmatprep.subr.mxu0 0.0
  %4456 = vmatpush1.msra.mxu0 0.0
  %4457 = vmatprep.subr.mxu0 0.0
  %4458 = vmatpush1.msra.mxu0 0.0
  %4459 = vmatprep.subr.mxu0 0.0
  %4460 = vmatpush1.msra.mxu0 0.0
  %4461 = vmatprep.subr.mxu0 0.0
  %4462 = vmatpush1.msra.mxu0 0.0
  %4463 = vmatprep.subr.mxu0 0.0
  %4464 = vmatpush1.msra.mxu0 0.0
  %4465 = vmatprep.subr.mxu0 0.0
  %4466 = vmatpush1.msra.mxu0 0.0
  %4467 = vmatprep.subr.mxu0 0.0
  %4468 = vmatpush1.msra.mxu0 0.0
  %4469 = vmatprep.subr.mxu0 0.0
  %4470 = vmatpush1.msra.mxu0 0.0
  %4471 = vmatprep.subr.mxu0 0.0
  %4472 = vmatpush1.msra.mxu0 0.0
  %4473 = vmatprep.subr.mxu0 0.0
  %4474 = vmatpush1.msra.mxu0 0.0
  %4475 = vmatprep.mubr.f32.mxu0 0.0
  %4476 = vmatmul.mubr.f32.gmra.mrb[0].mxu0 %v4409
  %v4477 = vpop.f32.mrb[0].mxu0
  %v4478 = vadd.f32 %v2450, %v4477
  %v4479 = vpop.f32.mrb[0].mxu0
  %4480 = vdwg.mxu0
  %vm4481 = vcmp.eq.s32.totalorder %v1780, 4
  %4483 = vset.pattern.permute.xlu0 0
  %4484 = vperm.xlu0 %4483, %v4478
  %v4485 = vpop.permute.xlu0 %4484
  %v4487 = vsel %vm4481, %v4485, %v3998
  %4488 = vmatprep.subr.mxu0 0.0
  %4489 = vmatpush1.msra.mxu0 %v34
  %4490 = vmatprep.subr.mxu0 0.0
  %4491 = vmatpush1.msra.mxu0 %v35
  %4492 = vmatprep.subr.mxu0 0.0
  %4493 = vmatpush1.msra.mxu0 %v36
  %4494 = vmatprep.subr.mxu0 0.0
  %4495 = vmatpush1.msra.mxu0 %v37
  %4496 = vmatprep.subr.mxu0 0.0
  %4497 = vmatpush1.msra.mxu0 0.0
  %4498 = vmatprep.subr.mxu0 0.0
  %4499 = vmatpush1.msra.mxu0 0.0
  %4500 = vmatprep.subr.mxu0 0.0
  %4501 = vmatpush1.msra.mxu0 0.0
  %4502 = vmatprep.subr.mxu0 0.0
  %4503 = vmatpush1.msra.mxu0 0.0
  %4504 = vmatprep.subr.mxu0 0.0
  %4505 = vmatpush1.msra.mxu0 0.0
  %4506 = vmatprep.subr.mxu0 0.0
  %4507 = vmatpush1.msra.mxu0 0.0
  %4508 = vmatprep.subr.mxu0 0.0
  %4509 = vmatpush1.msra.mxu0 0.0
  %4510 = vmatprep.subr.mxu0 0.0
  %4511 = vmatpush1.msra.mxu0 0.0
  %4512 = vmatprep.subr.mxu0 0.0
  %4513 = vmatpush1.msra.mxu0 0.0
  %4514 = vmatprep.subr.mxu0 0.0
  %4515 = vmatpush1.msra.mxu0 0.0
  %4516 = vmatprep.subr.mxu0 0.0
  %4517 = vmatpush1.msra.mxu0 0.0
  %4518 = vmatprep.subr.mxu0 0.0
  %4519 = vmatpush1.msra.mxu0 0.0
  %4520 = vmatprep.subr.mxu0 0.0
  %4521 = vmatpush1.msra.mxu0 0.0
  %4522 = vmatprep.subr.mxu0 0.0
  %4523 = vmatpush1.msra.mxu0 0.0
  %4524 = vmatprep.subr.mxu0 0.0
  %4525 = vmatpush1.msra.mxu0 0.0
  %4526 = vmatprep.subr.mxu0 0.0
  %4527 = vmatpush1.msra.mxu0 0.0
  %4528 = vmatprep.subr.mxu0 0.0
  %4529 = vmatpush1.msra.mxu0 0.0
  %4530 = vmatprep.subr.mxu0 0.0
  %4531 = vmatpush1.msra.mxu0 0.0
  %4532 = vmatprep.subr.mxu0 0.0
  %4533 = vmatpush1.msra.mxu0 0.0
  %4534 = vmatprep.subr.mxu0 0.0
  %4535 = vmatpush1.msra.mxu0 0.0
  %4536 = vmatprep.subr.mxu0 0.0
  %4537 = vmatpush1.msra.mxu0 0.0
  %4538 = vmatprep.subr.mxu0 0.0
  %4539 = vmatpush1.msra.mxu0 0.0
  %4540 = vmatprep.subr.mxu0 0.0
  %4541 = vmatpush1.msra.mxu0 0.0
  %4542 = vmatprep.subr.mxu0 0.0
  %4543 = vmatpush1.msra.mxu0 0.0
  %4544 = vmatprep.subr.mxu0 0.0
  %4545 = vmatpush1.msra.mxu0 0.0
  %4546 = vmatprep.subr.mxu0 0.0
  %4547 = vmatpush1.msra.mxu0 0.0
  %4548 = vmatprep.subr.mxu0 0.0
  %4549 = vmatpush1.msra.mxu0 0.0
  %4550 = vmatprep.subr.mxu0 0.0
  %4551 = vmatpush1.msra.mxu0 0.0
  %4552 = vmatprep.mubr.f32.mxu0 0.0
  %4553 = vmatmul.mubr.f32.gmra.mrb[0].mxu0 %v4095
  %v4554 = vpop.f32.mrb[0].mxu0
  %v4555 = vadd.f32 0.0, %v4554
  %v4556 = vpop.f32.mrb[0].mxu0
  %4557 = vdwg.mxu0
  %v4558 = vadd.f32 %v1761, %v4555
  %v4559 = vmul.f32 %v4558, 0.5
  %v4560 = vtanh.pop %v4559
  %v4561 = vmul.f32 %v4560, 0.5
  %v4562 = vadd.f32 %v4561, 0.5
  %v4563 = vtanh.pop %v4558
  %v4564 = vmul.f32 %v4562, %v4085
  %4566 = vrot.lane.b32.xlu0 %v4563, 64
  %v4567 = vpop.permute.xlu0 %4566
  %v4569 = vmul.f32 %v4562, %v4567
  %4571 = vrot.lane.b32.xlu0 %v4569, 32
  %v4572 = vpop.permute.xlu0 %4571
  %v4574 = vadd.f32 %v4564, %v4572
  %v4575 = vtanh.pop %v4574
  %4577 = vrot.lane.b32.xlu0 %v4575, 64
  %v4578 = vpop.permute.xlu0 %4577
  %v4580 = vmul.f32 %v4562, %v4578
  %4582 = vrot.lane.b32.xlu0 %v4580, 32
  %v4583 = vpop.permute.xlu0 %4582
  %v4584 = vsel %vm1781, %v4583, 0
  %4586 = vmatprep.subr.mxu0 0.0
  %4587 = vmatpush1.msra.mxu0 %v39
  %4588 = vmatprep.subr.mxu0 0.0
  %4589 = vmatpush1.msra.mxu0 %v40
  %4590 = vmatprep.subr.mxu0 0.0
  %4591 = vmatpush1.msra.mxu0 %v41
  %4592 = vmatprep.subr.mxu0 0.0
  %4593 = vmatpush1.msra.mxu0 %v42
  %4594 = vmatprep.subr.mxu0 0.0
  %4595 = vmatpush1.msra.mxu0 0.0
  %4596 = vmatprep.subr.mxu0 0.0
  %4597 = vmatpush1.msra.mxu0 0.0
  %4598 = vmatprep.subr.mxu0 0.0
  %4599 = vmatpush1.msra.mxu0 0.0
  %4600 = vmatprep.subr.mxu0 0.0
  %4601 = vmatpush1.msra.mxu0 0.0
  %4602 = vmatprep.subr.mxu0 0.0
  %4603 = vmatpush1.msra.mxu0 0.0
  %4604 = vmatprep.subr.mxu0 0.0
  %4605 = vmatpush1.msra.mxu0 0.0
  %4606 = vmatprep.subr.mxu0 0.0
  %4607 = vmatpush1.msra.mxu0 0.0
  %4608 = vmatprep.subr.mxu0 0.0
  %4609 = vmatpush1.msra.mxu0 0.0
  %4610 = vmatprep.subr.mxu0 0.0
  %4611 = vmatpush1.msra.mxu0 0.0
  %4612 = vmatprep.subr.mxu0 0.0
  %4613 = vmatpush1.msra.mxu0 0.0
  %4614 = vmatprep.subr.mxu0 0.0
  %4615 = vmatpush1.msra.mxu0 0.0
  %4616 = vmatprep.subr.mxu0 0.0
  %4617 = vmatpush1.msra.mxu0 0.0
  %4618 = vmatprep.subr.mxu0 0.0
  %4619 = vmatpush1.msra.mxu0 0.0
  %4620 = vmatprep.subr.mxu0 0.0
  %4621 = vmatpush1.msra.mxu0 0.0
  %4622 = vmatprep.subr.mxu0 0.0
  %4623 = vmatpush1.msra.mxu0 0.0
  %4624 = vmatprep.subr.mxu0 0.0
  %4625 = vmatpush1.msra.mxu0 0.0
  %4626 = vmatprep.subr.mxu0 0.0
  %4627 = vmatpush1.msra.mxu0 0.0
  %4628 = vmatprep.subr.mxu0 0.0
  %4629 = vmatpush1.msra.mxu0 0.0
  %4630 = vmatprep.subr.mxu0 0.0
  %4631 = vmatpush1.msra.mxu0 0.0
  %4632 = vmatprep.subr.mxu0 0.0
  %4633 = vmatpush1.msra.mxu0 0.0
  %4634 = vmatprep.subr.mxu0 0.0
  %4635 = vmatpush1.msra.mxu0 0.0
  %4636 = vmatprep.subr.mxu0 0.0
  %4637 = vmatpush1.msra.mxu0 0.0
  %4638 = vmatprep.subr.mxu0 0.0
  %4639 = vmatpush1.msra.mxu0 0.0
  %4640 = vmatprep.subr.mxu0 0.0
  %4641 = vmatpush1.msra.mxu0 0.0
  %4642 = vmatprep.subr.mxu0 0.0
  %4643 = vmatpush1.msra.mxu0 0.0
  %4644 = vmatprep.subr.mxu0 0.0
  %4645 = vmatpush1.msra.mxu0 0.0
  %4646 = vmatprep.subr.mxu0 0.0
  %4647 = vmatpush1.msra.mxu0 0.0
  %4648 = vmatprep.subr.mxu0 0.0
  %4649 = vmatpush1.msra.mxu0 0.0
  %4650 = vmatprep.mubr.f32.mxu0 0.0
  %4651 = vmatmul.mubr.f32.gmra.mrb[0].mxu0 %v4584
  %v4652 = vpop.f32.mrb[0].mxu0
  %v4653 = vadd.f32 %v1881, %v4652
  %v4654 = vpop.f32.mrb[0].mxu0
  %4655 = vdwg.mxu0
  %v4657 = vsel %vm1781, %v4653, 0
  %4659 = vmatprep.subr.mxu0 0.0
  %4660 = vmatpush1.msra.mxu0 %v44
  %4661 = vmatprep.subr.mxu0 0.0
  %4662 = vmatpush1.msra.mxu0 %v45
  %4663 = vmatprep.subr.mxu0 0.0
  %4664 = vmatpush1.msra.mxu0 %v46
  %4665 = vmatprep.subr.mxu0 0.0
  %4666 = vmatpush1.msra.mxu0 %v47
  %4667 = vmatprep.subr.mxu0 0.0
  %4668 = vmatpush1.msra.mxu0 0.0
  %4669 = vmatprep.subr.mxu0 0.0
  %4670 = vmatpush1.msra.mxu0 0.0
  %4671 = vmatprep.subr.mxu0 0.0
  %4672 = vmatpush1.msra.mxu0 0.0
  %4673 = vmatprep.subr.mxu0 0.0
  %4674 = vmatpush1.msra.mxu0 0.0
  %4675 = vmatprep.subr.mxu0 0.0
  %4676 = vmatpush1.msra.mxu0 0.0
  %4677 = vmatprep.subr.mxu0 0.0
  %4678 = vmatpush1.msra.mxu0 0.0
  %4679 = vmatprep.subr.mxu0 0.0
  %4680 = vmatpush1.msra.mxu0 0.0
  %4681 = vmatprep.subr.mxu0 0.0
  %4682 = vmatpush1.msra.mxu0 0.0
  %4683 = vmatprep.subr.mxu0 0.0
  %4684 = vmatpush1.msra.mxu0 0.0
  %4685 = vmatprep.subr.mxu0 0.0
  %4686 = vmatpush1.msra.mxu0 0.0
  %4687 = vmatprep.subr.mxu0 0.0
  %4688 = vmatpush1.msra.mxu0 0.0
  %4689 = vmatprep.subr.mxu0 0.0
  %4690 = vmatpush1.msra.mxu0 0.0
  %4691 = vmatprep.subr.mxu0 0.0
  %4692 = vmatpush1.msra.mxu0 0.0
  %4693 = vmatprep.subr.mxu0 0.0
  %4694 = vmatpush1.msra.mxu0 0.0
  %4695 = vmatprep.subr.mxu0 0.0
  %4696 = vmatpush1.msra.mxu0 0.0
  %4697 = vmatprep.subr.mxu0 0.0
  %4698 = vmatpush1.msra.mxu0 0.0
  %4699 = vmatprep.subr.mxu0 0.0
  %4700 = vmatpush1.msra.mxu0 0.0
  %4701 = vmatprep.subr.mxu0 0.0
  %4702 = vmatpush1.msra.mxu0 0.0
  %4703 = vmatprep.subr.mxu0 0.0
  %4704 = vmatpush1.msra.mxu0 0.0
  %4705 = vmatprep.subr.mxu0 0.0
  %4706 = vmatpush1.msra.mxu0 0.0
  %4707 = vmatprep.subr.mxu0 0.0
  %4708 = vmatpush1.msra.mxu0 0.0
  %4709 = vmatprep.subr.mxu0 0.0
  %4710 = vmatpush1.msra.mxu0 0.0
  %4711 = vmatprep.subr.mxu0 0.0
  %4712 = vmatpush1.msra.mxu0 0.0
  %4713 = vmatprep.subr.mxu0 0.0
  %4714 = vmatpush1.msra.mxu0 0.0
  %4715 = vmatprep.subr.mxu0 0.0
  %4716 = vmatpush1.msra.mxu0 0.0
  %4717 = vmatprep.subr.mxu0 0.0
  %4718 = vmatpush1.msra.mxu0 0.0
  %4719 = vmatprep.subr.mxu0 0.0
  %4720 = vmatpush1.msra.mxu0 0.0
  %4721 = vmatprep.subr.mxu0 0.0
  %4722 = vmatpush1.msra.mxu0 0.0
  %4723 = vmatprep.mubr.f32.mxu0 0.0
  %4724 = vmatmul.mubr.f32.gmra.mrb[0].mxu0 %v4657
  %v4725 = vpop.f32.mrb[0].mxu0
  %v4726 = vadd.f32 %v1960, %v4725
  %v4727 = vpop.f32.mrb[0].mxu0
  %4728 = vdwg.mxu0
  %4729 = vmatprep.subr.mxu0 0.0
  %4730 = vmatpush1.msra.mxu0 %v48
  %4731 = vmatprep.subr.mxu0 0.0
  %4732 = vmatpush1.msra.mxu0 %v49
  %4733 = vmatprep.subr.mxu0 0.0
  %4734 = vmatpush1.msra.mxu0 %v50
  %4735 = vmatprep.subr.mxu0 0.0
  %4736 = vmatpush1.msra.mxu0 %v51
  %4737 = vmatprep.subr.mxu0 0.0
  %4738 = vmatpush1.msra.mxu0 0.0
  %4739 = vmatprep.subr.mxu0 0.0
  %4740 = vmatpush1.msra.mxu0 0.0
  %4741 = vmatprep.subr.mxu0 0.0
  %4742 = vmatpush1.msra.mxu0 0.0
  %4743 = vmatprep.subr.mxu0 0.0
  %4744 = vmatpush1.msra.mxu0 0.0
  %4745 = vmatprep.subr.mxu0 0.0
  %4746 = vmatpush1.msra.mxu0 0.0
  %4747 = vmatprep.subr.mxu0 0.0
  %4748 = vmatpush1.msra.mxu0 0.0
  %4749 = vmatprep.subr.mxu0 0.0
  %4750 = vmatpush1.msra.mxu0 0.0
  %4751 = vmatprep.subr.mxu0 0.0
  %4752 = vmatpush1.msra.mxu0 0.0
  %4753 = vmatprep.subr.mxu0 0.0
  %4754 = vmatpush1.msra.mxu0 0.0
  %4755 = vmatprep.subr.mxu0 0.0
  %4756 = vmatpush1.msra.mxu0 0.0
  %4757 = vmatprep.subr.mxu0 0.0
  %4758 = vmatpush1.msra.mxu0 0.0
  %4759 = vmatprep.subr.mxu0 0.0
  %4760 = vmatpush1.msra.mxu0 0.0
  %4761 = vmatprep.subr.mxu0 0.0
  %4762 = vmatpush1.msra.mxu0 0.0
  %4763 = vmatprep.subr.mxu0 0.0
  %4764 = vmatpush1.msra.mxu0 0.0
  %4765 = vmatprep.subr.mxu0 0.0
  %4766 = vmatpush1.msra.mxu0 0.0
  %4767 = vmatprep.subr.mxu0 0.0
  %4768 = vmatpush1.msra.mxu0 0.0
  %4769 = vmatprep.subr.mxu0 0.0
  %4770 = vmatpush1.msra.mxu0 0.0
  %4771 = vmatprep.subr.mxu0 0.0
  %4772 = vmatpush1.msra.mxu0 0.0
  %4773 = vmatprep.subr.mxu0 0.0
  %4774 = vmatpush1.msra.mxu0 0.0
  %4775 = vmatprep.subr.mxu0 0.0
  %4776 = vmatpush1.msra.mxu0 0.0
  %4777 = vmatprep.subr.mxu0 0.0
  %4778 = vmatpush1.msra.mxu0 0.0
  %4779 = vmatprep.subr.mxu0 0.0
  %4780 = vmatpush1.msra.mxu0 0.0
  %4781 = vmatprep.subr.mxu0 0.0
  %4782 = vmatpush1.msra.mxu0 0.0
  %4783 = vmatprep.subr.mxu0 0.0
  %4784 = vmatpush1.msra.mxu0 0.0
  %4785 = vmatprep.subr.mxu0 0.0
  %4786 = vmatpush1.msra.mxu0 0.0
  %4787 = vmatprep.subr.mxu0 0.0
  %4788 = vmatpush1.msra.mxu0 0.0
  %4789 = vmatprep.subr.mxu0 0.0
  %4790 = vmatpush1.msra.mxu0 0.0
  %4791 = vmatprep.subr.mxu0 0.0
  %4792 = vmatpush1.msra.mxu0 0.0
  %4793 = vmatprep.mubr.f32.mxu0 0.0
  %4794 = vmatmul.mubr.f32.gmra.mrb[0].mxu0 %v4336
  %v4795 = vpop.f32.mrb[0].mxu0
  %v4796 = vadd.f32 0.0, %v4795
  %v4797 = vpop.f32.mrb[0].mxu0
  %4798 = vdwg.mxu0
  %v4799 = vadd.f32 %v4237, %v4796
  %v4800 = vmul.f32 %v4799, 0.5
  %v4801 = vtanh.pop %v4800
  %v4802 = vmul.f32 %v4801, 0.5
  %v4803 = vadd.f32 %v4802, 0.5
  %v4804 = vtanh.pop %v4799
  %v4805 = vmul.f32 %v4803, %v4326
  %4807 = vrot.lane.b32.xlu0 %v4804, 64
  %v4808 = vpop.permute.xlu0 %4807
  %v4810 = vmul.f32 %v4803, %v4808
  %4812 = vrot.lane.b32.xlu0 %v4810, 32
  %v4813 = vpop.permute.xlu0 %4812
  %v4815 = vadd.f32 %v4805, %v4813
  %v4816 = vtanh.pop %v4815
  %4818 = vrot.lane.b32.xlu0 %v4816, 64
  %v4819 = vpop.permute.xlu0 %4818
  %v4821 = vmul.f32 %v4803, %v4819
  %4823 = vrot.lane.b32.xlu0 %v4821, 32
  %v4824 = vpop.permute.xlu0 %4823
  %v4825 = vsel %vm1781, %v4824, 0
  %4827 = vmatprep.subr.mxu0 0.0
  %4828 = vmatpush1.msra.mxu0 %v53
  %4829 = vmatprep.subr.mxu0 0.0
  %4830 = vmatpush1.msra.mxu0 %v54
  %4831 = vmatprep.subr.mxu0 0.0
  %4832 = vmatpush1.msra.mxu0 %v55
  %4833 = vmatprep.subr.mxu0 0.0
  %4834 = vmatpush1.msra.mxu0 %v56
  %4835 = vmatprep.subr.mxu0 0.0
  %4836 = vmatpush1.msra.mxu0 0.0
  %4837 = vmatprep.subr.mxu0 0.0
  %4838 = vmatpush1.msra.mxu0 0.0
  %4839 = vmatprep.subr.mxu0 0.0
  %4840 = vmatpush1.msra.mxu0 0.0
  %4841 = vmatprep.subr.mxu0 0.0
  %4842 = vmatpush1.msra.mxu0 0.0
  %4843 = vmatprep.subr.mxu0 0.0
  %4844 = vmatpush1.msra.mxu0 0.0
  %4845 = vmatprep.subr.mxu0 0.0
  %4846 = vmatpush1.msra.mxu0 0.0
  %4847 = vmatprep.subr.mxu0 0.0
  %4848 = vmatpush1.msra.mxu0 0.0
  %4849 = vmatprep.subr.mxu0 0.0
  %4850 = vmatpush1.msra.mxu0 0.0
  %4851 = vmatprep.subr.mxu0 0.0
  %4852 = vmatpush1.msra.mxu0 0.0
  %4853 = vmatprep.subr.mxu0 0.0
  %4854 = vmatpush1.msra.mxu0 0.0
  %4855 = vmatprep.subr.mxu0 0.0
  %4856 = vmatpush1.msra.mxu0 0.0
  %4857 = vmatprep.subr.mxu0 0.0
  %4858 = vmatpush1.msra.mxu0 0.0
  %4859 = vmatprep.subr.mxu0 0.0
  %4860 = vmatpush1.msra.mxu0 0.0
  %4861 = vmatprep.subr.mxu0 0.0
  %4862 = vmatpush1.msra.mxu0 0.0
  %4863 = vmatprep.subr.mxu0 0.0
  %4864 = vmatpush1.msra.mxu0 0.0
  %4865 = vmatprep.subr.mxu0 0.0
  %4866 = vmatpush1.msra.mxu0 0.0
  %4867 = vmatprep.subr.mxu0 0.0
  %4868 = vmatpush1.msra.mxu0 0.0
  %4869 = vmatprep.subr.mxu0 0.0
  %4870 = vmatpush1.msra.mxu0 0.0
  %4871 = vmatprep.subr.mxu0 0.0
  %4872 = vmatpush1.msra.mxu0 0.0
  %4873 = vmatprep.subr.mxu0 0.0
  %4874 = vmatpush1.msra.mxu0 0.0
  %4875 = vmatprep.subr.mxu0 0.0
  %4876 = vmatpush1.msra.mxu0 0.0
  %4877 = vmatprep.subr.mxu0 0.0
  %4878 = vmatpush1.msra.mxu0 0.0
  %4879 = vmatprep.subr.mxu0 0.0
  %4880 = vmatpush1.msra.mxu0 0.0
  %4881 = vmatprep.subr.mxu0 0.0
  %4882 = vmatpush1.msra.mxu0 0.0
  %4883 = vmatprep.subr.mxu0 0.0
  %4884 = vmatpush1.msra.mxu0 0.0
  %4885 = vmatprep.subr.mxu0 0.0
  %4886 = vmatpush1.msra.mxu0 0.0
  %4887 = vmatprep.subr.mxu0 0.0
  %4888 = vmatpush1.msra.mxu0 0.0
  %4889 = vmatprep.subr.mxu0 0.0
  %4890 = vmatpush1.msra.mxu0 0.0
  %4891 = vmatprep.mubr.f32.mxu0 0.0
  %4892 = vmatmul.mubr.f32.gmra.mrb[0].mxu0 %v4825
  %v4893 = vpop.f32.mrb[0].mxu0
  %v4894 = vadd.f32 %v2371, %v4893
  %v4895 = vpop.f32.mrb[0].mxu0
  %4896 = vdwg.mxu0
  %v4898 = vsel %vm2451, %v4894, 0
  %4900 = vmatprep.subr.mxu0 0.0
  %4901 = vmatpush1.msra.mxu0 %v58
  %4902 = vmatprep.subr.mxu0 0.0
  %4903 = vmatpush1.msra.mxu0 %v59
  %4904 = vmatprep.subr.mxu0 0.0
  %4905 = vmatpush1.msra.mxu0 %v60
  %4906 = vmatprep.subr.mxu0 0.0
  %4907 = vmatpush1.msra.mxu0 %v61
  %4908 = vmatprep.subr.mxu0 0.0
  %4909 = vmatpush1.msra.mxu0 %v62
  %4910 = vmatprep.subr.mxu0 0.0
  %4911 = vmatpush1.msra.mxu0 %v63
  %4912 = vmatprep.subr.mxu0 0.0
  %4913 = vmatpush1.msra.mxu0 %v64
  %4914 = vmatprep.subr.mxu0 0.0
  %4915 = vmatpush1.msra.mxu0 %v65
  %4916 = vmatprep.subr.mxu0 0.0
  %4917 = vmatpush1.msra.mxu0 0.0
  %4918 = vmatprep.subr.mxu0 0.0
  %4919 = vmatpush1.msra.mxu0 0.0
  %4920 = vmatprep.subr.mxu0 0.0
  %4921 = vmatpush1.msra.mxu0 0.0
  %4922 = vmatprep.subr.mxu0 0.0
  %4923 = vmatpush1.msra.mxu0 0.0
  %4924 = vmatprep.subr.mxu0 0.0
  %4925 = vmatpush1.msra.mxu0 0.0
  %4926 = vmatprep.subr.mxu0 0.0
  %4927 = vmatpush1.msra.mxu0 0.0
  %4928 = vmatprep.subr.mxu0 0.0
  %4929 = vmatpush1.msra.mxu0 0.0
  %4930 = vmatprep.subr.mxu0 0.0
  %4931 = vmatpush1.msra.mxu0 0.0
  %4932 = vmatprep.subr.mxu0 0.0
  %4933 = vmatpush1.msra.mxu0 0.0
  %4934 = vmatprep.subr.mxu0 0.0
  %4935 = vmatpush1.msra.mxu0 0.0
  %4936 = vmatprep.subr.mxu0 0.0
  %4937 = vmatpush1.msra.mxu0 0.0
  %4938 = vmatprep.subr.mxu0 0.0
  %4939 = vmatpush1.msra.mxu0 0.0
  %4940 = vmatprep.subr.mxu0 0.0
  %4941 = vmatpush1.msra.mxu0 0.0
  %4942 = vmatprep.subr.mxu0 0.0
  %4943 = vmatpush1.msra.mxu0 0.0
  %4944 = vmatprep.subr.mxu0 0.0
  %4945 = vmatpush1.msra.mxu0 0.0
  %4946 = vmatprep.subr.mxu0 0.0
  %4947 = vmatpush1.msra.mxu0 0.0
  %4948 = vmatprep.subr.mxu0 0.0
  %4949 = vmatpush1.msra.mxu0 0.0
  %4950 = vmatprep.subr.mxu0 0.0
  %4951 = vmatpush1.msra.mxu0 0.0
  %4952 = vmatprep.subr.mxu0 0.0
  %4953 = vmatpush1.msra.mxu0 0.0
  %4954 = vmatprep.subr.mxu0 0.0
  %4955 = vmatpush1.msra.mxu0 0.0
  %4956 = vmatprep.subr.mxu0 0.0
  %4957 = vmatpush1.msra.mxu0 0.0
  %4958 = vmatprep.subr.mxu0 0.0
  %4959 = vmatpush1.msra.mxu0 0.0
  %4960 = vmatprep.subr.mxu0 0.0
  %4961 = vmatpush1.msra.mxu0 0.0
  %4962 = vmatprep.subr.mxu0 0.0
  %4963 = vmatpush1.msra.mxu0 0.0
  %4964 = vmatprep.mubr.f32.mxu0 0.0
  %4965 = vmatmul.mubr.f32.gmra.mrb[0].mxu0 %v4898
  %v4966 = vpop.f32.mrb[0].mxu0
  %v4967 = vadd.f32 %v2450, %v4966
  %v4968 = vpop.f32.mrb[0].mxu0
  %4969 = vdwg.mxu0
  %vm4970 = vcmp.eq.s32.totalorder %v1780, 5
  %4972 = vset.pattern.permute.xlu0 0
  %4973 = vperm.xlu0 %4972, %v4967
  %v4974 = vpop.permute.xlu0 %4973
  %v4976 = vsel %vm4970, %v4974, %v4487
  %4977 = vmatprep.subr.mxu0 0.0
  %4978 = vmatpush1.msra.mxu0 %v34
  %4979 = vmatprep.subr.mxu0 0.0
  %4980 = vmatpush1.msra.mxu0 %v35
  %4981 = vmatprep.subr.mxu0 0.0
  %4982 = vmatpush1.msra.mxu0 %v36
  %4983 = vmatprep.subr.mxu0 0.0
  %4984 = vmatpush1.msra.mxu0 %v37
  %4985 = vmatprep.subr.mxu0 0.0
  %4986 = vmatpush1.msra.mxu0 0.0
  %4987 = vmatprep.subr.mxu0 0.0
  %4988 = vmatpush1.msra.mxu0 0.0
  %4989 = vmatprep.subr.mxu0 0.0
  %4990 = vmatpush1.msra.mxu0 0.0
  %4991 = vmatprep.subr.mxu0 0.0
  %4992 = vmatpush1.msra.mxu0 0.0
  %4993 = vmatprep.subr.mxu0 0.0
  %4994 = vmatpush1.msra.mxu0 0.0
  %4995 = vmatprep.subr.mxu0 0.0
  %4996 = vmatpush1.msra.mxu0 0.0
  %4997 = vmatprep.subr.mxu0 0.0
  %4998 = vmatpush1.msra.mxu0 0.0
  %4999 = vmatprep.subr.mxu0 0.0
  %5000 = vmatpush1.msra.mxu0 0.0
  %5001 = vmatprep.subr.mxu0 0.0
  %5002 = vmatpush1.msra.mxu0 0.0
  %5003 = vmatprep.subr.mxu0 0.0
  %5004 = vmatpush1.msra.mxu0 0.0
  %5005 = vmatprep.subr.mxu0 0.0
  %5006 = vmatpush1.msra.mxu0 0.0
  %5007 = vmatprep.subr.mxu0 0.0
  %5008 = vmatpush1.msra.mxu0 0.0
  %5009 = vmatprep.subr.mxu0 0.0
  %5010 = vmatpush1.msra.mxu0 0.0
  %5011 = vmatprep.subr.mxu0 0.0
  %5012 = vmatpush1.msra.mxu0 0.0
  %5013 = vmatprep.subr.mxu0 0.0
  %5014 = vmatpush1.msra.mxu0 0.0
  %5015 = vmatprep.subr.mxu0 0.0
  %5016 = vmatpush1.msra.mxu0 0.0
  %5017 = vmatprep.subr.mxu0 0.0
  %5018 = vmatpush1.msra.mxu0 0.0
  %5019 = vmatprep.subr.mxu0 0.0
  %5020 = vmatpush1.msra.mxu0 0.0
  %5021 = vmatprep.subr.mxu0 0.0
  %5022 = vmatpush1.msra.mxu0 0.0
  %5023 = vmatprep.subr.mxu0 0.0
  %5024 = vmatpush1.msra.mxu0 0.0
  %5025 = vmatprep.subr.mxu0 0.0
  %5026 = vmatpush1.msra.mxu0 0.0
  %5027 = vmatprep.subr.mxu0 0.0
  %5028 = vmatpush1.msra.mxu0 0.0
  %5029 = vmatprep.subr.mxu0 0.0
  %5030 = vmatpush1.msra.mxu0 0.0
  %5031 = vmatprep.subr.mxu0 0.0
  %5032 = vmatpush1.msra.mxu0 0.0
  %5033 = vmatprep.subr.mxu0 0.0
  %5034 = vmatpush1.msra.mxu0 0.0
  %5035 = vmatprep.subr.mxu0 0.0
  %5036 = vmatpush1.msra.mxu0 0.0
  %5037 = vmatprep.subr.mxu0 0.0
  %5038 = vmatpush1.msra.mxu0 0.0
  %5039 = vmatprep.subr.mxu0 0.0
  %5040 = vmatpush1.msra.mxu0 0.0
  %5041 = vmatprep.mubr.f32.mxu0 0.0
  %5042 = vmatmul.mubr.f32.gmra.mrb[0].mxu0 %v4584
  %v5043 = vpop.f32.mrb[0].mxu0
  %v5044 = vadd.f32 0.0, %v5043
  %v5045 = vpop.f32.mrb[0].mxu0
  %5046 = vdwg.mxu0
  %v5047 = vadd.f32 %v1766, %v5044
  %v5048 = vmul.f32 %v5047, 0.5
  %v5049 = vtanh.pop %v5048
  %v5050 = vmul.f32 %v5049, 0.5
  %v5051 = vadd.f32 %v5050, 0.5
  %v5052 = vtanh.pop %v5047
  %v5053 = vmul.f32 %v5051, %v4574
  %5055 = vrot.lane.b32.xlu0 %v5052, 64
  %v5056 = vpop.permute.xlu0 %5055
  %v5058 = vmul.f32 %v5051, %v5056
  %5060 = vrot.lane.b32.xlu0 %v5058, 32
  %v5061 = vpop.permute.xlu0 %5060
  %v5063 = vadd.f32 %v5053, %v5061
  %v5064 = vtanh.pop %v5063
  %5066 = vrot.lane.b32.xlu0 %v5064, 64
  %v5067 = vpop.permute.xlu0 %5066
  %v5069 = vmul.f32 %v5051, %v5067
  %5071 = vrot.lane.b32.xlu0 %v5069, 32
  %v5072 = vpop.permute.xlu0 %5071
  %v5073 = vsel %vm1781, %v5072, 0
  %5075 = vmatprep.subr.mxu0 0.0
  %5076 = vmatpush1.msra.mxu0 %v39
  %5077 = vmatprep.subr.mxu0 0.0
  %5078 = vmatpush1.msra.mxu0 %v40
  %5079 = vmatprep.subr.mxu0 0.0
  %5080 = vmatpush1.msra.mxu0 %v41
  %5081 = vmatprep.subr.mxu0 0.0
  %5082 = vmatpush1.msra.mxu0 %v42
  %5083 = vmatprep.subr.mxu0 0.0
  %5084 = vmatpush1.msra.mxu0 0.0
  %5085 = vmatprep.subr.mxu0 0.0
  %5086 = vmatpush1.msra.mxu0 0.0
  %5087 = vmatprep.subr.mxu0 0.0
  %5088 = vmatpush1.msra.mxu0 0.0
  %5089 = vmatprep.subr.mxu0 0.0
  %5090 = vmatpush1.msra.mxu0 0.0
  %5091 = vmatprep.subr.mxu0 0.0
  %5092 = vmatpush1.msra.mxu0 0.0
  %5093 = vmatprep.subr.mxu0 0.0
  %5094 = vmatpush1.msra.mxu0 0.0
  %5095 = vmatprep.subr.mxu0 0.0
  %5096 = vmatpush1.msra.mxu0 0.0
  %5097 = vmatprep.subr.mxu0 0.0
  %5098 = vmatpush1.msra.mxu0 0.0
  %5099 = vmatprep.subr.mxu0 0.0
  %5100 = vmatpush1.msra.mxu0 0.0
  %5101 = vmatprep.subr.mxu0 0.0
  %5102 = vmatpush1.msra.mxu0 0.0
  %5103 = vmatprep.subr.mxu0 0.0
  %5104 = vmatpush1.msra.mxu0 0.0
  %5105 = vmatprep.subr.mxu0 0.0
  %5106 = vmatpush1.msra.mxu0 0.0
  %5107 = vmatprep.subr.mxu0 0.0
  %5108 = vmatpush1.msra.mxu0 0.0
  %5109 = vmatprep.subr.mxu0 0.0
  %5110 = vmatpush1.msra.mxu0 0.0
  %5111 = vmatprep.subr.mxu0 0.0
  %5112 = vmatpush1.msra.mxu0 0.0
  %5113 = vmatprep.subr.mxu0 0.0
  %5114 = vmatpush1.msra.mxu0 0.0
  %5115 = vmatprep.subr.mxu0 0.0
  %5116 = vmatpush1.msra.mxu0 0.0
  %5117 = vmatprep.subr.mxu0 0.0
  %5118 = vmatpush1.msra.mxu0 0.0
  %5119 = vmatprep.subr.mxu0 0.0
  %5120 = vmatpush1.msra.mxu0 0.0
  %5121 = vmatprep.subr.mxu0 0.0
  %5122 = vmatpush1.msra.mxu0 0.0
  %5123 = vmatprep.subr.mxu0 0.0
  %5124 = vmatpush1.msra.mxu0 0.0
  %5125 = vmatprep.subr.mxu0 0.0
  %5126 = vmatpush1.msra.mxu0 0.0
  %5127 = vmatprep.subr.mxu0 0.0
  %5128 = vmatpush1.msra.mxu0 0.0
  %5129 = vmatprep.subr.mxu0 0.0
  %5130 = vmatpush1.msra.mxu0 0.0
  %5131 = vmatprep.subr.mxu0 0.0
  %5132 = vmatpush1.msra.mxu0 0.0
  %5133 = vmatprep.subr.mxu0 0.0
  %5134 = vmatpush1.msra.mxu0 0.0
  %5135 = vmatprep.subr.mxu0 0.0
  %5136 = vmatpush1.msra.mxu0 0.0
  %5137 = vmatprep.subr.mxu0 0.0
  %5138 = vmatpush1.msra.mxu0 0.0
  %5139 = vmatprep.mubr.f32.mxu0 0.0
  %5140 = vmatmul.mubr.f32.gmra.mrb[0].mxu0 %v5073
  %v5141 = vpop.f32.mrb[0].mxu0
  %v5142 = vadd.f32 %v1881, %v5141
  %v5143 = vpop.f32.mrb[0].mxu0
  %5144 = vdwg.mxu0
  %v5146 = vsel %vm1781, %v5142, 0
  %5148 = vmatprep.subr.mxu0 0.0
  %5149 = vmatpush1.msra.mxu0 %v44
  %5150 = vmatprep.subr.mxu0 0.0
  %5151 = vmatpush1.msra.mxu0 %v45
  %5152 = vmatprep.subr.mxu0 0.0
  %5153 = vmatpush1.msra.mxu0 %v46
  %5154 = vmatprep.subr.mxu0 0.0
  %5155 = vmatpush1.msra.mxu0 %v47
  %5156 = vmatprep.subr.mxu0 0.0
  %5157 = vmatpush1.msra.mxu0 0.0
  %5158 = vmatprep.subr.mxu0 0.0
  %5159 = vmatpush1.msra.mxu0 0.0
  %5160 = vmatprep.subr.mxu0 0.0
  %5161 = vmatpush1.msra.mxu0 0.0
  %5162 = vmatprep.subr.mxu0 0.0
  %5163 = vmatpush1.msra.mxu0 0.0
  %5164 = vmatprep.subr.mxu0 0.0
  %5165 = vmatpush1.msra.mxu0 0.0
  %5166 = vmatprep.subr.mxu0 0.0
  %5167 = vmatpush1.msra.mxu0 0.0
  %5168 = vmatprep.subr.mxu0 0.0
  %5169 = vmatpush1.msra.mxu0 0.0
  %5170 = vmatprep.subr.mxu0 0.0
  %5171 = vmatpush1.msra.mxu0 0.0
  %5172 = vmatprep.subr.mxu0 0.0
  %5173 = vmatpush1.msra.mxu0 0.0
  %5174 = vmatprep.subr.mxu0 0.0
  %5175 = vmatpush1.msra.mxu0 0.0
  %5176 = vmatprep.subr.mxu0 0.0
  %5177 = vmatpush1.msra.mxu0 0.0
  %5178 = vmatprep.subr.mxu0 0.0
  %5179 = vmatpush1.msra.mxu0 0.0
  %5180 = vmatprep.subr.mxu0 0.0
  %5181 = vmatpush1.msra.mxu0 0.0
  %5182 = vmatprep.subr.mxu0 0.0
  %5183 = vmatpush1.msra.mxu0 0.0
  %5184 = vmatprep.subr.mxu0 0.0
  %5185 = vmatpush1.msra.mxu0 0.0
  %5186 = vmatprep.subr.mxu0 0.0
  %5187 = vmatpush1.msra.mxu0 0.0
  %5188 = vmatprep.subr.mxu0 0.0
  %5189 = vmatpush1.msra.mxu0 0.0
  %5190 = vmatprep.subr.mxu0 0.0
  %5191 = vmatpush1.msra.mxu0 0.0
  %5192 = vmatprep.subr.mxu0 0.0
  %5193 = vmatpush1.msra.mxu0 0.0
  %5194 = vmatprep.subr.mxu0 0.0
  %5195 = vmatpush1.msra.mxu0 0.0
  %5196 = vmatprep.subr.mxu0 0.0
  %5197 = vmatpush1.msra.mxu0 0.0
  %5198 = vmatprep.subr.mxu0 0.0
  %5199 = vmatpush1.msra.mxu0 0.0
  %5200 = vmatprep.subr.mxu0 0.0
  %5201 = vmatpush1.msra.mxu0 0.0
  %5202 = vmatprep.subr.mxu0 0.0
  %5203 = vmatpush1.msra.mxu0 0.0
  %5204 = vmatprep.subr.mxu0 0.0
  %5205 = vmatpush1.msra.mxu0 0.0
  %5206 = vmatprep.subr.mxu0 0.0
  %5207 = vmatpush1.msra.mxu0 0.0
  %5208 = vmatprep.subr.mxu0 0.0
  %5209 = vmatpush1.msra.mxu0 0.0
  %5210 = vmatprep.subr.mxu0 0.0
  %5211 = vmatpush1.msra.mxu0 0.0
  %5212 = vmatprep.mubr.f32.mxu0 0.0
  %5213 = vmatmul.mubr.f32.gmra.mrb[0].mxu0 %v5146
  %v5214 = vpop.f32.mrb[0].mxu0
  %v5215 = vadd.f32 %v1960, %v5214
  %v5216 = vpop.f32.mrb[0].mxu0
  %5217 = vdwg.mxu0
  %5218 = vmatprep.subr.mxu0 0.0
  %5219 = vmatpush1.msra.mxu0 %v48
  %5220 = vmatprep.subr.mxu0 0.0
  %5221 = vmatpush1.msra.mxu0 %v49
  %5222 = vmatprep.subr.mxu0 0.0
  %5223 = vmatpush1.msra.mxu0 %v50
  %5224 = vmatprep.subr.mxu0 0.0
  %5225 = vmatpush1.msra.mxu0 %v51
  %5226 = vmatprep.subr.mxu0 0.0
  %5227 = vmatpush1.msra.mxu0 0.0
  %5228 = vmatprep.subr.mxu0 0.0
  %5229 = vmatpush1.msra.mxu0 0.0
  %5230 = vmatprep.subr.mxu0 0.0
  %5231 = vmatpush1.msra.mxu0 0.0
  %5232 = vmatprep.subr.mxu0 0.0
  %5233 = vmatpush1.msra.mxu0 0.0
  %5234 = vmatprep.subr.mxu0 0.0
  %5235 = vmatpush1.msra.mxu0 0.0
  %5236 = vmatprep.subr.mxu0 0.0
  %5237 = vmatpush1.msra.mxu0 0.0
  %5238 = vmatprep.subr.mxu0 0.0
  %5239 = vmatpush1.msra.mxu0 0.0
  %5240 = vmatprep.subr.mxu0 0.0
  %5241 = vmatpush1.msra.mxu0 0.0
  %5242 = vmatprep.subr.mxu0 0.0
  %5243 = vmatpush1.msra.mxu0 0.0
  %5244 = vmatprep.subr.mxu0 0.0
  %5245 = vmatpush1.msra.mxu0 0.0
  %5246 = vmatprep.subr.mxu0 0.0
  %5247 = vmatpush1.msra.mxu0 0.0
  %5248 = vmatprep.subr.mxu0 0.0
  %5249 = vmatpush1.msra.mxu0 0.0
  %5250 = vmatprep.subr.mxu0 0.0
  %5251 = vmatpush1.msra.mxu0 0.0
  %5252 = vmatprep.subr.mxu0 0.0
  %5253 = vmatpush1.msra.mxu0 0.0
  %5254 = vmatprep.subr.mxu0 0.0
  %5255 = vmatpush1.msra.mxu0 0.0
  %5256 = vmatprep.subr.mxu0 0.0
  %5257 = vmatpush1.msra.mxu0 0.0
  %5258 = vmatprep.subr.mxu0 0.0
  %5259 = vmatpush1.msra.mxu0 0.0
  %5260 = vmatprep.subr.mxu0 0.0
  %5261 = vmatpush1.msra.mxu0 0.0
  %5262 = vmatprep.subr.mxu0 0.0
  %5263 = vmatpush1.msra.mxu0 0.0
  %5264 = vmatprep.subr.mxu0 0.0
  %5265 = vmatpush1.msra.mxu0 0.0
  %5266 = vmatprep.subr.mxu0 0.0
  %5267 = vmatpush1.msra.mxu0 0.0
  %5268 = vmatprep.subr.mxu0 0.0
  %5269 = vmatpush1.msra.mxu0 0.0
  %5270 = vmatprep.subr.mxu0 0.0
  %5271 = vmatpush1.msra.mxu0 0.0
  %5272 = vmatprep.subr.mxu0 0.0
  %5273 = vmatpush1.msra.mxu0 0.0
  %5274 = vmatprep.subr.mxu0 0.0
  %5275 = vmatpush1.msra.mxu0 0.0
  %5276 = vmatprep.subr.mxu0 0.0
  %5277 = vmatpush1.msra.mxu0 0.0
  %5278 = vmatprep.subr.mxu0 0.0
  %5279 = vmatpush1.msra.mxu0 0.0
  %5280 = vmatprep.subr.mxu0 0.0
  %5281 = vmatpush1.msra.mxu0 0.0
  %5282 = vmatprep.mubr.f32.mxu0 0.0
  %5283 = vmatmul.mubr.f32.gmra.mrb[0].mxu0 %v4825
  %v5284 = vpop.f32.mrb[0].mxu0
  %v5285 = vadd.f32 0.0, %v5284
  %v5286 = vpop.f32.mrb[0].mxu0
  %5287 = vdwg.mxu0
  %v5288 = vadd.f32 %v4726, %v5285
  %v5289 = vmul.f32 %v5288, 0.5
  %v5290 = vtanh.pop %v5289
  %v5291 = vmul.f32 %v5290, 0.5
  %v5292 = vadd.f32 %v5291, 0.5
  %v5293 = vtanh.pop %v5288
  %v5294 = vmul.f32 %v5292, %v4815
  %5296 = vrot.lane.b32.xlu0 %v5293, 64
  %v5297 = vpop.permute.xlu0 %5296
  %v5299 = vmul.f32 %v5292, %v5297
  %5301 = vrot.lane.b32.xlu0 %v5299, 32
  %v5302 = vpop.permute.xlu0 %5301
  %v5304 = vadd.f32 %v5294, %v5302
  %v5305 = vtanh.pop %v5304
  %5307 = vrot.lane.b32.xlu0 %v5305, 64
  %v5308 = vpop.permute.xlu0 %5307
  %v5310 = vmul.f32 %v5292, %v5308
  %5312 = vrot.lane.b32.xlu0 %v5310, 32
  %v5313 = vpop.permute.xlu0 %5312
  %v5314 = vsel %vm1781, %v5313, 0
  %5316 = vmatprep.subr.mxu0 0.0
  %5317 = vmatpush1.msra.mxu0 %v53
  %5318 = vmatprep.subr.mxu0 0.0
  %5319 = vmatpush1.msra.mxu0 %v54
  %5320 = vmatprep.subr.mxu0 0.0
  %5321 = vmatpush1.msra.mxu0 %v55
  %5322 = vmatprep.subr.mxu0 0.0
  %5323 = vmatpush1.msra.mxu0 %v56
  %5324 = vmatprep.subr.mxu0 0.0
  %5325 = vmatpush1.msra.mxu0 0.0
  %5326 = vmatprep.subr.mxu0 0.0
  %5327 = vmatpush1.msra.mxu0 0.0
  %5328 = vmatprep.subr.mxu0 0.0
  %5329 = vmatpush1.msra.mxu0 0.0
  %5330 = vmatprep.subr.mxu0 0.0
  %5331 = vmatpush1.msra.mxu0 0.0
  %5332 = vmatprep.subr.mxu0 0.0
  %5333 = vmatpush1.msra.mxu0 0.0
  %5334 = vmatprep.subr.mxu0 0.0
  %5335 = vmatpush1.msra.mxu0 0.0
  %5336 = vmatprep.subr.mxu0 0.0
  %5337 = vmatpush1.msra.mxu0 0.0
  %5338 = vmatprep.subr.mxu0 0.0
  %5339 = vmatpush1.msra.mxu0 0.0
  %5340 = vmatprep.subr.mxu0 0.0
  %5341 = vmatpush1.msra.mxu0 0.0
  %5342 = vmatprep.subr.mxu0 0.0
  %5343 = vmatpush1.msra.mxu0 0.0
  %5344 = vmatprep.subr.mxu0 0.0
  %5345 = vmatpush1.msra.mxu0 0.0
  %5346 = vmatprep.subr.mxu0 0.0
  %5347 = vmatpush1.msra.mxu0 0.0
  %5348 = vmatprep.subr.mxu0 0.0
  %5349 = vmatpush1.msra.mxu0 0.0
  %5350 = vmatprep.subr.mxu0 0.0
  %5351 = vmatpush1.msra.mxu0 0.0
  %5352 = vmatprep.subr.mxu0 0.0
  %5353 = vmatpush1.msra.mxu0 0.0
  %5354 = vmatprep.subr.mxu0 0.0
  %5355 = vmatpush1.msra.mxu0 0.0
  %5356 = vmatprep.subr.mxu0 0.0
  %5357 = vmatpush1.msra.mxu0 0.0
  %5358 = vmatprep.subr.mxu0 0.0
  %5359 = vmatpush1.msra.mxu0 0.0
  %5360 = vmatprep.subr.mxu0 0.0
  %5361 = vmatpush1.msra.mxu0 0.0
  %5362 = vmatprep.subr.mxu0 0.0
  %5363 = vmatpush1.msra.mxu0 0.0
  %5364 = vmatprep.subr.mxu0 0.0
  %5365 = vmatpush1.msra.mxu0 0.0
  %5366 = vmatprep.subr.mxu0 0.0
  %5367 = vmatpush1.msra.mxu0 0.0
  %5368 = vmatprep.subr.mxu0 0.0
  %5369 = vmatpush1.msra.mxu0 0.0
  %5370 = vmatprep.subr.mxu0 0.0
  %5371 = vmatpush1.msra.mxu0 0.0
  %5372 = vmatprep.subr.mxu0 0.0
  %5373 = vmatpush1.msra.mxu0 0.0
  %5374 = vmatprep.subr.mxu0 0.0
  %5375 = vmatpush1.msra.mxu0 0.0
  %5376 = vmatprep.subr.mxu0 0.0
  %5377 = vmatpush1.msra.mxu0 0.0
  %5378 = vmatprep.subr.mxu0 0.0
  %5379 = vmatpush1.msra.mxu0 0.0
  %5380 = vmatprep.mubr.f32.mxu0 0.0
  %5381 = vmatmul.mubr.f32.gmra.mrb[0].mxu0 %v5314
  %v5382 = vpop.f32.mrb[0].mxu0
  %v5383 = vadd.f32 %v2371, %v5382
  %v5384 = vpop.f32.mrb[0].mxu0
  %5385 = vdwg.mxu0
  %v5387 = vsel %vm2451, %v5383, 0
  %5389 = vmatprep.subr.mxu0 0.0
  %5390 = vmatpush1.msra.mxu0 %v58
  %5391 = vmatprep.subr.mxu0 0.0
  %5392 = vmatpush1.msra.mxu0 %v59
  %5393 = vmatprep.subr.mxu0 0.0
  %5394 = vmatpush1.msra.mxu0 %v60
  %5395 = vmatprep.subr.mxu0 0.0
  %5396 = vmatpush1.msra.mxu0 %v61
  %5397 = vmatprep.subr.mxu0 0.0
  %5398 = vmatpush1.msra.mxu0 %v62
  %5399 = vmatprep.subr.mxu0 0.0
  %5400 = vmatpush1.msra.mxu0 %v63
  %5401 = vmatprep.subr.mxu0 0.0
  %5402 = vmatpush1.msra.mxu0 %v64
  %5403 = vmatprep.subr.mxu0 0.0
  %5404 = vmatpush1.msra.mxu0 %v65
  %5405 = vmatprep.subr.mxu0 0.0
  %5406 = vmatpush1.msra.mxu0 0.0
  %5407 = vmatprep.subr.mxu0 0.0
  %5408 = vmatpush1.msra.mxu0 0.0
  %5409 = vmatprep.subr.mxu0 0.0
  %5410 = vmatpush1.msra.mxu0 0.0
  %5411 = vmatprep.subr.mxu0 0.0
  %5412 = vmatpush1.msra.mxu0 0.0
  %5413 = vmatprep.subr.mxu0 0.0
  %5414 = vmatpush1.msra.mxu0 0.0
  %5415 = vmatprep.subr.mxu0 0.0
  %5416 = vmatpush1.msra.mxu0 0.0
  %5417 = vmatprep.subr.mxu0 0.0
  %5418 = vmatpush1.msra.mxu0 0.0
  %5419 = vmatprep.subr.mxu0 0.0
  %5420 = vmatpush1.msra.mxu0 0.0
  %5421 = vmatprep.subr.mxu0 0.0
  %5422 = vmatpush1.msra.mxu0 0.0
  %5423 = vmatprep.subr.mxu0 0.0
  %5424 = vmatpush1.msra.mxu0 0.0
  %5425 = vmatprep.subr.mxu0 0.0
  %5426 = vmatpush1.msra.mxu0 0.0
  %5427 = vmatprep.subr.mxu0 0.0
  %5428 = vmatpush1.msra.mxu0 0.0
  %5429 = vmatprep.subr.mxu0 0.0
  %5430 = vmatpush1.msra.mxu0 0.0
  %5431 = vmatprep.subr.mxu0 0.0
  %5432 = vmatpush1.msra.mxu0 0.0
  %5433 = vmatprep.subr.mxu0 0.0
  %5434 = vmatpush1.msra.mxu0 0.0
  %5435 = vmatprep.subr.mxu0 0.0
  %5436 = vmatpush1.msra.mxu0 0.0
  %5437 = vmatprep.subr.mxu0 0.0
  %5438 = vmatpush1.msra.mxu0 0.0
  %5439 = vmatprep.subr.mxu0 0.0
  %5440 = vmatpush1.msra.mxu0 0.0
  %5441 = vmatprep.subr.mxu0 0.0
  %5442 = vmatpush1.msra.mxu0 0.0
  %5443 = vmatprep.subr.mxu0 0.0
  %5444 = vmatpush1.msra.mxu0 0.0
  %5445 = vmatprep.subr.mxu0 0.0
  %5446 = vmatpush1.msra.mxu0 0.0
  %5447 = vmatprep.subr.mxu0 0.0
  %5448 = vmatpush1.msra.mxu0 0.0
  %5449 = vmatprep.subr.mxu0 0.0
  %5450 = vmatpush1.msra.mxu0 0.0
  %5451 = vmatprep.subr.mxu0 0.0
  %5452 = vmatpush1.msra.mxu0 0.0
  %5453 = vmatprep.mubr.f32.mxu0 0.0
  %5454 = vmatmul.mubr.f32.gmra.mrb[0].mxu0 %v5387
  %v5455 = vpop.f32.mrb[0].mxu0
  %v5456 = vadd.f32 %v2450, %v5455
  %v5457 = vpop.f32.mrb[0].mxu0
  %5458 = vdwg.mxu0
  %vm5459 = vcmp.eq.s32.totalorder %v1780, 6
  %5461 = vset.pattern.permute.xlu0 0
  %5462 = vperm.xlu0 %5461, %v5456
  %v5463 = vpop.permute.xlu0 %5462
  %v5465 = vsel %vm5459, %v5463, %v4976
  %5466 = vmatprep.subr.mxu0 0.0
  %5467 = vmatpush1.msra.mxu0 %v34
  %5468 = vmatprep.subr.mxu0 0.0
  %5469 = vmatpush1.msra.mxu0 %v35
  %5470 = vmatprep.subr.mxu0 0.0
  %5471 = vmatpush1.msra.mxu0 %v36
  %5472 = vmatprep.subr.mxu0 0.0
  %5473 = vmatpush1.msra.mxu0 %v37
  %5474 = vmatprep.subr.mxu0 0.0
  %5475 = vmatpush1.msra.mxu0 0.0
  %5476 = vmatprep.subr.mxu0 0.0
  %5477 = vmatpush1.msra.mxu0 0.0
  %5478 = vmatprep.subr.mxu0 0.0
  %5479 = vmatpush1.msra.mxu0 0.0
  %5480 = vmatprep.subr.mxu0 0.0
  %5481 = vmatpush1.msra.mxu0 0.0
  %5482 = vmatprep.subr.mxu0 0.0
  %5483 = vmatpush1.msra.mxu0 0.0
  %5484 = vmatprep.subr.mxu0 0.0
  %5485 = vmatpush1.msra.mxu0 0.0
  %5486 = vmatprep.subr.mxu0 0.0
  %5487 = vmatpush1.msra.mxu0 0.0
  %5488 = vmatprep.subr.mxu0 0.0
  %5489 = vmatpush1.msra.mxu0 0.0
  %5490 = vmatprep.subr.mxu0 0.0
  %5491 = vmatpush1.msra.mxu0 0.0
  %5492 = vmatprep.subr.mxu0 0.0
  %5493 = vmatpush1.msra.mxu0 0.0
  %5494 = vmatprep.subr.mxu0 0.0
  %5495 = vmatpush1.msra.mxu0 0.0
  %5496 = vmatprep.subr.mxu0 0.0
  %5497 = vmatpush1.msra.mxu0 0.0
  %5498 = vmatprep.subr.mxu0 0.0
  %5499 = vmatpush1.msra.mxu0 0.0
  %5500 = vmatprep.subr.mxu0 0.0
  %5501 = vmatpush1.msra.mxu0 0.0
  %5502 = vmatprep.subr.mxu0 0.0
  %5503 = vmatpush1.msra.mxu0 0.0
  %5504 = vmatprep.subr.mxu0 0.0
  %5505 = vmatpush1.msra.mxu0 0.0
  %5506 = vmatprep.subr.mxu0 0.0
  %5507 = vmatpush1.msra.mxu0 0.0
  %5508 = vmatprep.subr.mxu0 0.0
  %5509 = vmatpush1.msra.mxu0 0.0
  %5510 = vmatprep.subr.mxu0 0.0
  %5511 = vmatpush1.msra.mxu0 0.0
  %5512 = vmatprep.subr.mxu0 0.0
  %5513 = vmatpush1.msra.mxu0 0.0
  %5514 = vmatprep.subr.mxu0 0.0
  %5515 = vmatpush1.msra.mxu0 0.0
  %5516 = vmatprep.subr.mxu0 0.0
  %5517 = vmatpush1.msra.mxu0 0.0
  %5518 = vmatprep.subr.mxu0 0.0
  %5519 = vmatpush1.msra.mxu0 0.0
  %5520 = vmatprep.subr.mxu0 0.0
  %5521 = vmatpush1.msra.mxu0 0.0
  %5522 = vmatprep.subr.mxu0 0.0
  %5523 = vmatpush1.msra.mxu0 0.0
  %5524 = vmatprep.subr.mxu0 0.0
  %5525 = vmatpush1.msra.mxu0 0.0
  %5526 = vmatprep.subr.mxu0 0.0
  %5527 = vmatpush1.msra.mxu0 0.0
  %5528 = vmatprep.subr.mxu0 0.0
  %5529 = vmatpush1.msra.mxu0 0.0
  %5530 = vmatprep.mubr.f32.mxu0 0.0
  %5531 = vmatmul.mubr.f32.gmra.mrb[0].mxu0 %v5073
  %v5532 = vpop.f32.mrb[0].mxu0
  %v5533 = vadd.f32 0.0, %v5532
  %v5534 = vpop.f32.mrb[0].mxu0
  %5535 = vdwg.mxu0
  %v5536 = vadd.f32 %v1771, %v5533
  %v5537 = vmul.f32 %v5536, 0.5
  %v5538 = vtanh.pop %v5537
  %v5539 = vmul.f32 %v5538, 0.5
  %v5540 = vadd.f32 %v5539, 0.5
  %v5541 = vtanh.pop %v5536
  %v5542 = vmul.f32 %v5540, %v5063
  %5544 = vrot.lane.b32.xlu0 %v5541, 64
  %v5545 = vpop.permute.xlu0 %5544
  %v5547 = vmul.f32 %v5540, %v5545
  %5549 = vrot.lane.b32.xlu0 %v5547, 32
  %v5550 = vpop.permute.xlu0 %5549
  %v5552 = vadd.f32 %v5542, %v5550
  %v5553 = vtanh.pop %v5552
  %5555 = vrot.lane.b32.xlu0 %v5553, 64
  %v5556 = vpop.permute.xlu0 %5555
  %v5558 = vmul.f32 %v5540, %v5556
  %5560 = vrot.lane.b32.xlu0 %v5558, 32
  %v5561 = vpop.permute.xlu0 %5560
  %v5562 = vsel %vm1781, %v5561, 0
  %5564 = vmatprep.subr.mxu0 0.0
  %5565 = vmatpush1.msra.mxu0 %v39
  %5566 = vmatprep.subr.mxu0 0.0
  %5567 = vmatpush1.msra.mxu0 %v40
  %5568 = vmatprep.subr.mxu0 0.0
  %5569 = vmatpush1.msra.mxu0 %v41
  %5570 = vmatprep.subr.mxu0 0.0
  %5571 = vmatpush1.msra.mxu0 %v42
  %5572 = vmatprep.subr.mxu0 0.0
  %5573 = vmatpush1.msra.mxu0 0.0
  %5574 = vmatprep.subr.mxu0 0.0
  %5575 = vmatpush1.msra.mxu0 0.0
  %5576 = vmatprep.subr.mxu0 0.0
  %5577 = vmatpush1.msra.mxu0 0.0
  %5578 = vmatprep.subr.mxu0 0.0
  %5579 = vmatpush1.msra.mxu0 0.0
  %5580 = vmatprep.subr.mxu0 0.0
  %5581 = vmatpush1.msra.mxu0 0.0
  %5582 = vmatprep.subr.mxu0 0.0
  %5583 = vmatpush1.msra.mxu0 0.0
  %5584 = vmatprep.subr.mxu0 0.0
  %5585 = vmatpush1.msra.mxu0 0.0
  %5586 = vmatprep.subr.mxu0 0.0
  %5587 = vmatpush1.msra.mxu0 0.0
  %5588 = vmatprep.subr.mxu0 0.0
  %5589 = vmatpush1.msra.mxu0 0.0
  %5590 = vmatprep.subr.mxu0 0.0
  %5591 = vmatpush1.msra.mxu0 0.0
  %5592 = vmatprep.subr.mxu0 0.0
  %5593 = vmatpush1.msra.mxu0 0.0
  %5594 = vmatprep.subr.mxu0 0.0
  %5595 = vmatpush1.msra.mxu0 0.0
  %5596 = vmatprep.subr.mxu0 0.0
  %5597 = vmatpush1.msra.mxu0 0.0
  %5598 = vmatprep.subr.mxu0 0.0
  %5599 = vmatpush1.msra.mxu0 0.0
  %5600 = vmatprep.subr.mxu0 0.0
  %5601 = vmatpush1.msra.mxu0 0.0
  %5602 = vmatprep.subr.mxu0 0.0
  %5603 = vmatpush1.msra.mxu0 0.0
  %5604 = vmatprep.subr.mxu0 0.0
  %5605 = vmatpush1.msra.mxu0 0.0
  %5606 = vmatprep.subr.mxu0 0.0
  %5607 = vmatpush1.msra.mxu0 0.0
  %5608 = vmatprep.subr.mxu0 0.0
  %5609 = vmatpush1.msra.mxu0 0.0
  %5610 = vmatprep.subr.mxu0 0.0
  %5611 = vmatpush1.msra.mxu0 0.0
  %5612 = vmatprep.subr.mxu0 0.0
  %5613 = vmatpush1.msra.mxu0 0.0
  %5614 = vmatprep.subr.mxu0 0.0
  %5615 = vmatpush1.msra.mxu0 0.0
  %5616 = vmatprep.subr.mxu0 0.0
  %5617 = vmatpush1.msra.mxu0 0.0
  %5618 = vmatprep.subr.mxu0 0.0
  %5619 = vmatpush1.msra.mxu0 0.0
  %5620 = vmatprep.subr.mxu0 0.0
  %5621 = vmatpush1.msra.mxu0 0.0
  %5622 = vmatprep.subr.mxu0 0.0
  %5623 = vmatpush1.msra.mxu0 0.0
  %5624 = vmatprep.subr.mxu0 0.0
  %5625 = vmatpush1.msra.mxu0 0.0
  %5626 = vmatprep.subr.mxu0 0.0
  %5627 = vmatpush1.msra.mxu0 0.0
  %5628 = vmatprep.mubr.f32.mxu0 0.0
  %5629 = vmatmul.mubr.f32.gmra.mrb[0].mxu0 %v5562
  %v5630 = vpop.f32.mrb[0].mxu0
  %v5631 = vadd.f32 %v1881, %v5630
  %v5632 = vpop.f32.mrb[0].mxu0
  %5633 = vdwg.mxu0
  %v5635 = vsel %vm1781, %v5631, 0
  %5637 = vmatprep.subr.mxu0 0.0
  %5638 = vmatpush1.msra.mxu0 %v44
  %5639 = vmatprep.subr.mxu0 0.0
  %5640 = vmatpush1.msra.mxu0 %v45
  %5641 = vmatprep.subr.mxu0 0.0
  %5642 = vmatpush1.msra.mxu0 %v46
  %5643 = vmatprep.subr.mxu0 0.0
  %5644 = vmatpush1.msra.mxu0 %v47
  %5645 = vmatprep.subr.mxu0 0.0
  %5646 = vmatpush1.msra.mxu0 0.0
  %5647 = vmatprep.subr.mxu0 0.0
  %5648 = vmatpush1.msra.mxu0 0.0
  %5649 = vmatprep.subr.mxu0 0.0
  %5650 = vmatpush1.msra.mxu0 0.0
  %5651 = vmatprep.subr.mxu0 0.0
  %5652 = vmatpush1.msra.mxu0 0.0
  %5653 = vmatprep.subr.mxu0 0.0
  %5654 = vmatpush1.msra.mxu0 0.0
  %5655 = vmatprep.subr.mxu0 0.0
  %5656 = vmatpush1.msra.mxu0 0.0
  %5657 = vmatprep.subr.mxu0 0.0
  %5658 = vmatpush1.msra.mxu0 0.0
  %5659 = vmatprep.subr.mxu0 0.0
  %5660 = vmatpush1.msra.mxu0 0.0
  %5661 = vmatprep.subr.mxu0 0.0
  %5662 = vmatpush1.msra.mxu0 0.0
  %5663 = vmatprep.subr.mxu0 0.0
  %5664 = vmatpush1.msra.mxu0 0.0
  %5665 = vmatprep.subr.mxu0 0.0
  %5666 = vmatpush1.msra.mxu0 0.0
  %5667 = vmatprep.subr.mxu0 0.0
  %5668 = vmatpush1.msra.mxu0 0.0
  %5669 = vmatprep.subr.mxu0 0.0
  %5670 = vmatpush1.msra.mxu0 0.0
  %5671 = vmatprep.subr.mxu0 0.0
  %5672 = vmatpush1.msra.mxu0 0.0
  %5673 = vmatprep.subr.mxu0 0.0
  %5674 = vmatpush1.msra.mxu0 0.0
  %5675 = vmatprep.subr.mxu0 0.0
  %5676 = vmatpush1.msra.mxu0 0.0
  %5677 = vmatprep.subr.mxu0 0.0
  %5678 = vmatpush1.msra.mxu0 0.0
  %5679 = vmatprep.subr.mxu0 0.0
  %5680 = vmatpush1.msra.mxu0 0.0
  %5681 = vmatprep.subr.mxu0 0.0
  %5682 = vmatpush1.msra.mxu0 0.0
  %5683 = vmatprep.subr.mxu0 0.0
  %5684 = vmatpush1.msra.mxu0 0.0
  %5685 = vmatprep.subr.mxu0 0.0
  %5686 = vmatpush1.msra.mxu0 0.0
  %5687 = vmatprep.subr.mxu0 0.0
  %5688 = vmatpush1.msra.mxu0 0.0
  %5689 = vmatprep.subr.mxu0 0.0
  %5690 = vmatpush1.msra.mxu0 0.0
  %5691 = vmatprep.subr.mxu0 0.0
  %5692 = vmatpush1.msra.mxu0 0.0
  %5693 = vmatprep.subr.mxu0 0.0
  %5694 = vmatpush1.msra.mxu0 0.0
  %5695 = vmatprep.subr.mxu0 0.0
  %5696 = vmatpush1.msra.mxu0 0.0
  %5697 = vmatprep.subr.mxu0 0.0
  %5698 = vmatpush1.msra.mxu0 0.0
  %5699 = vmatprep.subr.mxu0 0.0
  %5700 = vmatpush1.msra.mxu0 0.0
  %5701 = vmatprep.mubr.f32.mxu0 0.0
  %5702 = vmatmul.mubr.f32.gmra.mrb[0].mxu0 %v5635
  %v5703 = vpop.f32.mrb[0].mxu0
  %v5704 = vadd.f32 %v1960, %v5703
  %v5705 = vpop.f32.mrb[0].mxu0
  %5706 = vdwg.mxu0
  %5707 = vmatprep.subr.mxu0 0.0
  %5708 = vmatpush1.msra.mxu0 %v48
  %5709 = vmatprep.subr.mxu0 0.0
  %5710 = vmatpush1.msra.mxu0 %v49
  %5711 = vmatprep.subr.mxu0 0.0
  %5712 = vmatpush1.msra.mxu0 %v50
  %5713 = vmatprep.subr.mxu0 0.0
  %5714 = vmatpush1.msra.mxu0 %v51
  %5715 = vmatprep.subr.mxu0 0.0
  %5716 = vmatpush1.msra.mxu0 0.0
  %5717 = vmatprep.subr.mxu0 0.0
  %5718 = vmatpush1.msra.mxu0 0.0
  %5719 = vmatprep.subr.mxu0 0.0
  %5720 = vmatpush1.msra.mxu0 0.0
  %5721 = vmatprep.subr.mxu0 0.0
  %5722 = vmatpush1.msra.mxu0 0.0
  %5723 = vmatprep.subr.mxu0 0.0
  %5724 = vmatpush1.msra.mxu0 0.0
  %5725 = vmatprep.subr.mxu0 0.0
  %5726 = vmatpush1.msra.mxu0 0.0
  %5727 = vmatprep.subr.mxu0 0.0
  %5728 = vmatpush1.msra.mxu0 0.0
  %5729 = vmatprep.subr.mxu0 0.0
  %5730 = vmatpush1.msra.mxu0 0.0
  %5731 = vmatprep.subr.mxu0 0.0
  %5732 = vmatpush1.msra.mxu0 0.0
  %5733 = vmatprep.subr.mxu0 0.0
  %5734 = vmatpush1.msra.mxu0 0.0
  %5735 = vmatprep.subr.mxu0 0.0
  %5736 = vmatpush1.msra.mxu0 0.0
  %5737 = vmatprep.subr.mxu0 0.0
  %5738 = vmatpush1.msra.mxu0 0.0
  %5739 = vmatprep.subr.mxu0 0.0
  %5740 = vmatpush1.msra.mxu0 0.0
  %5741 = vmatprep.subr.mxu0 0.0
  %5742 = vmatpush1.msra.mxu0 0.0
  %5743 = vmatprep.subr.mxu0 0.0
  %5744 = vmatpush1.msra.mxu0 0.0
  %5745 = vmatprep.subr.mxu0 0.0
  %5746 = vmatpush1.msra.mxu0 0.0
  %5747 = vmatprep.subr.mxu0 0.0
  %5748 = vmatpush1.msra.mxu0 0.0
  %5749 = vmatprep.subr.mxu0 0.0
  %5750 = vmatpush1.msra.mxu0 0.0
  %5751 = vmatprep.subr.mxu0 0.0
  %5752 = vmatpush1.msra.mxu0 0.0
  %5753 = vmatprep.subr.mxu0 0.0
  %5754 = vmatpush1.msra.mxu0 0.0
  %5755 = vmatprep.subr.mxu0 0.0
  %5756 = vmatpush1.msra.mxu0 0.0
  %5757 = vmatprep.subr.mxu0 0.0
  %5758 = vmatpush1.msra.mxu0 0.0
  %5759 = vmatprep.subr.mxu0 0.0
  %5760 = vmatpush1.msra.mxu0 0.0
  %5761 = vmatprep.subr.mxu0 0.0
  %5762 = vmatpush1.msra.mxu0 0.0
  %5763 = vmatprep.subr.mxu0 0.0
  %5764 = vmatpush1.msra.mxu0 0.0
  %5765 = vmatprep.subr.mxu0 0.0
  %5766 = vmatpush1.msra.mxu0 0.0
  %5767 = vmatprep.subr.mxu0 0.0
  %5768 = vmatpush1.msra.mxu0 0.0
  %5769 = vmatprep.subr.mxu0 0.0
  %5770 = vmatpush1.msra.mxu0 0.0
  %5771 = vmatprep.mubr.f32.mxu0 0.0
  %5772 = vmatmul.mubr.f32.gmra.mrb[0].mxu0 %v5314
  %v5773 = vpop.f32.mrb[0].mxu0
  %v5774 = vadd.f32 0.0, %v5773
  %v5775 = vpop.f32.mrb[0].mxu0
  %5776 = vdwg.mxu0
  %v5777 = vadd.f32 %v5215, %v5774
  %v5778 = vmul.f32 %v5777, 0.5
  %v5779 = vtanh.pop %v5778
  %v5780 = vmul.f32 %v5779, 0.5
  %v5781 = vadd.f32 %v5780, 0.5
  %v5782 = vtanh.pop %v5777
  %v5783 = vmul.f32 %v5781, %v5304
  %5785 = vrot.lane.b32.xlu0 %v5782, 64
  %v5786 = vpop.permute.xlu0 %5785
  %v5788 = vmul.f32 %v5781, %v5786
  %5790 = vrot.lane.b32.xlu0 %v5788, 32
  %v5791 = vpop.permute.xlu0 %5790
  %v5793 = vadd.f32 %v5783, %v5791
  %v5794 = vtanh.pop %v5793
  %5796 = vrot.lane.b32.xlu0 %v5794, 64
  %v5797 = vpop.permute.xlu0 %5796
  %v5799 = vmul.f32 %v5781, %v5797
  %5801 = vrot.lane.b32.xlu0 %v5799, 32
  %v5802 = vpop.permute.xlu0 %5801
  %v5803 = vsel %vm1781, %v5802, 0
  %5805 = vmatprep.subr.mxu0 0.0
  %5806 = vmatpush1.msra.mxu0 %v53
  %5807 = vmatprep.subr.mxu0 0.0
  %5808 = vmatpush1.msra.mxu0 %v54
  %5809 = vmatprep.subr.mxu0 0.0
  %5810 = vmatpush1.msra.mxu0 %v55
  %5811 = vmatprep.subr.mxu0 0.0
  %5812 = vmatpush1.msra.mxu0 %v56
  %5813 = vmatprep.subr.mxu0 0.0
  %5814 = vmatpush1.msra.mxu0 0.0
  %5815 = vmatprep.subr.mxu0 0.0
  %5816 = vmatpush1.msra.mxu0 0.0
  %5817 = vmatprep.subr.mxu0 0.0
  %5818 = vmatpush1.msra.mxu0 0.0
  %5819 = vmatprep.subr.mxu0 0.0
  %5820 = vmatpush1.msra.mxu0 0.0
  %5821 = vmatprep.subr.mxu0 0.0
  %5822 = vmatpush1.msra.mxu0 0.0
  %5823 = vmatprep.subr.mxu0 0.0
  %5824 = vmatpush1.msra.mxu0 0.0
  %5825 = vmatprep.subr.mxu0 0.0
  %5826 = vmatpush1.msra.mxu0 0.0
  %5827 = vmatprep.subr.mxu0 0.0
  %5828 = vmatpush1.msra.mxu0 0.0
  %5829 = vmatprep.subr.mxu0 0.0
  %5830 = vmatpush1.msra.mxu0 0.0
  %5831 = vmatprep.subr.mxu0 0.0
  %5832 = vmatpush1.msra.mxu0 0.0
  %5833 = vmatprep.subr.mxu0 0.0
  %5834 = vmatpush1.msra.mxu0 0.0
  %5835 = vmatprep.subr.mxu0 0.0
  %5836 = vmatpush1.msra.mxu0 0.0
  %5837 = vmatprep.subr.mxu0 0.0
  %5838 = vmatpush1.msra.mxu0 0.0
  %5839 = vmatprep.subr.mxu0 0.0
  %5840 = vmatpush1.msra.mxu0 0.0
  %5841 = vmatprep.subr.mxu0 0.0
  %5842 = vmatpush1.msra.mxu0 0.0
  %5843 = vmatprep.subr.mxu0 0.0
  %5844 = vmatpush1.msra.mxu0 0.0
  %5845 = vmatprep.subr.mxu0 0.0
  %5846 = vmatpush1.msra.mxu0 0.0
  %5847 = vmatprep.subr.mxu0 0.0
  %5848 = vmatpush1.msra.mxu0 0.0
  %5849 = vmatprep.subr.mxu0 0.0
  %5850 = vmatpush1.msra.mxu0 0.0
  %5851 = vmatprep.subr.mxu0 0.0
  %5852 = vmatpush1.msra.mxu0 0.0
  %5853 = vmatprep.subr.mxu0 0.0
  %5854 = vmatpush1.msra.mxu0 0.0
  %5855 = vmatprep.subr.mxu0 0.0
  %5856 = vmatpush1.msra.mxu0 0.0
  %5857 = vmatprep.subr.mxu0 0.0
  %5858 = vmatpush1.msra.mxu0 0.0
  %5859 = vmatprep.subr.mxu0 0.0
  %5860 = vmatpush1.msra.mxu0 0.0
  %5861 = vmatprep.subr.mxu0 0.0
  %5862 = vmatpush1.msra.mxu0 0.0
  %5863 = vmatprep.subr.mxu0 0.0
  %5864 = vmatpush1.msra.mxu0 0.0
  %5865 = vmatprep.subr.mxu0 0.0
  %5866 = vmatpush1.msra.mxu0 0.0
  %5867 = vmatprep.subr.mxu0 0.0
  %5868 = vmatpush1.msra.mxu0 0.0
  %5869 = vmatprep.mubr.f32.mxu0 0.0
  %5870 = vmatmul.mubr.f32.gmra.mrb[0].mxu0 %v5803
  %v5871 = vpop.f32.mrb[0].mxu0
  %v5872 = vadd.f32 %v2371, %v5871
  %v5873 = vpop.f32.mrb[0].mxu0
  %5874 = vdwg.mxu0
  %v5876 = vsel %vm2451, %v5872, 0
  %5878 = vmatprep.subr.mxu0 0.0
  %5879 = vmatpush1.msra.mxu0 %v58
  %5880 = vmatprep.subr.mxu0 0.0
  %5881 = vmatpush1.msra.mxu0 %v59
  %5882 = vmatprep.subr.mxu0 0.0
  %5883 = vmatpush1.msra.mxu0 %v60
  %5884 = vmatprep.subr.mxu0 0.0
  %5885 = vmatpush1.msra.mxu0 %v61
  %5886 = vmatprep.subr.mxu0 0.0
  %5887 = vmatpush1.msra.mxu0 %v62
  %5888 = vmatprep.subr.mxu0 0.0
  %5889 = vmatpush1.msra.mxu0 %v63
  %5890 = vmatprep.subr.mxu0 0.0
  %5891 = vmatpush1.msra.mxu0 %v64
  %5892 = vmatprep.subr.mxu0 0.0
  %5893 = vmatpush1.msra.mxu0 %v65
  %5894 = vmatprep.subr.mxu0 0.0
  %5895 = vmatpush1.msra.mxu0 0.0
  %5896 = vmatprep.subr.mxu0 0.0
  %5897 = vmatpush1.msra.mxu0 0.0
  %5898 = vmatprep.subr.mxu0 0.0
  %5899 = vmatpush1.msra.mxu0 0.0
  %5900 = vmatprep.subr.mxu0 0.0
  %5901 = vmatpush1.msra.mxu0 0.0
  %5902 = vmatprep.subr.mxu0 0.0
  %5903 = vmatpush1.msra.mxu0 0.0
  %5904 = vmatprep.subr.mxu0 0.0
  %5905 = vmatpush1.msra.mxu0 0.0
  %5906 = vmatprep.subr.mxu0 0.0
  %5907 = vmatpush1.msra.mxu0 0.0
  %5908 = vmatprep.subr.mxu0 0.0
  %5909 = vmatpush1.msra.mxu0 0.0
  %5910 = vmatprep.subr.mxu0 0.0
  %5911 = vmatpush1.msra.mxu0 0.0
  %5912 = vmatprep.subr.mxu0 0.0
  %5913 = vmatpush1.msra.mxu0 0.0
  %5914 = vmatprep.subr.mxu0 0.0
  %5915 = vmatpush1.msra.mxu0 0.0
  %5916 = vmatprep.subr.mxu0 0.0
  %5917 = vmatpush1.msra.mxu0 0.0
  %5918 = vmatprep.subr.mxu0 0.0
  %5919 = vmatpush1.msra.mxu0 0.0
  %5920 = vmatprep.subr.mxu0 0.0
  %5921 = vmatpush1.msra.mxu0 0.0
  %5922 = vmatprep.subr.mxu0 0.0
  %5923 = vmatpush1.msra.mxu0 0.0
  %5924 = vmatprep.subr.mxu0 0.0
  %5925 = vmatpush1.msra.mxu0 0.0
  %5926 = vmatprep.subr.mxu0 0.0
  %5927 = vmatpush1.msra.mxu0 0.0
  %5928 = vmatprep.subr.mxu0 0.0
  %5929 = vmatpush1.msra.mxu0 0.0
  %5930 = vmatprep.subr.mxu0 0.0
  %5931 = vmatpush1.msra.mxu0 0.0
  %5932 = vmatprep.subr.mxu0 0.0
  %5933 = vmatpush1.msra.mxu0 0.0
  %5934 = vmatprep.subr.mxu0 0.0
  %5935 = vmatpush1.msra.mxu0 0.0
  %5936 = vmatprep.subr.mxu0 0.0
  %5937 = vmatpush1.msra.mxu0 0.0
  %5938 = vmatprep.subr.mxu0 0.0
  %5939 = vmatpush1.msra.mxu0 0.0
  %5940 = vmatprep.subr.mxu0 0.0
  %5941 = vmatpush1.msra.mxu0 0.0
  %5942 = vmatprep.mubr.f32.mxu0 0.0
  %5943 = vmatmul.mubr.f32.gmra.mrb[0].mxu0 %v5876
  %v5944 = vpop.f32.mrb[0].mxu0
  %v5945 = vadd.f32 %v2450, %v5944
  %v5946 = vpop.f32.mrb[0].mxu0
  %5947 = vdwg.mxu0
  %vm5948 = vcmp.eq.s32.totalorder %v1780, 7
  %5950 = vset.pattern.permute.xlu0 0
  %5951 = vperm.xlu0 %5950, %v5945
  %v5952 = vpop.permute.xlu0 %5951
  %v5954 = vsel %vm5948, %v5952, %v5465
  %5955 = vmatprep.subr.mxu0 0.0
  %5956 = vmatpush1.msra.mxu0 %v34
  %5957 = vmatprep.subr.mxu0 0.0
  %5958 = vmatpush1.msra.mxu0 %v35
  %5959 = vmatprep.subr.mxu0 0.0
  %5960 = vmatpush1.msra.mxu0 %v36
  %5961 = vmatprep.subr.mxu0 0.0
  %5962 = vmatpush1.msra.mxu0 %v37
  %5963 = vmatprep.subr.mxu0 0.0
  %5964 = vmatpush1.msra.mxu0 0.0
  %5965 = vmatprep.subr.mxu0 0.0
  %5966 = vmatpush1.msra.mxu0 0.0
  %5967 = vmatprep.subr.mxu0 0.0
  %5968 = vmatpush1.msra.mxu0 0.0
  %5969 = vmatprep.subr.mxu0 0.0
  %5970 = vmatpush1.msra.mxu0 0.0
  %5971 = vmatprep.subr.mxu0 0.0
  %5972 = vmatpush1.msra.mxu0 0.0
  %5973 = vmatprep.subr.mxu0 0.0
  %5974 = vmatpush1.msra.mxu0 0.0
  %5975 = vmatprep.subr.mxu0 0.0
  %5976 = vmatpush1.msra.mxu0 0.0
  %5977 = vmatprep.subr.mxu0 0.0
  %5978 = vmatpush1.msra.mxu0 0.0
  %5979 = vmatprep.subr.mxu0 0.0
  %5980 = vmatpush1.msra.mxu0 0.0
  %5981 = vmatprep.subr.mxu0 0.0
  %5982 = vmatpush1.msra.mxu0 0.0
  %5983 = vmatprep.subr.mxu0 0.0
  %5984 = vmatpush1.msra.mxu0 0.0
  %5985 = vmatprep.subr.mxu0 0.0
  %5986 = vmatpush1.msra.mxu0 0.0
  %5987 = vmatprep.subr.mxu0 0.0
  %5988 = vmatpush1.msra.mxu0 0.0
  %5989 = vmatprep.subr.mxu0 0.0
  %5990 = vmatpush1.msra.mxu0 0.0
  %5991 = vmatprep.subr.mxu0 0.0
  %5992 = vmatpush1.msra.mxu0 0.0
  %5993 = vmatprep.subr.mxu0 0.0
  %5994 = vmatpush1.msra.mxu0 0.0
  %5995 = vmatprep.subr.mxu0 0.0
  %5996 = vmatpush1.msra.mxu0 0.0
  %5997 = vmatprep.subr.mxu0 0.0
  %5998 = vmatpush1.msra.mxu0 0.0
  %5999 = vmatprep.subr.mxu0 0.0
  %6000 = vmatpush1.msra.mxu0 0.0
  %6001 = vmatprep.subr.mxu0 0.0
  %6002 = vmatpush1.msra.mxu0 0.0
  %6003 = vmatprep.subr.mxu0 0.0
  %6004 = vmatpush1.msra.mxu0 0.0
  %6005 = vmatprep.subr.mxu0 0.0
  %6006 = vmatpush1.msra.mxu0 0.0
  %6007 = vmatprep.subr.mxu0 0.0
  %6008 = vmatpush1.msra.mxu0 0.0
  %6009 = vmatprep.subr.mxu0 0.0
  %6010 = vmatpush1.msra.mxu0 0.0
  %6011 = vmatprep.subr.mxu0 0.0
  %6012 = vmatpush1.msra.mxu0 0.0
  %6013 = vmatprep.subr.mxu0 0.0
  %6014 = vmatpush1.msra.mxu0 0.0
  %6015 = vmatprep.subr.mxu0 0.0
  %6016 = vmatpush1.msra.mxu0 0.0
  %6017 = vmatprep.subr.mxu0 0.0
  %6018 = vmatpush1.msra.mxu0 0.0
  %6019 = vmatprep.mubr.f32.mxu0 0.0
  %6020 = vmatmul.mubr.f32.gmra.mrb[0].mxu0 %v5562
  %v6021 = vpop.f32.mrb[0].mxu0
  %v6022 = vadd.f32 0.0, %v6021
  %v6023 = vpop.f32.mrb[0].mxu0
  %6024 = vdwg.mxu0
  %v6025 = vadd.f32 %v1776, %v6022
  %v6026 = vmul.f32 %v6025, 0.5
  %v6027 = vtanh.pop %v6026
  %v6028 = vmul.f32 %v6027, 0.5
  %v6029 = vadd.f32 %v6028, 0.5
  %v6030 = vtanh.pop %v6025
  %v6031 = vmul.f32 %v6029, %v5552
  %6033 = vrot.lane.b32.xlu0 %v6030, 64
  %v6034 = vpop.permute.xlu0 %6033
  %v6036 = vmul.f32 %v6029, %v6034
  %6038 = vrot.lane.b32.xlu0 %v6036, 32
  %v6039 = vpop.permute.xlu0 %6038
  %v6041 = vadd.f32 %v6031, %v6039
  %v6042 = vtanh.pop %v6041
  %6044 = vrot.lane.b32.xlu0 %v6042, 64
  %v6045 = vpop.permute.xlu0 %6044
  %v6047 = vmul.f32 %v6029, %v6045
  %6049 = vrot.lane.b32.xlu0 %v6047, 32
  %v6050 = vpop.permute.xlu0 %6049
  %v6051 = vsel %vm1781, %v6050, 0
  %6053 = vmatprep.subr.mxu0 0.0
  %6054 = vmatpush1.msra.mxu0 %v39
  %6055 = vmatprep.subr.mxu0 0.0
  %6056 = vmatpush1.msra.mxu0 %v40
  %6057 = vmatprep.subr.mxu0 0.0
  %6058 = vmatpush1.msra.mxu0 %v41
  %6059 = vmatprep.subr.mxu0 0.0
  %6060 = vmatpush1.msra.mxu0 %v42
  %6061 = vmatprep.subr.mxu0 0.0
  %6062 = vmatpush1.msra.mxu0 0.0
  %6063 = vmatprep.subr.mxu0 0.0
  %6064 = vmatpush1.msra.mxu0 0.0
  %6065 = vmatprep.subr.mxu0 0.0
  %6066 = vmatpush1.msra.mxu0 0.0
  %6067 = vmatprep.subr.mxu0 0.0
  %6068 = vmatpush1.msra.mxu0 0.0
  %6069 = vmatprep.subr.mxu0 0.0
  %6070 = vmatpush1.msra.mxu0 0.0
  %6071 = vmatprep.subr.mxu0 0.0
  %6072 = vmatpush1.msra.mxu0 0.0
  %6073 = vmatprep.subr.mxu0 0.0
  %6074 = vmatpush1.msra.mxu0 0.0
  %6075 = vmatprep.subr.mxu0 0.0
  %6076 = vmatpush1.msra.mxu0 0.0
  %6077 = vmatprep.subr.mxu0 0.0
  %6078 = vmatpush1.msra.mxu0 0.0
  %6079 = vmatprep.subr.mxu0 0.0
  %6080 = vmatpush1.msra.mxu0 0.0
  %6081 = vmatprep.subr.mxu0 0.0
  %6082 = vmatpush1.msra.mxu0 0.0
  %6083 = vmatprep.subr.mxu0 0.0
  %6084 = vmatpush1.msra.mxu0 0.0
  %6085 = vmatprep.subr.mxu0 0.0
  %6086 = vmatpush1.msra.mxu0 0.0
  %6087 = vmatprep.subr.mxu0 0.0
  %6088 = vmatpush1.msra.mxu0 0.0
  %6089 = vmatprep.subr.mxu0 0.0
  %6090 = vmatpush1.msra.mxu0 0.0
  %6091 = vmatprep.subr.mxu0 0.0
  %6092 = vmatpush1.msra.mxu0 0.0
  %6093 = vmatprep.subr.mxu0 0.0
  %6094 = vmatpush1.msra.mxu0 0.0
  %6095 = vmatprep.subr.mxu0 0.0
  %6096 = vmatpush1.msra.mxu0 0.0
  %6097 = vmatprep.subr.mxu0 0.0
  %6098 = vmatpush1.msra.mxu0 0.0
  %6099 = vmatprep.subr.mxu0 0.0
  %6100 = vmatpush1.msra.mxu0 0.0
  %6101 = vmatprep.subr.mxu0 0.0
  %6102 = vmatpush1.msra.mxu0 0.0
  %6103 = vmatprep.subr.mxu0 0.0
  %6104 = vmatpush1.msra.mxu0 0.0
  %6105 = vmatprep.subr.mxu0 0.0
  %6106 = vmatpush1.msra.mxu0 0.0
  %6107 = vmatprep.subr.mxu0 0.0
  %6108 = vmatpush1.msra.mxu0 0.0
  %6109 = vmatprep.subr.mxu0 0.0
  %6110 = vmatpush1.msra.mxu0 0.0
  %6111 = vmatprep.subr.mxu0 0.0
  %6112 = vmatpush1.msra.mxu0 0.0
  %6113 = vmatprep.subr.mxu0 0.0
  %6114 = vmatpush1.msra.mxu0 0.0
  %6115 = vmatprep.subr.mxu0 0.0
  %6116 = vmatpush1.msra.mxu0 0.0
  %6117 = vmatprep.mubr.f32.mxu0 0.0
  %6118 = vmatmul.mubr.f32.gmra.mrb[0].mxu0 %v6051
  %v6119 = vpop.f32.mrb[0].mxu0
  %v6120 = vadd.f32 %v1881, %v6119
  %v6121 = vpop.f32.mrb[0].mxu0
  %6122 = vdwg.mxu0
  %v6124 = vsel %vm1781, %v6120, 0
  %6126 = vmatprep.subr.mxu0 0.0
  %6127 = vmatpush1.msra.mxu0 %v44
  %6128 = vmatprep.subr.mxu0 0.0
  %6129 = vmatpush1.msra.mxu0 %v45
  %6130 = vmatprep.subr.mxu0 0.0
  %6131 = vmatpush1.msra.mxu0 %v46
  %6132 = vmatprep.subr.mxu0 0.0
  %6133 = vmatpush1.msra.mxu0 %v47
  %6134 = vmatprep.subr.mxu0 0.0
  %6135 = vmatpush1.msra.mxu0 0.0
  %6136 = vmatprep.subr.mxu0 0.0
  %6137 = vmatpush1.msra.mxu0 0.0
  %6138 = vmatprep.subr.mxu0 0.0
  %6139 = vmatpush1.msra.mxu0 0.0
  %6140 = vmatprep.subr.mxu0 0.0
  %6141 = vmatpush1.msra.mxu0 0.0
  %6142 = vmatprep.subr.mxu0 0.0
  %6143 = vmatpush1.msra.mxu0 0.0
  %6144 = vmatprep.subr.mxu0 0.0
  %6145 = vmatpush1.msra.mxu0 0.0
  %6146 = vmatprep.subr.mxu0 0.0
  %6147 = vmatpush1.msra.mxu0 0.0
  %6148 = vmatprep.subr.mxu0 0.0
  %6149 = vmatpush1.msra.mxu0 0.0
  %6150 = vmatprep.subr.mxu0 0.0
  %6151 = vmatpush1.msra.mxu0 0.0
  %6152 = vmatprep.subr.mxu0 0.0
  %6153 = vmatpush1.msra.mxu0 0.0
  %6154 = vmatprep.subr.mxu0 0.0
  %6155 = vmatpush1.msra.mxu0 0.0
  %6156 = vmatprep.subr.mxu0 0.0
  %6157 = vmatpush1.msra.mxu0 0.0
  %6158 = vmatprep.subr.mxu0 0.0
  %6159 = vmatpush1.msra.mxu0 0.0
  %6160 = vmatprep.subr.mxu0 0.0
  %6161 = vmatpush1.msra.mxu0 0.0
  %6162 = vmatprep.subr.mxu0 0.0
  %6163 = vmatpush1.msra.mxu0 0.0
  %6164 = vmatprep.subr.mxu0 0.0
  %6165 = vmatpush1.msra.mxu0 0.0
  %6166 = vmatprep.subr.mxu0 0.0
  %6167 = vmatpush1.msra.mxu0 0.0
  %6168 = vmatprep.subr.mxu0 0.0
  %6169 = vmatpush1.msra.mxu0 0.0
  %6170 = vmatprep.subr.mxu0 0.0
  %6171 = vmatpush1.msra.mxu0 0.0
  %6172 = vmatprep.subr.mxu0 0.0
  %6173 = vmatpush1.msra.mxu0 0.0
  %6174 = vmatprep.subr.mxu0 0.0
  %6175 = vmatpush1.msra.mxu0 0.0
  %6176 = vmatprep.subr.mxu0 0.0
  %6177 = vmatpush1.msra.mxu0 0.0
  %6178 = vmatprep.subr.mxu0 0.0
  %6179 = vmatpush1.msra.mxu0 0.0
  %6180 = vmatprep.subr.mxu0 0.0
  %6181 = vmatpush1.msra.mxu0 0.0
  %6182 = vmatprep.subr.mxu0 0.0
  %6183 = vmatpush1.msra.mxu0 0.0
  %6184 = vmatprep.subr.mxu0 0.0
  %6185 = vmatpush1.msra.mxu0 0.0
  %6186 = vmatprep.subr.mxu0 0.0
  %6187 = vmatpush1.msra.mxu0 0.0
  %6188 = vmatprep.subr.mxu0 0.0
  %6189 = vmatpush1.msra.mxu0 0.0
  %6190 = vmatprep.mubr.f32.mxu0 0.0
  %6191 = vmatmul.mubr.f32.gmra.mrb[0].mxu0 %v6124
  %v6192 = vpop.f32.mrb[0].mxu0
  %v6193 = vadd.f32 %v1960, %v6192
  %v6194 = vpop.f32.mrb[0].mxu0
  %6195 = vdwg.mxu0
  %6196 = vmatprep.subr.mxu0 0.0
  %6197 = vmatpush1.msra.mxu0 %v48
  %6198 = vmatprep.subr.mxu0 0.0
  %6199 = vmatpush1.msra.mxu0 %v49
  %6200 = vmatprep.subr.mxu0 0.0
  %6201 = vmatpush1.msra.mxu0 %v50
  %6202 = vmatprep.subr.mxu0 0.0
  %6203 = vmatpush1.msra.mxu0 %v51
  %6204 = vmatprep.subr.mxu0 0.0
  %6205 = vmatpush1.msra.mxu0 0.0
  %6206 = vmatprep.subr.mxu0 0.0
  %6207 = vmatpush1.msra.mxu0 0.0
  %6208 = vmatprep.subr.mxu0 0.0
  %6209 = vmatpush1.msra.mxu0 0.0
  %6210 = vmatprep.subr.mxu0 0.0
  %6211 = vmatpush1.msra.mxu0 0.0
  %6212 = vmatprep.subr.mxu0 0.0
  %6213 = vmatpush1.msra.mxu0 0.0
  %6214 = vmatprep.subr.mxu0 0.0
  %6215 = vmatpush1.msra.mxu0 0.0
  %6216 = vmatprep.subr.mxu0 0.0
  %6217 = vmatpush1.msra.mxu0 0.0
  %6218 = vmatprep.subr.mxu0 0.0
  %6219 = vmatpush1.msra.mxu0 0.0
  %6220 = vmatprep.subr.mxu0 0.0
  %6221 = vmatpush1.msra.mxu0 0.0
  %6222 = vmatprep.subr.mxu0 0.0
  %6223 = vmatpush1.msra.mxu0 0.0
  %6224 = vmatprep.subr.mxu0 0.0
  %6225 = vmatpush1.msra.mxu0 0.0
  %6226 = vmatprep.subr.mxu0 0.0
  %6227 = vmatpush1.msra.mxu0 0.0
  %6228 = vmatprep.subr.mxu0 0.0
  %6229 = vmatpush1.msra.mxu0 0.0
  %6230 = vmatprep.subr.mxu0 0.0
  %6231 = vmatpush1.msra.mxu0 0.0
  %6232 = vmatprep.subr.mxu0 0.0
  %6233 = vmatpush1.msra.mxu0 0.0
  %6234 = vmatprep.subr.mxu0 0.0
  %6235 = vmatpush1.msra.mxu0 0.0
  %6236 = vmatprep.subr.mxu0 0.0
  %6237 = vmatpush1.msra.mxu0 0.0
  %6238 = vmatprep.subr.mxu0 0.0
  %6239 = vmatpush1.msra.mxu0 0.0
  %6240 = vmatprep.subr.mxu0 0.0
  %6241 = vmatpush1.msra.mxu0 0.0
  %6242 = vmatprep.subr.mxu0 0.0
  %6243 = vmatpush1.msra.mxu0 0.0
  %6244 = vmatprep.subr.mxu0 0.0
  %6245 = vmatpush1.msra.mxu0 0.0
  %6246 = vmatprep.subr.mxu0 0.0
  %6247 = vmatpush1.msra.mxu0 0.0
  %6248 = vmatprep.subr.mxu0 0.0
  %6249 = vmatpush1.msra.mxu0 0.0
  %6250 = vmatprep.subr.mxu0 0.0
  %6251 = vmatpush1.msra.mxu0 0.0
  %6252 = vmatprep.subr.mxu0 0.0
  %6253 = vmatpush1.msra.mxu0 0.0
  %6254 = vmatprep.subr.mxu0 0.0
  %6255 = vmatpush1.msra.mxu0 0.0
  %6256 = vmatprep.subr.mxu0 0.0
  %6257 = vmatpush1.msra.mxu0 0.0
  %6258 = vmatprep.subr.mxu0 0.0
  %6259 = vmatpush1.msra.mxu0 0.0
  %6260 = vmatprep.mubr.f32.mxu0 0.0
  %6261 = vmatmul.mubr.f32.gmra.mrb[0].mxu0 %v5803
  %v6262 = vpop.f32.mrb[0].mxu0
  %v6263 = vadd.f32 0.0, %v6262
  %v6264 = vpop.f32.mrb[0].mxu0
  %6265 = vdwg.mxu0
  %v6266 = vadd.f32 %v5704, %v6263
  %v6267 = vmul.f32 %v6266, 0.5
  %v6268 = vtanh.pop %v6267
  %v6269 = vmul.f32 %v6268, 0.5
  %v6270 = vadd.f32 %v6269, 0.5
  %v6271 = vtanh.pop %v6266
  %v6272 = vmul.f32 %v6270, %v5793
  %6274 = vrot.lane.b32.xlu0 %v6271, 64
  %v6275 = vpop.permute.xlu0 %6274
  %v6277 = vmul.f32 %v6270, %v6275
  %6279 = vrot.lane.b32.xlu0 %v6277, 32
  %v6280 = vpop.permute.xlu0 %6279
  %v6282 = vadd.f32 %v6272, %v6280
  %v6283 = vtanh.pop %v6282
  %6285 = vrot.lane.b32.xlu0 %v6283, 64
  %v6286 = vpop.permute.xlu0 %6285
  %v6288 = vmul.f32 %v6270, %v6286
  %6290 = vrot.lane.b32.xlu0 %v6288, 32
  %v6291 = vpop.permute.xlu0 %6290
  %v6292 = vsel %vm1781, %v6291, 0
  %6294 = vmatprep.subr.mxu0 0.0
  %6295 = vmatpush1.msra.mxu0 %v53
  %6296 = vmatprep.subr.mxu0 0.0
  %6297 = vmatpush1.msra.mxu0 %v54
  %6298 = vmatprep.subr.mxu0 0.0
  %6299 = vmatpush1.msra.mxu0 %v55
  %6300 = vmatprep.subr.mxu0 0.0
  %6301 = vmatpush1.msra.mxu0 %v56
  %6302 = vmatprep.subr.mxu0 0.0
  %6303 = vmatpush1.msra.mxu0 0.0
  %6304 = vmatprep.subr.mxu0 0.0
  %6305 = vmatpush1.msra.mxu0 0.0
  %6306 = vmatprep.subr.mxu0 0.0
  %6307 = vmatpush1.msra.mxu0 0.0
  %6308 = vmatprep.subr.mxu0 0.0
  %6309 = vmatpush1.msra.mxu0 0.0
  %6310 = vmatprep.subr.mxu0 0.0
  %6311 = vmatpush1.msra.mxu0 0.0
  %6312 = vmatprep.subr.mxu0 0.0
  %6313 = vmatpush1.msra.mxu0 0.0
  %6314 = vmatprep.subr.mxu0 0.0
  %6315 = vmatpush1.msra.mxu0 0.0
  %6316 = vmatprep.subr.mxu0 0.0
  %6317 = vmatpush1.msra.mxu0 0.0
  %6318 = vmatprep.subr.mxu0 0.0
  %6319 = vmatpush1.msra.mxu0 0.0
  %6320 = vmatprep.subr.mxu0 0.0
  %6321 = vmatpush1.msra.mxu0 0.0
  %6322 = vmatprep.subr.mxu0 0.0
  %6323 = vmatpush1.msra.mxu0 0.0
  %6324 = vmatprep.subr.mxu0 0.0
  %6325 = vmatpush1.msra.mxu0 0.0
  %6326 = vmatprep.subr.mxu0 0.0
  %6327 = vmatpush1.msra.mxu0 0.0
  %6328 = vmatprep.subr.mxu0 0.0
  %6329 = vmatpush1.msra.mxu0 0.0
  %6330 = vmatprep.subr.mxu0 0.0
  %6331 = vmatpush1.msra.mxu0 0.0
  %6332 = vmatprep.subr.mxu0 0.0
  %6333 = vmatpush1.msra.mxu0 0.0
  %6334 = vmatprep.subr.mxu0 0.0
  %6335 = vmatpush1.msra.mxu0 0.0
  %6336 = vmatprep.subr.mxu0 0.0
  %6337 = vmatpush1.msra.mxu0 0.0
  %6338 = vmatprep.subr.mxu0 0.0
  %6339 = vmatpush1.msra.mxu0 0.0
  %6340 = vmatprep.subr.mxu0 0.0
  %6341 = vmatpush1.msra.mxu0 0.0
  %6342 = vmatprep.subr.mxu0 0.0
  %6343 = vmatpush1.msra.mxu0 0.0
  %6344 = vmatprep.subr.mxu0 0.0
  %6345 = vmatpush1.msra.mxu0 0.0
  %6346 = vmatprep.subr.mxu0 0.0
  %6347 = vmatpush1.msra.mxu0 0.0
  %6348 = vmatprep.subr.mxu0 0.0
  %6349 = vmatpush1.msra.mxu0 0.0
  %6350 = vmatprep.subr.mxu0 0.0
  %6351 = vmatpush1.msra.mxu0 0.0
  %6352 = vmatprep.subr.mxu0 0.0
  %6353 = vmatpush1.msra.mxu0 0.0
  %6354 = vmatprep.subr.mxu0 0.0
  %6355 = vmatpush1.msra.mxu0 0.0
  %6356 = vmatprep.subr.mxu0 0.0
  %6357 = vmatpush1.msra.mxu0 0.0
  %6358 = vmatprep.mubr.f32.mxu0 0.0
  %6359 = vmatmul.mubr.f32.gmra.mrb[0].mxu0 %v6292
  %v6360 = vpop.f32.mrb[0].mxu0
  %v6361 = vadd.f32 %v2371, %v6360
  %v6362 = vpop.f32.mrb[0].mxu0
  %6363 = vdwg.mxu0
  %v6365 = vsel %vm2451, %v6361, 0
  %6367 = vmatprep.subr.mxu0 0.0
  %6368 = vmatpush1.msra.mxu0 %v58
  %6369 = vmatprep.subr.mxu0 0.0
  %6370 = vmatpush1.msra.mxu0 %v59
  %6371 = vmatprep.subr.mxu0 0.0
  %6372 = vmatpush1.msra.mxu0 %v60
  %6373 = vmatprep.subr.mxu0 0.0
  %6374 = vmatpush1.msra.mxu0 %v61
  %6375 = vmatprep.subr.mxu0 0.0
  %6376 = vmatpush1.msra.mxu0 %v62
  %6377 = vmatprep.subr.mxu0 0.0
  %6378 = vmatpush1.msra.mxu0 %v63
  %6379 = vmatprep.subr.mxu0 0.0
  %6380 = vmatpush1.msra.mxu0 %v64
  %6381 = vmatprep.subr.mxu0 0.0
  %6382 = vmatpush1.msra.mxu0 %v65
  %6383 = vmatprep.subr.mxu0 0.0
  %6384 = vmatpush1.msra.mxu0 0.0
  %6385 = vmatprep.subr.mxu0 0.0
  %6386 = vmatpush1.msra.mxu0 0.0
  %6387 = vmatprep.subr.mxu0 0.0
  %6388 = vmatpush1.msra.mxu0 0.0
  %6389 = vmatprep.subr.mxu0 0.0
  %6390 = vmatpush1.msra.mxu0 0.0
  %6391 = vmatprep.subr.mxu0 0.0
  %6392 = vmatpush1.msra.mxu0 0.0
  %6393 = vmatprep.subr.mxu0 0.0
  %6394 = vmatpush1.msra.mxu0 0.0
  %6395 = vmatprep.subr.mxu0 0.0
  %6396 = vmatpush1.msra.mxu0 0.0
  %6397 = vmatprep.subr.mxu0 0.0
  %6398 = vmatpush1.msra.mxu0 0.0
  %6399 = vmatprep.subr.mxu0 0.0
  %6400 = vmatpush1.msra.mxu0 0.0
  %6401 = vmatprep.subr.mxu0 0.0
  %6402 = vmatpush1.msra.mxu0 0.0
  %6403 = vmatprep.subr.mxu0 0.0
  %6404 = vmatpush1.msra.mxu0 0.0
  %6405 = vmatprep.subr.mxu0 0.0
  %6406 = vmatpush1.msra.mxu0 0.0
  %6407 = vmatprep.subr.mxu0 0.0
  %6408 = vmatpush1.msra.mxu0 0.0
  %6409 = vmatprep.subr.mxu0 0.0
  %6410 = vmatpush1.msra.mxu0 0.0
  %6411 = vmatprep.subr.mxu0 0.0
  %6412 = vmatpush1.msra.mxu0 0.0
  %6413 = vmatprep.subr.mxu0 0.0
  %6414 = vmatpush1.msra.mxu0 0.0
  %6415 = vmatprep.subr.mxu0 0.0
  %6416 = vmatpush1.msra.mxu0 0.0
  %6417 = vmatprep.subr.mxu0 0.0
  %6418 = vmatpush1.msra.mxu0 0.0
  %6419 = vmatprep.subr.mxu0 0.0
  %6420 = vmatpush1.msra.mxu0 0.0
  %6421 = vmatprep.subr.mxu0 0.0
  %6422 = vmatpush1.msra.mxu0 0.0
  %6423 = vmatprep.subr.mxu0 0.0
  %6424 = vmatpush1.msra.mxu0 0.0
  %6425 = vmatprep.subr.mxu0 0.0
  %6426 = vmatpush1.msra.mxu0 0.0
  %6427 = vmatprep.subr.mxu0 0.0
  %6428 = vmatpush1.msra.mxu0 0.0
  %6429 = vmatprep.subr.mxu0 0.0
  %6430 = vmatpush1.msra.mxu0 0.0
  %6431 = vmatprep.mubr.f32.mxu0 0.0
  %6432 = vmatmul.mubr.f32.gmra.mrb[0].mxu0 %v6365
  %v6433 = vpop.f32.mrb[0].mxu0
  %v6434 = vadd.f32 %v2450, %v6433
  %v6435 = vpop.f32.mrb[0].mxu0
  %6436 = vdwg.mxu0
  %vm6437 = vcmp.eq.s32.totalorder %v1780, 8
  %6439 = vset.pattern.permute.xlu0 0
  %6440 = vperm.xlu0 %6439, %v6434
  %v6441 = vpop.permute.xlu0 %6440
  %v6443 = vsel %vm6437, %v6441, %v5954
  %6444 = vmatprep.subr.mxu0 0.0
  %6445 = vmatpush1.msra.mxu0 %v48
  %6446 = vmatprep.subr.mxu0 0.0
  %6447 = vmatpush1.msra.mxu0 %v49
  %6448 = vmatprep.subr.mxu0 0.0
  %6449 = vmatpush1.msra.mxu0 %v50
  %6450 = vmatprep.subr.mxu0 0.0
  %6451 = vmatpush1.msra.mxu0 %v51
  %6452 = vmatprep.subr.mxu0 0.0
  %6453 = vmatpush1.msra.mxu0 0.0
  %6454 = vmatprep.subr.mxu0 0.0
  %6455 = vmatpush1.msra.mxu0 0.0
  %6456 = vmatprep.subr.mxu0 0.0
  %6457 = vmatpush1.msra.mxu0 0.0
  %6458 = vmatprep.subr.mxu0 0.0
  %6459 = vmatpush1.msra.mxu0 0.0
  %6460 = vmatprep.subr.mxu0 0.0
  %6461 = vmatpush1.msra.mxu0 0.0
  %6462 = vmatprep.subr.mxu0 0.0
  %6463 = vmatpush1.msra.mxu0 0.0
  %6464 = vmatprep.subr.mxu0 0.0
  %6465 = vmatpush1.msra.mxu0 0.0
  %6466 = vmatprep.subr.mxu0 0.0
  %6467 = vmatpush1.msra.mxu0 0.0
  %6468 = vmatprep.subr.mxu0 0.0
  %6469 = vmatpush1.msra.mxu0 0.0
  %6470 = vmatprep.subr.mxu0 0.0
  %6471 = vmatpush1.msra.mxu0 0.0
  %6472 = vmatprep.subr.mxu0 0.0
  %6473 = vmatpush1.msra.mxu0 0.0
  %6474 = vmatprep.subr.mxu0 0.0
  %6475 = vmatpush1.msra.mxu0 0.0
  %6476 = vmatprep.subr.mxu0 0.0
  %6477 = vmatpush1.msra.mxu0 0.0
  %6478 = vmatprep.subr.mxu0 0.0
  %6479 = vmatpush1.msra.mxu0 0.0
  %6480 = vmatprep.subr.mxu0 0.0
  %6481 = vmatpush1.msra.mxu0 0.0
  %6482 = vmatprep.subr.mxu0 0.0
  %6483 = vmatpush1.msra.mxu0 0.0
  %6484 = vmatprep.subr.mxu0 0.0
  %6485 = vmatpush1.msra.mxu0 0.0
  %6486 = vmatprep.subr.mxu0 0.0
  %6487 = vmatpush1.msra.mxu0 0.0
  %6488 = vmatprep.subr.mxu0 0.0
  %6489 = vmatpush1.msra.mxu0 0.0
  %6490 = vmatprep.subr.mxu0 0.0
  %6491 = vmatpush1.msra.mxu0 0.0
  %6492 = vmatprep.subr.mxu0 0.0
  %6493 = vmatpush1.msra.mxu0 0.0
  %6494 = vmatprep.subr.mxu0 0.0
  %6495 = vmatpush1.msra.mxu0 0.0
  %6496 = vmatprep.subr.mxu0 0.0
  %6497 = vmatpush1.msra.mxu0 0.0
  %6498 = vmatprep.subr.mxu0 0.0
  %6499 = vmatpush1.msra.mxu0 0.0
  %6500 = vmatprep.subr.mxu0 0.0
  %6501 = vmatpush1.msra.mxu0 0.0
  %6502 = vmatprep.subr.mxu0 0.0
  %6503 = vmatpush1.msra.mxu0 0.0
  %6504 = vmatprep.subr.mxu0 0.0
  %6505 = vmatpush1.msra.mxu0 0.0
  %6506 = vmatprep.subr.mxu0 0.0
  %6507 = vmatpush1.msra.mxu0 0.0
  %6508 = vmatprep.mubr.f32.mxu0 0.0
  %6509 = vmatmul.mubr.f32.gmra.mrb[0].mxu0 %v6292
  %v6510 = vpop.f32.mrb[0].mxu0
  %v6511 = vadd.f32 0.0, %v6510
  %v6512 = vpop.f32.mrb[0].mxu0
  %6513 = vdwg.mxu0
  %v6514 = vadd.f32 %v6193, %v6511
  %v6515 = vmul.f32 %v6514, 0.5
  %v6516 = vtanh.pop %v6515
  %v6517 = vmul.f32 %v6516, 0.5
  %v6518 = vadd.f32 %v6517, 0.5
  %v6519 = vtanh.pop %v6514
  %v6520 = vmul.f32 %v6518, %v6282
  %6522 = vrot.lane.b32.xlu0 %v6519, 64
  %v6523 = vpop.permute.xlu0 %6522
  %v6525 = vmul.f32 %v6518, %v6523
  %6527 = vrot.lane.b32.xlu0 %v6525, 32
  %v6528 = vpop.permute.xlu0 %6527
  %v6530 = vadd.f32 %v6520, %v6528
  %v6531 = vtanh.pop %v6530
  %6533 = vrot.lane.b32.xlu0 %v6531, 64
  %v6534 = vpop.permute.xlu0 %6533
  %v6536 = vmul.f32 %v6518, %v6534
  %6538 = vrot.lane.b32.xlu0 %v6536, 32
  %v6539 = vpop.permute.xlu0 %6538
  %v6540 = vsel %vm1781, %v6539, 0
  %6542 = vmatprep.subr.mxu0 0.0
  %6543 = vmatpush1.msra.mxu0 %v53
  %6544 = vmatprep.subr.mxu0 0.0
  %6545 = vmatpush1.msra.mxu0 %v54
  %6546 = vmatprep.subr.mxu0 0.0
  %6547 = vmatpush1.msra.mxu0 %v55
  %6548 = vmatprep.subr.mxu0 0.0
  %6549 = vmatpush1.msra.mxu0 %v56
  %6550 = vmatprep.subr.mxu0 0.0
  %6551 = vmatpush1.msra.mxu0 0.0
  %6552 = vmatprep.subr.mxu0 0.0
  %6553 = vmatpush1.msra.mxu0 0.0
  %6554 = vmatprep.subr.mxu0 0.0
  %6555 = vmatpush1.msra.mxu0 0.0
  %6556 = vmatprep.subr.mxu0 0.0
  %6557 = vmatpush1.msra.mxu0 0.0
  %6558 = vmatprep.subr.mxu0 0.0
  %6559 = vmatpush1.msra.mxu0 0.0
  %6560 = vmatprep.subr.mxu0 0.0
  %6561 = vmatpush1.msra.mxu0 0.0
  %6562 = vmatprep.subr.mxu0 0.0
  %6563 = vmatpush1.msra.mxu0 0.0
  %6564 = vmatprep.subr.mxu0 0.0
  %6565 = vmatpush1.msra.mxu0 0.0
  %6566 = vmatprep.subr.mxu0 0.0
  %6567 = vmatpush1.msra.mxu0 0.0
  %6568 = vmatprep.subr.mxu0 0.0
  %6569 = vmatpush1.msra.mxu0 0.0
  %6570 = vmatprep.subr.mxu0 0.0
  %6571 = vmatpush1.msra.mxu0 0.0
  %6572 = vmatprep.subr.mxu0 0.0
  %6573 = vmatpush1.msra.mxu0 0.0
  %6574 = vmatprep.subr.mxu0 0.0
  %6575 = vmatpush1.msra.mxu0 0.0
  %6576 = vmatprep.subr.mxu0 0.0
  %6577 = vmatpush1.msra.mxu0 0.0
  %6578 = vmatprep.subr.mxu0 0.0
  %6579 = vmatpush1.msra.mxu0 0.0
  %6580 = vmatprep.subr.mxu0 0.0
  %6581 = vmatpush1.msra.mxu0 0.0
  %6582 = vmatprep.subr.mxu0 0.0
  %6583 = vmatpush1.msra.mxu0 0.0
  %6584 = vmatprep.subr.mxu0 0.0
  %6585 = vmatpush1.msra.mxu0 0.0
  %6586 = vmatprep.subr.mxu0 0.0
  %6587 = vmatpush1.msra.mxu0 0.0
  %6588 = vmatprep.subr.mxu0 0.0
  %6589 = vmatpush1.msra.mxu0 0.0
  %6590 = vmatprep.subr.mxu0 0.0
  %6591 = vmatpush1.msra.mxu0 0.0
  %6592 = vmatprep.subr.mxu0 0.0
  %6593 = vmatpush1.msra.mxu0 0.0
  %6594 = vmatprep.subr.mxu0 0.0
  %6595 = vmatpush1.msra.mxu0 0.0
  %6596 = vmatprep.subr.mxu0 0.0
  %6597 = vmatpush1.msra.mxu0 0.0
  %6598 = vmatprep.subr.mxu0 0.0
  %6599 = vmatpush1.msra.mxu0 0.0
  %6600 = vmatprep.subr.mxu0 0.0
  %6601 = vmatpush1.msra.mxu0 0.0
  %6602 = vmatprep.subr.mxu0 0.0
  %6603 = vmatpush1.msra.mxu0 0.0
  %6604 = vmatprep.subr.mxu0 0.0
  %6605 = vmatpush1.msra.mxu0 0.0
  %6606 = vmatprep.mubr.f32.mxu0 0.0
  %6607 = vmatmul.mubr.f32.gmra.mrb[0].mxu0 %v6540
  %v6608 = vpop.f32.mrb[0].mxu0
  %v6609 = vadd.f32 %v2371, %v6608
  %v6610 = vpop.f32.mrb[0].mxu0
  %6611 = vdwg.mxu0
  %v6613 = vsel %vm2451, %v6609, 0
  %6615 = vmatprep.subr.mxu0 0.0
  %6616 = vmatpush1.msra.mxu0 %v58
  %6617 = vmatprep.subr.mxu0 0.0
  %6618 = vmatpush1.msra.mxu0 %v59
  %6619 = vmatprep.subr.mxu0 0.0
  %6620 = vmatpush1.msra.mxu0 %v60
  %6621 = vmatprep.subr.mxu0 0.0
  %6622 = vmatpush1.msra.mxu0 %v61
  %6623 = vmatprep.subr.mxu0 0.0
  %6624 = vmatpush1.msra.mxu0 %v62
  %6625 = vmatprep.subr.mxu0 0.0
  %6626 = vmatpush1.msra.mxu0 %v63
  %6627 = vmatprep.subr.mxu0 0.0
  %6628 = vmatpush1.msra.mxu0 %v64
  %6629 = vmatprep.subr.mxu0 0.0
  %6630 = vmatpush1.msra.mxu0 %v65
  %6631 = vmatprep.subr.mxu0 0.0
  %6632 = vmatpush1.msra.mxu0 0.0
  %6633 = vmatprep.subr.mxu0 0.0
  %6634 = vmatpush1.msra.mxu0 0.0
  %6635 = vmatprep.subr.mxu0 0.0
  %6636 = vmatpush1.msra.mxu0 0.0
  %6637 = vmatprep.subr.mxu0 0.0
  %6638 = vmatpush1.msra.mxu0 0.0
  %6639 = vmatprep.subr.mxu0 0.0
  %6640 = vmatpush1.msra.mxu0 0.0
  %6641 = vmatprep.subr.mxu0 0.0
  %6642 = vmatpush1.msra.mxu0 0.0
  %6643 = vmatprep.subr.mxu0 0.0
  %6644 = vmatpush1.msra.mxu0 0.0
  %6645 = vmatprep.subr.mxu0 0.0
  %6646 = vmatpush1.msra.mxu0 0.0
  %6647 = vmatprep.subr.mxu0 0.0
  %6648 = vmatpush1.msra.mxu0 0.0
  %6649 = vmatprep.subr.mxu0 0.0
  %6650 = vmatpush1.msra.mxu0 0.0
  %6651 = vmatprep.subr.mxu0 0.0
  %6652 = vmatpush1.msra.mxu0 0.0
  %6653 = vmatprep.subr.mxu0 0.0
  %6654 = vmatpush1.msra.mxu0 0.0
  %6655 = vmatprep.subr.mxu0 0.0
  %6656 = vmatpush1.msra.mxu0 0.0
  %6657 = vmatprep.subr.mxu0 0.0
  %6658 = vmatpush1.msra.mxu0 0.0
  %6659 = vmatprep.subr.mxu0 0.0
  %6660 = vmatpush1.msra.mxu0 0.0
  %6661 = vmatprep.subr.mxu0 0.0
  %6662 = vmatpush1.msra.mxu0 0.0
  %6663 = vmatprep.subr.mxu0 0.0
  %6664 = vmatpush1.msra.mxu0 0.0
  %6665 = vmatprep.subr.mxu0 0.0
  %6666 = vmatpush1.msra.mxu0 0.0
  %6667 = vmatprep.subr.mxu0 0.0
  %6668 = vmatpush1.msra.mxu0 0.0
  %6669 = vmatprep.subr.mxu0 0.0
  %6670 = vmatpush1.msra.mxu0 0.0
  %6671 = vmatprep.subr.mxu0 0.0
  %6672 = vmatpush1.msra.mxu0 0.0
  %6673 = vmatprep.subr.mxu0 0.0
  %6674 = vmatpush1.msra.mxu0 0.0
  %6675 = vmatprep.subr.mxu0 0.0
  %6676 = vmatpush1.msra.mxu0 0.0
  %6677 = vmatprep.subr.mxu0 0.0
  %6678 = vmatpush1.msra.mxu0 0.0
  %6679 = vmatprep.mubr.f32.mxu0 0.0
  %6680 = vmatmul.mubr.f32.gmra.mrb[0].mxu0 %v6613
  %v6681 = vpop.f32.mrb[0].mxu0
  %v6682 = vadd.f32 %v2450, %v6681
  %v6683 = vpop.f32.mrb[0].mxu0
  %6684 = vdwg.mxu0
  %vm6685 = vcmp.eq.s32.totalorder %v1780, 9
  %6687 = vset.pattern.permute.xlu0 0
  %6688 = vperm.xlu0 %6687, %v6682
  %v6689 = vpop.permute.xlu0 %6688
  %v6691 = vsel %vm6685, %v6689, %v6443
  %v6692 = vlaneseq
  %v6693 = vshrl.u32 %v6692, 7
  %v6694 = vsub.s32 0, %v6693
  %v6695 = vrot.slane %v69, %v6694
  %vm6696 = vcmask 80896
  %v6698 = vsel %vm6696, %v6691, 0
  %vm6700 = vcmask 1041408
  %v6702 = vsel %vm6700, %v68, 0
  %6704 = vmatprep.subr.mxu0 0.0
  %6705 = vmatpush1.msra.mxu0 %v67
  %6706 = vmatprep.subr.mxu0 0.0
  %6707 = vmatpush1.msra.mxu0 %v6702
  %6708 = vmatprep.subr.mxu0 0.0
  %6709 = vmatpush1.msra.mxu0 0.0
  %6710 = vmatprep.subr.mxu0 0.0
  %6711 = vmatpush1.msra.mxu0 0.0
  %6712 = vmatprep.subr.mxu0 0.0
  %6713 = vmatpush1.msra.mxu0 0.0
  %6714 = vmatprep.subr.mxu0 0.0
  %6715 = vmatpush1.msra.mxu0 0.0
  %6716 = vmatprep.subr.mxu0 0.0
  %6717 = vmatpush1.msra.mxu0 0.0
  %6718 = vmatprep.subr.mxu0 0.0
  %6719 = vmatpush1.msra.mxu0 0.0
  %6720 = vmatprep.subr.mxu0 0.0
  %6721 = vmatpush1.msra.mxu0 0.0
  %6722 = vmatprep.subr.mxu0 0.0
  %6723 = vmatpush1.msra.mxu0 0.0
  %6724 = vmatprep.subr.mxu0 0.0
  %6725 = vmatpush1.msra.mxu0 0.0
  %6726 = vmatprep.subr.mxu0 0.0
  %6727 = vmatpush1.msra.mxu0 0.0
  %6728 = vmatprep.subr.mxu0 0.0
  %6729 = vmatpush1.msra.mxu0 0.0
  %6730 = vmatprep.subr.mxu0 0.0
  %6731 = vmatpush1.msra.mxu0 0.0
  %6732 = vmatprep.subr.mxu0 0.0
  %6733 = vmatpush1.msra.mxu0 0.0
  %6734 = vmatprep.subr.mxu0 0.0
  %6735 = vmatpush1.msra.mxu0 0.0
  %6736 = vmatprep.subr.mxu0 0.0
  %6737 = vmatpush1.msra.mxu0 0.0
  %6738 = vmatprep.subr.mxu0 0.0
  %6739 = vmatpush1.msra.mxu0 0.0
  %6740 = vmatprep.subr.mxu0 0.0
  %6741 = vmatpush1.msra.mxu0 0.0
  %6742 = vmatprep.subr.mxu0 0.0
  %6743 = vmatpush1.msra.mxu0 0.0
  %6744 = vmatprep.subr.mxu0 0.0
  %6745 = vmatpush1.msra.mxu0 0.0
  %6746 = vmatprep.subr.mxu0 0.0
  %6747 = vmatpush1.msra.mxu0 0.0
  %6748 = vmatprep.subr.mxu0 0.0
  %6749 = vmatpush1.msra.mxu0 0.0
  %6750 = vmatprep.subr.mxu0 0.0
  %6751 = vmatpush1.msra.mxu0 0.0
  %6752 = vmatprep.subr.mxu0 0.0
  %6753 = vmatpush1.msra.mxu0 0.0
  %6754 = vmatprep.subr.mxu0 0.0
  %6755 = vmatpush1.msra.mxu0 0.0
  %6756 = vmatprep.subr.mxu0 0.0
  %6757 = vmatpush1.msra.mxu0 0.0
  %6758 = vmatprep.subr.mxu0 0.0
  %6759 = vmatpush1.msra.mxu0 0.0
  %6760 = vmatprep.subr.mxu0 0.0
  %6761 = vmatpush1.msra.mxu0 0.0
  %6762 = vmatprep.subr.mxu0 0.0
  %6763 = vmatpush1.msra.mxu0 0.0
  %6764 = vmatprep.subr.mxu0 0.0
  %6765 = vmatpush1.msra.mxu0 0.0
  %6766 = vmatprep.subr.mxu0 0.0
  %6767 = vmatpush1.msra.mxu0 0.0
  %6768 = vmatprep.mubr.f32.mxu0 0.0
  %6769 = vmatmul.mubr.f32.gmra.mrb[0].mxu0 %v6698
  %v6770 = vpop.f32.mrb[0].mxu0
  %v6771 = vadd.f32 %v6695, %v6770
  %v6772 = vpop.f32.mrb[0].mxu0
  %6773 = vdwg.mxu0
  %vm6774 = vcmp.eq.s32.totalorder %v1780, 10
  %6776 = vset.pattern.permute.xlu0 0
  %6777 = vperm.xlu0 %6776, %v6771
  %v6778 = vpop.permute.xlu0 %6777
  %v6780 = vsel %vm6774, %v6778, %v6691
  %6781 = vst [vmem:[%s4] sm:$0xff] %v6780
  // Predicated region
  $region18: #{_lambda_.1} parent=0 // pred_check
    _
  $region19: #{_lambda_.1} parent=0 // pred_check_branch
    %6783 = sbr.rel (0) target = $region21
  $region20: #{_lambda_.1} parent=0 // pred_region
    _
  $region21: #{_lambda_.1} parent=0 // pred_fallthru
    _
  // Predicated region
  $region22: #{_lambda_.1} parent=0 // pred_check
    _
  $region23: #{_lambda_.1} parent=0 // pred_check_branch
    %6785 = sbr.rel (0) target = $region25
  $region24: #{_lambda_.1} parent=0 // pred_region
    _
  $region25: #{_lambda_.1} parent=0 // pred_fallthru
    _

</llo_original>
